<compile_context>
chip_gen: v7x
topology: tpu7x:2x2x1
jax: 0.10.0
libtpu: 0.0.40
codegen_flags: <defaults>
</compile_context>

<pallas_src>
import functools

import jax
import jax.numpy as jnp
from jax import lax
from jax.experimental import pallas as pl
from jax.experimental.pallas import tpu as pltpu

LANE = 128  # lane-dense channel padding


def _round_up(x, m):
    return (x + m - 1) // m * m


# --------------------------- Pallas kernels ---------------------------------

def _conv_pool_relu_kernel(p_ref, w_ref, b_ref, o_ref, *, block_rows):
    """Fused im2col-GEMM + bias + 2x2 max-pool + ReLU.

    p_ref : (4*block_rows, Kp) patch rows, 4 pool-offset blocks, rows (img, pos)
    w_ref : (Kp, 128)          conv weights as a GEMM matrix (resident)
    b_ref : (1, 128)           bias
    o_ref : (block_rows, 128)  pooled + relu output rows (compute dtype)
    """
    w = w_ref[...]
    acc = jnp.dot(p_ref[0:block_rows, :], w, preferred_element_type=jnp.float32)
    for j in range(1, 4):  # max-accumulate the other three pool offsets
        acc = jnp.maximum(
            acc,
            jnp.dot(p_ref[j * block_rows:(j + 1) * block_rows, :], w,
                    preferred_element_type=jnp.float32))
    o_ref[...] = jnp.maximum(acc + b_ref[...], 0.0).astype(o_ref.dtype)


def _conv_pool_relu_fc_kernel(p_ref, w_ref, b_ref, mask_ref, wfc_ref, bfc_ref,
                              o_ref, *, tb, m):
    """conv3 GEMM + 2x2 max-pool + ReLU + Dropout2d mask + fused fc.

    p_ref   : (4*m*tb, Kp)   patch rows ordered (pool offset, spatial r, image)
    w_ref   : (Kp, 128)      conv3 weights (resident)
    b_ref   : (1, 128)       conv3 bias
    mask_ref: (tb, 128)      per-(image, channel) Dropout2d scale (1.0 in eval)
    wfc_ref : (m*128, Np)    fc weights, row block r holds the 128-channel slab
    bfc_ref : (1, Np)        fc bias
    o_ref   : (tb, Np)       logits (f32)
    """
    w = w_ref[...]
    blk = m * tb
    acc = jnp.dot(p_ref[0:blk, :], w, preferred_element_type=jnp.float32)
    for j in range(1, 4):
        acc = jnp.maximum(
            acc,
            jnp.dot(p_ref[j * blk:(j + 1) * blk, :], w,
                    preferred_element_type=jnp.float32))
    feat = jnp.maximum(acc + b_ref[...], 0.0)          # (m*tb, 128), rows (r, b)
    mask = mask_ref[...]                               # (tb, 128)

    logits = jnp.zeros((tb, o_ref.shape[1]), dtype=jnp.float32)
    for r in range(m):                                 # fc over the m=9 positions
        xr = (feat[r * tb:(r + 1) * tb, :] * mask).astype(wfc_ref.dtype)
        logits = logits + jnp.dot(xr, wfc_ref[r * LANE:(r + 1) * LANE, :],
                                  preferred_element_type=jnp.float32)
    o_ref[...] = logits + bfc_ref[...]


# ------------------------------ wrappers -------------------------------------

def _conv_pool_relu_stage(x_nhwc, w_hwio, bias, *, padding, tb, compute_dtype):
    """conv(kxk) -> maxpool(2x2) -> relu for one layer, via the fused kernel."""
    B, H, W, C = x_nhwc.shape
    kh, kw, _, Cout = w_hwio.shape
    assert B % tb == 0
    nb = B // tb
    if padding:
        x_nhwc = jnp.pad(x_nhwc, ((0, 0), (padding, padding),
                                  (padding, padding), (0, 0)))
        H += 2 * padding
        W += 2 * padding
    Ho, Wo = H - kh + 1, W - kw + 1
    assert Ho % 2 == 0 and Wo % 2 == 0
    Hp, Wp = Ho // 2, Wo // 2
    m = Hp * Wp
    K = kh * kw * C
    Kp = _round_up(K, LANE)

    # im2col (wrapper-side data movement), rows pre-ordered into the 4 pool
    # offsets and then blocked by tb images per grid step.
    cols = [x_nhwc[:, dy:dy + Ho, dx:dx + Wo, :]
            for dy in range(kh) for dx in range(kw)]
    patches = jnp.concatenate(cols, axis=-1)                           # (B,Ho,Wo,K)
    patches = patches.reshape(B, Hp, 2, Wp, 2, K)
    patches = patches.transpose(0, 2, 4, 1, 3, 5).reshape(B, 4, m, K)  # (b,j,r,K)
    patches = patches.reshape(nb, tb, 4, m, K).transpose(0, 2, 1, 3, 4)
    patches = patches.reshape(nb * 4 * tb * m, K)                      # rows (j,b,r)
    patches = jnp.pad(patches, ((0, 0), (0, Kp - K))).astype(compute_dtype)

    wmat = jnp.pad(w_hwio.reshape(K, Cout),
                   ((0, Kp - K), (0, LANE - Cout))).astype(compute_dtype)
    bvec = jnp.pad(bias, (0, LANE - Cout)).reshape(1, LANE).astype(jnp.float32)

    rows = tb * m
    itemsize = jnp.dtype(compute_dtype).itemsize
    cost = pl.CostEstimate(
        flops=2 * nb * 4 * rows * Kp * LANE,
        transcendentals=0,
        bytes_accessed=int(patches.size * itemsize + wmat.size * itemsize
                           + nb * rows * LANE * itemsize))

    out = pl.pallas_call(
        functools.partial(_conv_pool_relu_kernel, block_rows=rows),
        out_shape=jax.ShapeDtypeStruct((nb * rows, LANE), compute_dtype),
        grid=(nb,),
        in_specs=[
            pl.BlockSpec((4 * rows, Kp), lambda i: (i, 0)),   # patches (per block)
            pl.BlockSpec((Kp, LANE), lambda i: (0, 0)),       # weights (resident)
            pl.BlockSpec((1, LANE), lambda i: (0, 0)),        # bias (resident)
        ],
        out_specs=pl.BlockSpec((rows, LANE), lambda i: (i, 0)),
        compiler_params=pltpu.CompilerParams(
            dimension_semantics=("parallel",)),
        cost_estimate=cost,
    )(patches, wmat, bvec)

    out = out.reshape(B, m, LANE)[:, :, :Cout]
    return out.reshape(B, Hp, Wp, Cout)


def _conv_pool_relu_fc_stage(x_nhwc, w_hwio, bias, wfc, bfc, mask_bc, *, tb,
                             compute_dtype):
    """conv3('same') -> Dropout2d -> maxpool -> relu -> fc, one fused kernel."""
    B, H, W, C = x_nhwc.shape
    kh, kw, _, Cout = w_hwio.shape
    assert B % tb == 0
    nb = B // tb
    xp = jnp.pad(x_nhwc, ((0, 0), (1, 1), (1, 1), (0, 0)))
    Ho, Wo = H, W
    Hp, Wp = Ho // 2, Wo // 2
    m = Hp * Wp                                   # 9
    K = kh * kw * C                               # 180
    Kp = _round_up(K, LANE)                       # 256
    ncls = wfc.shape[1]
    Np = _round_up(ncls, LANE)
    assert wfc.shape[0] == Cout * m

    cols = [xp[:, dy:dy + Ho, dx:dx + Wo, :]
            for dy in range(kh) for dx in range(kw)]
    patches = jnp.concatenate(cols, axis=-1)                           # (B,Ho,Wo,K)
    patches = patches.reshape(B, Hp, 2, Wp, 2, K)
    patches = patches.transpose(0, 2, 4, 1, 3, 5).reshape(B, 4, m, K)  # (b,j,r,K)
    patches = patches.reshape(nb, tb, 4, m, K).transpose(0, 2, 3, 1, 4)
    patches = patches.reshape(nb * 4 * m * tb, K)                      # rows (j,r,b)
    patches = jnp.pad(patches, ((0, 0), (0, Kp - K))).astype(compute_dtype)

    wmat = jnp.pad(w_hwio.reshape(K, Cout),
                   ((0, Kp - K), (0, LANE - Cout))).astype(compute_dtype)
    bvec = jnp.pad(bias, (0, LANE - Cout)).reshape(1, LANE).astype(jnp.float32)

    # fc weight rows permuted from torch NCHW-flatten order (c*m + r) to the
    # (spatial r, channel c) order of the pooled activations; lane-padded.
    wfc_p = wfc.reshape(Cout, m, ncls).transpose(1, 0, 2)              # (m,Cout,ncls)
    wfc_p = jnp.pad(wfc_p, ((0, 0), (0, LANE - Cout), (0, Np - ncls)))
    wfc_p = wfc_p.reshape(m * LANE, Np).astype(compute_dtype)
    bfc_p = jnp.pad(bfc, (0, Np - ncls)).reshape(1, Np).astype(jnp.float32)

    mask = jnp.pad(mask_bc.astype(jnp.float32), ((0, 0), (0, LANE - Cout)))

    rows = 4 * m * tb
    itemsize = jnp.dtype(compute_dtype).itemsize
    cost = pl.CostEstimate(
        flops=2 * nb * rows * Kp * LANE + 2 * nb * m * tb * LANE * Np,
        transcendentals=0,
        bytes_accessed=int(patches.size * itemsize + wmat.size * itemsize
                           + wfc_p.size * itemsize + B * Np * 4))

    out = pl.pallas_call(
        functools.partial(_conv_pool_relu_fc_kernel, tb=tb, m=m),
        out_shape=jax.ShapeDtypeStruct((B, Np), jnp.float32),
        grid=(nb,),
        in_specs=[
            pl.BlockSpec((rows, Kp), lambda i: (i, 0)),       # conv3 patches
            pl.BlockSpec((Kp, LANE), lambda i: (0, 0)),       # conv3 weight (resident)
            pl.BlockSpec((1, LANE), lambda i: (0, 0)),        # conv3 bias
            pl.BlockSpec((tb, LANE), lambda i: (i, 0)),       # dropout2d mask
            pl.BlockSpec((m * LANE, Np), lambda i: (0, 0)),   # fc weight (resident)
            pl.BlockSpec((1, Np), lambda i: (0, 0)),          # fc bias
        ],
        out_specs=pl.BlockSpec((tb, Np), lambda i: (i, 0)),
        compiler_params=pltpu.CompilerParams(
            dimension_semantics=("parallel",)),
        cost_estimate=cost,
    )(patches, wmat, bvec, mask, wfc_p, bfc_p)

    return out[:, :ncls]


def cnn_forward(x_nchw, params, drop_mask=None, *, compute_dtype=jnp.bfloat16):
    """Forward pass of CNNModel.  x_nchw: (B, C, H, W).

    drop_mask: optional (B, 20) pre-scaled inverted-Dropout2d mask with values
               in {0.0, 2.0}; None == eval mode (identity).  Being non-negative
               and per-(image, channel), it commutes with max-pool and ReLU and
               is applied right before the fused fc.
    """
    (w1, b1), (w2, b2), (w3, b3), (wfc, bfc) = params
    B = x_nchw.shape[0]
    cout3 = w3.shape[3]

    # batch blocking: tb images per grid step (multiple of 8 sublanes);
    # batches >= 16 get >= 2 grid steps so both v7x TensorCores are used.
    tb = 16 if B >= 32 else 8
    nb = -(-B // tb)
    b_pad = nb * tb

    x = jnp.transpose(x_nchw, (0, 2, 3, 1)).astype(compute_dtype)   # NHWC
    if b_pad != B:
        x = jnp.pad(x, ((0, b_pad - B), (0, 0), (0, 0), (0, 0)))

    if drop_mask is None:
        mask = jnp.ones((b_pad, cout3), jnp.float32)
    else:
        mask = drop_mask.astype(jnp.float32)
        if b_pad != B:
            mask = jnp.pad(mask, ((0, b_pad - B), (0, 0)))

    h = _conv_pool_relu_stage(x, w1, b1, padding=0, tb=tb,
                              compute_dtype=compute_dtype)
    h = _conv_pool_relu_stage(h, w2, b2, padding=1, tb=tb,
                              compute_dtype=compute_dtype)
    logits = _conv_pool_relu_fc_stage(h, w3, b3, wfc, bfc, mask, tb=tb,
                                      compute_dtype=compute_dtype)
    return logits[:B]


# ------------------------- reference & init ----------------------------------

def cnn_reference(x_nchw, params, drop_mask=None):
    (w1, b1), (w2, b2), (w3, b3), (wfc, bfc) = params
    x = jnp.transpose(x_nchw, (0, 2, 3, 1))
    dn = ("NHWC", "HWIO", "NHWC")

    def conv(x, w, b, pad):
        y = lax.conv_general_dilated(x, w, (1, 1), [(pad, pad), (pad, pad)],
                                     dimension_numbers=dn,
                                     precision=lax.Precision.HIGHEST)
        return y + b.reshape(1, 1, 1, -1)

    def pool(x):
        return lax.reduce_window(x, -jnp.inf, lax.max,
                                 (1, 2, 2, 1), (1, 2, 2, 1), "VALID")

    h = jnp.maximum(pool(conv(x, w1, b1, 0)), 0.0)
    h = jnp.maximum(pool(conv(h, w2, b2, 1)), 0.0)
    h3 = conv(h, w3, b3, 1)
    if drop_mask is not None:
        h3 = h3 * drop_mask[:, None, None, :]
    h = jnp.maximum(pool(h3), 0.0)
    feats = jnp.transpose(h, (0, 3, 1, 2)).reshape(x.shape[0], -1)
    return jnp.dot(feats, wfc, precision=lax.Precision.HIGHEST) + bfc


def init_params(key, class_number=10, input_channel=3):
    """Uniform(-1/sqrt(fan_in), 1/sqrt(fan_in)) init, mirroring torch defaults."""
    ks = jax.random.split(key, 8)

    def conv_init(kw_, kb_, kh, kwd, cin, cout):
        bound = 1.0 / float(jnp.sqrt(cin * kh * kwd))
        w = jax.random.uniform(kw_, (kh, kwd, cin, cout), jnp.float32, -bound, bound)
        b = jax.random.uniform(kb_, (cout,), jnp.float32, -bound, bound)
        return w, b

    w1, b1 = conv_init(ks[0], ks[1], 5, 5, input_channel, 20)
    w2, b2 = conv_init(ks[2], ks[3], 3, 3, 20, 20)
    w3, b3 = conv_init(ks[4], ks[5], 3, 3, 20, 20)
    bound = 1.0 / float(jnp.sqrt(180))
    wfc = jax.random.uniform(ks[6], (180, class_number), jnp.float32, -bound, bound)
    bfc = jax.random.uniform(ks[7], (class_number,), jnp.float32, -bound, bound)
    return ((w1, b1), (w2, b2), (w3, b3), (wfc, bfc))


# --------------------------------- main ---------------------------------------

if __name__ == "__main__":
    class_number = 10
    key = jax.random.PRNGKey(0)
    kx, kp, kd, kx2 = jax.random.split(key, 4)

    params = init_params(kp, class_number, 3)
    fwd = jax.jit(cnn_forward, static_argnames=("compute_dtype",))

    # eval-mode forward (Dropout2d is identity), small batch, bf16 MXU path
    x = jax.random.normal(kx, (2, 3, 28, 28), dtype=jnp.float32)
    out = jax.block_until_ready(fwd(x, params))
    ref = cnn_reference(x, params)
    assert out.shape == (2, class_number)
    assert jnp.allclose(out, ref, atol=3e-2, rtol=3e-2), "eval mismatch vs reference"

    # training-mode forward: explicit per-(image, channel) Dropout2d mask drawn
    # with jax.random in the wrapper (no in-kernel PRNG), values in {0, 2}.
    keep = jax.random.bernoulli(kd, 0.5, (2, 20)).astype(jnp.float32)
    drop_mask = keep * 2.0
    out_t = jax.block_until_ready(fwd(x, params, drop_mask))
    ref_t = cnn_reference(x, params, drop_mask)
    assert jnp.allclose(out_t, ref_t, atol=3e-2, rtol=3e-2), "train mismatch vs reference"

    # larger batch: 2 grid steps of 16 images (exercises the multi-block /
    # v7x megacore path and batch blocking).
    xb = jax.random.normal(kx2, (32, 3, 28, 28), dtype=jnp.float32)
    out_b = jax.block_until_ready(fwd(xb, params))
    ref_b = cnn_reference(xb, params)
    assert out_b.shape == (32, class_number)
    assert jnp.allclose(out_b, ref_b, atol=3e-2, rtol=3e-2), "batch mismatch vs reference"

    print("KERNEL_OK")
</pallas_src>

<mosaic_0001>
module attributes {stable_mosaic.version = 11 : i64} {
  func.func @_conv_pool_relu_kernel(%arg0: i32, %arg1: memref<4608x128xbf16, #tpu.memory_space<vmem>>, %arg2: memref<128x128xbf16, #tpu.memory_space<vmem>>, %arg3: memref<1x128xf32, #tpu.memory_space<vmem>>, %arg4: memref<1152x128xbf16, #tpu.memory_space<vmem>>) attributes {dimension_semantics = [#tpu.dimension_semantics<parallel>], iteration_bounds = array<i64: 1>, scalar_prefetch = 0 : i64, scratch_operands = 0 : i64, tpu.core_type = #tpu.core_type<tc>, window_params = [{transform_indices = @transform_0, window_bounds = array<i64: 4608, 128>}, {pipeline_mode = #tpu.pipeline_mode<synchronous>, transform_indices = @transform_1, window_bounds = array<i64: 128, 128>}, {pipeline_mode = #tpu.pipeline_mode<synchronous>, transform_indices = @transform_2, window_bounds = array<i64: 1, 128>}, {transform_indices = @transform_3, window_bounds = array<i64: 1152, 128>}]} {
    %c0 = arith.constant 0 : index
    %c0_0 = arith.constant 0 : index
    %0 = vector.load %arg2[%c0, %c0_0] : memref<128x128xbf16, #tpu.memory_space<vmem>>, vector<128x128xbf16>
    %c0_1 = arith.constant 0 : index
    %c0_2 = arith.constant 0 : index
    %1 = vector.load %arg1[%c0_1, %c0_2] : memref<4608x128xbf16, #tpu.memory_space<vmem>>, vector<1152x128xbf16>
    %cst = arith.constant dense<0.000000e+00> : vector<1152x128xf32>
    %2 = tpu.matmul %1, %0, %cst {dimension_numbers = #tpu.dot_dimension_numbers<[1], [0], [0], [1], [0, 0, 1, 1], [], []>} : vector<1152x128xbf16>, vector<128x128xbf16>, vector<1152x128xf32> -> vector<1152x128xf32>
    %c1152 = arith.constant 1152 : index
    %c0_3 = arith.constant 0 : index
    %3 = vector.load %arg1[%c1152, %c0_3] : memref<4608x128xbf16, #tpu.memory_space<vmem>>, vector<1152x128xbf16>
    %cst_4 = arith.constant dense<0.000000e+00> : vector<1152x128xf32>
    %4 = tpu.matmul %3, %0, %cst_4 {dimension_numbers = #tpu.dot_dimension_numbers<[1], [0], [0], [1], [0, 0, 1, 1], [], []>} : vector<1152x128xbf16>, vector<128x128xbf16>, vector<1152x128xf32> -> vector<1152x128xf32>
    %5 = arith.maximumf %2, %4 : vector<1152x128xf32>
    %c2304 = arith.constant 2304 : index
    %c0_5 = arith.constant 0 : index
    %6 = vector.load %arg1[%c2304, %c0_5] : memref<4608x128xbf16, #tpu.memory_space<vmem>>, vector<1152x128xbf16>
    %cst_6 = arith.constant dense<0.000000e+00> : vector<1152x128xf32>
    %7 = tpu.matmul %6, %0, %cst_6 {dimension_numbers = #tpu.dot_dimension_numbers<[1], [0], [0], [1], [0, 0, 1, 1], [], []>} : vector<1152x128xbf16>, vector<128x128xbf16>, vector<1152x128xf32> -> vector<1152x128xf32>
    %8 = arith.maximumf %5, %7 : vector<1152x128xf32>
    %c3456 = arith.constant 3456 : index
    %c0_7 = arith.constant 0 : index
    %9 = vector.load %arg1[%c3456, %c0_7] : memref<4608x128xbf16, #tpu.memory_space<vmem>>, vector<1152x128xbf16>
    %cst_8 = arith.constant dense<0.000000e+00> : vector<1152x128xf32>
    %10 = tpu.matmul %9, %0, %cst_8 {dimension_numbers = #tpu.dot_dimension_numbers<[1], [0], [0], [1], [0, 0, 1, 1], [], []>} : vector<1152x128xbf16>, vector<128x128xbf16>, vector<1152x128xf32> -> vector<1152x128xf32>
    %11 = arith.maximumf %8, %10 : vector<1152x128xf32>
    %c0_9 = arith.constant 0 : index
    %c0_10 = arith.constant 0 : index
    %12 = vector.load %arg3[%c0_9, %c0_10] : memref<1x128xf32, #tpu.memory_space<vmem>>, vector<1x128xf32>
    %13 = vector.broadcast %12 : vector<1x128xf32> to vector<1152x128xf32>
    %14 = arith.addf %11, %13 : vector<1152x128xf32>
    %cst_11 = arith.constant 0.000000e+00 : f32
    %15 = vector.broadcast %cst_11 : f32 to vector<1152x128xf32>
    %16 = arith.maximumf %14, %15 : vector<1152x128xf32>
    %17 = arith.truncf %16 : vector<1152x128xf32> to vector<1152x128xbf16>
    %c0_12 = arith.constant 0 : index
    %c0_13 = arith.constant 0 : index
    %18 = vector.load %arg4[%c0_12, %c0_13] : memref<1152x128xbf16, #tpu.memory_space<vmem>>, vector<1152x128xbf16>
    tpu.vector_store %arg4[%c0_12, %c0_13], %17 {strides = array<i32>} : memref<1152x128xbf16, #tpu.memory_space<vmem>>, vector<1152x128xbf16>,
    return
  }
  func.func @transform_0(%arg0: i32) -> (i32, i32) {
    %c0_i32 = arith.constant 0 : i32
    %c0_i32_0 = arith.constant 0 : i32
    return %arg0, %c0_i32 : i32, i32
  }
  func.func @transform_1(%arg0: i32) -> (i32, i32) {
    %c0_i32 = arith.constant 0 : i32
    %c0_i32_0 = arith.constant 0 : i32
    %c0_i32_1 = arith.constant 0 : i32
    return %c0_i32, %c0_i32_0 : i32, i32
  }
  func.func @transform_2(%arg0: i32) -> (i32, i32) {
    %c0_i32 = arith.constant 0 : i32
    %c0_i32_0 = arith.constant 0 : i32
    %c0_i32_1 = arith.constant 0 : i32
    return %c0_i32, %c0_i32_0 : i32, i32
  }
  func.func @transform_3(%arg0: i32) -> (i32, i32) {
    %c0_i32 = arith.constant 0 : i32
    %c0_i32_0 = arith.constant 0 : i32
    return %arg0, %c0_i32 : i32, i32
  }
}

module attributes {stable_mosaic.version = 11 : i64} {
  func.func @_conv_pool_relu_kernel(%arg0: i32, %arg1: memref<1152x256xbf16, #tpu.memory_space<vmem>>, %arg2: memref<256x128xbf16, #tpu.memory_space<vmem>>, %arg3: memref<1x128xf32, #tpu.memory_space<vmem>>, %arg4: memref<288x128xbf16, #tpu.memory_space<vmem>>) attributes {dimension_semantics = [#tpu.dimension_semantics<parallel>], iteration_bounds = array<i64: 1>, scalar_prefetch = 0 : i64, scratch_operands = 0 : i64, tpu.core_type = #tpu.core_type<tc>, window_params = [{transform_indices = @transform_0, window_bounds = array<i64: 1152, 256>}, {pipeline_mode = #tpu.pipeline_mode<synchronous>, transform_indices = @transform_1, window_bounds = array<i64: 256, 128>}, {pipeline_mode = #tpu.pipeline_mode<synchronous>, transform_indices = @transform_2, window_bounds = array<i64: 1, 128>}, {transform_indices = @transform_3, window_bounds = array<i64: 288, 128>}]} {
    %c0 = arith.constant 0 : index
    %c0_0 = arith.constant 0 : index
    %0 = vector.load %arg2[%c0, %c0_0] : memref<256x128xbf16, #tpu.memory_space<vmem>>, vector<256x128xbf16>
    %c0_1 = arith.constant 0 : index
    %c0_2 = arith.constant 0 : index
    %1 = vector.load %arg1[%c0_1, %c0_2] : memref<1152x256xbf16, #tpu.memory_space<vmem>>, vector<288x256xbf16>
    %cst = arith.constant dense<0.000000e+00> : vector<288x128xf32>
    %2 = tpu.matmul %1, %0, %cst {dimension_numbers = #tpu.dot_dimension_numbers<[1], [0], [0], [1], [0, 0, 1, 1], [], []>} : vector<288x256xbf16>, vector<256x128xbf16>, vector<288x128xf32> -> vector<288x128xf32>
    %c288 = arith.constant 288 : index
    %c0_3 = arith.constant 0 : index
    %3 = vector.load %arg1[%c288, %c0_3] : memref<1152x256xbf16, #tpu.memory_space<vmem>>, vector<288x256xbf16>
    %cst_4 = arith.constant dense<0.000000e+00> : vector<288x128xf32>
    %4 = tpu.matmul %3, %0, %cst_4 {dimension_numbers = #tpu.dot_dimension_numbers<[1], [0], [0], [1], [0, 0, 1, 1], [], []>} : vector<288x256xbf16>, vector<256x128xbf16>, vector<288x128xf32> -> vector<288x128xf32>
    %5 = arith.maximumf %2, %4 : vector<288x128xf32>
    %c576 = arith.constant 576 : index
    %c0_5 = arith.constant 0 : index
    %6 = vector.load %arg1[%c576, %c0_5] : memref<1152x256xbf16, #tpu.memory_space<vmem>>, vector<288x256xbf16>
    %cst_6 = arith.constant dense<0.000000e+00> : vector<288x128xf32>
    %7 = tpu.matmul %6, %0, %cst_6 {dimension_numbers = #tpu.dot_dimension_numbers<[1], [0], [0], [1], [0, 0, 1, 1], [], []>} : vector<288x256xbf16>, vector<256x128xbf16>, vector<288x128xf32> -> vector<288x128xf32>
    %8 = arith.maximumf %5, %7 : vector<288x128xf32>
    %c864 = arith.constant 864 : index
    %c0_7 = arith.constant 0 : index
    %9 = vector.load %arg1[%c864, %c0_7] : memref<1152x256xbf16, #tpu.memory_space<vmem>>, vector<288x256xbf16>
    %cst_8 = arith.constant dense<0.000000e+00> : vector<288x128xf32>
    %10 = tpu.matmul %9, %0, %cst_8 {dimension_numbers = #tpu.dot_dimension_numbers<[1], [0], [0], [1], [0, 0, 1, 1], [], []>} : vector<288x256xbf16>, vector<256x128xbf16>, vector<288x128xf32> -> vector<288x128xf32>
    %11 = arith.maximumf %8, %10 : vector<288x128xf32>
    %c0_9 = arith.constant 0 : index
    %c0_10 = arith.constant 0 : index
    %12 = vector.load %arg3[%c0_9, %c0_10] : memref<1x128xf32, #tpu.memory_space<vmem>>, vector<1x128xf32>
    %13 = vector.broadcast %12 : vector<1x128xf32> to vector<288x128xf32>
    %14 = arith.addf %11, %13 : vector<288x128xf32>
    %cst_11 = arith.constant 0.000000e+00 : f32
    %15 = vector.broadcast %cst_11 : f32 to vector<288x128xf32>
    %16 = arith.maximumf %14, %15 : vector<288x128xf32>
    %17 = arith.truncf %16 : vector<288x128xf32> to vector<288x128xbf16>
    %c0_12 = arith.constant 0 : index
    %c0_13 = arith.constant 0 : index
    %18 = vector.load %arg4[%c0_12, %c0_13] : memref<288x128xbf16, #tpu.memory_space<vmem>>, vector<288x128xbf16>
    tpu.vector_store %arg4[%c0_12, %c0_13], %17 {strides = array<i32>} : memref<288x128xbf16, #tpu.memory_space<vmem>>, vector<288x128xbf16>,
    return
  }
  func.func @transform_0(%arg0: i32) -> (i32, i32) {
    %c0_i32 = arith.constant 0 : i32
    %c0_i32_0 = arith.constant 0 : i32
    return %arg0, %c0_i32 : i32, i32
  }
  func.func @transform_1(%arg0: i32) -> (i32, i32) {
    %c0_i32 = arith.constant 0 : i32
    %c0_i32_0 = arith.constant 0 : i32
    %c0_i32_1 = arith.constant 0 : i32
    return %c0_i32, %c0_i32_0 : i32, i32
  }
  func.func @transform_2(%arg0: i32) -> (i32, i32) {
    %c0_i32 = arith.constant 0 : i32
    %c0_i32_0 = arith.constant 0 : i32
    %c0_i32_1 = arith.constant 0 : i32
    return %c0_i32, %c0_i32_0 : i32, i32
  }
  func.func @transform_3(%arg0: i32) -> (i32, i32) {
    %c0_i32 = arith.constant 0 : i32
    %c0_i32_0 = arith.constant 0 : i32
    return %arg0, %c0_i32 : i32, i32
  }
}

module attributes {stable_mosaic.version = 11 : i64} {
  func.func @_conv_pool_relu_fc_kernel(%arg0: i32, %arg1: memref<288x256xbf16, #tpu.memory_space<vmem>>, %arg2: memref<256x128xbf16, #tpu.memory_space<vmem>>, %arg3: memref<1x128xf32, #tpu.memory_space<vmem>>, %arg4: memref<8x128xf32, #tpu.memory_space<vmem>>, %arg5: memref<1152x128xbf16, #tpu.memory_space<vmem>>, %arg6: memref<1x128xf32, #tpu.memory_space<vmem>>, %arg7: memref<8x128xf32, #tpu.memory_space<vmem>>) attributes {dimension_semantics = [#tpu.dimension_semantics<parallel>], iteration_bounds = array<i64: 1>, scalar_prefetch = 0 : i64, scratch_operands = 0 : i64, tpu.core_type = #tpu.core_type<tc>, window_params = [{transform_indices = @transform_0, window_bounds = array<i64: 288, 256>}, {pipeline_mode = #tpu.pipeline_mode<synchronous>, transform_indices = @transform_1, window_bounds = array<i64: 256, 128>}, {pipeline_mode = #tpu.pipeline_mode<synchronous>, transform_indices = @transform_2, window_bounds = array<i64: 1, 128>}, {transform_indices = @transform_3, window_bounds = array<i64: 8, 128>}, {pipeline_mode = #tpu.pipeline_mode<synchronous>, transform_indices = @transform_4, window_bounds = array<i64: 1152, 128>}, {pipeline_mode = #tpu.pipeline_mode<synchronous>, transform_indices = @transform_5, window_bounds = array<i64: 1, 128>}, {transform_indices = @transform_6, window_bounds = array<i64: 8, 128>}]} {
    %c0 = arith.constant 0 : index
    %c0_0 = arith.constant 0 : index
    %0 = vector.load %arg2[%c0, %c0_0] : memref<256x128xbf16, #tpu.memory_space<vmem>>, vector<256x128xbf16>
    %c0_1 = arith.constant 0 : index
    %c0_2 = arith.constant 0 : index
    %1 = vector.load %arg1[%c0_1, %c0_2] : memref<288x256xbf16, #tpu.memory_space<vmem>>, vector<72x256xbf16>
    %cst = arith.constant dense<0.000000e+00> : vector<72x128xf32>
    %2 = tpu.matmul %1, %0, %cst {dimension_numbers = #tpu.dot_dimension_numbers<[1], [0], [0], [1], [0, 0, 1, 1], [], []>} : vector<72x256xbf16>, vector<256x128xbf16>, vector<72x128xf32> -> vector<72x128xf32>
    %c72 = arith.constant 72 : index
    %c0_3 = arith.constant 0 : index
    %3 = vector.load %arg1[%c72, %c0_3] : memref<288x256xbf16, #tpu.memory_space<vmem>>, vector<72x256xbf16>
    %cst_4 = arith.constant dense<0.000000e+00> : vector<72x128xf32>
    %4 = tpu.matmul %3, %0, %cst_4 {dimension_numbers = #tpu.dot_dimension_numbers<[1], [0], [0], [1], [0, 0, 1, 1], [], []>} : vector<72x256xbf16>, vector<256x128xbf16>, vector<72x128xf32> -> vector<72x128xf32>
    %5 = arith.maximumf %2, %4 : vector<72x128xf32>
    %c144 = arith.constant 144 : index
    %c0_5 = arith.constant 0 : index
    %6 = vector.load %arg1[%c144, %c0_5] : memref<288x256xbf16, #tpu.memory_space<vmem>>, vector<72x256xbf16>
    %cst_6 = arith.constant dense<0.000000e+00> : vector<72x128xf32>
    %7 = tpu.matmul %6, %0, %cst_6 {dimension_numbers = #tpu.dot_dimension_numbers<[1], [0], [0], [1], [0, 0, 1, 1], [], []>} : vector<72x256xbf16>, vector<256x128xbf16>, vector<72x128xf32> -> vector<72x128xf32>
    %8 = arith.maximumf %5, %7 : vector<72x128xf32>
    %c216 = arith.constant 216 : index
    %c0_7 = arith.constant 0 : index
    %9 = vector.load %arg1[%c216, %c0_7] : memref<288x256xbf16, #tpu.memory_space<vmem>>, vector<72x256xbf16>
    %cst_8 = arith.constant dense<0.000000e+00> : vector<72x128xf32>
    %10 = tpu.matmul %9, %0, %cst_8 {dimension_numbers = #tpu.dot_dimension_numbers<[1], [0], [0], [1], [0, 0, 1, 1], [], []>} : vector<72x256xbf16>, vector<256x128xbf16>, vector<72x128xf32> -> vector<72x128xf32>
    %11 = arith.maximumf %8, %10 : vector<72x128xf32>
    %c0_9 = arith.constant 0 : index
    %c0_10 = arith.constant 0 : index
    %12 = vector.load %arg3[%c0_9, %c0_10] : memref<1x128xf32, #tpu.memory_space<vmem>>, vector<1x128xf32>
    %13 = vector.broadcast %12 : vector<1x128xf32> to vector<72x128xf32>
    %14 = arith.addf %11, %13 : vector<72x128xf32>
    %cst_11 = arith.constant 0.000000e+00 : f32
    %15 = vector.broadcast %cst_11 : f32 to vector<72x128xf32>
    %16 = arith.maximumf %14, %15 : vector<72x128xf32>
    %c0_12 = arith.constant 0 : index
    %c0_13 = arith.constant 0 : index
    %17 = vector.load %arg4[%c0_12, %c0_13] : memref<8x128xf32, #tpu.memory_space<vmem>>, vector<8x128xf32>
    %cst_14 = arith.constant 0.000000e+00 : f32
    %18 = vector.broadcast %cst_14 : f32 to vector<8x128xf32>
    %19 = vector.extract_strided_slice %16 {offsets = [0, 0], sizes = [8, 128], strides = [1, 1]} : vector<72x128xf32> to vector<8x128xf32>
    %20 = arith.mulf %19, %17 : vector<8x128xf32>
    %21 = arith.truncf %20 : vector<8x128xf32> to vector<8x128xbf16>
    %c0_15 = arith.constant 0 : index
    %c0_16 = arith.constant 0 : index
    %22 = vector.load %arg5[%c0_15, %c0_16] : memref<1152x128xbf16, #tpu.memory_space<vmem>>, vector<128x128xbf16>
    %cst_17 = arith.constant dense<0.000000e+00> : vector<8x128xf32>
    %23 = tpu.matmul %21, %22, %cst_17 {dimension_numbers = #tpu.dot_dimension_numbers<[1], [0], [0], [1], [0, 0, 1, 1], [], []>} : vector<8x128xbf16>, vector<128x128xbf16>, vector<8x128xf32> -> vector<8x128xf32>
    %24 = arith.addf %18, %23 : vector<8x128xf32>
    %25 = vector.extract_strided_slice %16 {offsets = [8, 0], sizes = [8, 128], strides = [1, 1]} : vector<72x128xf32> to vector<8x128xf32>
    %26 = arith.mulf %25, %17 : vector<8x128xf32>
    %27 = arith.truncf %26 : vector<8x128xf32> to vector<8x128xbf16>
    %c128 = arith.constant 128 : index
    %c0_18 = arith.constant 0 : index
    %28 = vector.load %arg5[%c128, %c0_18] : memref<1152x128xbf16, #tpu.memory_space<vmem>>, vector<128x128xbf16>
    %cst_19 = arith.constant dense<0.000000e+00> : vector<8x128xf32>
    %29 = tpu.matmul %27, %28, %cst_19 {dimension_numbers = #tpu.dot_dimension_numbers<[1], [0], [0], [1], [0, 0, 1, 1], [], []>} : vector<8x128xbf16>, vector<128x128xbf16>, vector<8x128xf32> -> vector<8x128xf32>
    %30 = arith.addf %24, %29 : vector<8x128xf32>
    %31 = vector.extract_strided_slice %16 {offsets = [16, 0], sizes = [8, 128], strides = [1, 1]} : vector<72x128xf32> to vector<8x128xf32>
    %32 = arith.mulf %31, %17 : vector<8x128xf32>
    %33 = arith.truncf %32 : vector<8x128xf32> to vector<8x128xbf16>
    %c256 = arith.constant 256 : index
    %c0_20 = arith.constant 0 : index
    %34 = vector.load %arg5[%c256, %c0_20] : memref<1152x128xbf16, #tpu.memory_space<vmem>>, vector<128x128xbf16>
    %cst_21 = arith.constant dense<0.000000e+00> : vector<8x128xf32>
    %35 = tpu.matmul %33, %34, %cst_21 {dimension_numbers = #tpu.dot_dimension_numbers<[1], [0], [0], [1], [0, 0, 1, 1], [], []>} : vector<8x128xbf16>, vector<128x128xbf16>, vector<8x128xf32> -> vector<8x128xf32>
    %36 = arith.addf %30, %35 : vector<8x128xf32>
    %37 = vector.extract_strided_slice %16 {offsets = [24, 0], sizes = [8, 128], strides = [1, 1]} : vector<72x128xf32> to vector<8x128xf32>
    %38 = arith.mulf %37, %17 : vector<8x128xf32>
    %39 = arith.truncf %38 : vector<8x128xf32> to vector<8x128xbf16>
    %c384 = arith.constant 384 : index
    %c0_22 = arith.constant 0 : index
    %40 = vector.load %arg5[%c384, %c0_22] : memref<1152x128xbf16, #tpu.memory_space<vmem>>, vector<128x128xbf16>
    %cst_23 = arith.constant dense<0.000000e+00> : vector<8x128xf32>
    %41 = tpu.matmul %39, %40, %cst_23 {dimension_numbers = #tpu.dot_dimension_numbers<[1], [0], [0], [1], [0, 0, 1, 1], [], []>} : vector<8x128xbf16>, vector<128x128xbf16>, vector<8x128xf32> -> vector<8x128xf32>
    %42 = arith.addf %36, %41 : vector<8x128xf32>
    %43 = vector.extract_strided_slice %16 {offsets = [32, 0], sizes = [8, 128], strides = [1, 1]} : vector<72x128xf32> to vector<8x128xf32>
    %44 = arith.mulf %43, %17 : vector<8x128xf32>
    %45 = arith.truncf %44 : vector<8x128xf32> to vector<8x128xbf16>
    %c512 = arith.constant 512 : index
    %c0_24 = arith.constant 0 : index
    %46 = vector.load %arg5[%c512, %c0_24] : memref<1152x128xbf16, #tpu.memory_space<vmem>>, vector<128x128xbf16>
    %cst_25 = arith.constant dense<0.000000e+00> : vector<8x128xf32>
    %47 = tpu.matmul %45, %46, %cst_25 {dimension_numbers = #tpu.dot_dimension_numbers<[1], [0], [0], [1], [0, 0, 1, 1], [], []>} : vector<8x128xbf16>, vector<128x128xbf16>, vector<8x128xf32> -> vector<8x128xf32>
    %48 = arith.addf %42, %47 : vector<8x128xf32>
    %49 = vector.extract_strided_slice %16 {offsets = [40, 0], sizes = [8, 128], strides = [1, 1]} : vector<72x128xf32> to vector<8x128xf32>
    %50 = arith.mulf %49, %17 : vector<8x128xf32>
    %51 = arith.truncf %50 : vector<8x128xf32> to vector<8x128xbf16>
    %c640 = arith.constant 640 : index
    %c0_26 = arith.constant 0 : index
    %52 = vector.load %arg5[%c640, %c0_26] : memref<1152x128xbf16, #tpu.memory_space<vmem>>, vector<128x128xbf16>
    %cst_27 = arith.constant dense<0.000000e+00> : vector<8x128xf32>
    %53 = tpu.matmul %51, %52, %cst_27 {dimension_numbers = #tpu.dot_dimension_numbers<[1], [0], [0], [1], [0, 0, 1, 1], [], []>} : vector<8x128xbf16>, vector<128x128xbf16>, vector<8x128xf32> -> vector<8x128xf32>
    %54 = arith.addf %48, %53 : vector<8x128xf32>
    %55 = vector.extract_strided_slice %16 {offsets = [48, 0], sizes = [8, 128], strides = [1, 1]} : vector<72x128xf32> to vector<8x128xf32>
    %56 = arith.mulf %55, %17 : vector<8x128xf32>
    %57 = arith.truncf %56 : vector<8x128xf32> to vector<8x128xbf16>
    %c768 = arith.constant 768 : index
    %c0_28 = arith.constant 0 : index
    %58 = vector.load %arg5[%c768, %c0_28] : memref<1152x128xbf16, #tpu.memory_space<vmem>>, vector<128x128xbf16>
    %cst_29 = arith.constant dense<0.000000e+00> : vector<8x128xf32>
    %59 = tpu.matmul %57, %58, %cst_29 {dimension_numbers = #tpu.dot_dimension_numbers<[1], [0], [0], [1], [0, 0, 1, 1], [], []>} : vector<8x128xbf16>, vector<128x128xbf16>, vector<8x128xf32> -> vector<8x128xf32>
    %60 = arith.addf %54, %59 : vector<8x128xf32>
    %61 = vector.extract_strided_slice %16 {offsets = [56, 0], sizes = [8, 128], strides = [1, 1]} : vector<72x128xf32> to vector<8x128xf32>
    %62 = arith.mulf %61, %17 : vector<8x128xf32>
    %63 = arith.truncf %62 : vector<8x128xf32> to vector<8x128xbf16>
    %c896 = arith.constant 896 : index
    %c0_30 = arith.constant 0 : index
    %64 = vector.load %arg5[%c896, %c0_30] : memref<1152x128xbf16, #tpu.memory_space<vmem>>, vector<128x128xbf16>
    %cst_31 = arith.constant dense<0.000000e+00> : vector<8x128xf32>
    %65 = tpu.matmul %63, %64, %cst_31 {dimension_numbers = #tpu.dot_dimension_numbers<[1], [0], [0], [1], [0, 0, 1, 1], [], []>} : vector<8x128xbf16>, vector<128x128xbf16>, vector<8x128xf32> -> vector<8x128xf32>
    %66 = arith.addf %60, %65 : vector<8x128xf32>
    %67 = vector.extract_strided_slice %16 {offsets = [64, 0], sizes = [8, 128], strides = [1, 1]} : vector<72x128xf32> to vector<8x128xf32>
    %68 = arith.mulf %67, %17 : vector<8x128xf32>
    %69 = arith.truncf %68 : vector<8x128xf32> to vector<8x128xbf16>
    %c1024 = arith.constant 1024 : index
    %c0_32 = arith.constant 0 : index
    %70 = vector.load %arg5[%c1024, %c0_32] : memref<1152x128xbf16, #tpu.memory_space<vmem>>, vector<128x128xbf16>
    %cst_33 = arith.constant dense<0.000000e+00> : vector<8x128xf32>
    %71 = tpu.matmul %69, %70, %cst_33 {dimension_numbers = #tpu.dot_dimension_numbers<[1], [0], [0], [1], [0, 0, 1, 1], [], []>} : vector<8x128xbf16>, vector<128x128xbf16>, vector<8x128xf32> -> vector<8x128xf32>
    %72 = arith.addf %66, %71 : vector<8x128xf32>
    %c0_34 = arith.constant 0 : index
    %c0_35 = arith.constant 0 : index
    %73 = vector.load %arg6[%c0_34, %c0_35] : memref<1x128xf32, #tpu.memory_space<vmem>>, vector<1x128xf32>
    %74 = vector.broadcast %73 : vector<1x128xf32> to vector<8x128xf32>
    %75 = arith.addf %72, %74 : vector<8x128xf32>
    %c0_36 = arith.constant 0 : index
    %c0_37 = arith.constant 0 : index
    %76 = vector.load %arg7[%c0_36, %c0_37] : memref<8x128xf32, #tpu.memory_space<vmem>>, vector<8x128xf32>
    tpu.vector_store %arg7[%c0_36, %c0_37], %75 {strides = array<i32>} : memref<8x128xf32, #tpu.memory_space<vmem>>, vector<8x128xf32>,
    return
  }
  func.func @transform_0(%arg0: i32) -> (i32, i32) {
    %c0_i32 = arith.constant 0 : i32
    %c0_i32_0 = arith.constant 0 : i32
    return %arg0, %c0_i32 : i32, i32
  }
  func.func @transform_1(%arg0: i32) -> (i32, i32) {
    %c0_i32 = arith.constant 0 : i32
    %c0_i32_0 = arith.constant 0 : i32
    %c0_i32_1 = arith.constant 0 : i32
    return %c0_i32, %c0_i32_0 : i32, i32
  }
  func.func @transform_2(%arg0: i32) -> (i32, i32) {
    %c0_i32 = arith.constant 0 : i32
    %c0_i32_0 = arith.constant 0 : i32
    %c0_i32_1 = arith.constant 0 : i32
    return %c0_i32, %c0_i32_0 : i32, i32
  }
  func.func @transform_3(%arg0: i32) -> (i32, i32) {
    %c0_i32 = arith.constant 0 : i32
    %c0_i32_0 = arith.constant 0 : i32
    return %arg0, %c0_i32 : i32, i32
  }
  func.func @transform_4(%arg0: i32) -> (i32, i32) {
    %c0_i32 = arith.constant 0 : i32
    %c0_i32_0 = arith.constant 0 : i32
    %c0_i32_1 = arith.constant 0 : i32
    return %c0_i32, %c0_i32_0 : i32, i32
  }
  func.func @transform_5(%arg0: i32) -> (i32, i32) {
    %c0_i32 = arith.constant 0 : i32
    %c0_i32_0 = arith.constant 0 : i32
    %c0_i32_1 = arith.constant 0 : i32
    return %c0_i32, %c0_i32_0 : i32, i32
  }
  func.func @transform_6(%arg0: i32) -> (i32, i32) {
    %c0_i32 = arith.constant 0 : i32
    %c0_i32_0 = arith.constant 0 : i32
    return %arg0, %c0_i32 : i32, i32
  }
}

</mosaic_0001>

<llo_original>
// kernel: cnn_forward.3
$region0: #{cnn_forward.3}
  #allocation0 [shape = 'u32[]', space=smem, size = 0x4, offset = 0x4, fixed_abs, tag = 'smem constant byte address 0x4 - core index']
  #allocation1 [shape = 'u32[144,128]{1,0:T(1,128)}', space=vmem, size = 0x12000, scoped, tag = 'internal scratch']
  %s0 = inlined_call_operand.vmem [shape: bf16[4608,128], index: 0, kind: input, shape index: {}]
  %s1 = inlined_call_operand.vmem [shape: bf16[128,128], index: 1, kind: input, shape index: {}]
  %s2 = inlined_call_operand.vmem [shape: f32[1,128], index: 2, kind: input, shape index: {}]
  %s3 = inlined_call_operand.vmem [shape: bf16[1152,128], index: 3, kind: output, shape index: {}]
  %s4 = sld [smem:[#allocation0]]
  $region22: #{cnn_forward.3} parent=0
    _
  %s6 = ssub.s32 1, %s4
  %s7 = scalar_select 0, %s6, %s4
  // Predicated region
  $region2: #{cnn_forward.3} parent=0 // pred_check
    _
  $region3: #{cnn_forward.3} parent=0 // pred_check_branch
    %9 = sbr.rel (0) target = $region5
  $region4: #{cnn_forward.3} parent=0 // pred_region
    _
  $region5: #{cnn_forward.3} parent=0 // pred_fallthru
    _
  // Predicated region
  $region6: #{cnn_forward.3} parent=0 // pred_check
    _
  $region7: #{cnn_forward.3} parent=0 // pred_check_branch
    %11 = sbr.rel (0) target = $region9
  $region8: #{cnn_forward.3} parent=0 // pred_region
    _
  $region9: #{cnn_forward.3} parent=0 // pred_fallthru
    _
  // Predicated region
  $region10: #{cnn_forward.3} parent=0 // pred_check
    _
  $region11: #{cnn_forward.3} parent=0 // pred_check_branch
    %13 = sbr.rel (0) target = $region13
  $region12: #{cnn_forward.3} parent=0 // pred_region
    _
  $region13: #{cnn_forward.3} parent=0 // pred_fallthru
    _
  %v15 = vld [vmem:[%s1] sm:$0xf]
  %v16 = vld [vmem:[%s1 + $0x4] sm:$0xf]
  %v17 = vld [vmem:[%s1 + $0x8] sm:$0xf]
  %v18 = vld [vmem:[%s1 + $0xc] sm:$0xf]
  %v19 = vld [vmem:[%s1 + $0x10] sm:$0xf]
  %v20 = vld [vmem:[%s1 + $0x14] sm:$0xf]
  %v21 = vld [vmem:[%s1 + $0x18] sm:$0xf]
  %v22 = vld [vmem:[%s1 + $0x1c] sm:$0xf]
  %v23 = vld [vmem:[%s1 + $0x20] sm:$0xf]
  %v24 = vld [vmem:[%s1 + $0x24] sm:$0xf]
  %v25 = vld [vmem:[%s1 + $0x28] sm:$0xf]
  %v26 = vld [vmem:[%s1 + $0x2c] sm:$0xf]
  %v27 = vld [vmem:[%s1 + $0x30] sm:$0xf]
  %v28 = vld [vmem:[%s1 + $0x34] sm:$0xf]
  %v29 = vld [vmem:[%s1 + $0x38] sm:$0xf]
  %v30 = vld [vmem:[%s1 + $0x3c] sm:$0xf]
  %v31 = vld [vmem:[%s0] sm:$0xf]
  %v32 = vld [vmem:[%s0 + $0x4] sm:$0xf]
  %v33 = vld [vmem:[%s0 + $0x8] sm:$0xf]
  %v34 = vld [vmem:[%s0 + $0xc] sm:$0xf]
  %v35 = vld [vmem:[%s0 + $0x10] sm:$0xf]
  %v36 = vld [vmem:[%s0 + $0x14] sm:$0xf]
  %v37 = vld [vmem:[%s0 + $0x18] sm:$0xf]
  %v38 = vld [vmem:[%s0 + $0x1c] sm:$0xf]
  %v39 = vld [vmem:[%s0 + $0x20] sm:$0xf]
  %v40 = vld [vmem:[%s0 + $0x24] sm:$0xf]
  %v41 = vld [vmem:[%s0 + $0x28] sm:$0xf]
  %v42 = vld [vmem:[%s0 + $0x2c] sm:$0xf]
  %v43 = vld [vmem:[%s0 + $0x30] sm:$0xf]
  %v44 = vld [vmem:[%s0 + $0x34] sm:$0xf]
  %v45 = vld [vmem:[%s0 + $0x38] sm:$0xf]
  %v46 = vld [vmem:[%s0 + $0x3c] sm:$0xf]
  %v47 = vld [vmem:[%s0 + $0x40] sm:$0xf]
  %v48 = vld [vmem:[%s0 + $0x44] sm:$0xf]
  %v49 = vld [vmem:[%s0 + $0x48] sm:$0xf]
  %v50 = vld [vmem:[%s0 + $0x4c] sm:$0xf]
  %v51 = vld [vmem:[%s0 + $0x50] sm:$0xf]
  %v52 = vld [vmem:[%s0 + $0x54] sm:$0xf]
  %v53 = vld [vmem:[%s0 + $0x58] sm:$0xf]
  %v54 = vld [vmem:[%s0 + $0x5c] sm:$0xf]
  %v55 = vld [vmem:[%s0 + $0x60] sm:$0xf]
  %v56 = vld [vmem:[%s0 + $0x64] sm:$0xf]
  %v57 = vld [vmem:[%s0 + $0x68] sm:$0xf]
  %v58 = vld [vmem:[%s0 + $0x6c] sm:$0xf]
  %v59 = vld [vmem:[%s0 + $0x70] sm:$0xf]
  %v60 = vld [vmem:[%s0 + $0x74] sm:$0xf]
  %v61 = vld [vmem:[%s0 + $0x78] sm:$0xf]
  %v62 = vld [vmem:[%s0 + $0x7c] sm:$0xf]
  %v63 = vld [vmem:[%s0 + $0x80] sm:$0xf]
  %v64 = vld [vmem:[%s0 + $0x84] sm:$0xf]
  %v65 = vld [vmem:[%s0 + $0x88] sm:$0xf]
  %v66 = vld [vmem:[%s0 + $0x8c] sm:$0xf]
  %v67 = vld [vmem:[%s0 + $0x90] sm:$0xf]
  %v68 = vld [vmem:[%s0 + $0x94] sm:$0xf]
  %v69 = vld [vmem:[%s0 + $0x98] sm:$0xf]
  %v70 = vld [vmem:[%s0 + $0x9c] sm:$0xf]
  %v71 = vld [vmem:[%s0 + $0xa0] sm:$0xf]
  %v72 = vld [vmem:[%s0 + $0xa4] sm:$0xf]
  %v73 = vld [vmem:[%s0 + $0xa8] sm:$0xf]
  %v74 = vld [vmem:[%s0 + $0xac] sm:$0xf]
  %v75 = vld [vmem:[%s0 + $0xb0] sm:$0xf]
  %v76 = vld [vmem:[%s0 + $0xb4] sm:$0xf]
  %v77 = vld [vmem:[%s0 + $0xb8] sm:$0xf]
  %v78 = vld [vmem:[%s0 + $0xbc] sm:$0xf]
  %v79 = vld [vmem:[%s0 + $0xc0] sm:$0xf]
  %v80 = vld [vmem:[%s0 + $0xc4] sm:$0xf]
  %v81 = vld [vmem:[%s0 + $0xc8] sm:$0xf]
  %v82 = vld [vmem:[%s0 + $0xcc] sm:$0xf]
  %v83 = vld [vmem:[%s0 + $0xd0] sm:$0xf]
  %v84 = vld [vmem:[%s0 + $0xd4] sm:$0xf]
  %v85 = vld [vmem:[%s0 + $0xd8] sm:$0xf]
  %v86 = vld [vmem:[%s0 + $0xdc] sm:$0xf]
  %v87 = vld [vmem:[%s0 + $0xe0] sm:$0xf]
  %v88 = vld [vmem:[%s0 + $0xe4] sm:$0xf]
  %v89 = vld [vmem:[%s0 + $0xe8] sm:$0xf]
  %v90 = vld [vmem:[%s0 + $0xec] sm:$0xf]
  %v91 = vld [vmem:[%s0 + $0xf0] sm:$0xf]
  %v92 = vld [vmem:[%s0 + $0xf4] sm:$0xf]
  %v93 = vld [vmem:[%s0 + $0xf8] sm:$0xf]
  %v94 = vld [vmem:[%s0 + $0xfc] sm:$0xf]
  %v95 = vld [vmem:[%s0 + $0x100] sm:$0xf]
  %v96 = vld [vmem:[%s0 + $0x104] sm:$0xf]
  %v97 = vld [vmem:[%s0 + $0x108] sm:$0xf]
  %v98 = vld [vmem:[%s0 + $0x10c] sm:$0xf]
  %v99 = vld [vmem:[%s0 + $0x110] sm:$0xf]
  %v100 = vld [vmem:[%s0 + $0x114] sm:$0xf]
  %v101 = vld [vmem:[%s0 + $0x118] sm:$0xf]
  %v102 = vld [vmem:[%s0 + $0x11c] sm:$0xf]
  %v103 = vld [vmem:[%s0 + $0x120] sm:$0xf]
  %v104 = vld [vmem:[%s0 + $0x124] sm:$0xf]
  %v105 = vld [vmem:[%s0 + $0x128] sm:$0xf]
  %v106 = vld [vmem:[%s0 + $0x12c] sm:$0xf]
  %v107 = vld [vmem:[%s0 + $0x130] sm:$0xf]
  %v108 = vld [vmem:[%s0 + $0x134] sm:$0xf]
  %v109 = vld [vmem:[%s0 + $0x138] sm:$0xf]
  %v110 = vld [vmem:[%s0 + $0x13c] sm:$0xf]
  %v111 = vld [vmem:[%s0 + $0x140] sm:$0xf]
  %v112 = vld [vmem:[%s0 + $0x144] sm:$0xf]
  %v113 = vld [vmem:[%s0 + $0x148] sm:$0xf]
  %v114 = vld [vmem:[%s0 + $0x14c] sm:$0xf]
  %v115 = vld [vmem:[%s0 + $0x150] sm:$0xf]
  %v116 = vld [vmem:[%s0 + $0x154] sm:$0xf]
  %v117 = vld [vmem:[%s0 + $0x158] sm:$0xf]
  %v118 = vld [vmem:[%s0 + $0x15c] sm:$0xf]
  %v119 = vld [vmem:[%s0 + $0x160] sm:$0xf]
  %v120 = vld [vmem:[%s0 + $0x164] sm:$0xf]
  %v121 = vld [vmem:[%s0 + $0x168] sm:$0xf]
  %v122 = vld [vmem:[%s0 + $0x16c] sm:$0xf]
  %v123 = vld [vmem:[%s0 + $0x170] sm:$0xf]
  %v124 = vld [vmem:[%s0 + $0x174] sm:$0xf]
  %v125 = vld [vmem:[%s0 + $0x178] sm:$0xf]
  %v126 = vld [vmem:[%s0 + $0x17c] sm:$0xf]
  %v127 = vld [vmem:[%s0 + $0x180] sm:$0xf]
  %v128 = vld [vmem:[%s0 + $0x184] sm:$0xf]
  %v129 = vld [vmem:[%s0 + $0x188] sm:$0xf]
  %v130 = vld [vmem:[%s0 + $0x18c] sm:$0xf]
  %v131 = vld [vmem:[%s0 + $0x190] sm:$0xf]
  %v132 = vld [vmem:[%s0 + $0x194] sm:$0xf]
  %v133 = vld [vmem:[%s0 + $0x198] sm:$0xf]
  %v134 = vld [vmem:[%s0 + $0x19c] sm:$0xf]
  %v135 = vld [vmem:[%s0 + $0x1a0] sm:$0xf]
  %v136 = vld [vmem:[%s0 + $0x1a4] sm:$0xf]
  %v137 = vld [vmem:[%s0 + $0x1a8] sm:$0xf]
  %v138 = vld [vmem:[%s0 + $0x1ac] sm:$0xf]
  %v139 = vld [vmem:[%s0 + $0x1b0] sm:$0xf]
  %v140 = vld [vmem:[%s0 + $0x1b4] sm:$0xf]
  %v141 = vld [vmem:[%s0 + $0x1b8] sm:$0xf]
  %v142 = vld [vmem:[%s0 + $0x1bc] sm:$0xf]
  %v143 = vld [vmem:[%s0 + $0x1c0] sm:$0xf]
  %v144 = vld [vmem:[%s0 + $0x1c4] sm:$0xf]
  %v145 = vld [vmem:[%s0 + $0x1c8] sm:$0xf]
  %v146 = vld [vmem:[%s0 + $0x1cc] sm:$0xf]
  %v147 = vld [vmem:[%s0 + $0x1d0] sm:$0xf]
  %v148 = vld [vmem:[%s0 + $0x1d4] sm:$0xf]
  %v149 = vld [vmem:[%s0 + $0x1d8] sm:$0xf]
  %v150 = vld [vmem:[%s0 + $0x1dc] sm:$0xf]
  %v151 = vld [vmem:[%s0 + $0x1e0] sm:$0xf]
  %v152 = vld [vmem:[%s0 + $0x1e4] sm:$0xf]
  %v153 = vld [vmem:[%s0 + $0x1e8] sm:$0xf]
  %v154 = vld [vmem:[%s0 + $0x1ec] sm:$0xf]
  %v155 = vld [vmem:[%s0 + $0x1f0] sm:$0xf]
  %v156 = vld [vmem:[%s0 + $0x1f4] sm:$0xf]
  %v157 = vld [vmem:[%s0 + $0x1f8] sm:$0xf]
  %v158 = vld [vmem:[%s0 + $0x1fc] sm:$0xf]
  %v159 = vld [vmem:[%s0 + $0x200] sm:$0xf]
  %v160 = vld [vmem:[%s0 + $0x204] sm:$0xf]
  %v161 = vld [vmem:[%s0 + $0x208] sm:$0xf]
  %v162 = vld [vmem:[%s0 + $0x20c] sm:$0xf]
  %v163 = vld [vmem:[%s0 + $0x210] sm:$0xf]
  %v164 = vld [vmem:[%s0 + $0x214] sm:$0xf]
  %v165 = vld [vmem:[%s0 + $0x218] sm:$0xf]
  %v166 = vld [vmem:[%s0 + $0x21c] sm:$0xf]
  %v167 = vld [vmem:[%s0 + $0x220] sm:$0xf]
  %v168 = vld [vmem:[%s0 + $0x224] sm:$0xf]
  %v169 = vld [vmem:[%s0 + $0x228] sm:$0xf]
  %v170 = vld [vmem:[%s0 + $0x22c] sm:$0xf]
  %v171 = vld [vmem:[%s0 + $0x230] sm:$0xf]
  %v172 = vld [vmem:[%s0 + $0x234] sm:$0xf]
  %v173 = vld [vmem:[%s0 + $0x238] sm:$0xf]
  %v174 = vld [vmem:[%s0 + $0x23c] sm:$0xf]
  %v319 = vunpack.c.l.b16 %v31
  %v320 = vunpack.c.l.b16 %v32
  %v321 = vunpack.c.l.b16 %v33
  %v322 = vunpack.c.l.b16 %v34
  %v323 = vunpack.c.l.b16 %v35
  %v324 = vunpack.c.l.b16 %v36
  %v325 = vunpack.c.l.b16 %v37
  %v326 = vunpack.c.l.b16 %v38
  %v327 = vunpack.c.l.b16 %v39
  %v328 = vunpack.c.l.b16 %v40
  %v329 = vunpack.c.l.b16 %v41
  %v330 = vunpack.c.l.b16 %v42
  %v331 = vunpack.c.l.b16 %v43
  %v332 = vunpack.c.l.b16 %v44
  %v333 = vunpack.c.l.b16 %v45
  %v334 = vunpack.c.l.b16 %v46
  %v335 = vunpack.c.l.b16 %v47
  %v336 = vunpack.c.l.b16 %v48
  %v337 = vunpack.c.l.b16 %v49
  %v338 = vunpack.c.l.b16 %v50
  %v339 = vunpack.c.l.b16 %v51
  %v340 = vunpack.c.l.b16 %v52
  %v341 = vunpack.c.l.b16 %v53
  %v342 = vunpack.c.l.b16 %v54
  %v343 = vunpack.c.l.b16 %v55
  %v344 = vunpack.c.l.b16 %v56
  %v345 = vunpack.c.l.b16 %v57
  %v346 = vunpack.c.l.b16 %v58
  %v347 = vunpack.c.l.b16 %v59
  %v348 = vunpack.c.l.b16 %v60
  %v349 = vunpack.c.l.b16 %v61
  %v350 = vunpack.c.l.b16 %v62
  %v351 = vunpack.c.l.b16 %v63
  %v352 = vunpack.c.l.b16 %v64
  %v353 = vunpack.c.l.b16 %v65
  %v354 = vunpack.c.l.b16 %v66
  %v355 = vunpack.c.l.b16 %v67
  %v356 = vunpack.c.l.b16 %v68
  %v357 = vunpack.c.l.b16 %v69
  %v358 = vunpack.c.l.b16 %v70
  %v359 = vunpack.c.l.b16 %v71
  %v360 = vunpack.c.l.b16 %v72
  %v361 = vunpack.c.l.b16 %v73
  %v362 = vunpack.c.l.b16 %v74
  %v363 = vunpack.c.l.b16 %v75
  %v364 = vunpack.c.l.b16 %v76
  %v365 = vunpack.c.l.b16 %v77
  %v366 = vunpack.c.l.b16 %v78
  %v367 = vunpack.c.l.b16 %v79
  %v368 = vunpack.c.l.b16 %v80
  %v369 = vunpack.c.l.b16 %v81
  %v370 = vunpack.c.l.b16 %v82
  %v371 = vunpack.c.l.b16 %v83
  %v372 = vunpack.c.l.b16 %v84
  %v373 = vunpack.c.l.b16 %v85
  %v374 = vunpack.c.l.b16 %v86
  %v375 = vunpack.c.l.b16 %v87
  %v376 = vunpack.c.l.b16 %v88
  %v377 = vunpack.c.l.b16 %v89
  %v378 = vunpack.c.l.b16 %v90
  %v379 = vunpack.c.l.b16 %v91
  %v380 = vunpack.c.l.b16 %v92
  %v381 = vunpack.c.l.b16 %v93
  %v382 = vunpack.c.l.b16 %v94
  %v383 = vunpack.c.l.b16 %v95
  %v384 = vunpack.c.l.b16 %v96
  %v385 = vunpack.c.l.b16 %v97
  %v386 = vunpack.c.l.b16 %v98
  %v387 = vunpack.c.l.b16 %v99
  %v388 = vunpack.c.l.b16 %v100
  %v389 = vunpack.c.l.b16 %v101
  %v390 = vunpack.c.l.b16 %v102
  %v391 = vunpack.c.l.b16 %v103
  %v392 = vunpack.c.l.b16 %v104
  %v393 = vunpack.c.l.b16 %v105
  %v394 = vunpack.c.l.b16 %v106
  %v395 = vunpack.c.l.b16 %v107
  %v396 = vunpack.c.l.b16 %v108
  %v397 = vunpack.c.l.b16 %v109
  %v398 = vunpack.c.l.b16 %v110
  %v399 = vunpack.c.l.b16 %v111
  %v400 = vunpack.c.l.b16 %v112
  %v401 = vunpack.c.l.b16 %v113
  %v402 = vunpack.c.l.b16 %v114
  %v403 = vunpack.c.l.b16 %v115
  %v404 = vunpack.c.l.b16 %v116
  %v405 = vunpack.c.l.b16 %v117
  %v406 = vunpack.c.l.b16 %v118
  %v407 = vunpack.c.l.b16 %v119
  %v408 = vunpack.c.l.b16 %v120
  %v409 = vunpack.c.l.b16 %v121
  %v410 = vunpack.c.l.b16 %v122
  %v411 = vunpack.c.l.b16 %v123
  %v412 = vunpack.c.l.b16 %v124
  %v413 = vunpack.c.l.b16 %v125
  %v414 = vunpack.c.l.b16 %v126
  %v415 = vunpack.c.l.b16 %v127
  %v416 = vunpack.c.l.b16 %v128
  %v417 = vunpack.c.l.b16 %v129
  %v418 = vunpack.c.l.b16 %v130
  %v419 = vunpack.c.l.b16 %v131
  %v420 = vunpack.c.l.b16 %v132
  %v421 = vunpack.c.l.b16 %v133
  %v422 = vunpack.c.l.b16 %v134
  %v423 = vunpack.c.l.b16 %v135
  %v424 = vunpack.c.l.b16 %v136
  %v425 = vunpack.c.l.b16 %v137
  %v426 = vunpack.c.l.b16 %v138
  %v427 = vunpack.c.l.b16 %v139
  %v428 = vunpack.c.l.b16 %v140
  %v429 = vunpack.c.l.b16 %v141
  %v430 = vunpack.c.l.b16 %v142
  %v431 = vunpack.c.l.b16 %v143
  %v432 = vunpack.c.l.b16 %v144
  %v433 = vunpack.c.l.b16 %v145
  %v434 = vunpack.c.l.b16 %v146
  %v435 = vunpack.c.l.b16 %v147
  %v436 = vunpack.c.l.b16 %v148
  %v437 = vunpack.c.l.b16 %v149
  %v438 = vunpack.c.l.b16 %v150
  %v439 = vunpack.c.l.b16 %v151
  %v440 = vunpack.c.l.b16 %v152
  %v441 = vunpack.c.l.b16 %v153
  %v442 = vunpack.c.l.b16 %v154
  %v443 = vunpack.c.l.b16 %v155
  %v444 = vunpack.c.l.b16 %v156
  %v445 = vunpack.c.l.b16 %v157
  %v446 = vunpack.c.l.b16 %v158
  %v447 = vunpack.c.l.b16 %v159
  %v448 = vunpack.c.l.b16 %v160
  %v449 = vunpack.c.l.b16 %v161
  %v450 = vunpack.c.l.b16 %v162
  %v451 = vunpack.c.l.b16 %v163
  %v452 = vunpack.c.l.b16 %v164
  %v453 = vunpack.c.l.b16 %v165
  %v454 = vunpack.c.l.b16 %v166
  %v455 = vunpack.c.l.b16 %v167
  %v456 = vunpack.c.l.b16 %v168
  %v457 = vunpack.c.l.b16 %v169
  %v458 = vunpack.c.l.b16 %v170
  %v459 = vunpack.c.l.b16 %v171
  %v460 = vunpack.c.l.b16 %v172
  %v461 = vunpack.c.l.b16 %v173
  %v462 = vunpack.c.l.b16 %v174
  %v463 = vpack.c.b16 %v320, %v319
  %v464 = vpack.c.b16 %v322, %v321
  %v465 = vpack.c.b16 %v324, %v323
  %v466 = vpack.c.b16 %v326, %v325
  %v467 = vpack.c.b16 %v328, %v327
  %v468 = vpack.c.b16 %v330, %v329
  %v469 = vpack.c.b16 %v332, %v331
  %v470 = vpack.c.b16 %v334, %v333
  %v471 = vpack.c.b16 %v336, %v335
  %v472 = vpack.c.b16 %v338, %v337
  %v473 = vpack.c.b16 %v340, %v339
  %v474 = vpack.c.b16 %v342, %v341
  %v475 = vpack.c.b16 %v344, %v343
  %v476 = vpack.c.b16 %v346, %v345
  %v477 = vpack.c.b16 %v348, %v347
  %v478 = vpack.c.b16 %v350, %v349
  %v479 = vpack.c.b16 %v352, %v351
  %v480 = vpack.c.b16 %v354, %v353
  %v481 = vpack.c.b16 %v356, %v355
  %v482 = vpack.c.b16 %v358, %v357
  %v483 = vpack.c.b16 %v360, %v359
  %v484 = vpack.c.b16 %v362, %v361
  %v485 = vpack.c.b16 %v364, %v363
  %v486 = vpack.c.b16 %v366, %v365
  %v487 = vpack.c.b16 %v368, %v367
  %v488 = vpack.c.b16 %v370, %v369
  %v489 = vpack.c.b16 %v372, %v371
  %v490 = vpack.c.b16 %v374, %v373
  %v491 = vpack.c.b16 %v376, %v375
  %v492 = vpack.c.b16 %v378, %v377
  %v493 = vpack.c.b16 %v380, %v379
  %v494 = vpack.c.b16 %v382, %v381
  %v495 = vpack.c.b16 %v384, %v383
  %v496 = vpack.c.b16 %v386, %v385
  %v497 = vpack.c.b16 %v388, %v387
  %v498 = vpack.c.b16 %v390, %v389
  %v499 = vpack.c.b16 %v392, %v391
  %v500 = vpack.c.b16 %v394, %v393
  %v501 = vpack.c.b16 %v396, %v395
  %v502 = vpack.c.b16 %v398, %v397
  %v503 = vpack.c.b16 %v400, %v399
  %v504 = vpack.c.b16 %v402, %v401
  %v505 = vpack.c.b16 %v404, %v403
  %v506 = vpack.c.b16 %v406, %v405
  %v507 = vpack.c.b16 %v408, %v407
  %v508 = vpack.c.b16 %v410, %v409
  %v509 = vpack.c.b16 %v412, %v411
  %v510 = vpack.c.b16 %v414, %v413
  %v511 = vpack.c.b16 %v416, %v415
  %v512 = vpack.c.b16 %v418, %v417
  %v513 = vpack.c.b16 %v420, %v419
  %v514 = vpack.c.b16 %v422, %v421
  %v515 = vpack.c.b16 %v424, %v423
  %v516 = vpack.c.b16 %v426, %v425
  %v517 = vpack.c.b16 %v428, %v427
  %v518 = vpack.c.b16 %v430, %v429
  %v519 = vpack.c.b16 %v432, %v431
  %v520 = vpack.c.b16 %v434, %v433
  %v521 = vpack.c.b16 %v436, %v435
  %v522 = vpack.c.b16 %v438, %v437
  %v523 = vpack.c.b16 %v440, %v439
  %v524 = vpack.c.b16 %v442, %v441
  %v525 = vpack.c.b16 %v444, %v443
  %v526 = vpack.c.b16 %v446, %v445
  %v527 = vpack.c.b16 %v448, %v447
  %v528 = vpack.c.b16 %v450, %v449
  %v529 = vpack.c.b16 %v452, %v451
  %v530 = vpack.c.b16 %v454, %v453
  %v531 = vpack.c.b16 %v456, %v455
  %v532 = vpack.c.b16 %v458, %v457
  %v533 = vpack.c.b16 %v460, %v459
  %v534 = vpack.c.b16 %v462, %v461
  %v623 = vunpack.c.l.b16 %v15
  %v624 = vunpack.c.l.b16 %v16
  %v625 = vunpack.c.l.b16 %v17
  %v626 = vunpack.c.l.b16 %v18
  %v627 = vunpack.c.l.b16 %v19
  %v628 = vunpack.c.l.b16 %v20
  %v629 = vunpack.c.l.b16 %v21
  %v630 = vunpack.c.l.b16 %v22
  %v631 = vunpack.c.l.b16 %v23
  %v632 = vunpack.c.l.b16 %v24
  %v633 = vunpack.c.l.b16 %v25
  %v634 = vunpack.c.l.b16 %v26
  %v635 = vunpack.c.l.b16 %v27
  %v636 = vunpack.c.l.b16 %v28
  %v637 = vunpack.c.l.b16 %v29
  %v638 = vunpack.c.l.b16 %v30
  %v639 = vpack.c.b16 %v624, %v623
  %v640 = vpack.c.b16 %v626, %v625
  %v641 = vpack.c.b16 %v628, %v627
  %v642 = vpack.c.b16 %v630, %v629
  %v643 = vpack.c.b16 %v632, %v631
  %v644 = vpack.c.b16 %v634, %v633
  %v645 = vpack.c.b16 %v636, %v635
  %v646 = vpack.c.b16 %v638, %v637
  %655 = vmatprep.subr.bf16.mxu0 0
  %656 = vmatpush1.bf16.msra.mxu0 %v639
  %657 = vmatprep.subr.bf16.mxu0 0
  %658 = vmatpush1.bf16.msra.mxu0 %v640
  %659 = vmatprep.subr.bf16.mxu0 0
  %660 = vmatpush1.bf16.msra.mxu0 %v641
  %661 = vmatprep.subr.bf16.mxu0 0
  %662 = vmatpush1.bf16.msra.mxu0 %v642
  %663 = vmatprep.subr.bf16.mxu0 0
  %664 = vmatpush1.bf16.msra.mxu0 %v643
  %665 = vmatprep.subr.bf16.mxu0 0
  %666 = vmatpush1.bf16.msra.mxu0 %v644
  %667 = vmatprep.subr.bf16.mxu0 0
  %668 = vmatpush1.bf16.msra.mxu0 %v645
  %669 = vmatprep.subr.bf16.mxu0 0
  %670 = vmatpush1.bf16.msra.mxu0 %v646
  %671 = vmatprep.subr.bf16.mxu0 0
  %672 = vmatpush1.bf16.msra.mxu0 0
  %673 = vmatprep.subr.bf16.mxu0 0
  %674 = vmatpush1.bf16.msra.mxu0 0
  %675 = vmatprep.subr.bf16.mxu0 0
  %676 = vmatpush1.bf16.msra.mxu0 0
  %677 = vmatprep.subr.bf16.mxu0 0
  %678 = vmatpush1.bf16.msra.mxu0 0
  %679 = vmatprep.subr.bf16.mxu0 0
  %680 = vmatpush1.bf16.msra.mxu0 0
  %681 = vmatprep.subr.bf16.mxu0 0
  %682 = vmatpush1.bf16.msra.mxu0 0
  %683 = vmatprep.subr.bf16.mxu0 0
  %684 = vmatpush1.bf16.msra.mxu0 0
  %685 = vmatprep.subr.bf16.mxu0 0
  %686 = vmatpush1.bf16.msra.mxu0 0
  %687 = vmatprep.mubr.bf16.mxu0 0
  %688 = vmatmul.mubr.bf16.gmra.mrb[0].mxu0 %v463
  %v689 = vpop.f32.mrb[0].mxu0
  %v690 = vadd.f32 0.0, %v689
  %v691 = vpop.f32.mrb[0].mxu0
  %v692 = vpop.f32.mrb[0].mxu0
  %v693 = vadd.f32 0.0, %v692
  %v694 = vpop.f32.mrb[0].mxu0
  %695 = vmatprep.mubr.bf16.mxu0 0
  %696 = vmatmul.mubr.bf16.gmra.mrb[0].mxu0 %v464
  %v697 = vpop.f32.mrb[0].mxu0
  %v698 = vadd.f32 0.0, %v697
  %v699 = vpop.f32.mrb[0].mxu0
  %v700 = vpop.f32.mrb[0].mxu0
  %v701 = vadd.f32 0.0, %v700
  %v702 = vpop.f32.mrb[0].mxu0
  %703 = vmatprep.mubr.bf16.mxu0 0
  %704 = vmatmul.mubr.bf16.gmra.mrb[0].mxu0 %v465
  %v705 = vpop.f32.mrb[0].mxu0
  %v706 = vadd.f32 0.0, %v705
  %v707 = vpop.f32.mrb[0].mxu0
  %v708 = vpop.f32.mrb[0].mxu0
  %v709 = vadd.f32 0.0, %v708
  %v710 = vpop.f32.mrb[0].mxu0
  %711 = vmatprep.mubr.bf16.mxu0 0
  %712 = vmatmul.mubr.bf16.gmra.mrb[0].mxu0 %v466
  %v713 = vpop.f32.mrb[0].mxu0
  %v714 = vadd.f32 0.0, %v713
  %v715 = vpop.f32.mrb[0].mxu0
  %v716 = vpop.f32.mrb[0].mxu0
  %v717 = vadd.f32 0.0, %v716
  %v718 = vpop.f32.mrb[0].mxu0
  %719 = vmatprep.mubr.bf16.mxu0 0
  %720 = vmatmul.mubr.bf16.gmra.mrb[0].mxu0 %v467
  %v721 = vpop.f32.mrb[0].mxu0
  %v722 = vadd.f32 0.0, %v721
  %v723 = vpop.f32.mrb[0].mxu0
  %v724 = vpop.f32.mrb[0].mxu0
  %v725 = vadd.f32 0.0, %v724
  %v726 = vpop.f32.mrb[0].mxu0
  %727 = vmatprep.mubr.bf16.mxu0 0
  %728 = vmatmul.mubr.bf16.gmra.mrb[0].mxu0 %v468
  %v729 = vpop.f32.mrb[0].mxu0
  %v730 = vadd.f32 0.0, %v729
  %v731 = vpop.f32.mrb[0].mxu0
  %v732 = vpop.f32.mrb[0].mxu0
  %v733 = vadd.f32 0.0, %v732
  %v734 = vpop.f32.mrb[0].mxu0
  %735 = vmatprep.mubr.bf16.mxu0 0
  %736 = vmatmul.mubr.bf16.gmra.mrb[0].mxu0 %v469
  %v737 = vpop.f32.mrb[0].mxu0
  %v738 = vadd.f32 0.0, %v737
  %v739 = vpop.f32.mrb[0].mxu0
  %v740 = vpop.f32.mrb[0].mxu0
  %v741 = vadd.f32 0.0, %v740
  %v742 = vpop.f32.mrb[0].mxu0
  %743 = vmatprep.mubr.bf16.mxu0 0
  %744 = vmatmul.mubr.bf16.gmra.mrb[0].mxu0 %v470
  %v745 = vpop.f32.mrb[0].mxu0
  %v746 = vadd.f32 0.0, %v745
  %v747 = vpop.f32.mrb[0].mxu0
  %v748 = vpop.f32.mrb[0].mxu0
  %v749 = vadd.f32 0.0, %v748
  %v750 = vpop.f32.mrb[0].mxu0
  %751 = vmatprep.mubr.bf16.mxu0 0
  %752 = vmatmul.mubr.bf16.gmra.mrb[0].mxu0 %v471
  %v753 = vpop.f32.mrb[0].mxu0
  %v754 = vadd.f32 0.0, %v753
  %v755 = vpop.f32.mrb[0].mxu0
  %v756 = vpop.f32.mrb[0].mxu0
  %v757 = vadd.f32 0.0, %v756
  %v758 = vpop.f32.mrb[0].mxu0
  %759 = vmatprep.mubr.bf16.mxu0 0
  %760 = vmatmul.mubr.bf16.gmra.mrb[0].mxu0 %v472
  %v761 = vpop.f32.mrb[0].mxu0
  %v762 = vadd.f32 0.0, %v761
  %v763 = vpop.f32.mrb[0].mxu0
  %v764 = vpop.f32.mrb[0].mxu0
  %v765 = vadd.f32 0.0, %v764
  %v766 = vpop.f32.mrb[0].mxu0
  %767 = vmatprep.mubr.bf16.mxu0 0
  %768 = vmatmul.mubr.bf16.gmra.mrb[0].mxu0 %v473
  %v769 = vpop.f32.mrb[0].mxu0
  %v770 = vadd.f32 0.0, %v769
  %v771 = vpop.f32.mrb[0].mxu0
  %v772 = vpop.f32.mrb[0].mxu0
  %v773 = vadd.f32 0.0, %v772
  %v774 = vpop.f32.mrb[0].mxu0
  %775 = vmatprep.mubr.bf16.mxu0 0
  %776 = vmatmul.mubr.bf16.gmra.mrb[0].mxu0 %v474
  %v777 = vpop.f32.mrb[0].mxu0
  %v778 = vadd.f32 0.0, %v777
  %v779 = vpop.f32.mrb[0].mxu0
  %v780 = vpop.f32.mrb[0].mxu0
  %v781 = vadd.f32 0.0, %v780
  %v782 = vpop.f32.mrb[0].mxu0
  %783 = vmatprep.mubr.bf16.mxu0 0
  %784 = vmatmul.mubr.bf16.gmra.mrb[0].mxu0 %v475
  %v785 = vpop.f32.mrb[0].mxu0
  %v786 = vadd.f32 0.0, %v785
  %v787 = vpop.f32.mrb[0].mxu0
  %v788 = vpop.f32.mrb[0].mxu0
  %v789 = vadd.f32 0.0, %v788
  %v790 = vpop.f32.mrb[0].mxu0
  %791 = vmatprep.mubr.bf16.mxu0 0
  %792 = vmatmul.mubr.bf16.gmra.mrb[0].mxu0 %v476
  %v793 = vpop.f32.mrb[0].mxu0
  %v794 = vadd.f32 0.0, %v793
  %v795 = vpop.f32.mrb[0].mxu0
  %v796 = vpop.f32.mrb[0].mxu0
  %v797 = vadd.f32 0.0, %v796
  %v798 = vpop.f32.mrb[0].mxu0
  %799 = vmatprep.mubr.bf16.mxu0 0
  %800 = vmatmul.mubr.bf16.gmra.mrb[0].mxu0 %v477
  %v801 = vpop.f32.mrb[0].mxu0
  %v802 = vadd.f32 0.0, %v801
  %v803 = vpop.f32.mrb[0].mxu0
  %v804 = vpop.f32.mrb[0].mxu0
  %v805 = vadd.f32 0.0, %v804
  %v806 = vpop.f32.mrb[0].mxu0
  %807 = vmatprep.mubr.bf16.mxu0 0
  %808 = vmatmul.mubr.bf16.gmra.mrb[0].mxu0 %v478
  %v809 = vpop.f32.mrb[0].mxu0
  %v810 = vadd.f32 0.0, %v809
  %v811 = vpop.f32.mrb[0].mxu0
  %v812 = vpop.f32.mrb[0].mxu0
  %v813 = vadd.f32 0.0, %v812
  %v814 = vpop.f32.mrb[0].mxu0
  %815 = vmatprep.mubr.bf16.mxu0 0
  %816 = vmatmul.mubr.bf16.gmra.mrb[0].mxu0 %v479
  %v817 = vpop.f32.mrb[0].mxu0
  %v818 = vadd.f32 0.0, %v817
  %v819 = vpop.f32.mrb[0].mxu0
  %v820 = vpop.f32.mrb[0].mxu0
  %v821 = vadd.f32 0.0, %v820
  %v822 = vpop.f32.mrb[0].mxu0
  %823 = vmatprep.mubr.bf16.mxu0 0
  %824 = vmatmul.mubr.bf16.gmra.mrb[0].mxu0 %v480
  %v825 = vpop.f32.mrb[0].mxu0
  %v826 = vadd.f32 0.0, %v825
  %v827 = vpop.f32.mrb[0].mxu0
  %v828 = vpop.f32.mrb[0].mxu0
  %v829 = vadd.f32 0.0, %v828
  %v830 = vpop.f32.mrb[0].mxu0
  %831 = vmatprep.mubr.bf16.mxu0 0
  %832 = vmatmul.mubr.bf16.gmra.mrb[0].mxu0 %v481
  %v833 = vpop.f32.mrb[0].mxu0
  %v834 = vadd.f32 0.0, %v833
  %v835 = vpop.f32.mrb[0].mxu0
  %v836 = vpop.f32.mrb[0].mxu0
  %v837 = vadd.f32 0.0, %v836
  %v838 = vpop.f32.mrb[0].mxu0
  %839 = vmatprep.mubr.bf16.mxu0 0
  %840 = vmatmul.mubr.bf16.gmra.mrb[0].mxu0 %v482
  %v841 = vpop.f32.mrb[0].mxu0
  %v842 = vadd.f32 0.0, %v841
  %v843 = vpop.f32.mrb[0].mxu0
  %v844 = vpop.f32.mrb[0].mxu0
  %v845 = vadd.f32 0.0, %v844
  %v846 = vpop.f32.mrb[0].mxu0
  %847 = vmatprep.mubr.bf16.mxu0 0
  %848 = vmatmul.mubr.bf16.gmra.mrb[0].mxu0 %v483
  %v849 = vpop.f32.mrb[0].mxu0
  %v850 = vadd.f32 0.0, %v849
  %v851 = vpop.f32.mrb[0].mxu0
  %v852 = vpop.f32.mrb[0].mxu0
  %v853 = vadd.f32 0.0, %v852
  %v854 = vpop.f32.mrb[0].mxu0
  %855 = vmatprep.mubr.bf16.mxu0 0
  %856 = vmatmul.mubr.bf16.gmra.mrb[0].mxu0 %v484
  %v857 = vpop.f32.mrb[0].mxu0
  %v858 = vadd.f32 0.0, %v857
  %v859 = vpop.f32.mrb[0].mxu0
  %v860 = vpop.f32.mrb[0].mxu0
  %v861 = vadd.f32 0.0, %v860
  %v862 = vpop.f32.mrb[0].mxu0
  %863 = vmatprep.mubr.bf16.mxu0 0
  %864 = vmatmul.mubr.bf16.gmra.mrb[0].mxu0 %v485
  %v865 = vpop.f32.mrb[0].mxu0
  %v866 = vadd.f32 0.0, %v865
  %v867 = vpop.f32.mrb[0].mxu0
  %v868 = vpop.f32.mrb[0].mxu0
  %v869 = vadd.f32 0.0, %v868
  %v870 = vpop.f32.mrb[0].mxu0
  %871 = vmatprep.mubr.bf16.mxu0 0
  %872 = vmatmul.mubr.bf16.gmra.mrb[0].mxu0 %v486
  %v873 = vpop.f32.mrb[0].mxu0
  %v874 = vadd.f32 0.0, %v873
  %v875 = vpop.f32.mrb[0].mxu0
  %v876 = vpop.f32.mrb[0].mxu0
  %v877 = vadd.f32 0.0, %v876
  %v878 = vpop.f32.mrb[0].mxu0
  %879 = vmatprep.mubr.bf16.mxu0 0
  %880 = vmatmul.mubr.bf16.gmra.mrb[0].mxu0 %v487
  %v881 = vpop.f32.mrb[0].mxu0
  %v882 = vadd.f32 0.0, %v881
  %v883 = vpop.f32.mrb[0].mxu0
  %v884 = vpop.f32.mrb[0].mxu0
  %v885 = vadd.f32 0.0, %v884
  %v886 = vpop.f32.mrb[0].mxu0
  %887 = vmatprep.mubr.bf16.mxu0 0
  %888 = vmatmul.mubr.bf16.gmra.mrb[0].mxu0 %v488
  %v889 = vpop.f32.mrb[0].mxu0
  %v890 = vadd.f32 0.0, %v889
  %v891 = vpop.f32.mrb[0].mxu0
  %v892 = vpop.f32.mrb[0].mxu0
  %v893 = vadd.f32 0.0, %v892
  %v894 = vpop.f32.mrb[0].mxu0
  %895 = vmatprep.mubr.bf16.mxu0 0
  %896 = vmatmul.mubr.bf16.gmra.mrb[0].mxu0 %v489
  %v897 = vpop.f32.mrb[0].mxu0
  %v898 = vadd.f32 0.0, %v897
  %v899 = vpop.f32.mrb[0].mxu0
  %v900 = vpop.f32.mrb[0].mxu0
  %v901 = vadd.f32 0.0, %v900
  %v902 = vpop.f32.mrb[0].mxu0
  %903 = vmatprep.mubr.bf16.mxu0 0
  %904 = vmatmul.mubr.bf16.gmra.mrb[0].mxu0 %v490
  %v905 = vpop.f32.mrb[0].mxu0
  %v906 = vadd.f32 0.0, %v905
  %v907 = vpop.f32.mrb[0].mxu0
  %v908 = vpop.f32.mrb[0].mxu0
  %v909 = vadd.f32 0.0, %v908
  %v910 = vpop.f32.mrb[0].mxu0
  %911 = vmatprep.mubr.bf16.mxu0 0
  %912 = vmatmul.mubr.bf16.gmra.mrb[0].mxu0 %v491
  %v913 = vpop.f32.mrb[0].mxu0
  %v914 = vadd.f32 0.0, %v913
  %v915 = vpop.f32.mrb[0].mxu0
  %v916 = vpop.f32.mrb[0].mxu0
  %v917 = vadd.f32 0.0, %v916
  %v918 = vpop.f32.mrb[0].mxu0
  %919 = vmatprep.mubr.bf16.mxu0 0
  %920 = vmatmul.mubr.bf16.gmra.mrb[0].mxu0 %v492
  %v921 = vpop.f32.mrb[0].mxu0
  %v922 = vadd.f32 0.0, %v921
  %v923 = vpop.f32.mrb[0].mxu0
  %v924 = vpop.f32.mrb[0].mxu0
  %v925 = vadd.f32 0.0, %v924
  %v926 = vpop.f32.mrb[0].mxu0
  %927 = vmatprep.mubr.bf16.mxu0 0
  %928 = vmatmul.mubr.bf16.gmra.mrb[0].mxu0 %v493
  %v929 = vpop.f32.mrb[0].mxu0
  %v930 = vadd.f32 0.0, %v929
  %v931 = vpop.f32.mrb[0].mxu0
  %v932 = vpop.f32.mrb[0].mxu0
  %v933 = vadd.f32 0.0, %v932
  %v934 = vpop.f32.mrb[0].mxu0
  %935 = vmatprep.mubr.bf16.mxu0 0
  %936 = vmatmul.mubr.bf16.gmra.mrb[0].mxu0 %v494
  %v937 = vpop.f32.mrb[0].mxu0
  %v938 = vadd.f32 0.0, %v937
  %v939 = vpop.f32.mrb[0].mxu0
  %v940 = vpop.f32.mrb[0].mxu0
  %v941 = vadd.f32 0.0, %v940
  %v942 = vpop.f32.mrb[0].mxu0
  %943 = vmatprep.mubr.bf16.mxu0 0
  %944 = vmatmul.mubr.bf16.gmra.mrb[0].mxu0 %v495
  %v945 = vpop.f32.mrb[0].mxu0
  %v946 = vadd.f32 0.0, %v945
  %v947 = vpop.f32.mrb[0].mxu0
  %v948 = vpop.f32.mrb[0].mxu0
  %v949 = vadd.f32 0.0, %v948
  %v950 = vpop.f32.mrb[0].mxu0
  %951 = vmatprep.mubr.bf16.mxu0 0
  %952 = vmatmul.mubr.bf16.gmra.mrb[0].mxu0 %v496
  %v953 = vpop.f32.mrb[0].mxu0
  %v954 = vadd.f32 0.0, %v953
  %v955 = vpop.f32.mrb[0].mxu0
  %v956 = vpop.f32.mrb[0].mxu0
  %v957 = vadd.f32 0.0, %v956
  %v958 = vpop.f32.mrb[0].mxu0
  %959 = vmatprep.mubr.bf16.mxu0 0
  %960 = vmatmul.mubr.bf16.gmra.mrb[0].mxu0 %v497
  %v961 = vpop.f32.mrb[0].mxu0
  %v962 = vadd.f32 0.0, %v961
  %v963 = vpop.f32.mrb[0].mxu0
  %v964 = vpop.f32.mrb[0].mxu0
  %v965 = vadd.f32 0.0, %v964
  %v966 = vpop.f32.mrb[0].mxu0
  %967 = vmatprep.mubr.bf16.mxu0 0
  %968 = vmatmul.mubr.bf16.gmra.mrb[0].mxu0 %v498
  %v969 = vpop.f32.mrb[0].mxu0
  %v970 = vadd.f32 0.0, %v969
  %v971 = vpop.f32.mrb[0].mxu0
  %v972 = vpop.f32.mrb[0].mxu0
  %v973 = vadd.f32 0.0, %v972
  %v974 = vpop.f32.mrb[0].mxu0
  %975 = vmatprep.mubr.bf16.mxu0 0
  %976 = vmatmul.mubr.bf16.gmra.mrb[0].mxu0 %v499
  %v977 = vpop.f32.mrb[0].mxu0
  %v978 = vadd.f32 0.0, %v977
  %v979 = vpop.f32.mrb[0].mxu0
  %v980 = vpop.f32.mrb[0].mxu0
  %v981 = vadd.f32 0.0, %v980
  %v982 = vpop.f32.mrb[0].mxu0
  %983 = vmatprep.mubr.bf16.mxu0 0
  %984 = vmatmul.mubr.bf16.gmra.mrb[0].mxu0 %v500
  %v985 = vpop.f32.mrb[0].mxu0
  %v986 = vadd.f32 0.0, %v985
  %v987 = vpop.f32.mrb[0].mxu0
  %v988 = vpop.f32.mrb[0].mxu0
  %v989 = vadd.f32 0.0, %v988
  %v990 = vpop.f32.mrb[0].mxu0
  %991 = vmatprep.mubr.bf16.mxu0 0
  %992 = vmatmul.mubr.bf16.gmra.mrb[0].mxu0 %v501
  %v993 = vpop.f32.mrb[0].mxu0
  %v994 = vadd.f32 0.0, %v993
  %v995 = vpop.f32.mrb[0].mxu0
  %v996 = vpop.f32.mrb[0].mxu0
  %v997 = vadd.f32 0.0, %v996
  %v998 = vpop.f32.mrb[0].mxu0
  %999 = vmatprep.mubr.bf16.mxu0 0
  %1000 = vmatmul.mubr.bf16.gmra.mrb[0].mxu0 %v502
  %v1001 = vpop.f32.mrb[0].mxu0
  %v1002 = vadd.f32 0.0, %v1001
  %v1003 = vpop.f32.mrb[0].mxu0
  %v1004 = vpop.f32.mrb[0].mxu0
  %v1005 = vadd.f32 0.0, %v1004
  %v1006 = vpop.f32.mrb[0].mxu0
  %1007 = vmatprep.mubr.bf16.mxu0 0
  %1008 = vmatmul.mubr.bf16.gmra.mrb[0].mxu0 %v503
  %v1009 = vpop.f32.mrb[0].mxu0
  %v1010 = vadd.f32 0.0, %v1009
  %v1011 = vpop.f32.mrb[0].mxu0
  %v1012 = vpop.f32.mrb[0].mxu0
  %v1013 = vadd.f32 0.0, %v1012
  %v1014 = vpop.f32.mrb[0].mxu0
  %1015 = vmatprep.mubr.bf16.mxu0 0
  %1016 = vmatmul.mubr.bf16.gmra.mrb[0].mxu0 %v504
  %v1017 = vpop.f32.mrb[0].mxu0
  %v1018 = vadd.f32 0.0, %v1017
  %v1019 = vpop.f32.mrb[0].mxu0
  %v1020 = vpop.f32.mrb[0].mxu0
  %v1021 = vadd.f32 0.0, %v1020
  %v1022 = vpop.f32.mrb[0].mxu0
  %1023 = vmatprep.mubr.bf16.mxu0 0
  %1024 = vmatmul.mubr.bf16.gmra.mrb[0].mxu0 %v505
  %v1025 = vpop.f32.mrb[0].mxu0
  %v1026 = vadd.f32 0.0, %v1025
  %v1027 = vpop.f32.mrb[0].mxu0
  %v1028 = vpop.f32.mrb[0].mxu0
  %v1029 = vadd.f32 0.0, %v1028
  %v1030 = vpop.f32.mrb[0].mxu0
  %1031 = vmatprep.mubr.bf16.mxu0 0
  %1032 = vmatmul.mubr.bf16.gmra.mrb[0].mxu0 %v506
  %v1033 = vpop.f32.mrb[0].mxu0
  %v1034 = vadd.f32 0.0, %v1033
  %v1035 = vpop.f32.mrb[0].mxu0
  %v1036 = vpop.f32.mrb[0].mxu0
  %v1037 = vadd.f32 0.0, %v1036
  %v1038 = vpop.f32.mrb[0].mxu0
  %1039 = vmatprep.mubr.bf16.mxu0 0
  %1040 = vmatmul.mubr.bf16.gmra.mrb[0].mxu0 %v507
  %v1041 = vpop.f32.mrb[0].mxu0
  %v1042 = vadd.f32 0.0, %v1041
  %v1043 = vpop.f32.mrb[0].mxu0
  %v1044 = vpop.f32.mrb[0].mxu0
  %v1045 = vadd.f32 0.0, %v1044
  %v1046 = vpop.f32.mrb[0].mxu0
  %1047 = vmatprep.mubr.bf16.mxu0 0
  %1048 = vmatmul.mubr.bf16.gmra.mrb[0].mxu0 %v508
  %v1049 = vpop.f32.mrb[0].mxu0
  %v1050 = vadd.f32 0.0, %v1049
  %v1051 = vpop.f32.mrb[0].mxu0
  %v1052 = vpop.f32.mrb[0].mxu0
  %v1053 = vadd.f32 0.0, %v1052
  %v1054 = vpop.f32.mrb[0].mxu0
  %1055 = vmatprep.mubr.bf16.mxu0 0
  %1056 = vmatmul.mubr.bf16.gmra.mrb[0].mxu0 %v509
  %v1057 = vpop.f32.mrb[0].mxu0
  %v1058 = vadd.f32 0.0, %v1057
  %v1059 = vpop.f32.mrb[0].mxu0
  %v1060 = vpop.f32.mrb[0].mxu0
  %v1061 = vadd.f32 0.0, %v1060
  %v1062 = vpop.f32.mrb[0].mxu0
  %1063 = vmatprep.mubr.bf16.mxu0 0
  %1064 = vmatmul.mubr.bf16.gmra.mrb[0].mxu0 %v510
  %v1065 = vpop.f32.mrb[0].mxu0
  %v1066 = vadd.f32 0.0, %v1065
  %v1067 = vpop.f32.mrb[0].mxu0
  %v1068 = vpop.f32.mrb[0].mxu0
  %v1069 = vadd.f32 0.0, %v1068
  %v1070 = vpop.f32.mrb[0].mxu0
  %1071 = vmatprep.mubr.bf16.mxu0 0
  %1072 = vmatmul.mubr.bf16.gmra.mrb[0].mxu0 %v511
  %v1073 = vpop.f32.mrb[0].mxu0
  %v1074 = vadd.f32 0.0, %v1073
  %v1075 = vpop.f32.mrb[0].mxu0
  %v1076 = vpop.f32.mrb[0].mxu0
  %v1077 = vadd.f32 0.0, %v1076
  %v1078 = vpop.f32.mrb[0].mxu0
  %1079 = vmatprep.mubr.bf16.mxu0 0
  %1080 = vmatmul.mubr.bf16.gmra.mrb[0].mxu0 %v512
  %v1081 = vpop.f32.mrb[0].mxu0
  %v1082 = vadd.f32 0.0, %v1081
  %v1083 = vpop.f32.mrb[0].mxu0
  %v1084 = vpop.f32.mrb[0].mxu0
  %v1085 = vadd.f32 0.0, %v1084
  %v1086 = vpop.f32.mrb[0].mxu0
  %1087 = vmatprep.mubr.bf16.mxu0 0
  %1088 = vmatmul.mubr.bf16.gmra.mrb[0].mxu0 %v513
  %v1089 = vpop.f32.mrb[0].mxu0
  %v1090 = vadd.f32 0.0, %v1089
  %v1091 = vpop.f32.mrb[0].mxu0
  %v1092 = vpop.f32.mrb[0].mxu0
  %v1093 = vadd.f32 0.0, %v1092
  %v1094 = vpop.f32.mrb[0].mxu0
  %1095 = vmatprep.mubr.bf16.mxu0 0
  %1096 = vmatmul.mubr.bf16.gmra.mrb[0].mxu0 %v514
  %v1097 = vpop.f32.mrb[0].mxu0
  %v1098 = vadd.f32 0.0, %v1097
  %v1099 = vpop.f32.mrb[0].mxu0
  %v1100 = vpop.f32.mrb[0].mxu0
  %v1101 = vadd.f32 0.0, %v1100
  %v1102 = vpop.f32.mrb[0].mxu0
  %1103 = vmatprep.mubr.bf16.mxu0 0
  %1104 = vmatmul.mubr.bf16.gmra.mrb[0].mxu0 %v515
  %v1105 = vpop.f32.mrb[0].mxu0
  %v1106 = vadd.f32 0.0, %v1105
  %v1107 = vpop.f32.mrb[0].mxu0
  %v1108 = vpop.f32.mrb[0].mxu0
  %v1109 = vadd.f32 0.0, %v1108
  %v1110 = vpop.f32.mrb[0].mxu0
  %1111 = vmatprep.mubr.bf16.mxu0 0
  %1112 = vmatmul.mubr.bf16.gmra.mrb[0].mxu0 %v516
  %v1113 = vpop.f32.mrb[0].mxu0
  %v1114 = vadd.f32 0.0, %v1113
  %v1115 = vpop.f32.mrb[0].mxu0
  %v1116 = vpop.f32.mrb[0].mxu0
  %v1117 = vadd.f32 0.0, %v1116
  %v1118 = vpop.f32.mrb[0].mxu0
  %1119 = vmatprep.mubr.bf16.mxu0 0
  %1120 = vmatmul.mubr.bf16.gmra.mrb[0].mxu0 %v517
  %v1121 = vpop.f32.mrb[0].mxu0
  %v1122 = vadd.f32 0.0, %v1121
  %v1123 = vpop.f32.mrb[0].mxu0
  %v1124 = vpop.f32.mrb[0].mxu0
  %v1125 = vadd.f32 0.0, %v1124
  %v1126 = vpop.f32.mrb[0].mxu0
  %1127 = vmatprep.mubr.bf16.mxu0 0
  %1128 = vmatmul.mubr.bf16.gmra.mrb[0].mxu0 %v518
  %v1129 = vpop.f32.mrb[0].mxu0
  %v1130 = vadd.f32 0.0, %v1129
  %v1131 = vpop.f32.mrb[0].mxu0
  %v1132 = vpop.f32.mrb[0].mxu0
  %v1133 = vadd.f32 0.0, %v1132
  %v1134 = vpop.f32.mrb[0].mxu0
  %1135 = vmatprep.mubr.bf16.mxu0 0
  %1136 = vmatmul.mubr.bf16.gmra.mrb[0].mxu0 %v519
  %v1137 = vpop.f32.mrb[0].mxu0
  %v1138 = vadd.f32 0.0, %v1137
  %v1139 = vpop.f32.mrb[0].mxu0
  %v1140 = vpop.f32.mrb[0].mxu0
  %v1141 = vadd.f32 0.0, %v1140
  %v1142 = vpop.f32.mrb[0].mxu0
  %1143 = vmatprep.mubr.bf16.mxu0 0
  %1144 = vmatmul.mubr.bf16.gmra.mrb[0].mxu0 %v520
  %v1145 = vpop.f32.mrb[0].mxu0
  %v1146 = vadd.f32 0.0, %v1145
  %v1147 = vpop.f32.mrb[0].mxu0
  %v1148 = vpop.f32.mrb[0].mxu0
  %v1149 = vadd.f32 0.0, %v1148
  %v1150 = vpop.f32.mrb[0].mxu0
  %1151 = vmatprep.mubr.bf16.mxu0 0
  %1152 = vmatmul.mubr.bf16.gmra.mrb[0].mxu0 %v521
  %v1153 = vpop.f32.mrb[0].mxu0
  %v1154 = vadd.f32 0.0, %v1153
  %v1155 = vpop.f32.mrb[0].mxu0
  %v1156 = vpop.f32.mrb[0].mxu0
  %v1157 = vadd.f32 0.0, %v1156
  %v1158 = vpop.f32.mrb[0].mxu0
  %1159 = vmatprep.mubr.bf16.mxu0 0
  %1160 = vmatmul.mubr.bf16.gmra.mrb[0].mxu0 %v522
  %v1161 = vpop.f32.mrb[0].mxu0
  %v1162 = vadd.f32 0.0, %v1161
  %v1163 = vpop.f32.mrb[0].mxu0
  %v1164 = vpop.f32.mrb[0].mxu0
  %v1165 = vadd.f32 0.0, %v1164
  %v1166 = vpop.f32.mrb[0].mxu0
  %1167 = vmatprep.mubr.bf16.mxu0 0
  %1168 = vmatmul.mubr.bf16.gmra.mrb[0].mxu0 %v523
  %v1169 = vpop.f32.mrb[0].mxu0
  %v1170 = vadd.f32 0.0, %v1169
  %v1171 = vpop.f32.mrb[0].mxu0
  %v1172 = vpop.f32.mrb[0].mxu0
  %v1173 = vadd.f32 0.0, %v1172
  %v1174 = vpop.f32.mrb[0].mxu0
  %1175 = vmatprep.mubr.bf16.mxu0 0
  %1176 = vmatmul.mubr.bf16.gmra.mrb[0].mxu0 %v524
  %v1177 = vpop.f32.mrb[0].mxu0
  %v1178 = vadd.f32 0.0, %v1177
  %v1179 = vpop.f32.mrb[0].mxu0
  %v1180 = vpop.f32.mrb[0].mxu0
  %v1181 = vadd.f32 0.0, %v1180
  %v1182 = vpop.f32.mrb[0].mxu0
  %1183 = vmatprep.mubr.bf16.mxu0 0
  %1184 = vmatmul.mubr.bf16.gmra.mrb[0].mxu0 %v525
  %v1185 = vpop.f32.mrb[0].mxu0
  %v1186 = vadd.f32 0.0, %v1185
  %v1187 = vpop.f32.mrb[0].mxu0
  %v1188 = vpop.f32.mrb[0].mxu0
  %v1189 = vadd.f32 0.0, %v1188
  %v1190 = vpop.f32.mrb[0].mxu0
  %1191 = vmatprep.mubr.bf16.mxu0 0
  %1192 = vmatmul.mubr.bf16.gmra.mrb[0].mxu0 %v526
  %v1193 = vpop.f32.mrb[0].mxu0
  %v1194 = vadd.f32 0.0, %v1193
  %v1195 = vpop.f32.mrb[0].mxu0
  %v1196 = vpop.f32.mrb[0].mxu0
  %v1197 = vadd.f32 0.0, %v1196
  %v1198 = vpop.f32.mrb[0].mxu0
  %1199 = vmatprep.mubr.bf16.mxu0 0
  %1200 = vmatmul.mubr.bf16.gmra.mrb[0].mxu0 %v527
  %v1201 = vpop.f32.mrb[0].mxu0
  %v1202 = vadd.f32 0.0, %v1201
  %v1203 = vpop.f32.mrb[0].mxu0
  %v1204 = vpop.f32.mrb[0].mxu0
  %v1205 = vadd.f32 0.0, %v1204
  %v1206 = vpop.f32.mrb[0].mxu0
  %1207 = vmatprep.mubr.bf16.mxu0 0
  %1208 = vmatmul.mubr.bf16.gmra.mrb[0].mxu0 %v528
  %v1209 = vpop.f32.mrb[0].mxu0
  %v1210 = vadd.f32 0.0, %v1209
  %v1211 = vpop.f32.mrb[0].mxu0
  %v1212 = vpop.f32.mrb[0].mxu0
  %v1213 = vadd.f32 0.0, %v1212
  %v1214 = vpop.f32.mrb[0].mxu0
  %1215 = vmatprep.mubr.bf16.mxu0 0
  %1216 = vmatmul.mubr.bf16.gmra.mrb[0].mxu0 %v529
  %v1217 = vpop.f32.mrb[0].mxu0
  %v1218 = vadd.f32 0.0, %v1217
  %v1219 = vpop.f32.mrb[0].mxu0
  %v1220 = vpop.f32.mrb[0].mxu0
  %v1221 = vadd.f32 0.0, %v1220
  %v1222 = vpop.f32.mrb[0].mxu0
  %1223 = vmatprep.mubr.bf16.mxu0 0
  %1224 = vmatmul.mubr.bf16.gmra.mrb[0].mxu0 %v530
  %v1225 = vpop.f32.mrb[0].mxu0
  %v1226 = vadd.f32 0.0, %v1225
  %v1227 = vpop.f32.mrb[0].mxu0
  %v1228 = vpop.f32.mrb[0].mxu0
  %v1229 = vadd.f32 0.0, %v1228
  %v1230 = vpop.f32.mrb[0].mxu0
  %1231 = vmatprep.mubr.bf16.mxu0 0
  %1232 = vmatmul.mubr.bf16.gmra.mrb[0].mxu0 %v531
  %v1233 = vpop.f32.mrb[0].mxu0
  %v1234 = vadd.f32 0.0, %v1233
  %v1235 = vpop.f32.mrb[0].mxu0
  %v1236 = vpop.f32.mrb[0].mxu0
  %v1237 = vadd.f32 0.0, %v1236
  %v1238 = vpop.f32.mrb[0].mxu0
  %1239 = vmatprep.mubr.bf16.mxu0 0
  %1240 = vmatmul.mubr.bf16.gmra.mrb[0].mxu0 %v532
  %v1241 = vpop.f32.mrb[0].mxu0
  %v1242 = vadd.f32 0.0, %v1241
  %v1243 = vpop.f32.mrb[0].mxu0
  %v1244 = vpop.f32.mrb[0].mxu0
  %v1245 = vadd.f32 0.0, %v1244
  %v1246 = vpop.f32.mrb[0].mxu0
  %1247 = vmatprep.mubr.bf16.mxu0 0
  %1248 = vmatmul.mubr.bf16.gmra.mrb[0].mxu0 %v533
  %v1249 = vpop.f32.mrb[0].mxu0
  %v1250 = vadd.f32 0.0, %v1249
  %v1251 = vpop.f32.mrb[0].mxu0
  %v1252 = vpop.f32.mrb[0].mxu0
  %v1253 = vadd.f32 0.0, %v1252
  %v1254 = vpop.f32.mrb[0].mxu0
  %1255 = vmatprep.mubr.bf16.mxu0 0
  %1256 = vmatmul.mubr.bf16.gmra.mrb[0].mxu0 %v534
  %v1257 = vpop.f32.mrb[0].mxu0
  %v1258 = vadd.f32 0.0, %v1257
  %v1259 = vpop.f32.mrb[0].mxu0
  %v1260 = vpop.f32.mrb[0].mxu0
  %v1261 = vadd.f32 0.0, %v1260
  %v1262 = vpop.f32.mrb[0].mxu0
  %1263 = vdwg.mxu0
  %v1264 = vld [vmem:[%s0 + $0x240] sm:$0xf]
  %v1265 = vld [vmem:[%s0 + $0x244] sm:$0xf]
  %v1266 = vld [vmem:[%s0 + $0x248] sm:$0xf]
  %v1267 = vld [vmem:[%s0 + $0x24c] sm:$0xf]
  %v1268 = vld [vmem:[%s0 + $0x250] sm:$0xf]
  %v1269 = vld [vmem:[%s0 + $0x254] sm:$0xf]
  %v1270 = vld [vmem:[%s0 + $0x258] sm:$0xf]
  %v1271 = vld [vmem:[%s0 + $0x25c] sm:$0xf]
  %v1272 = vld [vmem:[%s0 + $0x260] sm:$0xf]
  %v1273 = vld [vmem:[%s0 + $0x264] sm:$0xf]
  %v1274 = vld [vmem:[%s0 + $0x268] sm:$0xf]
  %v1275 = vld [vmem:[%s0 + $0x26c] sm:$0xf]
  %v1276 = vld [vmem:[%s0 + $0x270] sm:$0xf]
  %v1277 = vld [vmem:[%s0 + $0x274] sm:$0xf]
  %v1278 = vld [vmem:[%s0 + $0x278] sm:$0xf]
  %v1279 = vld [vmem:[%s0 + $0x27c] sm:$0xf]
  %v1280 = vld [vmem:[%s0 + $0x280] sm:$0xf]
  %v1281 = vld [vmem:[%s0 + $0x284] sm:$0xf]
  %v1282 = vld [vmem:[%s0 + $0x288] sm:$0xf]
  %v1283 = vld [vmem:[%s0 + $0x28c] sm:$0xf]
  %v1284 = vld [vmem:[%s0 + $0x290] sm:$0xf]
  %v1285 = vld [vmem:[%s0 + $0x294] sm:$0xf]
  %v1286 = vld [vmem:[%s0 + $0x298] sm:$0xf]
  %v1287 = vld [vmem:[%s0 + $0x29c] sm:$0xf]
  %v1288 = vld [vmem:[%s0 + $0x2a0] sm:$0xf]
  %v1289 = vld [vmem:[%s0 + $0x2a4] sm:$0xf]
  %v1290 = vld [vmem:[%s0 + $0x2a8] sm:$0xf]
  %v1291 = vld [vmem:[%s0 + $0x2ac] sm:$0xf]
  %v1292 = vld [vmem:[%s0 + $0x2b0] sm:$0xf]
  %v1293 = vld [vmem:[%s0 + $0x2b4] sm:$0xf]
  %v1294 = vld [vmem:[%s0 + $0x2b8] sm:$0xf]
  %v1295 = vld [vmem:[%s0 + $0x2bc] sm:$0xf]
  %v1296 = vld [vmem:[%s0 + $0x2c0] sm:$0xf]
  %v1297 = vld [vmem:[%s0 + $0x2c4] sm:$0xf]
  %v1298 = vld [vmem:[%s0 + $0x2c8] sm:$0xf]
  %v1299 = vld [vmem:[%s0 + $0x2cc] sm:$0xf]
  %v1300 = vld [vmem:[%s0 + $0x2d0] sm:$0xf]
  %v1301 = vld [vmem:[%s0 + $0x2d4] sm:$0xf]
  %v1302 = vld [vmem:[%s0 + $0x2d8] sm:$0xf]
  %v1303 = vld [vmem:[%s0 + $0x2dc] sm:$0xf]
  %v1304 = vld [vmem:[%s0 + $0x2e0] sm:$0xf]
  %v1305 = vld [vmem:[%s0 + $0x2e4] sm:$0xf]
  %v1306 = vld [vmem:[%s0 + $0x2e8] sm:$0xf]
  %v1307 = vld [vmem:[%s0 + $0x2ec] sm:$0xf]
  %v1308 = vld [vmem:[%s0 + $0x2f0] sm:$0xf]
  %v1309 = vld [vmem:[%s0 + $0x2f4] sm:$0xf]
  %v1310 = vld [vmem:[%s0 + $0x2f8] sm:$0xf]
  %v1311 = vld [vmem:[%s0 + $0x2fc] sm:$0xf]
  %v1312 = vld [vmem:[%s0 + $0x300] sm:$0xf]
  %v1313 = vld [vmem:[%s0 + $0x304] sm:$0xf]
  %v1314 = vld [vmem:[%s0 + $0x308] sm:$0xf]
  %v1315 = vld [vmem:[%s0 + $0x30c] sm:$0xf]
  %v1316 = vld [vmem:[%s0 + $0x310] sm:$0xf]
  %v1317 = vld [vmem:[%s0 + $0x314] sm:$0xf]
  %v1318 = vld [vmem:[%s0 + $0x318] sm:$0xf]
  %v1319 = vld [vmem:[%s0 + $0x31c] sm:$0xf]
  %v1320 = vld [vmem:[%s0 + $0x320] sm:$0xf]
  %v1321 = vld [vmem:[%s0 + $0x324] sm:$0xf]
  %v1322 = vld [vmem:[%s0 + $0x328] sm:$0xf]
  %v1323 = vld [vmem:[%s0 + $0x32c] sm:$0xf]
  %v1324 = vld [vmem:[%s0 + $0x330] sm:$0xf]
  %v1325 = vld [vmem:[%s0 + $0x334] sm:$0xf]
  %v1326 = vld [vmem:[%s0 + $0x338] sm:$0xf]
  %v1327 = vld [vmem:[%s0 + $0x33c] sm:$0xf]
  %v1328 = vld [vmem:[%s0 + $0x340] sm:$0xf]
  %v1329 = vld [vmem:[%s0 + $0x344] sm:$0xf]
  %v1330 = vld [vmem:[%s0 + $0x348] sm:$0xf]
  %v1331 = vld [vmem:[%s0 + $0x34c] sm:$0xf]
  %v1332 = vld [vmem:[%s0 + $0x350] sm:$0xf]
  %v1333 = vld [vmem:[%s0 + $0x354] sm:$0xf]
  %v1334 = vld [vmem:[%s0 + $0x358] sm:$0xf]
  %v1335 = vld [vmem:[%s0 + $0x35c] sm:$0xf]
  %v1336 = vld [vmem:[%s0 + $0x360] sm:$0xf]
  %v1337 = vld [vmem:[%s0 + $0x364] sm:$0xf]
  %v1338 = vld [vmem:[%s0 + $0x368] sm:$0xf]
  %v1339 = vld [vmem:[%s0 + $0x36c] sm:$0xf]
  %v1340 = vld [vmem:[%s0 + $0x370] sm:$0xf]
  %v1341 = vld [vmem:[%s0 + $0x374] sm:$0xf]
  %v1342 = vld [vmem:[%s0 + $0x378] sm:$0xf]
  %v1343 = vld [vmem:[%s0 + $0x37c] sm:$0xf]
  %v1344 = vld [vmem:[%s0 + $0x380] sm:$0xf]
  %v1345 = vld [vmem:[%s0 + $0x384] sm:$0xf]
  %v1346 = vld [vmem:[%s0 + $0x388] sm:$0xf]
  %v1347 = vld [vmem:[%s0 + $0x38c] sm:$0xf]
  %v1348 = vld [vmem:[%s0 + $0x390] sm:$0xf]
  %v1349 = vld [vmem:[%s0 + $0x394] sm:$0xf]
  %v1350 = vld [vmem:[%s0 + $0x398] sm:$0xf]
  %v1351 = vld [vmem:[%s0 + $0x39c] sm:$0xf]
  %v1352 = vld [vmem:[%s0 + $0x3a0] sm:$0xf]
  %v1353 = vld [vmem:[%s0 + $0x3a4] sm:$0xf]
  %v1354 = vld [vmem:[%s0 + $0x3a8] sm:$0xf]
  %v1355 = vld [vmem:[%s0 + $0x3ac] sm:$0xf]
  %v1356 = vld [vmem:[%s0 + $0x3b0] sm:$0xf]
  %v1357 = vld [vmem:[%s0 + $0x3b4] sm:$0xf]
  %v1358 = vld [vmem:[%s0 + $0x3b8] sm:$0xf]
  %v1359 = vld [vmem:[%s0 + $0x3bc] sm:$0xf]
  %v1360 = vld [vmem:[%s0 + $0x3c0] sm:$0xf]
  %v1361 = vld [vmem:[%s0 + $0x3c4] sm:$0xf]
  %v1362 = vld [vmem:[%s0 + $0x3c8] sm:$0xf]
  %v1363 = vld [vmem:[%s0 + $0x3cc] sm:$0xf]
  %v1364 = vld [vmem:[%s0 + $0x3d0] sm:$0xf]
  %v1365 = vld [vmem:[%s0 + $0x3d4] sm:$0xf]
  %v1366 = vld [vmem:[%s0 + $0x3d8] sm:$0xf]
  %v1367 = vld [vmem:[%s0 + $0x3dc] sm:$0xf]
  %v1368 = vld [vmem:[%s0 + $0x3e0] sm:$0xf]
  %v1369 = vld [vmem:[%s0 + $0x3e4] sm:$0xf]
  %v1370 = vld [vmem:[%s0 + $0x3e8] sm:$0xf]
  %v1371 = vld [vmem:[%s0 + $0x3ec] sm:$0xf]
  %v1372 = vld [vmem:[%s0 + $0x3f0] sm:$0xf]
  %v1373 = vld [vmem:[%s0 + $0x3f4] sm:$0xf]
  %v1374 = vld [vmem:[%s0 + $0x3f8] sm:$0xf]
  %v1375 = vld [vmem:[%s0 + $0x3fc] sm:$0xf]
  %v1376 = vld [vmem:[%s0 + $0x400] sm:$0xf]
  %v1377 = vld [vmem:[%s0 + $0x404] sm:$0xf]
  %v1378 = vld [vmem:[%s0 + $0x408] sm:$0xf]
  %v1379 = vld [vmem:[%s0 + $0x40c] sm:$0xf]
  %v1380 = vld [vmem:[%s0 + $0x410] sm:$0xf]
  %v1381 = vld [vmem:[%s0 + $0x414] sm:$0xf]
  %v1382 = vld [vmem:[%s0 + $0x418] sm:$0xf]
  %v1383 = vld [vmem:[%s0 + $0x41c] sm:$0xf]
  %v1384 = vld [vmem:[%s0 + $0x420] sm:$0xf]
  %v1385 = vld [vmem:[%s0 + $0x424] sm:$0xf]
  %v1386 = vld [vmem:[%s0 + $0x428] sm:$0xf]
  %v1387 = vld [vmem:[%s0 + $0x42c] sm:$0xf]
  %v1388 = vld [vmem:[%s0 + $0x430] sm:$0xf]
  %v1389 = vld [vmem:[%s0 + $0x434] sm:$0xf]
  %v1390 = vld [vmem:[%s0 + $0x438] sm:$0xf]
  %v1391 = vld [vmem:[%s0 + $0x43c] sm:$0xf]
  %v1392 = vld [vmem:[%s0 + $0x440] sm:$0xf]
  %v1393 = vld [vmem:[%s0 + $0x444] sm:$0xf]
  %v1394 = vld [vmem:[%s0 + $0x448] sm:$0xf]
  %v1395 = vld [vmem:[%s0 + $0x44c] sm:$0xf]
  %v1396 = vld [vmem:[%s0 + $0x450] sm:$0xf]
  %v1397 = vld [vmem:[%s0 + $0x454] sm:$0xf]
  %v1398 = vld [vmem:[%s0 + $0x458] sm:$0xf]
  %v1399 = vld [vmem:[%s0 + $0x45c] sm:$0xf]
  %v1400 = vld [vmem:[%s0 + $0x460] sm:$0xf]
  %v1401 = vld [vmem:[%s0 + $0x464] sm:$0xf]
  %v1402 = vld [vmem:[%s0 + $0x468] sm:$0xf]
  %v1403 = vld [vmem:[%s0 + $0x46c] sm:$0xf]
  %v1404 = vld [vmem:[%s0 + $0x470] sm:$0xf]
  %v1405 = vld [vmem:[%s0 + $0x474] sm:$0xf]
  %v1406 = vld [vmem:[%s0 + $0x478] sm:$0xf]
  %v1407 = vld [vmem:[%s0 + $0x47c] sm:$0xf]
  %v1552 = vunpack.c.l.b16 %v1264
  %v1553 = vunpack.c.l.b16 %v1265
  %v1554 = vunpack.c.l.b16 %v1266
  %v1555 = vunpack.c.l.b16 %v1267
  %v1556 = vunpack.c.l.b16 %v1268
  %v1557 = vunpack.c.l.b16 %v1269
  %v1558 = vunpack.c.l.b16 %v1270
  %v1559 = vunpack.c.l.b16 %v1271
  %v1560 = vunpack.c.l.b16 %v1272
  %v1561 = vunpack.c.l.b16 %v1273
  %v1562 = vunpack.c.l.b16 %v1274
  %v1563 = vunpack.c.l.b16 %v1275
  %v1564 = vunpack.c.l.b16 %v1276
  %v1565 = vunpack.c.l.b16 %v1277
  %v1566 = vunpack.c.l.b16 %v1278
  %v1567 = vunpack.c.l.b16 %v1279
  %v1568 = vunpack.c.l.b16 %v1280
  %v1569 = vunpack.c.l.b16 %v1281
  %v1570 = vunpack.c.l.b16 %v1282
  %v1571 = vunpack.c.l.b16 %v1283
  %v1572 = vunpack.c.l.b16 %v1284
  %v1573 = vunpack.c.l.b16 %v1285
  %v1574 = vunpack.c.l.b16 %v1286
  %v1575 = vunpack.c.l.b16 %v1287
  %v1576 = vunpack.c.l.b16 %v1288
  %v1577 = vunpack.c.l.b16 %v1289
  %v1578 = vunpack.c.l.b16 %v1290
  %v1579 = vunpack.c.l.b16 %v1291
  %v1580 = vunpack.c.l.b16 %v1292
  %v1581 = vunpack.c.l.b16 %v1293
  %v1582 = vunpack.c.l.b16 %v1294
  %v1583 = vunpack.c.l.b16 %v1295
  %v1584 = vunpack.c.l.b16 %v1296
  %v1585 = vunpack.c.l.b16 %v1297
  %v1586 = vunpack.c.l.b16 %v1298
  %v1587 = vunpack.c.l.b16 %v1299
  %v1588 = vunpack.c.l.b16 %v1300
  %v1589 = vunpack.c.l.b16 %v1301
  %v1590 = vunpack.c.l.b16 %v1302
  %v1591 = vunpack.c.l.b16 %v1303
  %v1592 = vunpack.c.l.b16 %v1304
  %v1593 = vunpack.c.l.b16 %v1305
  %v1594 = vunpack.c.l.b16 %v1306
  %v1595 = vunpack.c.l.b16 %v1307
  %v1596 = vunpack.c.l.b16 %v1308
  %v1597 = vunpack.c.l.b16 %v1309
  %v1598 = vunpack.c.l.b16 %v1310
  %v1599 = vunpack.c.l.b16 %v1311
  %v1600 = vunpack.c.l.b16 %v1312
  %v1601 = vunpack.c.l.b16 %v1313
  %v1602 = vunpack.c.l.b16 %v1314
  %v1603 = vunpack.c.l.b16 %v1315
  %v1604 = vunpack.c.l.b16 %v1316
  %v1605 = vunpack.c.l.b16 %v1317
  %v1606 = vunpack.c.l.b16 %v1318
  %v1607 = vunpack.c.l.b16 %v1319
  %v1608 = vunpack.c.l.b16 %v1320
  %v1609 = vunpack.c.l.b16 %v1321
  %v1610 = vunpack.c.l.b16 %v1322
  %v1611 = vunpack.c.l.b16 %v1323
  %v1612 = vunpack.c.l.b16 %v1324
  %v1613 = vunpack.c.l.b16 %v1325
  %v1614 = vunpack.c.l.b16 %v1326
  %v1615 = vunpack.c.l.b16 %v1327
  %v1616 = vunpack.c.l.b16 %v1328
  %v1617 = vunpack.c.l.b16 %v1329
  %v1618 = vunpack.c.l.b16 %v1330
  %v1619 = vunpack.c.l.b16 %v1331
  %v1620 = vunpack.c.l.b16 %v1332
  %v1621 = vunpack.c.l.b16 %v1333
  %v1622 = vunpack.c.l.b16 %v1334
  %v1623 = vunpack.c.l.b16 %v1335
  %v1624 = vunpack.c.l.b16 %v1336
  %v1625 = vunpack.c.l.b16 %v1337
  %v1626 = vunpack.c.l.b16 %v1338
  %v1627 = vunpack.c.l.b16 %v1339
  %v1628 = vunpack.c.l.b16 %v1340
  %v1629 = vunpack.c.l.b16 %v1341
  %v1630 = vunpack.c.l.b16 %v1342
  %v1631 = vunpack.c.l.b16 %v1343
  %v1632 = vunpack.c.l.b16 %v1344
  %v1633 = vunpack.c.l.b16 %v1345
  %v1634 = vunpack.c.l.b16 %v1346
  %v1635 = vunpack.c.l.b16 %v1347
  %v1636 = vunpack.c.l.b16 %v1348
  %v1637 = vunpack.c.l.b16 %v1349
  %v1638 = vunpack.c.l.b16 %v1350
  %v1639 = vunpack.c.l.b16 %v1351
  %v1640 = vunpack.c.l.b16 %v1352
  %v1641 = vunpack.c.l.b16 %v1353
  %v1642 = vunpack.c.l.b16 %v1354
  %v1643 = vunpack.c.l.b16 %v1355
  %v1644 = vunpack.c.l.b16 %v1356
  %v1645 = vunpack.c.l.b16 %v1357
  %v1646 = vunpack.c.l.b16 %v1358
  %v1647 = vunpack.c.l.b16 %v1359
  %v1648 = vunpack.c.l.b16 %v1360
  %v1649 = vunpack.c.l.b16 %v1361
  %v1650 = vunpack.c.l.b16 %v1362
  %v1651 = vunpack.c.l.b16 %v1363
  %v1652 = vunpack.c.l.b16 %v1364
  %v1653 = vunpack.c.l.b16 %v1365
  %v1654 = vunpack.c.l.b16 %v1366
  %v1655 = vunpack.c.l.b16 %v1367
  %v1656 = vunpack.c.l.b16 %v1368
  %v1657 = vunpack.c.l.b16 %v1369
  %v1658 = vunpack.c.l.b16 %v1370
  %v1659 = vunpack.c.l.b16 %v1371
  %v1660 = vunpack.c.l.b16 %v1372
  %v1661 = vunpack.c.l.b16 %v1373
  %v1662 = vunpack.c.l.b16 %v1374
  %v1663 = vunpack.c.l.b16 %v1375
  %v1664 = vunpack.c.l.b16 %v1376
  %v1665 = vunpack.c.l.b16 %v1377
  %v1666 = vunpack.c.l.b16 %v1378
  %v1667 = vunpack.c.l.b16 %v1379
  %v1668 = vunpack.c.l.b16 %v1380
  %v1669 = vunpack.c.l.b16 %v1381
  %v1670 = vunpack.c.l.b16 %v1382
  %v1671 = vunpack.c.l.b16 %v1383
  %v1672 = vunpack.c.l.b16 %v1384
  %v1673 = vunpack.c.l.b16 %v1385
  %v1674 = vunpack.c.l.b16 %v1386
  %v1675 = vunpack.c.l.b16 %v1387
  %v1676 = vunpack.c.l.b16 %v1388
  %v1677 = vunpack.c.l.b16 %v1389
  %v1678 = vunpack.c.l.b16 %v1390
  %v1679 = vunpack.c.l.b16 %v1391
  %v1680 = vunpack.c.l.b16 %v1392
  %v1681 = vunpack.c.l.b16 %v1393
  %v1682 = vunpack.c.l.b16 %v1394
  %v1683 = vunpack.c.l.b16 %v1395
  %v1684 = vunpack.c.l.b16 %v1396
  %v1685 = vunpack.c.l.b16 %v1397
  %v1686 = vunpack.c.l.b16 %v1398
  %v1687 = vunpack.c.l.b16 %v1399
  %v1688 = vunpack.c.l.b16 %v1400
  %v1689 = vunpack.c.l.b16 %v1401
  %v1690 = vunpack.c.l.b16 %v1402
  %v1691 = vunpack.c.l.b16 %v1403
  %v1692 = vunpack.c.l.b16 %v1404
  %v1693 = vunpack.c.l.b16 %v1405
  %v1694 = vunpack.c.l.b16 %v1406
  %v1695 = vunpack.c.l.b16 %v1407
  %v1696 = vpack.c.b16 %v1553, %v1552
  %v1697 = vpack.c.b16 %v1555, %v1554
  %v1698 = vpack.c.b16 %v1557, %v1556
  %v1699 = vpack.c.b16 %v1559, %v1558
  %v1700 = vpack.c.b16 %v1561, %v1560
  %v1701 = vpack.c.b16 %v1563, %v1562
  %v1702 = vpack.c.b16 %v1565, %v1564
  %v1703 = vpack.c.b16 %v1567, %v1566
  %v1704 = vpack.c.b16 %v1569, %v1568
  %v1705 = vpack.c.b16 %v1571, %v1570
  %v1706 = vpack.c.b16 %v1573, %v1572
  %v1707 = vpack.c.b16 %v1575, %v1574
  %v1708 = vpack.c.b16 %v1577, %v1576
  %v1709 = vpack.c.b16 %v1579, %v1578
  %v1710 = vpack.c.b16 %v1581, %v1580
  %v1711 = vpack.c.b16 %v1583, %v1582
  %v1712 = vpack.c.b16 %v1585, %v1584
  %v1713 = vpack.c.b16 %v1587, %v1586
  %v1714 = vpack.c.b16 %v1589, %v1588
  %v1715 = vpack.c.b16 %v1591, %v1590
  %v1716 = vpack.c.b16 %v1593, %v1592
  %v1717 = vpack.c.b16 %v1595, %v1594
  %v1718 = vpack.c.b16 %v1597, %v1596
  %v1719 = vpack.c.b16 %v1599, %v1598
  %v1720 = vpack.c.b16 %v1601, %v1600
  %v1721 = vpack.c.b16 %v1603, %v1602
  %v1722 = vpack.c.b16 %v1605, %v1604
  %v1723 = vpack.c.b16 %v1607, %v1606
  %v1724 = vpack.c.b16 %v1609, %v1608
  %v1725 = vpack.c.b16 %v1611, %v1610
  %v1726 = vpack.c.b16 %v1613, %v1612
  %v1727 = vpack.c.b16 %v1615, %v1614
  %v1728 = vpack.c.b16 %v1617, %v1616
  %v1729 = vpack.c.b16 %v1619, %v1618
  %v1730 = vpack.c.b16 %v1621, %v1620
  %v1731 = vpack.c.b16 %v1623, %v1622
  %v1732 = vpack.c.b16 %v1625, %v1624
  %v1733 = vpack.c.b16 %v1627, %v1626
  %v1734 = vpack.c.b16 %v1629, %v1628
  %v1735 = vpack.c.b16 %v1631, %v1630
  %v1736 = vpack.c.b16 %v1633, %v1632
  %v1737 = vpack.c.b16 %v1635, %v1634
  %v1738 = vpack.c.b16 %v1637, %v1636
  %v1739 = vpack.c.b16 %v1639, %v1638
  %v1740 = vpack.c.b16 %v1641, %v1640
  %v1741 = vpack.c.b16 %v1643, %v1642
  %v1742 = vpack.c.b16 %v1645, %v1644
  %v1743 = vpack.c.b16 %v1647, %v1646
  %v1744 = vpack.c.b16 %v1649, %v1648
  %v1745 = vpack.c.b16 %v1651, %v1650
  %v1746 = vpack.c.b16 %v1653, %v1652
  %v1747 = vpack.c.b16 %v1655, %v1654
  %v1748 = vpack.c.b16 %v1657, %v1656
  %v1749 = vpack.c.b16 %v1659, %v1658
  %v1750 = vpack.c.b16 %v1661, %v1660
  %v1751 = vpack.c.b16 %v1663, %v1662
  %v1752 = vpack.c.b16 %v1665, %v1664
  %v1753 = vpack.c.b16 %v1667, %v1666
  %v1754 = vpack.c.b16 %v1669, %v1668
  %v1755 = vpack.c.b16 %v1671, %v1670
  %v1756 = vpack.c.b16 %v1673, %v1672
  %v1757 = vpack.c.b16 %v1675, %v1674
  %v1758 = vpack.c.b16 %v1677, %v1676
  %v1759 = vpack.c.b16 %v1679, %v1678
  %v1760 = vpack.c.b16 %v1681, %v1680
  %v1761 = vpack.c.b16 %v1683, %v1682
  %v1762 = vpack.c.b16 %v1685, %v1684
  %v1763 = vpack.c.b16 %v1687, %v1686
  %v1764 = vpack.c.b16 %v1689, %v1688
  %v1765 = vpack.c.b16 %v1691, %v1690
  %v1766 = vpack.c.b16 %v1693, %v1692
  %v1767 = vpack.c.b16 %v1695, %v1694
  %1840 = vmatprep.subr.bf16.mxu0 0
  %1841 = vmatpush1.bf16.msra.mxu0 %v639
  %1842 = vmatprep.subr.bf16.mxu0 0
  %1843 = vmatpush1.bf16.msra.mxu0 %v640
  %1844 = vmatprep.subr.bf16.mxu0 0
  %1845 = vmatpush1.bf16.msra.mxu0 %v641
  %1846 = vmatprep.subr.bf16.mxu0 0
  %1847 = vmatpush1.bf16.msra.mxu0 %v642
  %1848 = vmatprep.subr.bf16.mxu0 0
  %1849 = vmatpush1.bf16.msra.mxu0 %v643
  %1850 = vmatprep.subr.bf16.mxu0 0
  %1851 = vmatpush1.bf16.msra.mxu0 %v644
  %1852 = vmatprep.subr.bf16.mxu0 0
  %1853 = vmatpush1.bf16.msra.mxu0 %v645
  %1854 = vmatprep.subr.bf16.mxu0 0
  %1855 = vmatpush1.bf16.msra.mxu0 %v646
  %1856 = vmatprep.subr.bf16.mxu0 0
  %1857 = vmatpush1.bf16.msra.mxu0 0
  %1858 = vmatprep.subr.bf16.mxu0 0
  %1859 = vmatpush1.bf16.msra.mxu0 0
  %1860 = vmatprep.subr.bf16.mxu0 0
  %1861 = vmatpush1.bf16.msra.mxu0 0
  %1862 = vmatprep.subr.bf16.mxu0 0
  %1863 = vmatpush1.bf16.msra.mxu0 0
  %1864 = vmatprep.subr.bf16.mxu0 0
  %1865 = vmatpush1.bf16.msra.mxu0 0
  %1866 = vmatprep.subr.bf16.mxu0 0
  %1867 = vmatpush1.bf16.msra.mxu0 0
  %1868 = vmatprep.subr.bf16.mxu0 0
  %1869 = vmatpush1.bf16.msra.mxu0 0
  %1870 = vmatprep.subr.bf16.mxu0 0
  %1871 = vmatpush1.bf16.msra.mxu0 0
  %1872 = vmatprep.mubr.bf16.mxu0 0
  %1873 = vmatmul.mubr.bf16.gmra.mrb[0].mxu0 %v1696
  %v1874 = vpop.f32.mrb[0].mxu0
  %v1875 = vadd.f32 0.0, %v1874
  %v1876 = vpop.f32.mrb[0].mxu0
  %v1877 = vpop.f32.mrb[0].mxu0
  %v1878 = vadd.f32 0.0, %v1877
  %v1879 = vpop.f32.mrb[0].mxu0
  %1880 = vmatprep.mubr.bf16.mxu0 0
  %1881 = vmatmul.mubr.bf16.gmra.mrb[0].mxu0 %v1697
  %v1882 = vpop.f32.mrb[0].mxu0
  %v1883 = vadd.f32 0.0, %v1882
  %v1884 = vpop.f32.mrb[0].mxu0
  %v1885 = vpop.f32.mrb[0].mxu0
  %v1886 = vadd.f32 0.0, %v1885
  %v1887 = vpop.f32.mrb[0].mxu0
  %1888 = vmatprep.mubr.bf16.mxu0 0
  %1889 = vmatmul.mubr.bf16.gmra.mrb[0].mxu0 %v1698
  %v1890 = vpop.f32.mrb[0].mxu0
  %v1891 = vadd.f32 0.0, %v1890
  %v1892 = vpop.f32.mrb[0].mxu0
  %v1893 = vpop.f32.mrb[0].mxu0
  %v1894 = vadd.f32 0.0, %v1893
  %v1895 = vpop.f32.mrb[0].mxu0
  %1896 = vmatprep.mubr.bf16.mxu0 0
  %1897 = vmatmul.mubr.bf16.gmra.mrb[0].mxu0 %v1699
  %v1898 = vpop.f32.mrb[0].mxu0
  %v1899 = vadd.f32 0.0, %v1898
  %v1900 = vpop.f32.mrb[0].mxu0
  %v1901 = vpop.f32.mrb[0].mxu0
  %v1902 = vadd.f32 0.0, %v1901
  %v1903 = vpop.f32.mrb[0].mxu0
  %1904 = vmatprep.mubr.bf16.mxu0 0
  %1905 = vmatmul.mubr.bf16.gmra.mrb[0].mxu0 %v1700
  %v1906 = vpop.f32.mrb[0].mxu0
  %v1907 = vadd.f32 0.0, %v1906
  %v1908 = vpop.f32.mrb[0].mxu0
  %v1909 = vpop.f32.mrb[0].mxu0
  %v1910 = vadd.f32 0.0, %v1909
  %v1911 = vpop.f32.mrb[0].mxu0
  %1912 = vmatprep.mubr.bf16.mxu0 0
  %1913 = vmatmul.mubr.bf16.gmra.mrb[0].mxu0 %v1701
  %v1914 = vpop.f32.mrb[0].mxu0
  %v1915 = vadd.f32 0.0, %v1914
  %v1916 = vpop.f32.mrb[0].mxu0
  %v1917 = vpop.f32.mrb[0].mxu0
  %v1918 = vadd.f32 0.0, %v1917
  %v1919 = vpop.f32.mrb[0].mxu0
  %1920 = vmatprep.mubr.bf16.mxu0 0
  %1921 = vmatmul.mubr.bf16.gmra.mrb[0].mxu0 %v1702
  %v1922 = vpop.f32.mrb[0].mxu0
  %v1923 = vadd.f32 0.0, %v1922
  %v1924 = vpop.f32.mrb[0].mxu0
  %v1925 = vpop.f32.mrb[0].mxu0
  %v1926 = vadd.f32 0.0, %v1925
  %v1927 = vpop.f32.mrb[0].mxu0
  %1928 = vmatprep.mubr.bf16.mxu0 0
  %1929 = vmatmul.mubr.bf16.gmra.mrb[0].mxu0 %v1703
  %v1930 = vpop.f32.mrb[0].mxu0
  %v1931 = vadd.f32 0.0, %v1930
  %v1932 = vpop.f32.mrb[0].mxu0
  %v1933 = vpop.f32.mrb[0].mxu0
  %v1934 = vadd.f32 0.0, %v1933
  %v1935 = vpop.f32.mrb[0].mxu0
  %1936 = vmatprep.mubr.bf16.mxu0 0
  %1937 = vmatmul.mubr.bf16.gmra.mrb[0].mxu0 %v1704
  %v1938 = vpop.f32.mrb[0].mxu0
  %v1939 = vadd.f32 0.0, %v1938
  %v1940 = vpop.f32.mrb[0].mxu0
  %v1941 = vpop.f32.mrb[0].mxu0
  %v1942 = vadd.f32 0.0, %v1941
  %v1943 = vpop.f32.mrb[0].mxu0
  %1944 = vmatprep.mubr.bf16.mxu0 0
  %1945 = vmatmul.mubr.bf16.gmra.mrb[0].mxu0 %v1705
  %v1946 = vpop.f32.mrb[0].mxu0
  %v1947 = vadd.f32 0.0, %v1946
  %v1948 = vpop.f32.mrb[0].mxu0
  %v1949 = vpop.f32.mrb[0].mxu0
  %v1950 = vadd.f32 0.0, %v1949
  %v1951 = vpop.f32.mrb[0].mxu0
  %1952 = vmatprep.mubr.bf16.mxu0 0
  %1953 = vmatmul.mubr.bf16.gmra.mrb[0].mxu0 %v1706
  %v1954 = vpop.f32.mrb[0].mxu0
  %v1955 = vadd.f32 0.0, %v1954
  %v1956 = vpop.f32.mrb[0].mxu0
  %v1957 = vpop.f32.mrb[0].mxu0
  %v1958 = vadd.f32 0.0, %v1957
  %v1959 = vpop.f32.mrb[0].mxu0
  %1960 = vmatprep.mubr.bf16.mxu0 0
  %1961 = vmatmul.mubr.bf16.gmra.mrb[0].mxu0 %v1707
  %v1962 = vpop.f32.mrb[0].mxu0
  %v1963 = vadd.f32 0.0, %v1962
  %v1964 = vpop.f32.mrb[0].mxu0
  %v1965 = vpop.f32.mrb[0].mxu0
  %v1966 = vadd.f32 0.0, %v1965
  %v1967 = vpop.f32.mrb[0].mxu0
  %1968 = vmatprep.mubr.bf16.mxu0 0
  %1969 = vmatmul.mubr.bf16.gmra.mrb[0].mxu0 %v1708
  %v1970 = vpop.f32.mrb[0].mxu0
  %v1971 = vadd.f32 0.0, %v1970
  %v1972 = vpop.f32.mrb[0].mxu0
  %v1973 = vpop.f32.mrb[0].mxu0
  %v1974 = vadd.f32 0.0, %v1973
  %v1975 = vpop.f32.mrb[0].mxu0
  %1976 = vmatprep.mubr.bf16.mxu0 0
  %1977 = vmatmul.mubr.bf16.gmra.mrb[0].mxu0 %v1709
  %v1978 = vpop.f32.mrb[0].mxu0
  %v1979 = vadd.f32 0.0, %v1978
  %v1980 = vpop.f32.mrb[0].mxu0
  %v1981 = vpop.f32.mrb[0].mxu0
  %v1982 = vadd.f32 0.0, %v1981
  %v1983 = vpop.f32.mrb[0].mxu0
  %1984 = vmatprep.mubr.bf16.mxu0 0
  %1985 = vmatmul.mubr.bf16.gmra.mrb[0].mxu0 %v1710
  %v1986 = vpop.f32.mrb[0].mxu0
  %v1987 = vadd.f32 0.0, %v1986
  %v1988 = vpop.f32.mrb[0].mxu0
  %v1989 = vpop.f32.mrb[0].mxu0
  %v1990 = vadd.f32 0.0, %v1989
  %v1991 = vpop.f32.mrb[0].mxu0
  %1992 = vmatprep.mubr.bf16.mxu0 0
  %1993 = vmatmul.mubr.bf16.gmra.mrb[0].mxu0 %v1711
  %v1994 = vpop.f32.mrb[0].mxu0
  %v1995 = vadd.f32 0.0, %v1994
  %v1996 = vpop.f32.mrb[0].mxu0
  %v1997 = vpop.f32.mrb[0].mxu0
  %v1998 = vadd.f32 0.0, %v1997
  %v1999 = vpop.f32.mrb[0].mxu0
  %2000 = vmatprep.mubr.bf16.mxu0 0
  %2001 = vmatmul.mubr.bf16.gmra.mrb[0].mxu0 %v1712
  %v2002 = vpop.f32.mrb[0].mxu0
  %v2003 = vadd.f32 0.0, %v2002
  %v2004 = vpop.f32.mrb[0].mxu0
  %v2005 = vpop.f32.mrb[0].mxu0
  %v2006 = vadd.f32 0.0, %v2005
  %v2007 = vpop.f32.mrb[0].mxu0
  %2008 = vmatprep.mubr.bf16.mxu0 0
  %2009 = vmatmul.mubr.bf16.gmra.mrb[0].mxu0 %v1713
  %v2010 = vpop.f32.mrb[0].mxu0
  %v2011 = vadd.f32 0.0, %v2010
  %v2012 = vpop.f32.mrb[0].mxu0
  %v2013 = vpop.f32.mrb[0].mxu0
  %v2014 = vadd.f32 0.0, %v2013
  %v2015 = vpop.f32.mrb[0].mxu0
  %2016 = vmatprep.mubr.bf16.mxu0 0
  %2017 = vmatmul.mubr.bf16.gmra.mrb[0].mxu0 %v1714
  %v2018 = vpop.f32.mrb[0].mxu0
  %v2019 = vadd.f32 0.0, %v2018
  %v2020 = vpop.f32.mrb[0].mxu0
  %v2021 = vpop.f32.mrb[0].mxu0
  %v2022 = vadd.f32 0.0, %v2021
  %v2023 = vpop.f32.mrb[0].mxu0
  %2024 = vmatprep.mubr.bf16.mxu0 0
  %2025 = vmatmul.mubr.bf16.gmra.mrb[0].mxu0 %v1715
  %v2026 = vpop.f32.mrb[0].mxu0
  %v2027 = vadd.f32 0.0, %v2026
  %v2028 = vpop.f32.mrb[0].mxu0
  %v2029 = vpop.f32.mrb[0].mxu0
  %v2030 = vadd.f32 0.0, %v2029
  %v2031 = vpop.f32.mrb[0].mxu0
  %2032 = vmatprep.mubr.bf16.mxu0 0
  %2033 = vmatmul.mubr.bf16.gmra.mrb[0].mxu0 %v1716
  %v2034 = vpop.f32.mrb[0].mxu0
  %v2035 = vadd.f32 0.0, %v2034
  %v2036 = vpop.f32.mrb[0].mxu0
  %v2037 = vpop.f32.mrb[0].mxu0
  %v2038 = vadd.f32 0.0, %v2037
  %v2039 = vpop.f32.mrb[0].mxu0
  %2040 = vmatprep.mubr.bf16.mxu0 0
  %2041 = vmatmul.mubr.bf16.gmra.mrb[0].mxu0 %v1717
  %v2042 = vpop.f32.mrb[0].mxu0
  %v2043 = vadd.f32 0.0, %v2042
  %v2044 = vpop.f32.mrb[0].mxu0
  %v2045 = vpop.f32.mrb[0].mxu0
  %v2046 = vadd.f32 0.0, %v2045
  %v2047 = vpop.f32.mrb[0].mxu0
  %2048 = vmatprep.mubr.bf16.mxu0 0
  %2049 = vmatmul.mubr.bf16.gmra.mrb[0].mxu0 %v1718
  %v2050 = vpop.f32.mrb[0].mxu0
  %v2051 = vadd.f32 0.0, %v2050
  %v2052 = vpop.f32.mrb[0].mxu0
  %v2053 = vpop.f32.mrb[0].mxu0
  %v2054 = vadd.f32 0.0, %v2053
  %v2055 = vpop.f32.mrb[0].mxu0
  %2056 = vmatprep.mubr.bf16.mxu0 0
  %2057 = vmatmul.mubr.bf16.gmra.mrb[0].mxu0 %v1719
  %v2058 = vpop.f32.mrb[0].mxu0
  %v2059 = vadd.f32 0.0, %v2058
  %v2060 = vpop.f32.mrb[0].mxu0
  %v2061 = vpop.f32.mrb[0].mxu0
  %v2062 = vadd.f32 0.0, %v2061
  %v2063 = vpop.f32.mrb[0].mxu0
  %2064 = vmatprep.mubr.bf16.mxu0 0
  %2065 = vmatmul.mubr.bf16.gmra.mrb[0].mxu0 %v1720
  %v2066 = vpop.f32.mrb[0].mxu0
  %v2067 = vadd.f32 0.0, %v2066
  %v2068 = vpop.f32.mrb[0].mxu0
  %v2069 = vpop.f32.mrb[0].mxu0
  %v2070 = vadd.f32 0.0, %v2069
  %v2071 = vpop.f32.mrb[0].mxu0
  %2072 = vmatprep.mubr.bf16.mxu0 0
  %2073 = vmatmul.mubr.bf16.gmra.mrb[0].mxu0 %v1721
  %v2074 = vpop.f32.mrb[0].mxu0
  %v2075 = vadd.f32 0.0, %v2074
  %v2076 = vpop.f32.mrb[0].mxu0
  %v2077 = vpop.f32.mrb[0].mxu0
  %v2078 = vadd.f32 0.0, %v2077
  %v2079 = vpop.f32.mrb[0].mxu0
  %2080 = vmatprep.mubr.bf16.mxu0 0
  %2081 = vmatmul.mubr.bf16.gmra.mrb[0].mxu0 %v1722
  %v2082 = vpop.f32.mrb[0].mxu0
  %v2083 = vadd.f32 0.0, %v2082
  %v2084 = vpop.f32.mrb[0].mxu0
  %v2085 = vpop.f32.mrb[0].mxu0
  %v2086 = vadd.f32 0.0, %v2085
  %v2087 = vpop.f32.mrb[0].mxu0
  %2088 = vmatprep.mubr.bf16.mxu0 0
  %2089 = vmatmul.mubr.bf16.gmra.mrb[0].mxu0 %v1723
  %v2090 = vpop.f32.mrb[0].mxu0
  %v2091 = vadd.f32 0.0, %v2090
  %v2092 = vpop.f32.mrb[0].mxu0
  %v2093 = vpop.f32.mrb[0].mxu0
  %v2094 = vadd.f32 0.0, %v2093
  %v2095 = vpop.f32.mrb[0].mxu0
  %2096 = vmatprep.mubr.bf16.mxu0 0
  %2097 = vmatmul.mubr.bf16.gmra.mrb[0].mxu0 %v1724
  %v2098 = vpop.f32.mrb[0].mxu0
  %v2099 = vadd.f32 0.0, %v2098
  %v2100 = vpop.f32.mrb[0].mxu0
  %v2101 = vpop.f32.mrb[0].mxu0
  %v2102 = vadd.f32 0.0, %v2101
  %v2103 = vpop.f32.mrb[0].mxu0
  %2104 = vmatprep.mubr.bf16.mxu0 0
  %2105 = vmatmul.mubr.bf16.gmra.mrb[0].mxu0 %v1725
  %v2106 = vpop.f32.mrb[0].mxu0
  %v2107 = vadd.f32 0.0, %v2106
  %v2108 = vpop.f32.mrb[0].mxu0
  %v2109 = vpop.f32.mrb[0].mxu0
  %v2110 = vadd.f32 0.0, %v2109
  %v2111 = vpop.f32.mrb[0].mxu0
  %2112 = vmatprep.mubr.bf16.mxu0 0
  %2113 = vmatmul.mubr.bf16.gmra.mrb[0].mxu0 %v1726
  %v2114 = vpop.f32.mrb[0].mxu0
  %v2115 = vadd.f32 0.0, %v2114
  %v2116 = vpop.f32.mrb[0].mxu0
  %v2117 = vpop.f32.mrb[0].mxu0
  %v2118 = vadd.f32 0.0, %v2117
  %v2119 = vpop.f32.mrb[0].mxu0
  %2120 = vmatprep.mubr.bf16.mxu0 0
  %2121 = vmatmul.mubr.bf16.gmra.mrb[0].mxu0 %v1727
  %v2122 = vpop.f32.mrb[0].mxu0
  %v2123 = vadd.f32 0.0, %v2122
  %v2124 = vpop.f32.mrb[0].mxu0
  %v2125 = vpop.f32.mrb[0].mxu0
  %v2126 = vadd.f32 0.0, %v2125
  %v2127 = vpop.f32.mrb[0].mxu0
  %2128 = vmatprep.mubr.bf16.mxu0 0
  %2129 = vmatmul.mubr.bf16.gmra.mrb[0].mxu0 %v1728
  %v2130 = vpop.f32.mrb[0].mxu0
  %v2131 = vadd.f32 0.0, %v2130
  %v2132 = vpop.f32.mrb[0].mxu0
  %v2133 = vpop.f32.mrb[0].mxu0
  %v2134 = vadd.f32 0.0, %v2133
  %v2135 = vpop.f32.mrb[0].mxu0
  %2136 = vmatprep.mubr.bf16.mxu0 0
  %2137 = vmatmul.mubr.bf16.gmra.mrb[0].mxu0 %v1729
  %v2138 = vpop.f32.mrb[0].mxu0
  %v2139 = vadd.f32 0.0, %v2138
  %v2140 = vpop.f32.mrb[0].mxu0
  %v2141 = vpop.f32.mrb[0].mxu0
  %v2142 = vadd.f32 0.0, %v2141
  %v2143 = vpop.f32.mrb[0].mxu0
  %2144 = vmatprep.mubr.bf16.mxu0 0
  %2145 = vmatmul.mubr.bf16.gmra.mrb[0].mxu0 %v1730
  %v2146 = vpop.f32.mrb[0].mxu0
  %v2147 = vadd.f32 0.0, %v2146
  %v2148 = vpop.f32.mrb[0].mxu0
  %v2149 = vpop.f32.mrb[0].mxu0
  %v2150 = vadd.f32 0.0, %v2149
  %v2151 = vpop.f32.mrb[0].mxu0
  %2152 = vmatprep.mubr.bf16.mxu0 0
  %2153 = vmatmul.mubr.bf16.gmra.mrb[0].mxu0 %v1731
  %v2154 = vpop.f32.mrb[0].mxu0
  %v2155 = vadd.f32 0.0, %v2154
  %v2156 = vpop.f32.mrb[0].mxu0
  %v2157 = vpop.f32.mrb[0].mxu0
  %v2158 = vadd.f32 0.0, %v2157
  %v2159 = vpop.f32.mrb[0].mxu0
  %2160 = vmatprep.mubr.bf16.mxu0 0
  %2161 = vmatmul.mubr.bf16.gmra.mrb[0].mxu0 %v1732
  %v2162 = vpop.f32.mrb[0].mxu0
  %v2163 = vadd.f32 0.0, %v2162
  %v2164 = vpop.f32.mrb[0].mxu0
  %v2165 = vpop.f32.mrb[0].mxu0
  %v2166 = vadd.f32 0.0, %v2165
  %v2167 = vpop.f32.mrb[0].mxu0
  %2168 = vmatprep.mubr.bf16.mxu0 0
  %2169 = vmatmul.mubr.bf16.gmra.mrb[0].mxu0 %v1733
  %v2170 = vpop.f32.mrb[0].mxu0
  %v2171 = vadd.f32 0.0, %v2170
  %v2172 = vpop.f32.mrb[0].mxu0
  %v2173 = vpop.f32.mrb[0].mxu0
  %v2174 = vadd.f32 0.0, %v2173
  %v2175 = vpop.f32.mrb[0].mxu0
  %2176 = vmatprep.mubr.bf16.mxu0 0
  %2177 = vmatmul.mubr.bf16.gmra.mrb[0].mxu0 %v1734
  %v2178 = vpop.f32.mrb[0].mxu0
  %v2179 = vadd.f32 0.0, %v2178
  %v2180 = vpop.f32.mrb[0].mxu0
  %v2181 = vpop.f32.mrb[0].mxu0
  %v2182 = vadd.f32 0.0, %v2181
  %v2183 = vpop.f32.mrb[0].mxu0
  %2184 = vmatprep.mubr.bf16.mxu0 0
  %2185 = vmatmul.mubr.bf16.gmra.mrb[0].mxu0 %v1735
  %v2186 = vpop.f32.mrb[0].mxu0
  %v2187 = vadd.f32 0.0, %v2186
  %v2188 = vpop.f32.mrb[0].mxu0
  %v2189 = vpop.f32.mrb[0].mxu0
  %v2190 = vadd.f32 0.0, %v2189
  %v2191 = vpop.f32.mrb[0].mxu0
  %2192 = vmatprep.mubr.bf16.mxu0 0
  %2193 = vmatmul.mubr.bf16.gmra.mrb[0].mxu0 %v1736
  %v2194 = vpop.f32.mrb[0].mxu0
  %v2195 = vadd.f32 0.0, %v2194
  %v2196 = vpop.f32.mrb[0].mxu0
  %v2197 = vpop.f32.mrb[0].mxu0
  %v2198 = vadd.f32 0.0, %v2197
  %v2199 = vpop.f32.mrb[0].mxu0
  %2200 = vmatprep.mubr.bf16.mxu0 0
  %2201 = vmatmul.mubr.bf16.gmra.mrb[0].mxu0 %v1737
  %v2202 = vpop.f32.mrb[0].mxu0
  %v2203 = vadd.f32 0.0, %v2202
  %v2204 = vpop.f32.mrb[0].mxu0
  %v2205 = vpop.f32.mrb[0].mxu0
  %v2206 = vadd.f32 0.0, %v2205
  %v2207 = vpop.f32.mrb[0].mxu0
  %2208 = vmatprep.mubr.bf16.mxu0 0
  %2209 = vmatmul.mubr.bf16.gmra.mrb[0].mxu0 %v1738
  %v2210 = vpop.f32.mrb[0].mxu0
  %v2211 = vadd.f32 0.0, %v2210
  %v2212 = vpop.f32.mrb[0].mxu0
  %v2213 = vpop.f32.mrb[0].mxu0
  %v2214 = vadd.f32 0.0, %v2213
  %v2215 = vpop.f32.mrb[0].mxu0
  %2216 = vmatprep.mubr.bf16.mxu0 0
  %2217 = vmatmul.mubr.bf16.gmra.mrb[0].mxu0 %v1739
  %v2218 = vpop.f32.mrb[0].mxu0
  %v2219 = vadd.f32 0.0, %v2218
  %v2220 = vpop.f32.mrb[0].mxu0
  %v2221 = vpop.f32.mrb[0].mxu0
  %v2222 = vadd.f32 0.0, %v2221
  %v2223 = vpop.f32.mrb[0].mxu0
  %2224 = vmatprep.mubr.bf16.mxu0 0
  %2225 = vmatmul.mubr.bf16.gmra.mrb[0].mxu0 %v1740
  %v2226 = vpop.f32.mrb[0].mxu0
  %v2227 = vadd.f32 0.0, %v2226
  %v2228 = vpop.f32.mrb[0].mxu0
  %v2229 = vpop.f32.mrb[0].mxu0
  %v2230 = vadd.f32 0.0, %v2229
  %v2231 = vpop.f32.mrb[0].mxu0
  %2232 = vmatprep.mubr.bf16.mxu0 0
  %2233 = vmatmul.mubr.bf16.gmra.mrb[0].mxu0 %v1741
  %v2234 = vpop.f32.mrb[0].mxu0
  %v2235 = vadd.f32 0.0, %v2234
  %v2236 = vpop.f32.mrb[0].mxu0
  %v2237 = vpop.f32.mrb[0].mxu0
  %v2238 = vadd.f32 0.0, %v2237
  %v2239 = vpop.f32.mrb[0].mxu0
  %2240 = vmatprep.mubr.bf16.mxu0 0
  %2241 = vmatmul.mubr.bf16.gmra.mrb[0].mxu0 %v1742
  %v2242 = vpop.f32.mrb[0].mxu0
  %v2243 = vadd.f32 0.0, %v2242
  %v2244 = vpop.f32.mrb[0].mxu0
  %v2245 = vpop.f32.mrb[0].mxu0
  %v2246 = vadd.f32 0.0, %v2245
  %v2247 = vpop.f32.mrb[0].mxu0
  %2248 = vmatprep.mubr.bf16.mxu0 0
  %2249 = vmatmul.mubr.bf16.gmra.mrb[0].mxu0 %v1743
  %v2250 = vpop.f32.mrb[0].mxu0
  %v2251 = vadd.f32 0.0, %v2250
  %v2252 = vpop.f32.mrb[0].mxu0
  %v2253 = vpop.f32.mrb[0].mxu0
  %v2254 = vadd.f32 0.0, %v2253
  %v2255 = vpop.f32.mrb[0].mxu0
  %2256 = vmatprep.mubr.bf16.mxu0 0
  %2257 = vmatmul.mubr.bf16.gmra.mrb[0].mxu0 %v1744
  %v2258 = vpop.f32.mrb[0].mxu0
  %v2259 = vadd.f32 0.0, %v2258
  %v2260 = vpop.f32.mrb[0].mxu0
  %v2261 = vpop.f32.mrb[0].mxu0
  %v2262 = vadd.f32 0.0, %v2261
  %v2263 = vpop.f32.mrb[0].mxu0
  %2264 = vmatprep.mubr.bf16.mxu0 0
  %2265 = vmatmul.mubr.bf16.gmra.mrb[0].mxu0 %v1745
  %v2266 = vpop.f32.mrb[0].mxu0
  %v2267 = vadd.f32 0.0, %v2266
  %v2268 = vpop.f32.mrb[0].mxu0
  %v2269 = vpop.f32.mrb[0].mxu0
  %v2270 = vadd.f32 0.0, %v2269
  %v2271 = vpop.f32.mrb[0].mxu0
  %2272 = vmatprep.mubr.bf16.mxu0 0
  %2273 = vmatmul.mubr.bf16.gmra.mrb[0].mxu0 %v1746
  %v2274 = vpop.f32.mrb[0].mxu0
  %v2275 = vadd.f32 0.0, %v2274
  %v2276 = vpop.f32.mrb[0].mxu0
  %v2277 = vpop.f32.mrb[0].mxu0
  %v2278 = vadd.f32 0.0, %v2277
  %v2279 = vpop.f32.mrb[0].mxu0
  %2280 = vmatprep.mubr.bf16.mxu0 0
  %2281 = vmatmul.mubr.bf16.gmra.mrb[0].mxu0 %v1747
  %v2282 = vpop.f32.mrb[0].mxu0
  %v2283 = vadd.f32 0.0, %v2282
  %v2284 = vpop.f32.mrb[0].mxu0
  %v2285 = vpop.f32.mrb[0].mxu0
  %v2286 = vadd.f32 0.0, %v2285
  %v2287 = vpop.f32.mrb[0].mxu0
  %2288 = vmatprep.mubr.bf16.mxu0 0
  %2289 = vmatmul.mubr.bf16.gmra.mrb[0].mxu0 %v1748
  %v2290 = vpop.f32.mrb[0].mxu0
  %v2291 = vadd.f32 0.0, %v2290
  %v2292 = vpop.f32.mrb[0].mxu0
  %v2293 = vpop.f32.mrb[0].mxu0
  %v2294 = vadd.f32 0.0, %v2293
  %v2295 = vpop.f32.mrb[0].mxu0
  %2296 = vmatprep.mubr.bf16.mxu0 0
  %2297 = vmatmul.mubr.bf16.gmra.mrb[0].mxu0 %v1749
  %v2298 = vpop.f32.mrb[0].mxu0
  %v2299 = vadd.f32 0.0, %v2298
  %v2300 = vpop.f32.mrb[0].mxu0
  %v2301 = vpop.f32.mrb[0].mxu0
  %v2302 = vadd.f32 0.0, %v2301
  %v2303 = vpop.f32.mrb[0].mxu0
  %2304 = vmatprep.mubr.bf16.mxu0 0
  %2305 = vmatmul.mubr.bf16.gmra.mrb[0].mxu0 %v1750
  %v2306 = vpop.f32.mrb[0].mxu0
  %v2307 = vadd.f32 0.0, %v2306
  %v2308 = vpop.f32.mrb[0].mxu0
  %v2309 = vpop.f32.mrb[0].mxu0
  %v2310 = vadd.f32 0.0, %v2309
  %v2311 = vpop.f32.mrb[0].mxu0
  %2312 = vmatprep.mubr.bf16.mxu0 0
  %2313 = vmatmul.mubr.bf16.gmra.mrb[0].mxu0 %v1751
  %v2314 = vpop.f32.mrb[0].mxu0
  %v2315 = vadd.f32 0.0, %v2314
  %v2316 = vpop.f32.mrb[0].mxu0
  %v2317 = vpop.f32.mrb[0].mxu0
  %v2318 = vadd.f32 0.0, %v2317
  %v2319 = vpop.f32.mrb[0].mxu0
  %2320 = vmatprep.mubr.bf16.mxu0 0
  %2321 = vmatmul.mubr.bf16.gmra.mrb[0].mxu0 %v1752
  %v2322 = vpop.f32.mrb[0].mxu0
  %v2323 = vadd.f32 0.0, %v2322
  %v2324 = vpop.f32.mrb[0].mxu0
  %v2325 = vpop.f32.mrb[0].mxu0
  %v2326 = vadd.f32 0.0, %v2325
  %v2327 = vpop.f32.mrb[0].mxu0
  %2328 = vmatprep.mubr.bf16.mxu0 0
  %2329 = vmatmul.mubr.bf16.gmra.mrb[0].mxu0 %v1753
  %v2330 = vpop.f32.mrb[0].mxu0
  %v2331 = vadd.f32 0.0, %v2330
  %v2332 = vpop.f32.mrb[0].mxu0
  %v2333 = vpop.f32.mrb[0].mxu0
  %v2334 = vadd.f32 0.0, %v2333
  %v2335 = vpop.f32.mrb[0].mxu0
  %2336 = vmatprep.mubr.bf16.mxu0 0
  %2337 = vmatmul.mubr.bf16.gmra.mrb[0].mxu0 %v1754
  %v2338 = vpop.f32.mrb[0].mxu0
  %v2339 = vadd.f32 0.0, %v2338
  %v2340 = vpop.f32.mrb[0].mxu0
  %v2341 = vpop.f32.mrb[0].mxu0
  %v2342 = vadd.f32 0.0, %v2341
  %v2343 = vpop.f32.mrb[0].mxu0
  %2344 = vmatprep.mubr.bf16.mxu0 0
  %2345 = vmatmul.mubr.bf16.gmra.mrb[0].mxu0 %v1755
  %v2346 = vpop.f32.mrb[0].mxu0
  %v2347 = vadd.f32 0.0, %v2346
  %v2348 = vpop.f32.mrb[0].mxu0
  %v2349 = vpop.f32.mrb[0].mxu0
  %v2350 = vadd.f32 0.0, %v2349
  %v2351 = vpop.f32.mrb[0].mxu0
  %2352 = vmatprep.mubr.bf16.mxu0 0
  %2353 = vmatmul.mubr.bf16.gmra.mrb[0].mxu0 %v1756
  %v2354 = vpop.f32.mrb[0].mxu0
  %v2355 = vadd.f32 0.0, %v2354
  %v2356 = vpop.f32.mrb[0].mxu0
  %v2357 = vpop.f32.mrb[0].mxu0
  %v2358 = vadd.f32 0.0, %v2357
  %v2359 = vpop.f32.mrb[0].mxu0
  %2360 = vmatprep.mubr.bf16.mxu0 0
  %2361 = vmatmul.mubr.bf16.gmra.mrb[0].mxu0 %v1757
  %v2362 = vpop.f32.mrb[0].mxu0
  %v2363 = vadd.f32 0.0, %v2362
  %v2364 = vpop.f32.mrb[0].mxu0
  %v2365 = vpop.f32.mrb[0].mxu0
  %v2366 = vadd.f32 0.0, %v2365
  %v2367 = vpop.f32.mrb[0].mxu0
  %2368 = vmatprep.mubr.bf16.mxu0 0
  %2369 = vmatmul.mubr.bf16.gmra.mrb[0].mxu0 %v1758
  %v2370 = vpop.f32.mrb[0].mxu0
  %v2371 = vadd.f32 0.0, %v2370
  %v2372 = vpop.f32.mrb[0].mxu0
  %v2373 = vpop.f32.mrb[0].mxu0
  %v2374 = vadd.f32 0.0, %v2373
  %v2375 = vpop.f32.mrb[0].mxu0
  %2376 = vmatprep.mubr.bf16.mxu0 0
  %2377 = vmatmul.mubr.bf16.gmra.mrb[0].mxu0 %v1759
  %v2378 = vpop.f32.mrb[0].mxu0
  %v2379 = vadd.f32 0.0, %v2378
  %v2380 = vpop.f32.mrb[0].mxu0
  %v2381 = vpop.f32.mrb[0].mxu0
  %v2382 = vadd.f32 0.0, %v2381
  %v2383 = vpop.f32.mrb[0].mxu0
  %2384 = vmatprep.mubr.bf16.mxu0 0
  %2385 = vmatmul.mubr.bf16.gmra.mrb[0].mxu0 %v1760
  %v2386 = vpop.f32.mrb[0].mxu0
  %v2387 = vadd.f32 0.0, %v2386
  %v2388 = vpop.f32.mrb[0].mxu0
  %v2389 = vpop.f32.mrb[0].mxu0
  %v2390 = vadd.f32 0.0, %v2389
  %v2391 = vpop.f32.mrb[0].mxu0
  %2392 = vmatprep.mubr.bf16.mxu0 0
  %2393 = vmatmul.mubr.bf16.gmra.mrb[0].mxu0 %v1761
  %v2394 = vpop.f32.mrb[0].mxu0
  %v2395 = vadd.f32 0.0, %v2394
  %v2396 = vpop.f32.mrb[0].mxu0
  %v2397 = vpop.f32.mrb[0].mxu0
  %v2398 = vadd.f32 0.0, %v2397
  %v2399 = vpop.f32.mrb[0].mxu0
  %2400 = vmatprep.mubr.bf16.mxu0 0
  %2401 = vmatmul.mubr.bf16.gmra.mrb[0].mxu0 %v1762
  %v2402 = vpop.f32.mrb[0].mxu0
  %v2403 = vadd.f32 0.0, %v2402
  %v2404 = vpop.f32.mrb[0].mxu0
  %v2405 = vpop.f32.mrb[0].mxu0
  %v2406 = vadd.f32 0.0, %v2405
  %v2407 = vpop.f32.mrb[0].mxu0
  %2408 = vmatprep.mubr.bf16.mxu0 0
  %2409 = vmatmul.mubr.bf16.gmra.mrb[0].mxu0 %v1763
  %v2410 = vpop.f32.mrb[0].mxu0
  %v2411 = vadd.f32 0.0, %v2410
  %v2412 = vpop.f32.mrb[0].mxu0
  %v2413 = vpop.f32.mrb[0].mxu0
  %v2414 = vadd.f32 0.0, %v2413
  %v2415 = vpop.f32.mrb[0].mxu0
  %2416 = vmatprep.mubr.bf16.mxu0 0
  %2417 = vmatmul.mubr.bf16.gmra.mrb[0].mxu0 %v1764
  %v2418 = vpop.f32.mrb[0].mxu0
  %v2419 = vadd.f32 0.0, %v2418
  %v2420 = vpop.f32.mrb[0].mxu0
  %v2421 = vpop.f32.mrb[0].mxu0
  %v2422 = vadd.f32 0.0, %v2421
  %v2423 = vpop.f32.mrb[0].mxu0
  %2424 = vmatprep.mubr.bf16.mxu0 0
  %2425 = vmatmul.mubr.bf16.gmra.mrb[0].mxu0 %v1765
  %v2426 = vpop.f32.mrb[0].mxu0
  %v2427 = vadd.f32 0.0, %v2426
  %v2428 = vpop.f32.mrb[0].mxu0
  %v2429 = vpop.f32.mrb[0].mxu0
  %v2430 = vadd.f32 0.0, %v2429
  %v2431 = vpop.f32.mrb[0].mxu0
  %2432 = vmatprep.mubr.bf16.mxu0 0
  %2433 = vmatmul.mubr.bf16.gmra.mrb[0].mxu0 %v1766
  %v2434 = vpop.f32.mrb[0].mxu0
  %v2435 = vadd.f32 0.0, %v2434
  %v2436 = vpop.f32.mrb[0].mxu0
  %v2437 = vpop.f32.mrb[0].mxu0
  %v2438 = vadd.f32 0.0, %v2437
  %v2439 = vpop.f32.mrb[0].mxu0
  %2440 = vmatprep.mubr.bf16.mxu0 0
  %2441 = vmatmul.mubr.bf16.gmra.mrb[0].mxu0 %v1767
  %v2442 = vpop.f32.mrb[0].mxu0
  %v2443 = vadd.f32 0.0, %v2442
  %v2444 = vpop.f32.mrb[0].mxu0
  %v2445 = vpop.f32.mrb[0].mxu0
  %v2446 = vadd.f32 0.0, %v2445
  %v2447 = vpop.f32.mrb[0].mxu0
  %2448 = vdwg.mxu0
  %v2449 = vmax.f32 %v690, %v1875
  %v2450 = vmax.f32 %v693, %v1878
  %v2451 = vmax.f32 %v698, %v1883
  %v2452 = vmax.f32 %v701, %v1886
  %v2453 = vmax.f32 %v706, %v1891
  %v2454 = vmax.f32 %v709, %v1894
  %v2455 = vmax.f32 %v714, %v1899
  %v2456 = vmax.f32 %v717, %v1902
  %v2457 = vmax.f32 %v722, %v1907
  %v2458 = vmax.f32 %v725, %v1910
  %v2459 = vmax.f32 %v730, %v1915
  %v2460 = vmax.f32 %v733, %v1918
  %v2461 = vmax.f32 %v738, %v1923
  %v2462 = vmax.f32 %v741, %v1926
  %v2463 = vmax.f32 %v746, %v1931
  %v2464 = vmax.f32 %v749, %v1934
  %v2465 = vmax.f32 %v754, %v1939
  %v2466 = vmax.f32 %v757, %v1942
  %v2467 = vmax.f32 %v762, %v1947
  %v2468 = vmax.f32 %v765, %v1950
  %v2469 = vmax.f32 %v770, %v1955
  %v2470 = vmax.f32 %v773, %v1958
  %v2471 = vmax.f32 %v778, %v1963
  %v2472 = vmax.f32 %v781, %v1966
  %v2473 = vmax.f32 %v786, %v1971
  %v2474 = vmax.f32 %v789, %v1974
  %v2475 = vmax.f32 %v794, %v1979
  %v2476 = vmax.f32 %v797, %v1982
  %v2477 = vmax.f32 %v802, %v1987
  %v2478 = vmax.f32 %v805, %v1990
  %v2479 = vmax.f32 %v810, %v1995
  %v2480 = vmax.f32 %v813, %v1998
  %v2481 = vmax.f32 %v818, %v2003
  %v2482 = vmax.f32 %v821, %v2006
  %v2483 = vmax.f32 %v826, %v2011
  %v2484 = vmax.f32 %v829, %v2014
  %v2485 = vmax.f32 %v834, %v2019
  %v2486 = vmax.f32 %v837, %v2022
  %v2487 = vmax.f32 %v842, %v2027
  %v2488 = vmax.f32 %v845, %v2030
  %v2489 = vmax.f32 %v850, %v2035
  %v2490 = vmax.f32 %v853, %v2038
  %v2491 = vmax.f32 %v858, %v2043
  %v2492 = vmax.f32 %v861, %v2046
  %v2493 = vmax.f32 %v866, %v2051
  %v2494 = vmax.f32 %v869, %v2054
  %v2495 = vmax.f32 %v874, %v2059
  %v2496 = vmax.f32 %v877, %v2062
  %v2497 = vmax.f32 %v882, %v2067
  %v2498 = vmax.f32 %v885, %v2070
  %v2499 = vmax.f32 %v890, %v2075
  %v2500 = vmax.f32 %v893, %v2078
  %v2501 = vmax.f32 %v898, %v2083
  %v2502 = vmax.f32 %v901, %v2086
  %v2503 = vmax.f32 %v906, %v2091
  %v2504 = vmax.f32 %v909, %v2094
  %v2505 = vmax.f32 %v914, %v2099
  %v2506 = vmax.f32 %v917, %v2102
  %v2507 = vmax.f32 %v922, %v2107
  %v2508 = vmax.f32 %v925, %v2110
  %v2509 = vmax.f32 %v930, %v2115
  %v2510 = vmax.f32 %v933, %v2118
  %v2511 = vmax.f32 %v938, %v2123
  %v2512 = vmax.f32 %v941, %v2126
  %v2513 = vmax.f32 %v946, %v2131
  %v2514 = vmax.f32 %v949, %v2134
  %v2515 = vmax.f32 %v954, %v2139
  %v2516 = vmax.f32 %v957, %v2142
  %v2517 = vmax.f32 %v962, %v2147
  %v2518 = vmax.f32 %v965, %v2150
  %v2519 = vmax.f32 %v970, %v2155
  %v2520 = vmax.f32 %v973, %v2158
  %v2521 = vmax.f32 %v978, %v2163
  %v2522 = vmax.f32 %v981, %v2166
  %v2523 = vmax.f32 %v986, %v2171
  %v2524 = vmax.f32 %v989, %v2174
  %v2525 = vmax.f32 %v994, %v2179
  %v2526 = vmax.f32 %v997, %v2182
  %v2527 = vmax.f32 %v1002, %v2187
  %v2528 = vmax.f32 %v1005, %v2190
  %v2529 = vmax.f32 %v1010, %v2195
  %v2530 = vmax.f32 %v1013, %v2198
  %v2531 = vmax.f32 %v1018, %v2203
  %v2532 = vmax.f32 %v1021, %v2206
  %v2533 = vmax.f32 %v1026, %v2211
  %v2534 = vmax.f32 %v1029, %v2214
  %v2535 = vmax.f32 %v1034, %v2219
  %v2536 = vmax.f32 %v1037, %v2222
  %v2537 = vmax.f32 %v1042, %v2227
  %v2538 = vmax.f32 %v1045, %v2230
  %v2539 = vmax.f32 %v1050, %v2235
  %v2540 = vmax.f32 %v1053, %v2238
  %v2541 = vmax.f32 %v1058, %v2243
  %v2542 = vmax.f32 %v1061, %v2246
  %v2543 = vmax.f32 %v1066, %v2251
  %v2544 = vmax.f32 %v1069, %v2254
  %v2545 = vmax.f32 %v1074, %v2259
  %v2546 = vmax.f32 %v1077, %v2262
  %v2547 = vmax.f32 %v1082, %v2267
  %v2548 = vmax.f32 %v1085, %v2270
  %v2549 = vmax.f32 %v1090, %v2275
  %v2550 = vmax.f32 %v1093, %v2278
  %v2551 = vmax.f32 %v1098, %v2283
  %v2552 = vmax.f32 %v1101, %v2286
  %v2553 = vmax.f32 %v1106, %v2291
  %v2554 = vmax.f32 %v1109, %v2294
  %v2555 = vmax.f32 %v1114, %v2299
  %v2556 = vmax.f32 %v1117, %v2302
  %v2557 = vmax.f32 %v1122, %v2307
  %v2558 = vmax.f32 %v1125, %v2310
  %v2559 = vmax.f32 %v1130, %v2315
  %v2560 = vmax.f32 %v1133, %v2318
  %v2561 = vmax.f32 %v1138, %v2323
  %v2562 = vmax.f32 %v1141, %v2326
  %v2563 = vmax.f32 %v1146, %v2331
  %v2564 = vmax.f32 %v1149, %v2334
  %v2565 = vmax.f32 %v1154, %v2339
  %v2566 = vmax.f32 %v1157, %v2342
  %v2567 = vmax.f32 %v1162, %v2347
  %v2568 = vmax.f32 %v1165, %v2350
  %v2569 = vmax.f32 %v1170, %v2355
  %v2570 = vmax.f32 %v1173, %v2358
  %v2571 = vmax.f32 %v1178, %v2363
  %v2572 = vmax.f32 %v1181, %v2366
  %v2573 = vmax.f32 %v1186, %v2371
  %v2574 = vmax.f32 %v1189, %v2374
  %v2575 = vmax.f32 %v1194, %v2379
  %v2576 = vmax.f32 %v1197, %v2382
  %v2577 = vmax.f32 %v1202, %v2387
  %v2578 = vmax.f32 %v1205, %v2390
  %v2579 = vmax.f32 %v1210, %v2395
  %v2580 = vmax.f32 %v1213, %v2398
  %v2581 = vmax.f32 %v1218, %v2403
  %v2582 = vmax.f32 %v1221, %v2406
  %v2583 = vmax.f32 %v1226, %v2411
  %v2584 = vmax.f32 %v1229, %v2414
  %v2585 = vmax.f32 %v1234, %v2419
  %v2586 = vmax.f32 %v1237, %v2422
  %v2587 = vmax.f32 %v1242, %v2427
  %v2588 = vmax.f32 %v1245, %v2430
  %v2589 = vmax.f32 %v1250, %v2435
  %v2590 = vmax.f32 %v1253, %v2438
  %v2591 = vmax.f32 %v1258, %v2443
  %v2592 = vmax.f32 %v1261, %v2446
  %v2593 = vld [vmem:[%s0 + $0x480] sm:$0xf]
  %v2594 = vld [vmem:[%s0 + $0x484] sm:$0xf]
  %v2595 = vld [vmem:[%s0 + $0x488] sm:$0xf]
  %v2596 = vld [vmem:[%s0 + $0x48c] sm:$0xf]
  %v2597 = vld [vmem:[%s0 + $0x490] sm:$0xf]
  %v2598 = vld [vmem:[%s0 + $0x494] sm:$0xf]
  %v2599 = vld [vmem:[%s0 + $0x498] sm:$0xf]
  %v2600 = vld [vmem:[%s0 + $0x49c] sm:$0xf]
  %v2601 = vld [vmem:[%s0 + $0x4a0] sm:$0xf]
  %v2602 = vld [vmem:[%s0 + $0x4a4] sm:$0xf]
  %v2603 = vld [vmem:[%s0 + $0x4a8] sm:$0xf]
  %v2604 = vld [vmem:[%s0 + $0x4ac] sm:$0xf]
  %v2605 = vld [vmem:[%s0 + $0x4b0] sm:$0xf]
  %v2606 = vld [vmem:[%s0 + $0x4b4] sm:$0xf]
  %v2607 = vld [vmem:[%s0 + $0x4b8] sm:$0xf]
  %v2608 = vld [vmem:[%s0 + $0x4bc] sm:$0xf]
  %v2609 = vld [vmem:[%s0 + $0x4c0] sm:$0xf]
  %v2610 = vld [vmem:[%s0 + $0x4c4] sm:$0xf]
  %v2611 = vld [vmem:[%s0 + $0x4c8] sm:$0xf]
  %v2612 = vld [vmem:[%s0 + $0x4cc] sm:$0xf]
  %v2613 = vld [vmem:[%s0 + $0x4d0] sm:$0xf]
  %v2614 = vld [vmem:[%s0 + $0x4d4] sm:$0xf]
  %v2615 = vld [vmem:[%s0 + $0x4d8] sm:$0xf]
  %v2616 = vld [vmem:[%s0 + $0x4dc] sm:$0xf]
  %v2617 = vld [vmem:[%s0 + $0x4e0] sm:$0xf]
  %v2618 = vld [vmem:[%s0 + $0x4e4] sm:$0xf]
  %v2619 = vld [vmem:[%s0 + $0x4e8] sm:$0xf]
  %v2620 = vld [vmem:[%s0 + $0x4ec] sm:$0xf]
  %v2621 = vld [vmem:[%s0 + $0x4f0] sm:$0xf]
  %v2622 = vld [vmem:[%s0 + $0x4f4] sm:$0xf]
  %v2623 = vld [vmem:[%s0 + $0x4f8] sm:$0xf]
  %v2624 = vld [vmem:[%s0 + $0x4fc] sm:$0xf]
  %v2625 = vld [vmem:[%s0 + $0x500] sm:$0xf]
  %v2626 = vld [vmem:[%s0 + $0x504] sm:$0xf]
  %v2627 = vld [vmem:[%s0 + $0x508] sm:$0xf]
  %v2628 = vld [vmem:[%s0 + $0x50c] sm:$0xf]
  %v2629 = vld [vmem:[%s0 + $0x510] sm:$0xf]
  %v2630 = vld [vmem:[%s0 + $0x514] sm:$0xf]
  %v2631 = vld [vmem:[%s0 + $0x518] sm:$0xf]
  %v2632 = vld [vmem:[%s0 + $0x51c] sm:$0xf]
  %v2633 = vld [vmem:[%s0 + $0x520] sm:$0xf]
  %v2634 = vld [vmem:[%s0 + $0x524] sm:$0xf]
  %v2635 = vld [vmem:[%s0 + $0x528] sm:$0xf]
  %v2636 = vld [vmem:[%s0 + $0x52c] sm:$0xf]
  %v2637 = vld [vmem:[%s0 + $0x530] sm:$0xf]
  %v2638 = vld [vmem:[%s0 + $0x534] sm:$0xf]
  %v2639 = vld [vmem:[%s0 + $0x538] sm:$0xf]
  %v2640 = vld [vmem:[%s0 + $0x53c] sm:$0xf]
  %v2641 = vld [vmem:[%s0 + $0x540] sm:$0xf]
  %v2642 = vld [vmem:[%s0 + $0x544] sm:$0xf]
  %v2643 = vld [vmem:[%s0 + $0x548] sm:$0xf]
  %v2644 = vld [vmem:[%s0 + $0x54c] sm:$0xf]
  %v2645 = vld [vmem:[%s0 + $0x550] sm:$0xf]
  %v2646 = vld [vmem:[%s0 + $0x554] sm:$0xf]
  %v2647 = vld [vmem:[%s0 + $0x558] sm:$0xf]
  %v2648 = vld [vmem:[%s0 + $0x55c] sm:$0xf]
  %v2649 = vld [vmem:[%s0 + $0x560] sm:$0xf]
  %v2650 = vld [vmem:[%s0 + $0x564] sm:$0xf]
  %v2651 = vld [vmem:[%s0 + $0x568] sm:$0xf]
  %v2652 = vld [vmem:[%s0 + $0x56c] sm:$0xf]
  %v2653 = vld [vmem:[%s0 + $0x570] sm:$0xf]
  %v2654 = vld [vmem:[%s0 + $0x574] sm:$0xf]
  %v2655 = vld [vmem:[%s0 + $0x578] sm:$0xf]
  %v2656 = vld [vmem:[%s0 + $0x57c] sm:$0xf]
  %v2657 = vld [vmem:[%s0 + $0x580] sm:$0xf]
  %v2658 = vld [vmem:[%s0 + $0x584] sm:$0xf]
  %v2659 = vld [vmem:[%s0 + $0x588] sm:$0xf]
  %v2660 = vld [vmem:[%s0 + $0x58c] sm:$0xf]
  %v2661 = vld [vmem:[%s0 + $0x590] sm:$0xf]
  %v2662 = vld [vmem:[%s0 + $0x594] sm:$0xf]
  %v2663 = vld [vmem:[%s0 + $0x598] sm:$0xf]
  %v2664 = vld [vmem:[%s0 + $0x59c] sm:$0xf]
  %v2665 = vld [vmem:[%s0 + $0x5a0] sm:$0xf]
  %v2666 = vld [vmem:[%s0 + $0x5a4] sm:$0xf]
  %v2667 = vld [vmem:[%s0 + $0x5a8] sm:$0xf]
  %v2668 = vld [vmem:[%s0 + $0x5ac] sm:$0xf]
  %v2669 = vld [vmem:[%s0 + $0x5b0] sm:$0xf]
  %v2670 = vld [vmem:[%s0 + $0x5b4] sm:$0xf]
  %v2671 = vld [vmem:[%s0 + $0x5b8] sm:$0xf]
  %v2672 = vld [vmem:[%s0 + $0x5bc] sm:$0xf]
  %v2673 = vld [vmem:[%s0 + $0x5c0] sm:$0xf]
  %v2674 = vld [vmem:[%s0 + $0x5c4] sm:$0xf]
  %v2675 = vld [vmem:[%s0 + $0x5c8] sm:$0xf]
  %v2676 = vld [vmem:[%s0 + $0x5cc] sm:$0xf]
  %v2677 = vld [vmem:[%s0 + $0x5d0] sm:$0xf]
  %v2678 = vld [vmem:[%s0 + $0x5d4] sm:$0xf]
  %v2679 = vld [vmem:[%s0 + $0x5d8] sm:$0xf]
  %v2680 = vld [vmem:[%s0 + $0x5dc] sm:$0xf]
  %v2681 = vld [vmem:[%s0 + $0x5e0] sm:$0xf]
  %v2682 = vld [vmem:[%s0 + $0x5e4] sm:$0xf]
  %v2683 = vld [vmem:[%s0 + $0x5e8] sm:$0xf]
  %v2684 = vld [vmem:[%s0 + $0x5ec] sm:$0xf]
  %v2685 = vld [vmem:[%s0 + $0x5f0] sm:$0xf]
  %v2686 = vld [vmem:[%s0 + $0x5f4] sm:$0xf]
  %v2687 = vld [vmem:[%s0 + $0x5f8] sm:$0xf]
  %v2688 = vld [vmem:[%s0 + $0x5fc] sm:$0xf]
  %v2689 = vld [vmem:[%s0 + $0x600] sm:$0xf]
  %v2690 = vld [vmem:[%s0 + $0x604] sm:$0xf]
  %v2691 = vld [vmem:[%s0 + $0x608] sm:$0xf]
  %v2692 = vld [vmem:[%s0 + $0x60c] sm:$0xf]
  %v2693 = vld [vmem:[%s0 + $0x610] sm:$0xf]
  %v2694 = vld [vmem:[%s0 + $0x614] sm:$0xf]
  %v2695 = vld [vmem:[%s0 + $0x618] sm:$0xf]
  %v2696 = vld [vmem:[%s0 + $0x61c] sm:$0xf]
  %v2697 = vld [vmem:[%s0 + $0x620] sm:$0xf]
  %v2698 = vld [vmem:[%s0 + $0x624] sm:$0xf]
  %v2699 = vld [vmem:[%s0 + $0x628] sm:$0xf]
  %v2700 = vld [vmem:[%s0 + $0x62c] sm:$0xf]
  %v2701 = vld [vmem:[%s0 + $0x630] sm:$0xf]
  %v2702 = vld [vmem:[%s0 + $0x634] sm:$0xf]
  %v2703 = vld [vmem:[%s0 + $0x638] sm:$0xf]
  %v2704 = vld [vmem:[%s0 + $0x63c] sm:$0xf]
  %v2705 = vld [vmem:[%s0 + $0x640] sm:$0xf]
  %v2706 = vld [vmem:[%s0 + $0x644] sm:$0xf]
  %v2707 = vld [vmem:[%s0 + $0x648] sm:$0xf]
  %v2708 = vld [vmem:[%s0 + $0x64c] sm:$0xf]
  %v2709 = vld [vmem:[%s0 + $0x650] sm:$0xf]
  %v2710 = vld [vmem:[%s0 + $0x654] sm:$0xf]
  %v2711 = vld [vmem:[%s0 + $0x658] sm:$0xf]
  %v2712 = vld [vmem:[%s0 + $0x65c] sm:$0xf]
  %v2713 = vld [vmem:[%s0 + $0x660] sm:$0xf]
  %v2714 = vld [vmem:[%s0 + $0x664] sm:$0xf]
  %v2715 = vld [vmem:[%s0 + $0x668] sm:$0xf]
  %v2716 = vld [vmem:[%s0 + $0x66c] sm:$0xf]
  %v2717 = vld [vmem:[%s0 + $0x670] sm:$0xf]
  %v2718 = vld [vmem:[%s0 + $0x674] sm:$0xf]
  %v2719 = vld [vmem:[%s0 + $0x678] sm:$0xf]
  %v2720 = vld [vmem:[%s0 + $0x67c] sm:$0xf]
  %v2721 = vld [vmem:[%s0 + $0x680] sm:$0xf]
  %v2722 = vld [vmem:[%s0 + $0x684] sm:$0xf]
  %v2723 = vld [vmem:[%s0 + $0x688] sm:$0xf]
  %v2724 = vld [vmem:[%s0 + $0x68c] sm:$0xf]
  %v2725 = vld [vmem:[%s0 + $0x690] sm:$0xf]
  %v2726 = vld [vmem:[%s0 + $0x694] sm:$0xf]
  %v2727 = vld [vmem:[%s0 + $0x698] sm:$0xf]
  %v2728 = vld [vmem:[%s0 + $0x69c] sm:$0xf]
  %v2729 = vld [vmem:[%s0 + $0x6a0] sm:$0xf]
  %v2730 = vld [vmem:[%s0 + $0x6a4] sm:$0xf]
  %v2731 = vld [vmem:[%s0 + $0x6a8] sm:$0xf]
  %v2732 = vld [vmem:[%s0 + $0x6ac] sm:$0xf]
  %v2733 = vld [vmem:[%s0 + $0x6b0] sm:$0xf]
  %v2734 = vld [vmem:[%s0 + $0x6b4] sm:$0xf]
  %v2735 = vld [vmem:[%s0 + $0x6b8] sm:$0xf]
  %v2736 = vld [vmem:[%s0 + $0x6bc] sm:$0xf]
  %v2881 = vunpack.c.l.b16 %v2593
  %v2882 = vunpack.c.l.b16 %v2594
  %v2883 = vunpack.c.l.b16 %v2595
  %v2884 = vunpack.c.l.b16 %v2596
  %v2885 = vunpack.c.l.b16 %v2597
  %v2886 = vunpack.c.l.b16 %v2598
  %v2887 = vunpack.c.l.b16 %v2599
  %v2888 = vunpack.c.l.b16 %v2600
  %v2889 = vunpack.c.l.b16 %v2601
  %v2890 = vunpack.c.l.b16 %v2602
  %v2891 = vunpack.c.l.b16 %v2603
  %v2892 = vunpack.c.l.b16 %v2604
  %v2893 = vunpack.c.l.b16 %v2605
  %v2894 = vunpack.c.l.b16 %v2606
  %v2895 = vunpack.c.l.b16 %v2607
  %v2896 = vunpack.c.l.b16 %v2608
  %v2897 = vunpack.c.l.b16 %v2609
  %v2898 = vunpack.c.l.b16 %v2610
  %v2899 = vunpack.c.l.b16 %v2611
  %v2900 = vunpack.c.l.b16 %v2612
  %v2901 = vunpack.c.l.b16 %v2613
  %v2902 = vunpack.c.l.b16 %v2614
  %v2903 = vunpack.c.l.b16 %v2615
  %v2904 = vunpack.c.l.b16 %v2616
  %v2905 = vunpack.c.l.b16 %v2617
  %v2906 = vunpack.c.l.b16 %v2618
  %v2907 = vunpack.c.l.b16 %v2619
  %v2908 = vunpack.c.l.b16 %v2620
  %v2909 = vunpack.c.l.b16 %v2621
  %v2910 = vunpack.c.l.b16 %v2622
  %v2911 = vunpack.c.l.b16 %v2623
  %v2912 = vunpack.c.l.b16 %v2624
  %v2913 = vunpack.c.l.b16 %v2625
  %v2914 = vunpack.c.l.b16 %v2626
  %v2915 = vunpack.c.l.b16 %v2627
  %v2916 = vunpack.c.l.b16 %v2628
  %v2917 = vunpack.c.l.b16 %v2629
  %v2918 = vunpack.c.l.b16 %v2630
  %v2919 = vunpack.c.l.b16 %v2631
  %v2920 = vunpack.c.l.b16 %v2632
  %v2921 = vunpack.c.l.b16 %v2633
  %v2922 = vunpack.c.l.b16 %v2634
  %v2923 = vunpack.c.l.b16 %v2635
  %v2924 = vunpack.c.l.b16 %v2636
  %v2925 = vunpack.c.l.b16 %v2637
  %v2926 = vunpack.c.l.b16 %v2638
  %v2927 = vunpack.c.l.b16 %v2639
  %v2928 = vunpack.c.l.b16 %v2640
  %v2929 = vunpack.c.l.b16 %v2641
  %v2930 = vunpack.c.l.b16 %v2642
  %v2931 = vunpack.c.l.b16 %v2643
  %v2932 = vunpack.c.l.b16 %v2644
  %v2933 = vunpack.c.l.b16 %v2645
  %v2934 = vunpack.c.l.b16 %v2646
  %v2935 = vunpack.c.l.b16 %v2647
  %v2936 = vunpack.c.l.b16 %v2648
  %v2937 = vunpack.c.l.b16 %v2649
  %v2938 = vunpack.c.l.b16 %v2650
  %v2939 = vunpack.c.l.b16 %v2651
  %v2940 = vunpack.c.l.b16 %v2652
  %v2941 = vunpack.c.l.b16 %v2653
  %v2942 = vunpack.c.l.b16 %v2654
  %v2943 = vunpack.c.l.b16 %v2655
  %v2944 = vunpack.c.l.b16 %v2656
  %v2945 = vunpack.c.l.b16 %v2657
  %v2946 = vunpack.c.l.b16 %v2658
  %v2947 = vunpack.c.l.b16 %v2659
  %v2948 = vunpack.c.l.b16 %v2660
  %v2949 = vunpack.c.l.b16 %v2661
  %v2950 = vunpack.c.l.b16 %v2662
  %v2951 = vunpack.c.l.b16 %v2663
  %v2952 = vunpack.c.l.b16 %v2664
  %v2953 = vunpack.c.l.b16 %v2665
  %v2954 = vunpack.c.l.b16 %v2666
  %v2955 = vunpack.c.l.b16 %v2667
  %v2956 = vunpack.c.l.b16 %v2668
  %v2957 = vunpack.c.l.b16 %v2669
  %v2958 = vunpack.c.l.b16 %v2670
  %v2959 = vunpack.c.l.b16 %v2671
  %v2960 = vunpack.c.l.b16 %v2672
  %v2961 = vunpack.c.l.b16 %v2673
  %v2962 = vunpack.c.l.b16 %v2674
  %v2963 = vunpack.c.l.b16 %v2675
  %v2964 = vunpack.c.l.b16 %v2676
  %v2965 = vunpack.c.l.b16 %v2677
  %v2966 = vunpack.c.l.b16 %v2678
  %v2967 = vunpack.c.l.b16 %v2679
  %v2968 = vunpack.c.l.b16 %v2680
  %v2969 = vunpack.c.l.b16 %v2681
  %v2970 = vunpack.c.l.b16 %v2682
  %v2971 = vunpack.c.l.b16 %v2683
  %v2972 = vunpack.c.l.b16 %v2684
  %v2973 = vunpack.c.l.b16 %v2685
  %v2974 = vunpack.c.l.b16 %v2686
  %v2975 = vunpack.c.l.b16 %v2687
  %v2976 = vunpack.c.l.b16 %v2688
  %v2977 = vunpack.c.l.b16 %v2689
  %v2978 = vunpack.c.l.b16 %v2690
  %v2979 = vunpack.c.l.b16 %v2691
  %v2980 = vunpack.c.l.b16 %v2692
  %v2981 = vunpack.c.l.b16 %v2693
  %v2982 = vunpack.c.l.b16 %v2694
  %v2983 = vunpack.c.l.b16 %v2695
  %v2984 = vunpack.c.l.b16 %v2696
  %v2985 = vunpack.c.l.b16 %v2697
  %v2986 = vunpack.c.l.b16 %v2698
  %v2987 = vunpack.c.l.b16 %v2699
  %v2988 = vunpack.c.l.b16 %v2700
  %v2989 = vunpack.c.l.b16 %v2701
  %v2990 = vunpack.c.l.b16 %v2702
  %v2991 = vunpack.c.l.b16 %v2703
  %v2992 = vunpack.c.l.b16 %v2704
  %v2993 = vunpack.c.l.b16 %v2705
  %v2994 = vunpack.c.l.b16 %v2706
  %v2995 = vunpack.c.l.b16 %v2707
  %v2996 = vunpack.c.l.b16 %v2708
  %v2997 = vunpack.c.l.b16 %v2709
  %v2998 = vunpack.c.l.b16 %v2710
  %v2999 = vunpack.c.l.b16 %v2711
  %v3000 = vunpack.c.l.b16 %v2712
  %v3001 = vunpack.c.l.b16 %v2713
  %v3002 = vunpack.c.l.b16 %v2714
  %v3003 = vunpack.c.l.b16 %v2715
  %v3004 = vunpack.c.l.b16 %v2716
  %v3005 = vunpack.c.l.b16 %v2717
  %v3006 = vunpack.c.l.b16 %v2718
  %v3007 = vunpack.c.l.b16 %v2719
  %v3008 = vunpack.c.l.b16 %v2720
  %v3009 = vunpack.c.l.b16 %v2721
  %v3010 = vunpack.c.l.b16 %v2722
  %v3011 = vunpack.c.l.b16 %v2723
  %v3012 = vunpack.c.l.b16 %v2724
  %v3013 = vunpack.c.l.b16 %v2725
  %v3014 = vunpack.c.l.b16 %v2726
  %v3015 = vunpack.c.l.b16 %v2727
  %v3016 = vunpack.c.l.b16 %v2728
  %v3017 = vunpack.c.l.b16 %v2729
  %v3018 = vunpack.c.l.b16 %v2730
  %v3019 = vunpack.c.l.b16 %v2731
  %v3020 = vunpack.c.l.b16 %v2732
  %v3021 = vunpack.c.l.b16 %v2733
  %v3022 = vunpack.c.l.b16 %v2734
  %v3023 = vunpack.c.l.b16 %v2735
  %v3024 = vunpack.c.l.b16 %v2736
  %v3025 = vpack.c.b16 %v2882, %v2881
  %v3026 = vpack.c.b16 %v2884, %v2883
  %v3027 = vpack.c.b16 %v2886, %v2885
  %v3028 = vpack.c.b16 %v2888, %v2887
  %v3029 = vpack.c.b16 %v2890, %v2889
  %v3030 = vpack.c.b16 %v2892, %v2891
  %v3031 = vpack.c.b16 %v2894, %v2893
  %v3032 = vpack.c.b16 %v2896, %v2895
  %v3033 = vpack.c.b16 %v2898, %v2897
  %v3034 = vpack.c.b16 %v2900, %v2899
  %v3035 = vpack.c.b16 %v2902, %v2901
  %v3036 = vpack.c.b16 %v2904, %v2903
  %v3037 = vpack.c.b16 %v2906, %v2905
  %v3038 = vpack.c.b16 %v2908, %v2907
  %v3039 = vpack.c.b16 %v2910, %v2909
  %v3040 = vpack.c.b16 %v2912, %v2911
  %v3041 = vpack.c.b16 %v2914, %v2913
  %v3042 = vpack.c.b16 %v2916, %v2915
  %v3043 = vpack.c.b16 %v2918, %v2917
  %v3044 = vpack.c.b16 %v2920, %v2919
  %v3045 = vpack.c.b16 %v2922, %v2921
  %v3046 = vpack.c.b16 %v2924, %v2923
  %v3047 = vpack.c.b16 %v2926, %v2925
  %v3048 = vpack.c.b16 %v2928, %v2927
  %v3049 = vpack.c.b16 %v2930, %v2929
  %v3050 = vpack.c.b16 %v2932, %v2931
  %v3051 = vpack.c.b16 %v2934, %v2933
  %v3052 = vpack.c.b16 %v2936, %v2935
  %v3053 = vpack.c.b16 %v2938, %v2937
  %v3054 = vpack.c.b16 %v2940, %v2939
  %v3055 = vpack.c.b16 %v2942, %v2941
  %v3056 = vpack.c.b16 %v2944, %v2943
  %v3057 = vpack.c.b16 %v2946, %v2945
  %v3058 = vpack.c.b16 %v2948, %v2947
  %v3059 = vpack.c.b16 %v2950, %v2949
  %v3060 = vpack.c.b16 %v2952, %v2951
  %v3061 = vpack.c.b16 %v2954, %v2953
  %v3062 = vpack.c.b16 %v2956, %v2955
  %v3063 = vpack.c.b16 %v2958, %v2957
  %v3064 = vpack.c.b16 %v2960, %v2959
  %v3065 = vpack.c.b16 %v2962, %v2961
  %v3066 = vpack.c.b16 %v2964, %v2963
  %v3067 = vpack.c.b16 %v2966, %v2965
  %v3068 = vpack.c.b16 %v2968, %v2967
  %v3069 = vpack.c.b16 %v2970, %v2969
  %v3070 = vpack.c.b16 %v2972, %v2971
  %v3071 = vpack.c.b16 %v2974, %v2973
  %v3072 = vpack.c.b16 %v2976, %v2975
  %v3073 = vpack.c.b16 %v2978, %v2977
  %v3074 = vpack.c.b16 %v2980, %v2979
  %v3075 = vpack.c.b16 %v2982, %v2981
  %v3076 = vpack.c.b16 %v2984, %v2983
  %v3077 = vpack.c.b16 %v2986, %v2985
  %v3078 = vpack.c.b16 %v2988, %v2987
  %v3079 = vpack.c.b16 %v2990, %v2989
  %v3080 = vpack.c.b16 %v2992, %v2991
  %v3081 = vpack.c.b16 %v2994, %v2993
  %v3082 = vpack.c.b16 %v2996, %v2995
  %v3083 = vpack.c.b16 %v2998, %v2997
  %v3084 = vpack.c.b16 %v3000, %v2999
  %v3085 = vpack.c.b16 %v3002, %v3001
  %v3086 = vpack.c.b16 %v3004, %v3003
  %v3087 = vpack.c.b16 %v3006, %v3005
  %v3088 = vpack.c.b16 %v3008, %v3007
  %v3089 = vpack.c.b16 %v3010, %v3009
  %v3090 = vpack.c.b16 %v3012, %v3011
  %v3091 = vpack.c.b16 %v3014, %v3013
  %v3092 = vpack.c.b16 %v3016, %v3015
  %v3093 = vpack.c.b16 %v3018, %v3017
  %v3094 = vpack.c.b16 %v3020, %v3019
  %v3095 = vpack.c.b16 %v3022, %v3021
  %v3096 = vpack.c.b16 %v3024, %v3023
  %3169 = vmatprep.subr.bf16.mxu0 0
  %3170 = vmatpush1.bf16.msra.mxu0 %v639
  %3171 = vmatprep.subr.bf16.mxu0 0
  %3172 = vmatpush1.bf16.msra.mxu0 %v640
  %3173 = vmatprep.subr.bf16.mxu0 0
  %3174 = vmatpush1.bf16.msra.mxu0 %v641
  %3175 = vmatprep.subr.bf16.mxu0 0
  %3176 = vmatpush1.bf16.msra.mxu0 %v642
  %3177 = vmatprep.subr.bf16.mxu0 0
  %3178 = vmatpush1.bf16.msra.mxu0 %v643
  %3179 = vmatprep.subr.bf16.mxu0 0
  %3180 = vmatpush1.bf16.msra.mxu0 %v644
  %3181 = vmatprep.subr.bf16.mxu0 0
  %3182 = vmatpush1.bf16.msra.mxu0 %v645
  %3183 = vmatprep.subr.bf16.mxu0 0
  %3184 = vmatpush1.bf16.msra.mxu0 %v646
  %3185 = vmatprep.subr.bf16.mxu0 0
  %3186 = vmatpush1.bf16.msra.mxu0 0
  %3187 = vmatprep.subr.bf16.mxu0 0
  %3188 = vmatpush1.bf16.msra.mxu0 0
  %3189 = vmatprep.subr.bf16.mxu0 0
  %3190 = vmatpush1.bf16.msra.mxu0 0
  %3191 = vmatprep.subr.bf16.mxu0 0
  %3192 = vmatpush1.bf16.msra.mxu0 0
  %3193 = vmatprep.subr.bf16.mxu0 0
  %3194 = vmatpush1.bf16.msra.mxu0 0
  %3195 = vmatprep.subr.bf16.mxu0 0
  %3196 = vmatpush1.bf16.msra.mxu0 0
  %3197 = vmatprep.subr.bf16.mxu0 0
  %3198 = vmatpush1.bf16.msra.mxu0 0
  %3199 = vmatprep.subr.bf16.mxu0 0
  %3200 = vmatpush1.bf16.msra.mxu0 0
  %3201 = vmatprep.mubr.bf16.mxu0 0
  %3202 = vmatmul.mubr.bf16.gmra.mrb[0].mxu0 %v3025
  %v3203 = vpop.f32.mrb[0].mxu0
  %v3204 = vadd.f32 0.0, %v3203
  %v3205 = vpop.f32.mrb[0].mxu0
  %v3206 = vpop.f32.mrb[0].mxu0
  %v3207 = vadd.f32 0.0, %v3206
  %v3208 = vpop.f32.mrb[0].mxu0
  %3209 = vmatprep.mubr.bf16.mxu0 0
  %3210 = vmatmul.mubr.bf16.gmra.mrb[0].mxu0 %v3026
  %v3211 = vpop.f32.mrb[0].mxu0
  %v3212 = vadd.f32 0.0, %v3211
  %v3213 = vpop.f32.mrb[0].mxu0
  %v3214 = vpop.f32.mrb[0].mxu0
  %v3215 = vadd.f32 0.0, %v3214
  %v3216 = vpop.f32.mrb[0].mxu0
  %3217 = vmatprep.mubr.bf16.mxu0 0
  %3218 = vmatmul.mubr.bf16.gmra.mrb[0].mxu0 %v3027
  %v3219 = vpop.f32.mrb[0].mxu0
  %v3220 = vadd.f32 0.0, %v3219
  %v3221 = vpop.f32.mrb[0].mxu0
  %v3222 = vpop.f32.mrb[0].mxu0
  %v3223 = vadd.f32 0.0, %v3222
  %v3224 = vpop.f32.mrb[0].mxu0
  %3225 = vmatprep.mubr.bf16.mxu0 0
  %3226 = vmatmul.mubr.bf16.gmra.mrb[0].mxu0 %v3028
  %v3227 = vpop.f32.mrb[0].mxu0
  %v3228 = vadd.f32 0.0, %v3227
  %v3229 = vpop.f32.mrb[0].mxu0
  %v3230 = vpop.f32.mrb[0].mxu0
  %v3231 = vadd.f32 0.0, %v3230
  %v3232 = vpop.f32.mrb[0].mxu0
  %3233 = vmatprep.mubr.bf16.mxu0 0
  %3234 = vmatmul.mubr.bf16.gmra.mrb[0].mxu0 %v3029
  %v3235 = vpop.f32.mrb[0].mxu0
  %v3236 = vadd.f32 0.0, %v3235
  %v3237 = vpop.f32.mrb[0].mxu0
  %v3238 = vpop.f32.mrb[0].mxu0
  %v3239 = vadd.f32 0.0, %v3238
  %v3240 = vpop.f32.mrb[0].mxu0
  %3241 = vmatprep.mubr.bf16.mxu0 0
  %3242 = vmatmul.mubr.bf16.gmra.mrb[0].mxu0 %v3030
  %v3243 = vpop.f32.mrb[0].mxu0
  %v3244 = vadd.f32 0.0, %v3243
  %v3245 = vpop.f32.mrb[0].mxu0
  %v3246 = vpop.f32.mrb[0].mxu0
  %v3247 = vadd.f32 0.0, %v3246
  %v3248 = vpop.f32.mrb[0].mxu0
  %3249 = vmatprep.mubr.bf16.mxu0 0
  %3250 = vmatmul.mubr.bf16.gmra.mrb[0].mxu0 %v3031
  %v3251 = vpop.f32.mrb[0].mxu0
  %v3252 = vadd.f32 0.0, %v3251
  %v3253 = vpop.f32.mrb[0].mxu0
  %v3254 = vpop.f32.mrb[0].mxu0
  %v3255 = vadd.f32 0.0, %v3254
  %v3256 = vpop.f32.mrb[0].mxu0
  %3257 = vmatprep.mubr.bf16.mxu0 0
  %3258 = vmatmul.mubr.bf16.gmra.mrb[0].mxu0 %v3032
  %v3259 = vpop.f32.mrb[0].mxu0
  %v3260 = vadd.f32 0.0, %v3259
  %v3261 = vpop.f32.mrb[0].mxu0
  %v3262 = vpop.f32.mrb[0].mxu0
  %v3263 = vadd.f32 0.0, %v3262
  %v3264 = vpop.f32.mrb[0].mxu0
  %3265 = vmatprep.mubr.bf16.mxu0 0
  %3266 = vmatmul.mubr.bf16.gmra.mrb[0].mxu0 %v3033
  %v3267 = vpop.f32.mrb[0].mxu0
  %v3268 = vadd.f32 0.0, %v3267
  %v3269 = vpop.f32.mrb[0].mxu0
  %v3270 = vpop.f32.mrb[0].mxu0
  %v3271 = vadd.f32 0.0, %v3270
  %v3272 = vpop.f32.mrb[0].mxu0
  %3273 = vmatprep.mubr.bf16.mxu0 0
  %3274 = vmatmul.mubr.bf16.gmra.mrb[0].mxu0 %v3034
  %v3275 = vpop.f32.mrb[0].mxu0
  %v3276 = vadd.f32 0.0, %v3275
  %v3277 = vpop.f32.mrb[0].mxu0
  %v3278 = vpop.f32.mrb[0].mxu0
  %v3279 = vadd.f32 0.0, %v3278
  %v3280 = vpop.f32.mrb[0].mxu0
  %3281 = vmatprep.mubr.bf16.mxu0 0
  %3282 = vmatmul.mubr.bf16.gmra.mrb[0].mxu0 %v3035
  %v3283 = vpop.f32.mrb[0].mxu0
  %v3284 = vadd.f32 0.0, %v3283
  %v3285 = vpop.f32.mrb[0].mxu0
  %v3286 = vpop.f32.mrb[0].mxu0
  %v3287 = vadd.f32 0.0, %v3286
  %v3288 = vpop.f32.mrb[0].mxu0
  %3289 = vmatprep.mubr.bf16.mxu0 0
  %3290 = vmatmul.mubr.bf16.gmra.mrb[0].mxu0 %v3036
  %v3291 = vpop.f32.mrb[0].mxu0
  %v3292 = vadd.f32 0.0, %v3291
  %v3293 = vpop.f32.mrb[0].mxu0
  %v3294 = vpop.f32.mrb[0].mxu0
  %v3295 = vadd.f32 0.0, %v3294
  %v3296 = vpop.f32.mrb[0].mxu0
  %3297 = vmatprep.mubr.bf16.mxu0 0
  %3298 = vmatmul.mubr.bf16.gmra.mrb[0].mxu0 %v3037
  %v3299 = vpop.f32.mrb[0].mxu0
  %v3300 = vadd.f32 0.0, %v3299
  %v3301 = vpop.f32.mrb[0].mxu0
  %v3302 = vpop.f32.mrb[0].mxu0
  %v3303 = vadd.f32 0.0, %v3302
  %v3304 = vpop.f32.mrb[0].mxu0
  %3305 = vmatprep.mubr.bf16.mxu0 0
  %3306 = vmatmul.mubr.bf16.gmra.mrb[0].mxu0 %v3038
  %v3307 = vpop.f32.mrb[0].mxu0
  %v3308 = vadd.f32 0.0, %v3307
  %v3309 = vpop.f32.mrb[0].mxu0
  %v3310 = vpop.f32.mrb[0].mxu0
  %v3311 = vadd.f32 0.0, %v3310
  %v3312 = vpop.f32.mrb[0].mxu0
  %3313 = vmatprep.mubr.bf16.mxu0 0
  %3314 = vmatmul.mubr.bf16.gmra.mrb[0].mxu0 %v3039
  %v3315 = vpop.f32.mrb[0].mxu0
  %v3316 = vadd.f32 0.0, %v3315
  %v3317 = vpop.f32.mrb[0].mxu0
  %v3318 = vpop.f32.mrb[0].mxu0
  %v3319 = vadd.f32 0.0, %v3318
  %v3320 = vpop.f32.mrb[0].mxu0
  %3321 = vmatprep.mubr.bf16.mxu0 0
  %3322 = vmatmul.mubr.bf16.gmra.mrb[0].mxu0 %v3040
  %v3323 = vpop.f32.mrb[0].mxu0
  %v3324 = vadd.f32 0.0, %v3323
  %v3325 = vpop.f32.mrb[0].mxu0
  %v3326 = vpop.f32.mrb[0].mxu0
  %v3327 = vadd.f32 0.0, %v3326
  %v3328 = vpop.f32.mrb[0].mxu0
  %3329 = vmatprep.mubr.bf16.mxu0 0
  %3330 = vmatmul.mubr.bf16.gmra.mrb[0].mxu0 %v3041
  %v3331 = vpop.f32.mrb[0].mxu0
  %v3332 = vadd.f32 0.0, %v3331
  %v3333 = vpop.f32.mrb[0].mxu0
  %v3334 = vpop.f32.mrb[0].mxu0
  %v3335 = vadd.f32 0.0, %v3334
  %v3336 = vpop.f32.mrb[0].mxu0
  %3337 = vmatprep.mubr.bf16.mxu0 0
  %3338 = vmatmul.mubr.bf16.gmra.mrb[0].mxu0 %v3042
  %v3339 = vpop.f32.mrb[0].mxu0
  %v3340 = vadd.f32 0.0, %v3339
  %v3341 = vpop.f32.mrb[0].mxu0
  %v3342 = vpop.f32.mrb[0].mxu0
  %v3343 = vadd.f32 0.0, %v3342
  %v3344 = vpop.f32.mrb[0].mxu0
  %3345 = vmatprep.mubr.bf16.mxu0 0
  %3346 = vmatmul.mubr.bf16.gmra.mrb[0].mxu0 %v3043
  %v3347 = vpop.f32.mrb[0].mxu0
  %v3348 = vadd.f32 0.0, %v3347
  %v3349 = vpop.f32.mrb[0].mxu0
  %v3350 = vpop.f32.mrb[0].mxu0
  %v3351 = vadd.f32 0.0, %v3350
  %v3352 = vpop.f32.mrb[0].mxu0
  %3353 = vmatprep.mubr.bf16.mxu0 0
  %3354 = vmatmul.mubr.bf16.gmra.mrb[0].mxu0 %v3044
  %v3355 = vpop.f32.mrb[0].mxu0
  %v3356 = vadd.f32 0.0, %v3355
  %v3357 = vpop.f32.mrb[0].mxu0
  %v3358 = vpop.f32.mrb[0].mxu0
  %v3359 = vadd.f32 0.0, %v3358
  %v3360 = vpop.f32.mrb[0].mxu0
  %3361 = vmatprep.mubr.bf16.mxu0 0
  %3362 = vmatmul.mubr.bf16.gmra.mrb[0].mxu0 %v3045
  %v3363 = vpop.f32.mrb[0].mxu0
  %v3364 = vadd.f32 0.0, %v3363
  %v3365 = vpop.f32.mrb[0].mxu0
  %v3366 = vpop.f32.mrb[0].mxu0
  %v3367 = vadd.f32 0.0, %v3366
  %v3368 = vpop.f32.mrb[0].mxu0
  %3369 = vmatprep.mubr.bf16.mxu0 0
  %3370 = vmatmul.mubr.bf16.gmra.mrb[0].mxu0 %v3046
  %v3371 = vpop.f32.mrb[0].mxu0
  %v3372 = vadd.f32 0.0, %v3371
  %v3373 = vpop.f32.mrb[0].mxu0
  %v3374 = vpop.f32.mrb[0].mxu0
  %v3375 = vadd.f32 0.0, %v3374
  %v3376 = vpop.f32.mrb[0].mxu0
  %3377 = vmatprep.mubr.bf16.mxu0 0
  %3378 = vmatmul.mubr.bf16.gmra.mrb[0].mxu0 %v3047
  %v3379 = vpop.f32.mrb[0].mxu0
  %v3380 = vadd.f32 0.0, %v3379
  %v3381 = vpop.f32.mrb[0].mxu0
  %v3382 = vpop.f32.mrb[0].mxu0
  %v3383 = vadd.f32 0.0, %v3382
  %v3384 = vpop.f32.mrb[0].mxu0
  %3385 = vmatprep.mubr.bf16.mxu0 0
  %3386 = vmatmul.mubr.bf16.gmra.mrb[0].mxu0 %v3048
  %v3387 = vpop.f32.mrb[0].mxu0
  %v3388 = vadd.f32 0.0, %v3387
  %v3389 = vpop.f32.mrb[0].mxu0
  %v3390 = vpop.f32.mrb[0].mxu0
  %v3391 = vadd.f32 0.0, %v3390
  %v3392 = vpop.f32.mrb[0].mxu0
  %3393 = vmatprep.mubr.bf16.mxu0 0
  %3394 = vmatmul.mubr.bf16.gmra.mrb[0].mxu0 %v3049
  %v3395 = vpop.f32.mrb[0].mxu0
  %v3396 = vadd.f32 0.0, %v3395
  %v3397 = vpop.f32.mrb[0].mxu0
  %v3398 = vpop.f32.mrb[0].mxu0
  %v3399 = vadd.f32 0.0, %v3398
  %v3400 = vpop.f32.mrb[0].mxu0
  %3401 = vmatprep.mubr.bf16.mxu0 0
  %3402 = vmatmul.mubr.bf16.gmra.mrb[0].mxu0 %v3050
  %v3403 = vpop.f32.mrb[0].mxu0
  %v3404 = vadd.f32 0.0, %v3403
  %v3405 = vpop.f32.mrb[0].mxu0
  %v3406 = vpop.f32.mrb[0].mxu0
  %v3407 = vadd.f32 0.0, %v3406
  %v3408 = vpop.f32.mrb[0].mxu0
  %3409 = vmatprep.mubr.bf16.mxu0 0
  %3410 = vmatmul.mubr.bf16.gmra.mrb[0].mxu0 %v3051
  %v3411 = vpop.f32.mrb[0].mxu0
  %v3412 = vadd.f32 0.0, %v3411
  %v3413 = vpop.f32.mrb[0].mxu0
  %v3414 = vpop.f32.mrb[0].mxu0
  %v3415 = vadd.f32 0.0, %v3414
  %v3416 = vpop.f32.mrb[0].mxu0
  %3417 = vmatprep.mubr.bf16.mxu0 0
  %3418 = vmatmul.mubr.bf16.gmra.mrb[0].mxu0 %v3052
  %v3419 = vpop.f32.mrb[0].mxu0
  %v3420 = vadd.f32 0.0, %v3419
  %v3421 = vpop.f32.mrb[0].mxu0
  %v3422 = vpop.f32.mrb[0].mxu0
  %v3423 = vadd.f32 0.0, %v3422
  %v3424 = vpop.f32.mrb[0].mxu0
  %3425 = vmatprep.mubr.bf16.mxu0 0
  %3426 = vmatmul.mubr.bf16.gmra.mrb[0].mxu0 %v3053
  %v3427 = vpop.f32.mrb[0].mxu0
  %v3428 = vadd.f32 0.0, %v3427
  %v3429 = vpop.f32.mrb[0].mxu0
  %v3430 = vpop.f32.mrb[0].mxu0
  %v3431 = vadd.f32 0.0, %v3430
  %v3432 = vpop.f32.mrb[0].mxu0
  %3433 = vmatprep.mubr.bf16.mxu0 0
  %3434 = vmatmul.mubr.bf16.gmra.mrb[0].mxu0 %v3054
  %v3435 = vpop.f32.mrb[0].mxu0
  %v3436 = vadd.f32 0.0, %v3435
  %v3437 = vpop.f32.mrb[0].mxu0
  %v3438 = vpop.f32.mrb[0].mxu0
  %v3439 = vadd.f32 0.0, %v3438
  %v3440 = vpop.f32.mrb[0].mxu0
  %3441 = vmatprep.mubr.bf16.mxu0 0
  %3442 = vmatmul.mubr.bf16.gmra.mrb[0].mxu0 %v3055
  %v3443 = vpop.f32.mrb[0].mxu0
  %v3444 = vadd.f32 0.0, %v3443
  %v3445 = vpop.f32.mrb[0].mxu0
  %v3446 = vpop.f32.mrb[0].mxu0
  %v3447 = vadd.f32 0.0, %v3446
  %v3448 = vpop.f32.mrb[0].mxu0
  %3449 = vmatprep.mubr.bf16.mxu0 0
  %3450 = vmatmul.mubr.bf16.gmra.mrb[0].mxu0 %v3056
  %v3451 = vpop.f32.mrb[0].mxu0
  %v3452 = vadd.f32 0.0, %v3451
  %v3453 = vpop.f32.mrb[0].mxu0
  %v3454 = vpop.f32.mrb[0].mxu0
  %v3455 = vadd.f32 0.0, %v3454
  %v3456 = vpop.f32.mrb[0].mxu0
  %3457 = vmatprep.mubr.bf16.mxu0 0
  %3458 = vmatmul.mubr.bf16.gmra.mrb[0].mxu0 %v3057
  %v3459 = vpop.f32.mrb[0].mxu0
  %v3460 = vadd.f32 0.0, %v3459
  %v3461 = vpop.f32.mrb[0].mxu0
  %v3462 = vpop.f32.mrb[0].mxu0
  %v3463 = vadd.f32 0.0, %v3462
  %v3464 = vpop.f32.mrb[0].mxu0
  %3465 = vmatprep.mubr.bf16.mxu0 0
  %3466 = vmatmul.mubr.bf16.gmra.mrb[0].mxu0 %v3058
  %v3467 = vpop.f32.mrb[0].mxu0
  %v3468 = vadd.f32 0.0, %v3467
  %v3469 = vpop.f32.mrb[0].mxu0
  %v3470 = vpop.f32.mrb[0].mxu0
  %v3471 = vadd.f32 0.0, %v3470
  %v3472 = vpop.f32.mrb[0].mxu0
  %3473 = vmatprep.mubr.bf16.mxu0 0
  %3474 = vmatmul.mubr.bf16.gmra.mrb[0].mxu0 %v3059
  %v3475 = vpop.f32.mrb[0].mxu0
  %v3476 = vadd.f32 0.0, %v3475
  %v3477 = vpop.f32.mrb[0].mxu0
  %v3478 = vpop.f32.mrb[0].mxu0
  %v3479 = vadd.f32 0.0, %v3478
  %v3480 = vpop.f32.mrb[0].mxu0
  %3481 = vmatprep.mubr.bf16.mxu0 0
  %3482 = vmatmul.mubr.bf16.gmra.mrb[0].mxu0 %v3060
  %v3483 = vpop.f32.mrb[0].mxu0
  %v3484 = vadd.f32 0.0, %v3483
  %v3485 = vpop.f32.mrb[0].mxu0
  %v3486 = vpop.f32.mrb[0].mxu0
  %v3487 = vadd.f32 0.0, %v3486
  %v3488 = vpop.f32.mrb[0].mxu0
  %3489 = vmatprep.mubr.bf16.mxu0 0
  %3490 = vmatmul.mubr.bf16.gmra.mrb[0].mxu0 %v3061
  %v3491 = vpop.f32.mrb[0].mxu0
  %v3492 = vadd.f32 0.0, %v3491
  %v3493 = vpop.f32.mrb[0].mxu0
  %v3494 = vpop.f32.mrb[0].mxu0
  %v3495 = vadd.f32 0.0, %v3494
  %v3496 = vpop.f32.mrb[0].mxu0
  %3497 = vmatprep.mubr.bf16.mxu0 0
  %3498 = vmatmul.mubr.bf16.gmra.mrb[0].mxu0 %v3062
  %v3499 = vpop.f32.mrb[0].mxu0
  %v3500 = vadd.f32 0.0, %v3499
  %v3501 = vpop.f32.mrb[0].mxu0
  %v3502 = vpop.f32.mrb[0].mxu0
  %v3503 = vadd.f32 0.0, %v3502
  %v3504 = vpop.f32.mrb[0].mxu0
  %3505 = vmatprep.mubr.bf16.mxu0 0
  %3506 = vmatmul.mubr.bf16.gmra.mrb[0].mxu0 %v3063
  %v3507 = vpop.f32.mrb[0].mxu0
  %v3508 = vadd.f32 0.0, %v3507
  %v3509 = vpop.f32.mrb[0].mxu0
  %v3510 = vpop.f32.mrb[0].mxu0
  %v3511 = vadd.f32 0.0, %v3510
  %v3512 = vpop.f32.mrb[0].mxu0
  %3513 = vmatprep.mubr.bf16.mxu0 0
  %3514 = vmatmul.mubr.bf16.gmra.mrb[0].mxu0 %v3064
  %v3515 = vpop.f32.mrb[0].mxu0
  %v3516 = vadd.f32 0.0, %v3515
  %v3517 = vpop.f32.mrb[0].mxu0
  %v3518 = vpop.f32.mrb[0].mxu0
  %v3519 = vadd.f32 0.0, %v3518
  %v3520 = vpop.f32.mrb[0].mxu0
  %3521 = vmatprep.mubr.bf16.mxu0 0
  %3522 = vmatmul.mubr.bf16.gmra.mrb[0].mxu0 %v3065
  %v3523 = vpop.f32.mrb[0].mxu0
  %v3524 = vadd.f32 0.0, %v3523
  %v3525 = vpop.f32.mrb[0].mxu0
  %v3526 = vpop.f32.mrb[0].mxu0
  %v3527 = vadd.f32 0.0, %v3526
  %v3528 = vpop.f32.mrb[0].mxu0
  %3529 = vmatprep.mubr.bf16.mxu0 0
  %3530 = vmatmul.mubr.bf16.gmra.mrb[0].mxu0 %v3066
  %v3531 = vpop.f32.mrb[0].mxu0
  %v3532 = vadd.f32 0.0, %v3531
  %v3533 = vpop.f32.mrb[0].mxu0
  %v3534 = vpop.f32.mrb[0].mxu0
  %v3535 = vadd.f32 0.0, %v3534
  %v3536 = vpop.f32.mrb[0].mxu0
  %3537 = vmatprep.mubr.bf16.mxu0 0
  %3538 = vmatmul.mubr.bf16.gmra.mrb[0].mxu0 %v3067
  %v3539 = vpop.f32.mrb[0].mxu0
  %v3540 = vadd.f32 0.0, %v3539
  %v3541 = vpop.f32.mrb[0].mxu0
  %v3542 = vpop.f32.mrb[0].mxu0
  %v3543 = vadd.f32 0.0, %v3542
  %v3544 = vpop.f32.mrb[0].mxu0
  %3545 = vmatprep.mubr.bf16.mxu0 0
  %3546 = vmatmul.mubr.bf16.gmra.mrb[0].mxu0 %v3068
  %v3547 = vpop.f32.mrb[0].mxu0
  %v3548 = vadd.f32 0.0, %v3547
  %v3549 = vpop.f32.mrb[0].mxu0
  %v3550 = vpop.f32.mrb[0].mxu0
  %v3551 = vadd.f32 0.0, %v3550
  %v3552 = vpop.f32.mrb[0].mxu0
  %3553 = vmatprep.mubr.bf16.mxu0 0
  %3554 = vmatmul.mubr.bf16.gmra.mrb[0].mxu0 %v3069
  %v3555 = vpop.f32.mrb[0].mxu0
  %v3556 = vadd.f32 0.0, %v3555
  %v3557 = vpop.f32.mrb[0].mxu0
  %v3558 = vpop.f32.mrb[0].mxu0
  %v3559 = vadd.f32 0.0, %v3558
  %v3560 = vpop.f32.mrb[0].mxu0
  %3561 = vmatprep.mubr.bf16.mxu0 0
  %3562 = vmatmul.mubr.bf16.gmra.mrb[0].mxu0 %v3070
  %v3563 = vpop.f32.mrb[0].mxu0
  %v3564 = vadd.f32 0.0, %v3563
  %v3565 = vpop.f32.mrb[0].mxu0
  %v3566 = vpop.f32.mrb[0].mxu0
  %v3567 = vadd.f32 0.0, %v3566
  %v3568 = vpop.f32.mrb[0].mxu0
  %3569 = vmatprep.mubr.bf16.mxu0 0
  %3570 = vmatmul.mubr.bf16.gmra.mrb[0].mxu0 %v3071
  %v3571 = vpop.f32.mrb[0].mxu0
  %v3572 = vadd.f32 0.0, %v3571
  %v3573 = vpop.f32.mrb[0].mxu0
  %v3574 = vpop.f32.mrb[0].mxu0
  %v3575 = vadd.f32 0.0, %v3574
  %v3576 = vpop.f32.mrb[0].mxu0
  %3577 = vmatprep.mubr.bf16.mxu0 0
  %3578 = vmatmul.mubr.bf16.gmra.mrb[0].mxu0 %v3072
  %v3579 = vpop.f32.mrb[0].mxu0
  %v3580 = vadd.f32 0.0, %v3579
  %v3581 = vpop.f32.mrb[0].mxu0
  %v3582 = vpop.f32.mrb[0].mxu0
  %v3583 = vadd.f32 0.0, %v3582
  %v3584 = vpop.f32.mrb[0].mxu0
  %3585 = vmatprep.mubr.bf16.mxu0 0
  %3586 = vmatmul.mubr.bf16.gmra.mrb[0].mxu0 %v3073
  %v3587 = vpop.f32.mrb[0].mxu0
  %v3588 = vadd.f32 0.0, %v3587
  %v3589 = vpop.f32.mrb[0].mxu0
  %v3590 = vpop.f32.mrb[0].mxu0
  %v3591 = vadd.f32 0.0, %v3590
  %v3592 = vpop.f32.mrb[0].mxu0
  %3593 = vmatprep.mubr.bf16.mxu0 0
  %3594 = vmatmul.mubr.bf16.gmra.mrb[0].mxu0 %v3074
  %v3595 = vpop.f32.mrb[0].mxu0
  %v3596 = vadd.f32 0.0, %v3595
  %v3597 = vpop.f32.mrb[0].mxu0
  %v3598 = vpop.f32.mrb[0].mxu0
  %v3599 = vadd.f32 0.0, %v3598
  %v3600 = vpop.f32.mrb[0].mxu0
  %3601 = vmatprep.mubr.bf16.mxu0 0
  %3602 = vmatmul.mubr.bf16.gmra.mrb[0].mxu0 %v3075
  %v3603 = vpop.f32.mrb[0].mxu0
  %v3604 = vadd.f32 0.0, %v3603
  %v3605 = vpop.f32.mrb[0].mxu0
  %v3606 = vpop.f32.mrb[0].mxu0
  %v3607 = vadd.f32 0.0, %v3606
  %v3608 = vpop.f32.mrb[0].mxu0
  %3609 = vmatprep.mubr.bf16.mxu0 0
  %3610 = vmatmul.mubr.bf16.gmra.mrb[0].mxu0 %v3076
  %v3611 = vpop.f32.mrb[0].mxu0
  %v3612 = vadd.f32 0.0, %v3611
  %v3613 = vpop.f32.mrb[0].mxu0
  %v3614 = vpop.f32.mrb[0].mxu0
  %v3615 = vadd.f32 0.0, %v3614
  %v3616 = vpop.f32.mrb[0].mxu0
  %3617 = vmatprep.mubr.bf16.mxu0 0
  %3618 = vmatmul.mubr.bf16.gmra.mrb[0].mxu0 %v3077
  %v3619 = vpop.f32.mrb[0].mxu0
  %v3620 = vadd.f32 0.0, %v3619
  %v3621 = vpop.f32.mrb[0].mxu0
  %v3622 = vpop.f32.mrb[0].mxu0
  %v3623 = vadd.f32 0.0, %v3622
  %v3624 = vpop.f32.mrb[0].mxu0
  %3625 = vmatprep.mubr.bf16.mxu0 0
  %3626 = vmatmul.mubr.bf16.gmra.mrb[0].mxu0 %v3078
  %v3627 = vpop.f32.mrb[0].mxu0
  %v3628 = vadd.f32 0.0, %v3627
  %v3629 = vpop.f32.mrb[0].mxu0
  %v3630 = vpop.f32.mrb[0].mxu0
  %v3631 = vadd.f32 0.0, %v3630
  %v3632 = vpop.f32.mrb[0].mxu0
  %3633 = vmatprep.mubr.bf16.mxu0 0
  %3634 = vmatmul.mubr.bf16.gmra.mrb[0].mxu0 %v3079
  %v3635 = vpop.f32.mrb[0].mxu0
  %v3636 = vadd.f32 0.0, %v3635
  %v3637 = vpop.f32.mrb[0].mxu0
  %v3638 = vpop.f32.mrb[0].mxu0
  %v3639 = vadd.f32 0.0, %v3638
  %v3640 = vpop.f32.mrb[0].mxu0
  %3641 = vmatprep.mubr.bf16.mxu0 0
  %3642 = vmatmul.mubr.bf16.gmra.mrb[0].mxu0 %v3080
  %v3643 = vpop.f32.mrb[0].mxu0
  %v3644 = vadd.f32 0.0, %v3643
  %v3645 = vpop.f32.mrb[0].mxu0
  %v3646 = vpop.f32.mrb[0].mxu0
  %v3647 = vadd.f32 0.0, %v3646
  %v3648 = vpop.f32.mrb[0].mxu0
  %3649 = vmatprep.mubr.bf16.mxu0 0
  %3650 = vmatmul.mubr.bf16.gmra.mrb[0].mxu0 %v3081
  %v3651 = vpop.f32.mrb[0].mxu0
  %v3652 = vadd.f32 0.0, %v3651
  %v3653 = vpop.f32.mrb[0].mxu0
  %v3654 = vpop.f32.mrb[0].mxu0
  %v3655 = vadd.f32 0.0, %v3654
  %v3656 = vpop.f32.mrb[0].mxu0
  %3657 = vmatprep.mubr.bf16.mxu0 0
  %3658 = vmatmul.mubr.bf16.gmra.mrb[0].mxu0 %v3082
  %v3659 = vpop.f32.mrb[0].mxu0
  %v3660 = vadd.f32 0.0, %v3659
  %v3661 = vpop.f32.mrb[0].mxu0
  %v3662 = vpop.f32.mrb[0].mxu0
  %v3663 = vadd.f32 0.0, %v3662
  %v3664 = vpop.f32.mrb[0].mxu0
  %3665 = vmatprep.mubr.bf16.mxu0 0
  %3666 = vmatmul.mubr.bf16.gmra.mrb[0].mxu0 %v3083
  %v3667 = vpop.f32.mrb[0].mxu0
  %v3668 = vadd.f32 0.0, %v3667
  %v3669 = vpop.f32.mrb[0].mxu0
  %v3670 = vpop.f32.mrb[0].mxu0
  %v3671 = vadd.f32 0.0, %v3670
  %v3672 = vpop.f32.mrb[0].mxu0
  %3673 = vmatprep.mubr.bf16.mxu0 0
  %3674 = vmatmul.mubr.bf16.gmra.mrb[0].mxu0 %v3084
  %v3675 = vpop.f32.mrb[0].mxu0
  %v3676 = vadd.f32 0.0, %v3675
  %v3677 = vpop.f32.mrb[0].mxu0
  %v3678 = vpop.f32.mrb[0].mxu0
  %v3679 = vadd.f32 0.0, %v3678
  %v3680 = vpop.f32.mrb[0].mxu0
  %3681 = vmatprep.mubr.bf16.mxu0 0
  %3682 = vmatmul.mubr.bf16.gmra.mrb[0].mxu0 %v3085
  %v3683 = vpop.f32.mrb[0].mxu0
  %v3684 = vadd.f32 0.0, %v3683
  %v3685 = vpop.f32.mrb[0].mxu0
  %v3686 = vpop.f32.mrb[0].mxu0
  %v3687 = vadd.f32 0.0, %v3686
  %v3688 = vpop.f32.mrb[0].mxu0
  %3689 = vmatprep.mubr.bf16.mxu0 0
  %3690 = vmatmul.mubr.bf16.gmra.mrb[0].mxu0 %v3086
  %v3691 = vpop.f32.mrb[0].mxu0
  %v3692 = vadd.f32 0.0, %v3691
  %v3693 = vpop.f32.mrb[0].mxu0
  %v3694 = vpop.f32.mrb[0].mxu0
  %v3695 = vadd.f32 0.0, %v3694
  %v3696 = vpop.f32.mrb[0].mxu0
  %3697 = vmatprep.mubr.bf16.mxu0 0
  %3698 = vmatmul.mubr.bf16.gmra.mrb[0].mxu0 %v3087
  %v3699 = vpop.f32.mrb[0].mxu0
  %v3700 = vadd.f32 0.0, %v3699
  %v3701 = vpop.f32.mrb[0].mxu0
  %v3702 = vpop.f32.mrb[0].mxu0
  %v3703 = vadd.f32 0.0, %v3702
  %v3704 = vpop.f32.mrb[0].mxu0
  %3705 = vmatprep.mubr.bf16.mxu0 0
  %3706 = vmatmul.mubr.bf16.gmra.mrb[0].mxu0 %v3088
  %v3707 = vpop.f32.mrb[0].mxu0
  %v3708 = vadd.f32 0.0, %v3707
  %v3709 = vpop.f32.mrb[0].mxu0
  %v3710 = vpop.f32.mrb[0].mxu0
  %v3711 = vadd.f32 0.0, %v3710
  %v3712 = vpop.f32.mrb[0].mxu0
  %3713 = vmatprep.mubr.bf16.mxu0 0
  %3714 = vmatmul.mubr.bf16.gmra.mrb[0].mxu0 %v3089
  %v3715 = vpop.f32.mrb[0].mxu0
  %v3716 = vadd.f32 0.0, %v3715
  %v3717 = vpop.f32.mrb[0].mxu0
  %v3718 = vpop.f32.mrb[0].mxu0
  %v3719 = vadd.f32 0.0, %v3718
  %v3720 = vpop.f32.mrb[0].mxu0
  %3721 = vmatprep.mubr.bf16.mxu0 0
  %3722 = vmatmul.mubr.bf16.gmra.mrb[0].mxu0 %v3090
  %v3723 = vpop.f32.mrb[0].mxu0
  %v3724 = vadd.f32 0.0, %v3723
  %v3725 = vpop.f32.mrb[0].mxu0
  %v3726 = vpop.f32.mrb[0].mxu0
  %v3727 = vadd.f32 0.0, %v3726
  %v3728 = vpop.f32.mrb[0].mxu0
  %3729 = vmatprep.mubr.bf16.mxu0 0
  %3730 = vmatmul.mubr.bf16.gmra.mrb[0].mxu0 %v3091
  %v3731 = vpop.f32.mrb[0].mxu0
  %v3732 = vadd.f32 0.0, %v3731
  %v3733 = vpop.f32.mrb[0].mxu0
  %v3734 = vpop.f32.mrb[0].mxu0
  %v3735 = vadd.f32 0.0, %v3734
  %v3736 = vpop.f32.mrb[0].mxu0
  %3737 = vmatprep.mubr.bf16.mxu0 0
  %3738 = vmatmul.mubr.bf16.gmra.mrb[0].mxu0 %v3092
  %v3739 = vpop.f32.mrb[0].mxu0
  %v3740 = vadd.f32 0.0, %v3739
  %v3741 = vpop.f32.mrb[0].mxu0
  %v3742 = vpop.f32.mrb[0].mxu0
  %v3743 = vadd.f32 0.0, %v3742
  %v3744 = vpop.f32.mrb[0].mxu0
  %3745 = vmatprep.mubr.bf16.mxu0 0
  %3746 = vmatmul.mubr.bf16.gmra.mrb[0].mxu0 %v3093
  %v3747 = vpop.f32.mrb[0].mxu0
  %v3748 = vadd.f32 0.0, %v3747
  %v3749 = vpop.f32.mrb[0].mxu0
  %v3750 = vpop.f32.mrb[0].mxu0
  %v3751 = vadd.f32 0.0, %v3750
  %v3752 = vpop.f32.mrb[0].mxu0
  %3753 = vmatprep.mubr.bf16.mxu0 0
  %3754 = vmatmul.mubr.bf16.gmra.mrb[0].mxu0 %v3094
  %v3755 = vpop.f32.mrb[0].mxu0
  %v3756 = vadd.f32 0.0, %v3755
  %v3757 = vpop.f32.mrb[0].mxu0
  %v3758 = vpop.f32.mrb[0].mxu0
  %v3759 = vadd.f32 0.0, %v3758
  %v3760 = vpop.f32.mrb[0].mxu0
  %3761 = vmatprep.mubr.bf16.mxu0 0
  %3762 = vmatmul.mubr.bf16.gmra.mrb[0].mxu0 %v3095
  %v3763 = vpop.f32.mrb[0].mxu0
  %v3764 = vadd.f32 0.0, %v3763
  %v3765 = vpop.f32.mrb[0].mxu0
  %v3766 = vpop.f32.mrb[0].mxu0
  %v3767 = vadd.f32 0.0, %v3766
  %v3768 = vpop.f32.mrb[0].mxu0
  %3769 = vmatprep.mubr.bf16.mxu0 0
  %3770 = vmatmul.mubr.bf16.gmra.mrb[0].mxu0 %v3096
  %v3771 = vpop.f32.mrb[0].mxu0
  %v3772 = vadd.f32 0.0, %v3771
  %v3773 = vpop.f32.mrb[0].mxu0
  %v3774 = vpop.f32.mrb[0].mxu0
  %v3775 = vadd.f32 0.0, %v3774
  %v3776 = vpop.f32.mrb[0].mxu0
  %3777 = vdwg.mxu0
  %v3778 = vmax.f32 %v2449, %v3204
  %v3779 = vmax.f32 %v2450, %v3207
  %v3780 = vmax.f32 %v2451, %v3212
  %v3781 = vmax.f32 %v2452, %v3215
  %v3782 = vmax.f32 %v2453, %v3220
  %v3783 = vmax.f32 %v2454, %v3223
  %v3784 = vmax.f32 %v2455, %v3228
  %v3785 = vmax.f32 %v2456, %v3231
  %v3786 = vmax.f32 %v2457, %v3236
  %v3787 = vmax.f32 %v2458, %v3239
  %v3788 = vmax.f32 %v2459, %v3244
  %v3789 = vmax.f32 %v2460, %v3247
  %v3790 = vmax.f32 %v2461, %v3252
  %v3791 = vmax.f32 %v2462, %v3255
  %v3792 = vmax.f32 %v2463, %v3260
  %v3793 = vmax.f32 %v2464, %v3263
  %v3794 = vmax.f32 %v2465, %v3268
  %v3795 = vmax.f32 %v2466, %v3271
  %v3796 = vmax.f32 %v2467, %v3276
  %v3797 = vmax.f32 %v2468, %v3279
  %v3798 = vmax.f32 %v2469, %v3284
  %v3799 = vmax.f32 %v2470, %v3287
  %v3800 = vmax.f32 %v2471, %v3292
  %v3801 = vmax.f32 %v2472, %v3295
  %v3802 = vmax.f32 %v2473, %v3300
  %v3803 = vmax.f32 %v2474, %v3303
  %v3804 = vmax.f32 %v2475, %v3308
  %v3805 = vmax.f32 %v2476, %v3311
  %v3806 = vmax.f32 %v2477, %v3316
  %v3807 = vmax.f32 %v2478, %v3319
  %v3808 = vmax.f32 %v2479, %v3324
  %v3809 = vmax.f32 %v2480, %v3327
  %v3810 = vmax.f32 %v2481, %v3332
  %v3811 = vmax.f32 %v2482, %v3335
  %v3812 = vmax.f32 %v2483, %v3340
  %v3813 = vmax.f32 %v2484, %v3343
  %v3814 = vmax.f32 %v2485, %v3348
  %v3815 = vmax.f32 %v2486, %v3351
  %v3816 = vmax.f32 %v2487, %v3356
  %v3817 = vmax.f32 %v2488, %v3359
  %v3818 = vmax.f32 %v2489, %v3364
  %v3819 = vmax.f32 %v2490, %v3367
  %v3820 = vmax.f32 %v2491, %v3372
  %v3821 = vmax.f32 %v2492, %v3375
  %v3822 = vmax.f32 %v2493, %v3380
  %v3823 = vmax.f32 %v2494, %v3383
  %v3824 = vmax.f32 %v2495, %v3388
  %v3825 = vmax.f32 %v2496, %v3391
  %v3826 = vmax.f32 %v2497, %v3396
  %v3827 = vmax.f32 %v2498, %v3399
  %v3828 = vmax.f32 %v2499, %v3404
  %v3829 = vmax.f32 %v2500, %v3407
  %v3830 = vmax.f32 %v2501, %v3412
  %v3831 = vmax.f32 %v2502, %v3415
  %v3832 = vmax.f32 %v2503, %v3420
  %v3833 = vmax.f32 %v2504, %v3423
  %v3834 = vmax.f32 %v2505, %v3428
  %v3835 = vmax.f32 %v2506, %v3431
  %v3836 = vmax.f32 %v2507, %v3436
  %v3837 = vmax.f32 %v2508, %v3439
  %v3838 = vmax.f32 %v2509, %v3444
  %v3839 = vmax.f32 %v2510, %v3447
  %v3840 = vmax.f32 %v2511, %v3452
  %v3841 = vmax.f32 %v2512, %v3455
  %v3842 = vmax.f32 %v2513, %v3460
  %v3843 = vmax.f32 %v2514, %v3463
  %v3844 = vmax.f32 %v2515, %v3468
  %v3845 = vmax.f32 %v2516, %v3471
  %v3846 = vmax.f32 %v2517, %v3476
  %v3847 = vmax.f32 %v2518, %v3479
  %v3848 = vmax.f32 %v2519, %v3484
  %v3849 = vmax.f32 %v2520, %v3487
  %v3850 = vmax.f32 %v2521, %v3492
  %v3851 = vmax.f32 %v2522, %v3495
  %v3852 = vmax.f32 %v2523, %v3500
  %v3853 = vmax.f32 %v2524, %v3503
  %v3854 = vmax.f32 %v2525, %v3508
  %v3855 = vmax.f32 %v2526, %v3511
  %v3856 = vmax.f32 %v2527, %v3516
  %v3857 = vmax.f32 %v2528, %v3519
  %v3858 = vmax.f32 %v2529, %v3524
  %v3859 = vmax.f32 %v2530, %v3527
  %v3860 = vmax.f32 %v2531, %v3532
  %v3861 = vmax.f32 %v2532, %v3535
  %v3862 = vmax.f32 %v2533, %v3540
  %v3863 = vmax.f32 %v2534, %v3543
  %v3864 = vmax.f32 %v2535, %v3548
  %v3865 = vmax.f32 %v2536, %v3551
  %v3866 = vmax.f32 %v2537, %v3556
  %v3867 = vmax.f32 %v2538, %v3559
  %v3868 = vmax.f32 %v2539, %v3564
  %v3869 = vmax.f32 %v2540, %v3567
  %v3870 = vmax.f32 %v2541, %v3572
  %v3871 = vmax.f32 %v2542, %v3575
  %v3872 = vmax.f32 %v2543, %v3580
  %v3873 = vmax.f32 %v2544, %v3583
  %v3874 = vmax.f32 %v2545, %v3588
  %v3875 = vmax.f32 %v2546, %v3591
  %v3876 = vmax.f32 %v2547, %v3596
  %v3877 = vmax.f32 %v2548, %v3599
  %v3878 = vmax.f32 %v2549, %v3604
  %v3879 = vmax.f32 %v2550, %v3607
  %v3880 = vmax.f32 %v2551, %v3612
  %v3881 = vmax.f32 %v2552, %v3615
  %v3882 = vmax.f32 %v2553, %v3620
  %v3883 = vmax.f32 %v2554, %v3623
  %v3884 = vmax.f32 %v2555, %v3628
  %v3885 = vmax.f32 %v2556, %v3631
  %v3886 = vmax.f32 %v2557, %v3636
  %v3887 = vmax.f32 %v2558, %v3639
  %v3888 = vmax.f32 %v2559, %v3644
  %v3889 = vmax.f32 %v2560, %v3647
  %v3890 = vmax.f32 %v2561, %v3652
  %v3891 = vmax.f32 %v2562, %v3655
  %v3892 = vmax.f32 %v2563, %v3660
  %v3893 = vmax.f32 %v2564, %v3663
  %v3894 = vmax.f32 %v2565, %v3668
  %v3895 = vmax.f32 %v2566, %v3671
  %v3896 = vmax.f32 %v2567, %v3676
  %v3897 = vmax.f32 %v2568, %v3679
  %v3898 = vmax.f32 %v2569, %v3684
  %v3899 = vmax.f32 %v2570, %v3687
  %v3900 = vmax.f32 %v2571, %v3692
  %v3901 = vmax.f32 %v2572, %v3695
  %v3902 = vmax.f32 %v2573, %v3700
  %v3903 = vmax.f32 %v2574, %v3703
  %v3904 = vmax.f32 %v2575, %v3708
  %v3905 = vmax.f32 %v2576, %v3711
  %v3906 = vmax.f32 %v2577, %v3716
  %v3907 = vmax.f32 %v2578, %v3719
  %v3908 = vmax.f32 %v2579, %v3724
  %v3909 = vmax.f32 %v2580, %v3727
  %v3910 = vmax.f32 %v2581, %v3732
  %v3911 = vmax.f32 %v2582, %v3735
  %v3912 = vmax.f32 %v2583, %v3740
  %v3913 = vmax.f32 %v2584, %v3743
  %v3914 = vmax.f32 %v2585, %v3748
  %v3915 = vmax.f32 %v2586, %v3751
  %v3916 = vmax.f32 %v2587, %v3756
  %v3917 = vmax.f32 %v2588, %v3759
  %v3918 = vmax.f32 %v2589, %v3764
  %v3919 = vmax.f32 %v2590, %v3767
  %v3920 = vmax.f32 %v2591, %v3772
  %v3921 = vmax.f32 %v2592, %v3775
  %v3922 = vld [vmem:[%s0 + $0x6c0] sm:$0xf]
  %v3923 = vld [vmem:[%s0 + $0x6c4] sm:$0xf]
  %v3924 = vld [vmem:[%s0 + $0x6c8] sm:$0xf]
  %v3925 = vld [vmem:[%s0 + $0x6cc] sm:$0xf]
  %v3926 = vld [vmem:[%s0 + $0x6d0] sm:$0xf]
  %v3927 = vld [vmem:[%s0 + $0x6d4] sm:$0xf]
  %v3928 = vld [vmem:[%s0 + $0x6d8] sm:$0xf]
  %v3929 = vld [vmem:[%s0 + $0x6dc] sm:$0xf]
  %v3930 = vld [vmem:[%s0 + $0x6e0] sm:$0xf]
  %v3931 = vld [vmem:[%s0 + $0x6e4] sm:$0xf]
  %v3932 = vld [vmem:[%s0 + $0x6e8] sm:$0xf]
  %v3933 = vld [vmem:[%s0 + $0x6ec] sm:$0xf]
  %v3934 = vld [vmem:[%s0 + $0x6f0] sm:$0xf]
  %v3935 = vld [vmem:[%s0 + $0x6f4] sm:$0xf]
  %v3936 = vld [vmem:[%s0 + $0x6f8] sm:$0xf]
  %v3937 = vld [vmem:[%s0 + $0x6fc] sm:$0xf]
  %v3938 = vld [vmem:[%s0 + $0x700] sm:$0xf]
  %v3939 = vld [vmem:[%s0 + $0x704] sm:$0xf]
  %v3940 = vld [vmem:[%s0 + $0x708] sm:$0xf]
  %v3941 = vld [vmem:[%s0 + $0x70c] sm:$0xf]
  %v3942 = vld [vmem:[%s0 + $0x710] sm:$0xf]
  %v3943 = vld [vmem:[%s0 + $0x714] sm:$0xf]
  %v3944 = vld [vmem:[%s0 + $0x718] sm:$0xf]
  %v3945 = vld [vmem:[%s0 + $0x71c] sm:$0xf]
  %v3946 = vld [vmem:[%s0 + $0x720] sm:$0xf]
  %v3947 = vld [vmem:[%s0 + $0x724] sm:$0xf]
  %v3948 = vld [vmem:[%s0 + $0x728] sm:$0xf]
  %v3949 = vld [vmem:[%s0 + $0x72c] sm:$0xf]
  %v3950 = vld [vmem:[%s0 + $0x730] sm:$0xf]
  %v3951 = vld [vmem:[%s0 + $0x734] sm:$0xf]
  %v3952 = vld [vmem:[%s0 + $0x738] sm:$0xf]
  %v3953 = vld [vmem:[%s0 + $0x73c] sm:$0xf]
  %v3954 = vld [vmem:[%s0 + $0x740] sm:$0xf]
  %v3955 = vld [vmem:[%s0 + $0x744] sm:$0xf]
  %v3956 = vld [vmem:[%s0 + $0x748] sm:$0xf]
  %v3957 = vld [vmem:[%s0 + $0x74c] sm:$0xf]
  %v3958 = vld [vmem:[%s0 + $0x750] sm:$0xf]
  %v3959 = vld [vmem:[%s0 + $0x754] sm:$0xf]
  %v3960 = vld [vmem:[%s0 + $0x758] sm:$0xf]
  %v3961 = vld [vmem:[%s0 + $0x75c] sm:$0xf]
  %v3962 = vld [vmem:[%s0 + $0x760] sm:$0xf]
  %v3963 = vld [vmem:[%s0 + $0x764] sm:$0xf]
  %v3964 = vld [vmem:[%s0 + $0x768] sm:$0xf]
  %v3965 = vld [vmem:[%s0 + $0x76c] sm:$0xf]
  %v3966 = vld [vmem:[%s0 + $0x770] sm:$0xf]
  %v3967 = vld [vmem:[%s0 + $0x774] sm:$0xf]
  %v3968 = vld [vmem:[%s0 + $0x778] sm:$0xf]
  %v3969 = vld [vmem:[%s0 + $0x77c] sm:$0xf]
  %v3970 = vld [vmem:[%s0 + $0x780] sm:$0xf]
  %v3971 = vld [vmem:[%s0 + $0x784] sm:$0xf]
  %v3972 = vld [vmem:[%s0 + $0x788] sm:$0xf]
  %v3973 = vld [vmem:[%s0 + $0x78c] sm:$0xf]
  %v3974 = vld [vmem:[%s0 + $0x790] sm:$0xf]
  %v3975 = vld [vmem:[%s0 + $0x794] sm:$0xf]
  %v3976 = vld [vmem:[%s0 + $0x798] sm:$0xf]
  %v3977 = vld [vmem:[%s0 + $0x79c] sm:$0xf]
  %v3978 = vld [vmem:[%s0 + $0x7a0] sm:$0xf]
  %v3979 = vld [vmem:[%s0 + $0x7a4] sm:$0xf]
  %v3980 = vld [vmem:[%s0 + $0x7a8] sm:$0xf]
  %v3981 = vld [vmem:[%s0 + $0x7ac] sm:$0xf]
  %v3982 = vld [vmem:[%s0 + $0x7b0] sm:$0xf]
  %v3983 = vld [vmem:[%s0 + $0x7b4] sm:$0xf]
  %v3984 = vld [vmem:[%s0 + $0x7b8] sm:$0xf]
  %v3985 = vld [vmem:[%s0 + $0x7bc] sm:$0xf]
  %v3986 = vld [vmem:[%s0 + $0x7c0] sm:$0xf]
  %v3987 = vld [vmem:[%s0 + $0x7c4] sm:$0xf]
  %v3988 = vld [vmem:[%s0 + $0x7c8] sm:$0xf]
  %v3989 = vld [vmem:[%s0 + $0x7cc] sm:$0xf]
  %v3990 = vld [vmem:[%s0 + $0x7d0] sm:$0xf]
  %v3991 = vld [vmem:[%s0 + $0x7d4] sm:$0xf]
  %v3992 = vld [vmem:[%s0 + $0x7d8] sm:$0xf]
  %v3993 = vld [vmem:[%s0 + $0x7dc] sm:$0xf]
  %v3994 = vld [vmem:[%s0 + $0x7e0] sm:$0xf]
  %v3995 = vld [vmem:[%s0 + $0x7e4] sm:$0xf]
  %v3996 = vld [vmem:[%s0 + $0x7e8] sm:$0xf]
  %v3997 = vld [vmem:[%s0 + $0x7ec] sm:$0xf]
  %v3998 = vld [vmem:[%s0 + $0x7f0] sm:$0xf]
  %v3999 = vld [vmem:[%s0 + $0x7f4] sm:$0xf]
  %v4000 = vld [vmem:[%s0 + $0x7f8] sm:$0xf]
  %v4001 = vld [vmem:[%s0 + $0x7fc] sm:$0xf]
  %v4002 = vld [vmem:[%s0 + $0x800] sm:$0xf]
  %v4003 = vld [vmem:[%s0 + $0x804] sm:$0xf]
  %v4004 = vld [vmem:[%s0 + $0x808] sm:$0xf]
  %v4005 = vld [vmem:[%s0 + $0x80c] sm:$0xf]
  %v4006 = vld [vmem:[%s0 + $0x810] sm:$0xf]
  %v4007 = vld [vmem:[%s0 + $0x814] sm:$0xf]
  %v4008 = vld [vmem:[%s0 + $0x818] sm:$0xf]
  %v4009 = vld [vmem:[%s0 + $0x81c] sm:$0xf]
  %v4010 = vld [vmem:[%s0 + $0x820] sm:$0xf]
  %v4011 = vld [vmem:[%s0 + $0x824] sm:$0xf]
  %v4012 = vld [vmem:[%s0 + $0x828] sm:$0xf]
  %v4013 = vld [vmem:[%s0 + $0x82c] sm:$0xf]
  %v4014 = vld [vmem:[%s0 + $0x830] sm:$0xf]
  %v4015 = vld [vmem:[%s0 + $0x834] sm:$0xf]
  %v4016 = vld [vmem:[%s0 + $0x838] sm:$0xf]
  %v4017 = vld [vmem:[%s0 + $0x83c] sm:$0xf]
  %v4018 = vld [vmem:[%s0 + $0x840] sm:$0xf]
  %v4019 = vld [vmem:[%s0 + $0x844] sm:$0xf]
  %v4020 = vld [vmem:[%s0 + $0x848] sm:$0xf]
  %v4021 = vld [vmem:[%s0 + $0x84c] sm:$0xf]
  %v4022 = vld [vmem:[%s0 + $0x850] sm:$0xf]
  %v4023 = vld [vmem:[%s0 + $0x854] sm:$0xf]
  %v4024 = vld [vmem:[%s0 + $0x858] sm:$0xf]
  %v4025 = vld [vmem:[%s0 + $0x85c] sm:$0xf]
  %v4026 = vld [vmem:[%s0 + $0x860] sm:$0xf]
  %v4027 = vld [vmem:[%s0 + $0x864] sm:$0xf]
  %v4028 = vld [vmem:[%s0 + $0x868] sm:$0xf]
  %v4029 = vld [vmem:[%s0 + $0x86c] sm:$0xf]
  %v4030 = vld [vmem:[%s0 + $0x870] sm:$0xf]
  %v4031 = vld [vmem:[%s0 + $0x874] sm:$0xf]
  %v4032 = vld [vmem:[%s0 + $0x878] sm:$0xf]
  %v4033 = vld [vmem:[%s0 + $0x87c] sm:$0xf]
  %v4034 = vld [vmem:[%s0 + $0x880] sm:$0xf]
  %v4035 = vld [vmem:[%s0 + $0x884] sm:$0xf]
  %v4036 = vld [vmem:[%s0 + $0x888] sm:$0xf]
  %v4037 = vld [vmem:[%s0 + $0x88c] sm:$0xf]
  %v4038 = vld [vmem:[%s0 + $0x890] sm:$0xf]
  %v4039 = vld [vmem:[%s0 + $0x894] sm:$0xf]
  %v4040 = vld [vmem:[%s0 + $0x898] sm:$0xf]
  %v4041 = vld [vmem:[%s0 + $0x89c] sm:$0xf]
  %v4042 = vld [vmem:[%s0 + $0x8a0] sm:$0xf]
  %v4043 = vld [vmem:[%s0 + $0x8a4] sm:$0xf]
  %v4044 = vld [vmem:[%s0 + $0x8a8] sm:$0xf]
  %v4045 = vld [vmem:[%s0 + $0x8ac] sm:$0xf]
  %v4046 = vld [vmem:[%s0 + $0x8b0] sm:$0xf]
  %v4047 = vld [vmem:[%s0 + $0x8b4] sm:$0xf]
  %v4048 = vld [vmem:[%s0 + $0x8b8] sm:$0xf]
  %v4049 = vld [vmem:[%s0 + $0x8bc] sm:$0xf]
  %v4050 = vld [vmem:[%s0 + $0x8c0] sm:$0xf]
  %v4051 = vld [vmem:[%s0 + $0x8c4] sm:$0xf]
  %v4052 = vld [vmem:[%s0 + $0x8c8] sm:$0xf]
  %v4053 = vld [vmem:[%s0 + $0x8cc] sm:$0xf]
  %v4054 = vld [vmem:[%s0 + $0x8d0] sm:$0xf]
  %v4055 = vld [vmem:[%s0 + $0x8d4] sm:$0xf]
  %v4056 = vld [vmem:[%s0 + $0x8d8] sm:$0xf]
  %v4057 = vld [vmem:[%s0 + $0x8dc] sm:$0xf]
  %v4058 = vld [vmem:[%s0 + $0x8e0] sm:$0xf]
  %v4059 = vld [vmem:[%s0 + $0x8e4] sm:$0xf]
  %v4060 = vld [vmem:[%s0 + $0x8e8] sm:$0xf]
  %v4061 = vld [vmem:[%s0 + $0x8ec] sm:$0xf]
  %v4062 = vld [vmem:[%s0 + $0x8f0] sm:$0xf]
  %v4063 = vld [vmem:[%s0 + $0x8f4] sm:$0xf]
  %v4064 = vld [vmem:[%s0 + $0x8f8] sm:$0xf]
  %v4065 = vld [vmem:[%s0 + $0x8fc] sm:$0xf]
  %v4210 = vunpack.c.l.b16 %v3922
  %v4211 = vunpack.c.l.b16 %v3923
  %v4212 = vunpack.c.l.b16 %v3924
  %v4213 = vunpack.c.l.b16 %v3925
  %v4214 = vunpack.c.l.b16 %v3926
  %v4215 = vunpack.c.l.b16 %v3927
  %v4216 = vunpack.c.l.b16 %v3928
  %v4217 = vunpack.c.l.b16 %v3929
  %v4218 = vunpack.c.l.b16 %v3930
  %v4219 = vunpack.c.l.b16 %v3931
  %v4220 = vunpack.c.l.b16 %v3932
  %v4221 = vunpack.c.l.b16 %v3933
  %v4222 = vunpack.c.l.b16 %v3934
  %v4223 = vunpack.c.l.b16 %v3935
  %v4224 = vunpack.c.l.b16 %v3936
  %v4225 = vunpack.c.l.b16 %v3937
  %v4226 = vunpack.c.l.b16 %v3938
  %v4227 = vunpack.c.l.b16 %v3939
  %v4228 = vunpack.c.l.b16 %v3940
  %v4229 = vunpack.c.l.b16 %v3941
  %v4230 = vunpack.c.l.b16 %v3942
  %v4231 = vunpack.c.l.b16 %v3943
  %v4232 = vunpack.c.l.b16 %v3944
  %v4233 = vunpack.c.l.b16 %v3945
  %v4234 = vunpack.c.l.b16 %v3946
  %v4235 = vunpack.c.l.b16 %v3947
  %v4236 = vunpack.c.l.b16 %v3948
  %v4237 = vunpack.c.l.b16 %v3949
  %v4238 = vunpack.c.l.b16 %v3950
  %v4239 = vunpack.c.l.b16 %v3951
  %v4240 = vunpack.c.l.b16 %v3952
  %v4241 = vunpack.c.l.b16 %v3953
  %v4242 = vunpack.c.l.b16 %v3954
  %v4243 = vunpack.c.l.b16 %v3955
  %v4244 = vunpack.c.l.b16 %v3956
  %v4245 = vunpack.c.l.b16 %v3957
  %v4246 = vunpack.c.l.b16 %v3958
  %v4247 = vunpack.c.l.b16 %v3959
  %v4248 = vunpack.c.l.b16 %v3960
  %v4249 = vunpack.c.l.b16 %v3961
  %v4250 = vunpack.c.l.b16 %v3962
  %v4251 = vunpack.c.l.b16 %v3963
  %v4252 = vunpack.c.l.b16 %v3964
  %v4253 = vunpack.c.l.b16 %v3965
  %v4254 = vunpack.c.l.b16 %v3966
  %v4255 = vunpack.c.l.b16 %v3967
  %v4256 = vunpack.c.l.b16 %v3968
  %v4257 = vunpack.c.l.b16 %v3969
  %v4258 = vunpack.c.l.b16 %v3970
  %v4259 = vunpack.c.l.b16 %v3971
  %v4260 = vunpack.c.l.b16 %v3972
  %v4261 = vunpack.c.l.b16 %v3973
  %v4262 = vunpack.c.l.b16 %v3974
  %v4263 = vunpack.c.l.b16 %v3975
  %v4264 = vunpack.c.l.b16 %v3976
  %v4265 = vunpack.c.l.b16 %v3977
  %v4266 = vunpack.c.l.b16 %v3978
  %v4267 = vunpack.c.l.b16 %v3979
  %v4268 = vunpack.c.l.b16 %v3980
  %v4269 = vunpack.c.l.b16 %v3981
  %v4270 = vunpack.c.l.b16 %v3982
  %v4271 = vunpack.c.l.b16 %v3983
  %v4272 = vunpack.c.l.b16 %v3984
  %v4273 = vunpack.c.l.b16 %v3985
  %v4274 = vunpack.c.l.b16 %v3986
  %v4275 = vunpack.c.l.b16 %v3987
  %v4276 = vunpack.c.l.b16 %v3988
  %v4277 = vunpack.c.l.b16 %v3989
  %v4278 = vunpack.c.l.b16 %v3990
  %v4279 = vunpack.c.l.b16 %v3991
  %v4280 = vunpack.c.l.b16 %v3992
  %v4281 = vunpack.c.l.b16 %v3993
  %v4282 = vunpack.c.l.b16 %v3994
  %v4283 = vunpack.c.l.b16 %v3995
  %v4284 = vunpack.c.l.b16 %v3996
  %v4285 = vunpack.c.l.b16 %v3997
  %v4286 = vunpack.c.l.b16 %v3998
  %v4287 = vunpack.c.l.b16 %v3999
  %v4288 = vunpack.c.l.b16 %v4000
  %v4289 = vunpack.c.l.b16 %v4001
  %v4290 = vunpack.c.l.b16 %v4002
  %v4291 = vunpack.c.l.b16 %v4003
  %v4292 = vunpack.c.l.b16 %v4004
  %v4293 = vunpack.c.l.b16 %v4005
  %v4294 = vunpack.c.l.b16 %v4006
  %v4295 = vunpack.c.l.b16 %v4007
  %v4296 = vunpack.c.l.b16 %v4008
  %v4297 = vunpack.c.l.b16 %v4009
  %v4298 = vunpack.c.l.b16 %v4010
  %v4299 = vunpack.c.l.b16 %v4011
  %v4300 = vunpack.c.l.b16 %v4012
  %v4301 = vunpack.c.l.b16 %v4013
  %v4302 = vunpack.c.l.b16 %v4014
  %v4303 = vunpack.c.l.b16 %v4015
  %v4304 = vunpack.c.l.b16 %v4016
  %v4305 = vunpack.c.l.b16 %v4017
  %v4306 = vunpack.c.l.b16 %v4018
  %v4307 = vunpack.c.l.b16 %v4019
  %v4308 = vunpack.c.l.b16 %v4020
  %v4309 = vunpack.c.l.b16 %v4021
  %v4310 = vunpack.c.l.b16 %v4022
  %v4311 = vunpack.c.l.b16 %v4023
  %v4312 = vunpack.c.l.b16 %v4024
  %v4313 = vunpack.c.l.b16 %v4025
  %v4314 = vunpack.c.l.b16 %v4026
  %v4315 = vunpack.c.l.b16 %v4027
  %v4316 = vunpack.c.l.b16 %v4028
  %v4317 = vunpack.c.l.b16 %v4029
  %v4318 = vunpack.c.l.b16 %v4030
  %v4319 = vunpack.c.l.b16 %v4031
  %v4320 = vunpack.c.l.b16 %v4032
  %v4321 = vunpack.c.l.b16 %v4033
  %v4322 = vunpack.c.l.b16 %v4034
  %v4323 = vunpack.c.l.b16 %v4035
  %v4324 = vunpack.c.l.b16 %v4036
  %v4325 = vunpack.c.l.b16 %v4037
  %v4326 = vunpack.c.l.b16 %v4038
  %v4327 = vunpack.c.l.b16 %v4039
  %v4328 = vunpack.c.l.b16 %v4040
  %v4329 = vunpack.c.l.b16 %v4041
  %v4330 = vunpack.c.l.b16 %v4042
  %v4331 = vunpack.c.l.b16 %v4043
  %v4332 = vunpack.c.l.b16 %v4044
  %v4333 = vunpack.c.l.b16 %v4045
  %v4334 = vunpack.c.l.b16 %v4046
  %v4335 = vunpack.c.l.b16 %v4047
  %v4336 = vunpack.c.l.b16 %v4048
  %v4337 = vunpack.c.l.b16 %v4049
  %v4338 = vunpack.c.l.b16 %v4050
  %v4339 = vunpack.c.l.b16 %v4051
  %v4340 = vunpack.c.l.b16 %v4052
  %v4341 = vunpack.c.l.b16 %v4053
  %v4342 = vunpack.c.l.b16 %v4054
  %v4343 = vunpack.c.l.b16 %v4055
  %v4344 = vunpack.c.l.b16 %v4056
  %v4345 = vunpack.c.l.b16 %v4057
  %v4346 = vunpack.c.l.b16 %v4058
  %v4347 = vunpack.c.l.b16 %v4059
  %v4348 = vunpack.c.l.b16 %v4060
  %v4349 = vunpack.c.l.b16 %v4061
  %v4350 = vunpack.c.l.b16 %v4062
  %v4351 = vunpack.c.l.b16 %v4063
  %v4352 = vunpack.c.l.b16 %v4064
  %v4353 = vunpack.c.l.b16 %v4065
  %v4354 = vpack.c.b16 %v4211, %v4210
  %v4355 = vpack.c.b16 %v4213, %v4212
  %v4356 = vpack.c.b16 %v4215, %v4214
  %v4357 = vpack.c.b16 %v4217, %v4216
  %v4358 = vpack.c.b16 %v4219, %v4218
  %v4359 = vpack.c.b16 %v4221, %v4220
  %v4360 = vpack.c.b16 %v4223, %v4222
  %v4361 = vpack.c.b16 %v4225, %v4224
  %v4362 = vpack.c.b16 %v4227, %v4226
  %v4363 = vpack.c.b16 %v4229, %v4228
  %v4364 = vpack.c.b16 %v4231, %v4230
  %v4365 = vpack.c.b16 %v4233, %v4232
  %v4366 = vpack.c.b16 %v4235, %v4234
  %v4367 = vpack.c.b16 %v4237, %v4236
  %v4368 = vpack.c.b16 %v4239, %v4238
  %v4369 = vpack.c.b16 %v4241, %v4240
  %v4370 = vpack.c.b16 %v4243, %v4242
  %v4371 = vpack.c.b16 %v4245, %v4244
  %v4372 = vpack.c.b16 %v4247, %v4246
  %v4373 = vpack.c.b16 %v4249, %v4248
  %v4374 = vpack.c.b16 %v4251, %v4250
  %v4375 = vpack.c.b16 %v4253, %v4252
  %v4376 = vpack.c.b16 %v4255, %v4254
  %v4377 = vpack.c.b16 %v4257, %v4256
  %v4378 = vpack.c.b16 %v4259, %v4258
  %v4379 = vpack.c.b16 %v4261, %v4260
  %v4380 = vpack.c.b16 %v4263, %v4262
  %v4381 = vpack.c.b16 %v4265, %v4264
  %v4382 = vpack.c.b16 %v4267, %v4266
  %v4383 = vpack.c.b16 %v4269, %v4268
  %v4384 = vpack.c.b16 %v4271, %v4270
  %v4385 = vpack.c.b16 %v4273, %v4272
  %v4386 = vpack.c.b16 %v4275, %v4274
  %v4387 = vpack.c.b16 %v4277, %v4276
  %v4388 = vpack.c.b16 %v4279, %v4278
  %v4389 = vpack.c.b16 %v4281, %v4280
  %v4390 = vpack.c.b16 %v4283, %v4282
  %v4391 = vpack.c.b16 %v4285, %v4284
  %v4392 = vpack.c.b16 %v4287, %v4286
  %v4393 = vpack.c.b16 %v4289, %v4288
  %v4394 = vpack.c.b16 %v4291, %v4290
  %v4395 = vpack.c.b16 %v4293, %v4292
  %v4396 = vpack.c.b16 %v4295, %v4294
  %v4397 = vpack.c.b16 %v4297, %v4296
  %v4398 = vpack.c.b16 %v4299, %v4298
  %v4399 = vpack.c.b16 %v4301, %v4300
  %v4400 = vpack.c.b16 %v4303, %v4302
  %v4401 = vpack.c.b16 %v4305, %v4304
  %v4402 = vpack.c.b16 %v4307, %v4306
  %v4403 = vpack.c.b16 %v4309, %v4308
  %v4404 = vpack.c.b16 %v4311, %v4310
  %v4405 = vpack.c.b16 %v4313, %v4312
  %v4406 = vpack.c.b16 %v4315, %v4314
  %v4407 = vpack.c.b16 %v4317, %v4316
  %v4408 = vpack.c.b16 %v4319, %v4318
  %v4409 = vpack.c.b16 %v4321, %v4320
  %v4410 = vpack.c.b16 %v4323, %v4322
  %v4411 = vpack.c.b16 %v4325, %v4324
  %v4412 = vpack.c.b16 %v4327, %v4326
  %v4413 = vpack.c.b16 %v4329, %v4328
  %v4414 = vpack.c.b16 %v4331, %v4330
  %v4415 = vpack.c.b16 %v4333, %v4332
  %v4416 = vpack.c.b16 %v4335, %v4334
  %v4417 = vpack.c.b16 %v4337, %v4336
  %v4418 = vpack.c.b16 %v4339, %v4338
  %v4419 = vpack.c.b16 %v4341, %v4340
  %v4420 = vpack.c.b16 %v4343, %v4342
  %v4421 = vpack.c.b16 %v4345, %v4344
  %v4422 = vpack.c.b16 %v4347, %v4346
  %v4423 = vpack.c.b16 %v4349, %v4348
  %v4424 = vpack.c.b16 %v4351, %v4350
  %v4425 = vpack.c.b16 %v4353, %v4352
  %4498 = vmatprep.subr.bf16.mxu0 0
  %4499 = vmatpush1.bf16.msra.mxu0 %v639
  %4500 = vmatprep.subr.bf16.mxu0 0
  %4501 = vmatpush1.bf16.msra.mxu0 %v640
  %4502 = vmatprep.subr.bf16.mxu0 0
  %4503 = vmatpush1.bf16.msra.mxu0 %v641
  %4504 = vmatprep.subr.bf16.mxu0 0
  %4505 = vmatpush1.bf16.msra.mxu0 %v642
  %4506 = vmatprep.subr.bf16.mxu0 0
  %4507 = vmatpush1.bf16.msra.mxu0 %v643
  %4508 = vmatprep.subr.bf16.mxu0 0
  %4509 = vmatpush1.bf16.msra.mxu0 %v644
  %4510 = vmatprep.subr.bf16.mxu0 0
  %4511 = vmatpush1.bf16.msra.mxu0 %v645
  %4512 = vmatprep.subr.bf16.mxu0 0
  %4513 = vmatpush1.bf16.msra.mxu0 %v646
  %4514 = vmatprep.subr.bf16.mxu0 0
  %4515 = vmatpush1.bf16.msra.mxu0 0
  %4516 = vmatprep.subr.bf16.mxu0 0
  %4517 = vmatpush1.bf16.msra.mxu0 0
  %4518 = vmatprep.subr.bf16.mxu0 0
  %4519 = vmatpush1.bf16.msra.mxu0 0
  %4520 = vmatprep.subr.bf16.mxu0 0
  %4521 = vmatpush1.bf16.msra.mxu0 0
  %4522 = vmatprep.subr.bf16.mxu0 0
  %4523 = vmatpush1.bf16.msra.mxu0 0
  %4524 = vmatprep.subr.bf16.mxu0 0
  %4525 = vmatpush1.bf16.msra.mxu0 0
  %4526 = vmatprep.subr.bf16.mxu0 0
  %4527 = vmatpush1.bf16.msra.mxu0 0
  %4528 = vmatprep.subr.bf16.mxu0 0
  %4529 = vmatpush1.bf16.msra.mxu0 0
  %4530 = vmatprep.mubr.bf16.mxu0 0
  %4531 = vmatmul.mubr.bf16.gmra.mrb[0].mxu0 %v4354
  %v4532 = vpop.f32.mrb[0].mxu0
  %v4533 = vadd.f32 0.0, %v4532
  %v4534 = vpop.f32.mrb[0].mxu0
  %v4535 = vpop.f32.mrb[0].mxu0
  %v4536 = vadd.f32 0.0, %v4535
  %v4537 = vpop.f32.mrb[0].mxu0
  %4538 = vmatprep.mubr.bf16.mxu0 0
  %4539 = vmatmul.mubr.bf16.gmra.mrb[0].mxu0 %v4355
  %v4540 = vpop.f32.mrb[0].mxu0
  %v4541 = vadd.f32 0.0, %v4540
  %v4542 = vpop.f32.mrb[0].mxu0
  %v4543 = vpop.f32.mrb[0].mxu0
  %v4544 = vadd.f32 0.0, %v4543
  %v4545 = vpop.f32.mrb[0].mxu0
  %4546 = vmatprep.mubr.bf16.mxu0 0
  %4547 = vmatmul.mubr.bf16.gmra.mrb[0].mxu0 %v4356
  %v4548 = vpop.f32.mrb[0].mxu0
  %v4549 = vadd.f32 0.0, %v4548
  %v4550 = vpop.f32.mrb[0].mxu0
  %v4551 = vpop.f32.mrb[0].mxu0
  %v4552 = vadd.f32 0.0, %v4551
  %v4553 = vpop.f32.mrb[0].mxu0
  %4554 = vmatprep.mubr.bf16.mxu0 0
  %4555 = vmatmul.mubr.bf16.gmra.mrb[0].mxu0 %v4357
  %v4556 = vpop.f32.mrb[0].mxu0
  %v4557 = vadd.f32 0.0, %v4556
  %v4558 = vpop.f32.mrb[0].mxu0
  %v4559 = vpop.f32.mrb[0].mxu0
  %v4560 = vadd.f32 0.0, %v4559
  %v4561 = vpop.f32.mrb[0].mxu0
  %4562 = vmatprep.mubr.bf16.mxu0 0
  %4563 = vmatmul.mubr.bf16.gmra.mrb[0].mxu0 %v4358
  %v4564 = vpop.f32.mrb[0].mxu0
  %v4565 = vadd.f32 0.0, %v4564
  %v4566 = vpop.f32.mrb[0].mxu0
  %v4567 = vpop.f32.mrb[0].mxu0
  %v4568 = vadd.f32 0.0, %v4567
  %v4569 = vpop.f32.mrb[0].mxu0
  %4570 = vmatprep.mubr.bf16.mxu0 0
  %4571 = vmatmul.mubr.bf16.gmra.mrb[0].mxu0 %v4359
  %v4572 = vpop.f32.mrb[0].mxu0
  %v4573 = vadd.f32 0.0, %v4572
  %v4574 = vpop.f32.mrb[0].mxu0
  %v4575 = vpop.f32.mrb[0].mxu0
  %v4576 = vadd.f32 0.0, %v4575
  %v4577 = vpop.f32.mrb[0].mxu0
  %4578 = vmatprep.mubr.bf16.mxu0 0
  %4579 = vmatmul.mubr.bf16.gmra.mrb[0].mxu0 %v4360
  %v4580 = vpop.f32.mrb[0].mxu0
  %v4581 = vadd.f32 0.0, %v4580
  %v4582 = vpop.f32.mrb[0].mxu0
  %v4583 = vpop.f32.mrb[0].mxu0
  %v4584 = vadd.f32 0.0, %v4583
  %v4585 = vpop.f32.mrb[0].mxu0
  %4586 = vmatprep.mubr.bf16.mxu0 0
  %4587 = vmatmul.mubr.bf16.gmra.mrb[0].mxu0 %v4361
  %v4588 = vpop.f32.mrb[0].mxu0
  %v4589 = vadd.f32 0.0, %v4588
  %v4590 = vpop.f32.mrb[0].mxu0
  %v4591 = vpop.f32.mrb[0].mxu0
  %v4592 = vadd.f32 0.0, %v4591
  %v4593 = vpop.f32.mrb[0].mxu0
  %4594 = vmatprep.mubr.bf16.mxu0 0
  %4595 = vmatmul.mubr.bf16.gmra.mrb[0].mxu0 %v4362
  %v4596 = vpop.f32.mrb[0].mxu0
  %v4597 = vadd.f32 0.0, %v4596
  %v4598 = vpop.f32.mrb[0].mxu0
  %v4599 = vpop.f32.mrb[0].mxu0
  %v4600 = vadd.f32 0.0, %v4599
  %v4601 = vpop.f32.mrb[0].mxu0
  %4602 = vmatprep.mubr.bf16.mxu0 0
  %4603 = vmatmul.mubr.bf16.gmra.mrb[0].mxu0 %v4363
  %v4604 = vpop.f32.mrb[0].mxu0
  %v4605 = vadd.f32 0.0, %v4604
  %v4606 = vpop.f32.mrb[0].mxu0
  %v4607 = vpop.f32.mrb[0].mxu0
  %v4608 = vadd.f32 0.0, %v4607
  %v4609 = vpop.f32.mrb[0].mxu0
  %4610 = vmatprep.mubr.bf16.mxu0 0
  %4611 = vmatmul.mubr.bf16.gmra.mrb[0].mxu0 %v4364
  %v4612 = vpop.f32.mrb[0].mxu0
  %v4613 = vadd.f32 0.0, %v4612
  %v4614 = vpop.f32.mrb[0].mxu0
  %v4615 = vpop.f32.mrb[0].mxu0
  %v4616 = vadd.f32 0.0, %v4615
  %v4617 = vpop.f32.mrb[0].mxu0
  %4618 = vmatprep.mubr.bf16.mxu0 0
  %4619 = vmatmul.mubr.bf16.gmra.mrb[0].mxu0 %v4365
  %v4620 = vpop.f32.mrb[0].mxu0
  %v4621 = vadd.f32 0.0, %v4620
  %v4622 = vpop.f32.mrb[0].mxu0
  %v4623 = vpop.f32.mrb[0].mxu0
  %v4624 = vadd.f32 0.0, %v4623
  %v4625 = vpop.f32.mrb[0].mxu0
  %4626 = vmatprep.mubr.bf16.mxu0 0
  %4627 = vmatmul.mubr.bf16.gmra.mrb[0].mxu0 %v4366
  %v4628 = vpop.f32.mrb[0].mxu0
  %v4629 = vadd.f32 0.0, %v4628
  %v4630 = vpop.f32.mrb[0].mxu0
  %v4631 = vpop.f32.mrb[0].mxu0
  %v4632 = vadd.f32 0.0, %v4631
  %v4633 = vpop.f32.mrb[0].mxu0
  %4634 = vmatprep.mubr.bf16.mxu0 0
  %4635 = vmatmul.mubr.bf16.gmra.mrb[0].mxu0 %v4367
  %v4636 = vpop.f32.mrb[0].mxu0
  %v4637 = vadd.f32 0.0, %v4636
  %v4638 = vpop.f32.mrb[0].mxu0
  %v4639 = vpop.f32.mrb[0].mxu0
  %v4640 = vadd.f32 0.0, %v4639
  %v4641 = vpop.f32.mrb[0].mxu0
  %4642 = vmatprep.mubr.bf16.mxu0 0
  %4643 = vmatmul.mubr.bf16.gmra.mrb[0].mxu0 %v4368
  %v4644 = vpop.f32.mrb[0].mxu0
  %v4645 = vadd.f32 0.0, %v4644
  %v4646 = vpop.f32.mrb[0].mxu0
  %v4647 = vpop.f32.mrb[0].mxu0
  %v4648 = vadd.f32 0.0, %v4647
  %v4649 = vpop.f32.mrb[0].mxu0
  %4650 = vmatprep.mubr.bf16.mxu0 0
  %4651 = vmatmul.mubr.bf16.gmra.mrb[0].mxu0 %v4369
  %v4652 = vpop.f32.mrb[0].mxu0
  %v4653 = vadd.f32 0.0, %v4652
  %v4654 = vpop.f32.mrb[0].mxu0
  %v4655 = vpop.f32.mrb[0].mxu0
  %v4656 = vadd.f32 0.0, %v4655
  %v4657 = vpop.f32.mrb[0].mxu0
  %4658 = vmatprep.mubr.bf16.mxu0 0
  %4659 = vmatmul.mubr.bf16.gmra.mrb[0].mxu0 %v4370
  %v4660 = vpop.f32.mrb[0].mxu0
  %v4661 = vadd.f32 0.0, %v4660
  %v4662 = vpop.f32.mrb[0].mxu0
  %v4663 = vpop.f32.mrb[0].mxu0
  %v4664 = vadd.f32 0.0, %v4663
  %v4665 = vpop.f32.mrb[0].mxu0
  %4666 = vmatprep.mubr.bf16.mxu0 0
  %4667 = vmatmul.mubr.bf16.gmra.mrb[0].mxu0 %v4371
  %v4668 = vpop.f32.mrb[0].mxu0
  %v4669 = vadd.f32 0.0, %v4668
  %v4670 = vpop.f32.mrb[0].mxu0
  %v4671 = vpop.f32.mrb[0].mxu0
  %v4672 = vadd.f32 0.0, %v4671
  %v4673 = vpop.f32.mrb[0].mxu0
  %4674 = vmatprep.mubr.bf16.mxu0 0
  %4675 = vmatmul.mubr.bf16.gmra.mrb[0].mxu0 %v4372
  %v4676 = vpop.f32.mrb[0].mxu0
  %v4677 = vadd.f32 0.0, %v4676
  %v4678 = vpop.f32.mrb[0].mxu0
  %v4679 = vpop.f32.mrb[0].mxu0
  %v4680 = vadd.f32 0.0, %v4679
  %v4681 = vpop.f32.mrb[0].mxu0
  %4682 = vmatprep.mubr.bf16.mxu0 0
  %4683 = vmatmul.mubr.bf16.gmra.mrb[0].mxu0 %v4373
  %v4684 = vpop.f32.mrb[0].mxu0
  %v4685 = vadd.f32 0.0, %v4684
  %v4686 = vpop.f32.mrb[0].mxu0
  %v4687 = vpop.f32.mrb[0].mxu0
  %v4688 = vadd.f32 0.0, %v4687
  %v4689 = vpop.f32.mrb[0].mxu0
  %4690 = vmatprep.mubr.bf16.mxu0 0
  %4691 = vmatmul.mubr.bf16.gmra.mrb[0].mxu0 %v4374
  %v4692 = vpop.f32.mrb[0].mxu0
  %v4693 = vadd.f32 0.0, %v4692
  %v4694 = vpop.f32.mrb[0].mxu0
  %v4695 = vpop.f32.mrb[0].mxu0
  %v4696 = vadd.f32 0.0, %v4695
  %v4697 = vpop.f32.mrb[0].mxu0
  %4698 = vmatprep.mubr.bf16.mxu0 0
  %4699 = vmatmul.mubr.bf16.gmra.mrb[0].mxu0 %v4375
  %v4700 = vpop.f32.mrb[0].mxu0
  %v4701 = vadd.f32 0.0, %v4700
  %v4702 = vpop.f32.mrb[0].mxu0
  %v4703 = vpop.f32.mrb[0].mxu0
  %v4704 = vadd.f32 0.0, %v4703
  %v4705 = vpop.f32.mrb[0].mxu0
  %4706 = vmatprep.mubr.bf16.mxu0 0
  %4707 = vmatmul.mubr.bf16.gmra.mrb[0].mxu0 %v4376
  %v4708 = vpop.f32.mrb[0].mxu0
  %v4709 = vadd.f32 0.0, %v4708
  %v4710 = vpop.f32.mrb[0].mxu0
  %v4711 = vpop.f32.mrb[0].mxu0
  %v4712 = vadd.f32 0.0, %v4711
  %v4713 = vpop.f32.mrb[0].mxu0
  %4714 = vmatprep.mubr.bf16.mxu0 0
  %4715 = vmatmul.mubr.bf16.gmra.mrb[0].mxu0 %v4377
  %v4716 = vpop.f32.mrb[0].mxu0
  %v4717 = vadd.f32 0.0, %v4716
  %v4718 = vpop.f32.mrb[0].mxu0
  %v4719 = vpop.f32.mrb[0].mxu0
  %v4720 = vadd.f32 0.0, %v4719
  %v4721 = vpop.f32.mrb[0].mxu0
  %4722 = vmatprep.mubr.bf16.mxu0 0
  %4723 = vmatmul.mubr.bf16.gmra.mrb[0].mxu0 %v4378
  %v4724 = vpop.f32.mrb[0].mxu0
  %v4725 = vadd.f32 0.0, %v4724
  %v4726 = vpop.f32.mrb[0].mxu0
  %v4727 = vpop.f32.mrb[0].mxu0
  %v4728 = vadd.f32 0.0, %v4727
  %v4729 = vpop.f32.mrb[0].mxu0
  %4730 = vmatprep.mubr.bf16.mxu0 0
  %4731 = vmatmul.mubr.bf16.gmra.mrb[0].mxu0 %v4379
  %v4732 = vpop.f32.mrb[0].mxu0
  %v4733 = vadd.f32 0.0, %v4732
  %v4734 = vpop.f32.mrb[0].mxu0
  %v4735 = vpop.f32.mrb[0].mxu0
  %v4736 = vadd.f32 0.0, %v4735
  %v4737 = vpop.f32.mrb[0].mxu0
  %4738 = vmatprep.mubr.bf16.mxu0 0
  %4739 = vmatmul.mubr.bf16.gmra.mrb[0].mxu0 %v4380
  %v4740 = vpop.f32.mrb[0].mxu0
  %v4741 = vadd.f32 0.0, %v4740
  %v4742 = vpop.f32.mrb[0].mxu0
  %v4743 = vpop.f32.mrb[0].mxu0
  %v4744 = vadd.f32 0.0, %v4743
  %v4745 = vpop.f32.mrb[0].mxu0
  %4746 = vmatprep.mubr.bf16.mxu0 0
  %4747 = vmatmul.mubr.bf16.gmra.mrb[0].mxu0 %v4381
  %v4748 = vpop.f32.mrb[0].mxu0
  %v4749 = vadd.f32 0.0, %v4748
  %v4750 = vpop.f32.mrb[0].mxu0
  %v4751 = vpop.f32.mrb[0].mxu0
  %v4752 = vadd.f32 0.0, %v4751
  %v4753 = vpop.f32.mrb[0].mxu0
  %4754 = vmatprep.mubr.bf16.mxu0 0
  %4755 = vmatmul.mubr.bf16.gmra.mrb[0].mxu0 %v4382
  %v4756 = vpop.f32.mrb[0].mxu0
  %v4757 = vadd.f32 0.0, %v4756
  %v4758 = vpop.f32.mrb[0].mxu0
  %v4759 = vpop.f32.mrb[0].mxu0
  %v4760 = vadd.f32 0.0, %v4759
  %v4761 = vpop.f32.mrb[0].mxu0
  %4762 = vmatprep.mubr.bf16.mxu0 0
  %4763 = vmatmul.mubr.bf16.gmra.mrb[0].mxu0 %v4383
  %v4764 = vpop.f32.mrb[0].mxu0
  %v4765 = vadd.f32 0.0, %v4764
  %v4766 = vpop.f32.mrb[0].mxu0
  %v4767 = vpop.f32.mrb[0].mxu0
  %v4768 = vadd.f32 0.0, %v4767
  %v4769 = vpop.f32.mrb[0].mxu0
  %4770 = vmatprep.mubr.bf16.mxu0 0
  %4771 = vmatmul.mubr.bf16.gmra.mrb[0].mxu0 %v4384
  %v4772 = vpop.f32.mrb[0].mxu0
  %v4773 = vadd.f32 0.0, %v4772
  %v4774 = vpop.f32.mrb[0].mxu0
  %v4775 = vpop.f32.mrb[0].mxu0
  %v4776 = vadd.f32 0.0, %v4775
  %v4777 = vpop.f32.mrb[0].mxu0
  %4778 = vmatprep.mubr.bf16.mxu0 0
  %4779 = vmatmul.mubr.bf16.gmra.mrb[0].mxu0 %v4385
  %v4780 = vpop.f32.mrb[0].mxu0
  %v4781 = vadd.f32 0.0, %v4780
  %v4782 = vpop.f32.mrb[0].mxu0
  %v4783 = vpop.f32.mrb[0].mxu0
  %v4784 = vadd.f32 0.0, %v4783
  %v4785 = vpop.f32.mrb[0].mxu0
  %4786 = vmatprep.mubr.bf16.mxu0 0
  %4787 = vmatmul.mubr.bf16.gmra.mrb[0].mxu0 %v4386
  %v4788 = vpop.f32.mrb[0].mxu0
  %v4789 = vadd.f32 0.0, %v4788
  %v4790 = vpop.f32.mrb[0].mxu0
  %v4791 = vpop.f32.mrb[0].mxu0
  %v4792 = vadd.f32 0.0, %v4791
  %v4793 = vpop.f32.mrb[0].mxu0
  %4794 = vmatprep.mubr.bf16.mxu0 0
  %4795 = vmatmul.mubr.bf16.gmra.mrb[0].mxu0 %v4387
  %v4796 = vpop.f32.mrb[0].mxu0
  %v4797 = vadd.f32 0.0, %v4796
  %v4798 = vpop.f32.mrb[0].mxu0
  %v4799 = vpop.f32.mrb[0].mxu0
  %v4800 = vadd.f32 0.0, %v4799
  %v4801 = vpop.f32.mrb[0].mxu0
  %4802 = vmatprep.mubr.bf16.mxu0 0
  %4803 = vmatmul.mubr.bf16.gmra.mrb[0].mxu0 %v4388
  %v4804 = vpop.f32.mrb[0].mxu0
  %v4805 = vadd.f32 0.0, %v4804
  %v4806 = vpop.f32.mrb[0].mxu0
  %v4807 = vpop.f32.mrb[0].mxu0
  %v4808 = vadd.f32 0.0, %v4807
  %v4809 = vpop.f32.mrb[0].mxu0
  %4810 = vmatprep.mubr.bf16.mxu0 0
  %4811 = vmatmul.mubr.bf16.gmra.mrb[0].mxu0 %v4389
  %v4812 = vpop.f32.mrb[0].mxu0
  %v4813 = vadd.f32 0.0, %v4812
  %v4814 = vpop.f32.mrb[0].mxu0
  %v4815 = vpop.f32.mrb[0].mxu0
  %v4816 = vadd.f32 0.0, %v4815
  %v4817 = vpop.f32.mrb[0].mxu0
  %4818 = vmatprep.mubr.bf16.mxu0 0
  %4819 = vmatmul.mubr.bf16.gmra.mrb[0].mxu0 %v4390
  %v4820 = vpop.f32.mrb[0].mxu0
  %v4821 = vadd.f32 0.0, %v4820
  %v4822 = vpop.f32.mrb[0].mxu0
  %v4823 = vpop.f32.mrb[0].mxu0
  %v4824 = vadd.f32 0.0, %v4823
  %v4825 = vpop.f32.mrb[0].mxu0
  %4826 = vmatprep.mubr.bf16.mxu0 0
  %4827 = vmatmul.mubr.bf16.gmra.mrb[0].mxu0 %v4391
  %v4828 = vpop.f32.mrb[0].mxu0
  %v4829 = vadd.f32 0.0, %v4828
  %v4830 = vpop.f32.mrb[0].mxu0
  %v4831 = vpop.f32.mrb[0].mxu0
  %v4832 = vadd.f32 0.0, %v4831
  %v4833 = vpop.f32.mrb[0].mxu0
  %4834 = vmatprep.mubr.bf16.mxu0 0
  %4835 = vmatmul.mubr.bf16.gmra.mrb[0].mxu0 %v4392
  %v4836 = vpop.f32.mrb[0].mxu0
  %v4837 = vadd.f32 0.0, %v4836
  %v4838 = vpop.f32.mrb[0].mxu0
  %v4839 = vpop.f32.mrb[0].mxu0
  %v4840 = vadd.f32 0.0, %v4839
  %v4841 = vpop.f32.mrb[0].mxu0
  %4842 = vmatprep.mubr.bf16.mxu0 0
  %4843 = vmatmul.mubr.bf16.gmra.mrb[0].mxu0 %v4393
  %v4844 = vpop.f32.mrb[0].mxu0
  %v4845 = vadd.f32 0.0, %v4844
  %v4846 = vpop.f32.mrb[0].mxu0
  %v4847 = vpop.f32.mrb[0].mxu0
  %v4848 = vadd.f32 0.0, %v4847
  %v4849 = vpop.f32.mrb[0].mxu0
  %4850 = vmatprep.mubr.bf16.mxu0 0
  %4851 = vmatmul.mubr.bf16.gmra.mrb[0].mxu0 %v4394
  %v4852 = vpop.f32.mrb[0].mxu0
  %v4853 = vadd.f32 0.0, %v4852
  %v4854 = vpop.f32.mrb[0].mxu0
  %v4855 = vpop.f32.mrb[0].mxu0
  %v4856 = vadd.f32 0.0, %v4855
  %v4857 = vpop.f32.mrb[0].mxu0
  %4858 = vmatprep.mubr.bf16.mxu0 0
  %4859 = vmatmul.mubr.bf16.gmra.mrb[0].mxu0 %v4395
  %v4860 = vpop.f32.mrb[0].mxu0
  %v4861 = vadd.f32 0.0, %v4860
  %v4862 = vpop.f32.mrb[0].mxu0
  %v4863 = vpop.f32.mrb[0].mxu0
  %v4864 = vadd.f32 0.0, %v4863
  %v4865 = vpop.f32.mrb[0].mxu0
  %4866 = vmatprep.mubr.bf16.mxu0 0
  %4867 = vmatmul.mubr.bf16.gmra.mrb[0].mxu0 %v4396
  %v4868 = vpop.f32.mrb[0].mxu0
  %v4869 = vadd.f32 0.0, %v4868
  %v4870 = vpop.f32.mrb[0].mxu0
  %v4871 = vpop.f32.mrb[0].mxu0
  %v4872 = vadd.f32 0.0, %v4871
  %v4873 = vpop.f32.mrb[0].mxu0
  %4874 = vmatprep.mubr.bf16.mxu0 0
  %4875 = vmatmul.mubr.bf16.gmra.mrb[0].mxu0 %v4397
  %v4876 = vpop.f32.mrb[0].mxu0
  %v4877 = vadd.f32 0.0, %v4876
  %v4878 = vpop.f32.mrb[0].mxu0
  %v4879 = vpop.f32.mrb[0].mxu0
  %v4880 = vadd.f32 0.0, %v4879
  %v4881 = vpop.f32.mrb[0].mxu0
  %4882 = vmatprep.mubr.bf16.mxu0 0
  %4883 = vmatmul.mubr.bf16.gmra.mrb[0].mxu0 %v4398
  %v4884 = vpop.f32.mrb[0].mxu0
  %v4885 = vadd.f32 0.0, %v4884
  %v4886 = vpop.f32.mrb[0].mxu0
  %v4887 = vpop.f32.mrb[0].mxu0
  %v4888 = vadd.f32 0.0, %v4887
  %v4889 = vpop.f32.mrb[0].mxu0
  %4890 = vmatprep.mubr.bf16.mxu0 0
  %4891 = vmatmul.mubr.bf16.gmra.mrb[0].mxu0 %v4399
  %v4892 = vpop.f32.mrb[0].mxu0
  %v4893 = vadd.f32 0.0, %v4892
  %v4894 = vpop.f32.mrb[0].mxu0
  %v4895 = vpop.f32.mrb[0].mxu0
  %v4896 = vadd.f32 0.0, %v4895
  %v4897 = vpop.f32.mrb[0].mxu0
  %4898 = vmatprep.mubr.bf16.mxu0 0
  %4899 = vmatmul.mubr.bf16.gmra.mrb[0].mxu0 %v4400
  %v4900 = vpop.f32.mrb[0].mxu0
  %v4901 = vadd.f32 0.0, %v4900
  %v4902 = vpop.f32.mrb[0].mxu0
  %v4903 = vpop.f32.mrb[0].mxu0
  %v4904 = vadd.f32 0.0, %v4903
  %v4905 = vpop.f32.mrb[0].mxu0
  %4906 = vmatprep.mubr.bf16.mxu0 0
  %4907 = vmatmul.mubr.bf16.gmra.mrb[0].mxu0 %v4401
  %v4908 = vpop.f32.mrb[0].mxu0
  %v4909 = vadd.f32 0.0, %v4908
  %v4910 = vpop.f32.mrb[0].mxu0
  %v4911 = vpop.f32.mrb[0].mxu0
  %v4912 = vadd.f32 0.0, %v4911
  %v4913 = vpop.f32.mrb[0].mxu0
  %4914 = vmatprep.mubr.bf16.mxu0 0
  %4915 = vmatmul.mubr.bf16.gmra.mrb[0].mxu0 %v4402
  %v4916 = vpop.f32.mrb[0].mxu0
  %v4917 = vadd.f32 0.0, %v4916
  %v4918 = vpop.f32.mrb[0].mxu0
  %v4919 = vpop.f32.mrb[0].mxu0
  %v4920 = vadd.f32 0.0, %v4919
  %v4921 = vpop.f32.mrb[0].mxu0
  %4922 = vmatprep.mubr.bf16.mxu0 0
  %4923 = vmatmul.mubr.bf16.gmra.mrb[0].mxu0 %v4403
  %v4924 = vpop.f32.mrb[0].mxu0
  %v4925 = vadd.f32 0.0, %v4924
  %v4926 = vpop.f32.mrb[0].mxu0
  %v4927 = vpop.f32.mrb[0].mxu0
  %v4928 = vadd.f32 0.0, %v4927
  %v4929 = vpop.f32.mrb[0].mxu0
  %4930 = vmatprep.mubr.bf16.mxu0 0
  %4931 = vmatmul.mubr.bf16.gmra.mrb[0].mxu0 %v4404
  %v4932 = vpop.f32.mrb[0].mxu0
  %v4933 = vadd.f32 0.0, %v4932
  %v4934 = vpop.f32.mrb[0].mxu0
  %v4935 = vpop.f32.mrb[0].mxu0
  %v4936 = vadd.f32 0.0, %v4935
  %v4937 = vpop.f32.mrb[0].mxu0
  %4938 = vmatprep.mubr.bf16.mxu0 0
  %4939 = vmatmul.mubr.bf16.gmra.mrb[0].mxu0 %v4405
  %v4940 = vpop.f32.mrb[0].mxu0
  %v4941 = vadd.f32 0.0, %v4940
  %v4942 = vpop.f32.mrb[0].mxu0
  %v4943 = vpop.f32.mrb[0].mxu0
  %v4944 = vadd.f32 0.0, %v4943
  %v4945 = vpop.f32.mrb[0].mxu0
  %4946 = vmatprep.mubr.bf16.mxu0 0
  %4947 = vmatmul.mubr.bf16.gmra.mrb[0].mxu0 %v4406
  %v4948 = vpop.f32.mrb[0].mxu0
  %v4949 = vadd.f32 0.0, %v4948
  %v4950 = vpop.f32.mrb[0].mxu0
  %v4951 = vpop.f32.mrb[0].mxu0
  %v4952 = vadd.f32 0.0, %v4951
  %v4953 = vpop.f32.mrb[0].mxu0
  %4954 = vmatprep.mubr.bf16.mxu0 0
  %4955 = vmatmul.mubr.bf16.gmra.mrb[0].mxu0 %v4407
  %v4956 = vpop.f32.mrb[0].mxu0
  %v4957 = vadd.f32 0.0, %v4956
  %v4958 = vpop.f32.mrb[0].mxu0
  %v4959 = vpop.f32.mrb[0].mxu0
  %v4960 = vadd.f32 0.0, %v4959
  %v4961 = vpop.f32.mrb[0].mxu0
  %4962 = vmatprep.mubr.bf16.mxu0 0
  %4963 = vmatmul.mubr.bf16.gmra.mrb[0].mxu0 %v4408
  %v4964 = vpop.f32.mrb[0].mxu0
  %v4965 = vadd.f32 0.0, %v4964
  %v4966 = vpop.f32.mrb[0].mxu0
  %v4967 = vpop.f32.mrb[0].mxu0
  %v4968 = vadd.f32 0.0, %v4967
  %v4969 = vpop.f32.mrb[0].mxu0
  %4970 = vmatprep.mubr.bf16.mxu0 0
  %4971 = vmatmul.mubr.bf16.gmra.mrb[0].mxu0 %v4409
  %v4972 = vpop.f32.mrb[0].mxu0
  %v4973 = vadd.f32 0.0, %v4972
  %v4974 = vpop.f32.mrb[0].mxu0
  %v4975 = vpop.f32.mrb[0].mxu0
  %v4976 = vadd.f32 0.0, %v4975
  %v4977 = vpop.f32.mrb[0].mxu0
  %4978 = vmatprep.mubr.bf16.mxu0 0
  %4979 = vmatmul.mubr.bf16.gmra.mrb[0].mxu0 %v4410
  %v4980 = vpop.f32.mrb[0].mxu0
  %v4981 = vadd.f32 0.0, %v4980
  %v4982 = vpop.f32.mrb[0].mxu0
  %v4983 = vpop.f32.mrb[0].mxu0
  %v4984 = vadd.f32 0.0, %v4983
  %v4985 = vpop.f32.mrb[0].mxu0
  %4986 = vmatprep.mubr.bf16.mxu0 0
  %4987 = vmatmul.mubr.bf16.gmra.mrb[0].mxu0 %v4411
  %v4988 = vpop.f32.mrb[0].mxu0
  %v4989 = vadd.f32 0.0, %v4988
  %v4990 = vpop.f32.mrb[0].mxu0
  %v4991 = vpop.f32.mrb[0].mxu0
  %v4992 = vadd.f32 0.0, %v4991
  %v4993 = vpop.f32.mrb[0].mxu0
  %4994 = vmatprep.mubr.bf16.mxu0 0
  %4995 = vmatmul.mubr.bf16.gmra.mrb[0].mxu0 %v4412
  %v4996 = vpop.f32.mrb[0].mxu0
  %v4997 = vadd.f32 0.0, %v4996
  %v4998 = vpop.f32.mrb[0].mxu0
  %v4999 = vpop.f32.mrb[0].mxu0
  %v5000 = vadd.f32 0.0, %v4999
  %v5001 = vpop.f32.mrb[0].mxu0
  %5002 = vmatprep.mubr.bf16.mxu0 0
  %5003 = vmatmul.mubr.bf16.gmra.mrb[0].mxu0 %v4413
  %v5004 = vpop.f32.mrb[0].mxu0
  %v5005 = vadd.f32 0.0, %v5004
  %v5006 = vpop.f32.mrb[0].mxu0
  %v5007 = vpop.f32.mrb[0].mxu0
  %v5008 = vadd.f32 0.0, %v5007
  %v5009 = vpop.f32.mrb[0].mxu0
  %5010 = vmatprep.mubr.bf16.mxu0 0
  %5011 = vmatmul.mubr.bf16.gmra.mrb[0].mxu0 %v4414
  %v5012 = vpop.f32.mrb[0].mxu0
  %v5013 = vadd.f32 0.0, %v5012
  %v5014 = vpop.f32.mrb[0].mxu0
  %v5015 = vpop.f32.mrb[0].mxu0
  %v5016 = vadd.f32 0.0, %v5015
  %v5017 = vpop.f32.mrb[0].mxu0
  %5018 = vmatprep.mubr.bf16.mxu0 0
  %5019 = vmatmul.mubr.bf16.gmra.mrb[0].mxu0 %v4415
  %v5020 = vpop.f32.mrb[0].mxu0
  %v5021 = vadd.f32 0.0, %v5020
  %v5022 = vpop.f32.mrb[0].mxu0
  %v5023 = vpop.f32.mrb[0].mxu0
  %v5024 = vadd.f32 0.0, %v5023
  %v5025 = vpop.f32.mrb[0].mxu0
  %5026 = vmatprep.mubr.bf16.mxu0 0
  %5027 = vmatmul.mubr.bf16.gmra.mrb[0].mxu0 %v4416
  %v5028 = vpop.f32.mrb[0].mxu0
  %v5029 = vadd.f32 0.0, %v5028
  %v5030 = vpop.f32.mrb[0].mxu0
  %v5031 = vpop.f32.mrb[0].mxu0
  %v5032 = vadd.f32 0.0, %v5031
  %v5033 = vpop.f32.mrb[0].mxu0
  %5034 = vmatprep.mubr.bf16.mxu0 0
  %5035 = vmatmul.mubr.bf16.gmra.mrb[0].mxu0 %v4417
  %v5036 = vpop.f32.mrb[0].mxu0
  %v5037 = vadd.f32 0.0, %v5036
  %v5038 = vpop.f32.mrb[0].mxu0
  %v5039 = vpop.f32.mrb[0].mxu0
  %v5040 = vadd.f32 0.0, %v5039
  %v5041 = vpop.f32.mrb[0].mxu0
  %5042 = vmatprep.mubr.bf16.mxu0 0
  %5043 = vmatmul.mubr.bf16.gmra.mrb[0].mxu0 %v4418
  %v5044 = vpop.f32.mrb[0].mxu0
  %v5045 = vadd.f32 0.0, %v5044
  %v5046 = vpop.f32.mrb[0].mxu0
  %v5047 = vpop.f32.mrb[0].mxu0
  %v5048 = vadd.f32 0.0, %v5047
  %v5049 = vpop.f32.mrb[0].mxu0
  %5050 = vmatprep.mubr.bf16.mxu0 0
  %5051 = vmatmul.mubr.bf16.gmra.mrb[0].mxu0 %v4419
  %v5052 = vpop.f32.mrb[0].mxu0
  %v5053 = vadd.f32 0.0, %v5052
  %v5054 = vpop.f32.mrb[0].mxu0
  %v5055 = vpop.f32.mrb[0].mxu0
  %v5056 = vadd.f32 0.0, %v5055
  %v5057 = vpop.f32.mrb[0].mxu0
  %5058 = vmatprep.mubr.bf16.mxu0 0
  %5059 = vmatmul.mubr.bf16.gmra.mrb[0].mxu0 %v4420
  %v5060 = vpop.f32.mrb[0].mxu0
  %v5061 = vadd.f32 0.0, %v5060
  %v5062 = vpop.f32.mrb[0].mxu0
  %v5063 = vpop.f32.mrb[0].mxu0
  %v5064 = vadd.f32 0.0, %v5063
  %v5065 = vpop.f32.mrb[0].mxu0
  %5066 = vmatprep.mubr.bf16.mxu0 0
  %5067 = vmatmul.mubr.bf16.gmra.mrb[0].mxu0 %v4421
  %v5068 = vpop.f32.mrb[0].mxu0
  %v5069 = vadd.f32 0.0, %v5068
  %v5070 = vpop.f32.mrb[0].mxu0
  %v5071 = vpop.f32.mrb[0].mxu0
  %v5072 = vadd.f32 0.0, %v5071
  %v5073 = vpop.f32.mrb[0].mxu0
  %5074 = vmatprep.mubr.bf16.mxu0 0
  %5075 = vmatmul.mubr.bf16.gmra.mrb[0].mxu0 %v4422
  %v5076 = vpop.f32.mrb[0].mxu0
  %v5077 = vadd.f32 0.0, %v5076
  %v5078 = vpop.f32.mrb[0].mxu0
  %v5079 = vpop.f32.mrb[0].mxu0
  %v5080 = vadd.f32 0.0, %v5079
  %v5081 = vpop.f32.mrb[0].mxu0
  %5082 = vmatprep.mubr.bf16.mxu0 0
  %5083 = vmatmul.mubr.bf16.gmra.mrb[0].mxu0 %v4423
  %v5084 = vpop.f32.mrb[0].mxu0
  %v5085 = vadd.f32 0.0, %v5084
  %v5086 = vpop.f32.mrb[0].mxu0
  %v5087 = vpop.f32.mrb[0].mxu0
  %v5088 = vadd.f32 0.0, %v5087
  %v5089 = vpop.f32.mrb[0].mxu0
  %5090 = vmatprep.mubr.bf16.mxu0 0
  %5091 = vmatmul.mubr.bf16.gmra.mrb[0].mxu0 %v4424
  %v5092 = vpop.f32.mrb[0].mxu0
  %v5093 = vadd.f32 0.0, %v5092
  %v5094 = vpop.f32.mrb[0].mxu0
  %v5095 = vpop.f32.mrb[0].mxu0
  %v5096 = vadd.f32 0.0, %v5095
  %v5097 = vpop.f32.mrb[0].mxu0
  %5098 = vmatprep.mubr.bf16.mxu0 0
  %5099 = vmatmul.mubr.bf16.gmra.mrb[0].mxu0 %v4425
  %v5100 = vpop.f32.mrb[0].mxu0
  %v5101 = vadd.f32 0.0, %v5100
  %v5102 = vpop.f32.mrb[0].mxu0
  %v5103 = vpop.f32.mrb[0].mxu0
  %v5104 = vadd.f32 0.0, %v5103
  %v5105 = vpop.f32.mrb[0].mxu0
  %5106 = vdwg.mxu0
  %v5107 = vmax.f32 %v3778, %v4533
  %v5108 = vmax.f32 %v3779, %v4536
  %v5109 = vmax.f32 %v3780, %v4541
  %v5110 = vmax.f32 %v3781, %v4544
  %v5111 = vmax.f32 %v3782, %v4549
  %v5112 = vmax.f32 %v3783, %v4552
  %v5113 = vmax.f32 %v3784, %v4557
  %v5114 = vmax.f32 %v3785, %v4560
  %v5115 = vmax.f32 %v3786, %v4565
  %v5116 = vmax.f32 %v3787, %v4568
  %v5117 = vmax.f32 %v3788, %v4573
  %v5118 = vmax.f32 %v3789, %v4576
  %v5119 = vmax.f32 %v3790, %v4581
  %v5120 = vmax.f32 %v3791, %v4584
  %v5121 = vmax.f32 %v3792, %v4589
  %v5122 = vmax.f32 %v3793, %v4592
  %v5123 = vmax.f32 %v3794, %v4597
  %v5124 = vmax.f32 %v3795, %v4600
  %v5125 = vmax.f32 %v3796, %v4605
  %v5126 = vmax.f32 %v3797, %v4608
  %v5127 = vmax.f32 %v3798, %v4613
  %v5128 = vmax.f32 %v3799, %v4616
  %v5129 = vmax.f32 %v3800, %v4621
  %v5130 = vmax.f32 %v3801, %v4624
  %v5131 = vmax.f32 %v3802, %v4629
  %v5132 = vmax.f32 %v3803, %v4632
  %v5133 = vmax.f32 %v3804, %v4637
  %v5134 = vmax.f32 %v3805, %v4640
  %v5135 = vmax.f32 %v3806, %v4645
  %v5136 = vmax.f32 %v3807, %v4648
  %v5137 = vmax.f32 %v3808, %v4653
  %v5138 = vmax.f32 %v3809, %v4656
  %v5139 = vmax.f32 %v3810, %v4661
  %v5140 = vmax.f32 %v3811, %v4664
  %v5141 = vmax.f32 %v3812, %v4669
  %v5142 = vmax.f32 %v3813, %v4672
  %v5143 = vmax.f32 %v3814, %v4677
  %v5144 = vmax.f32 %v3815, %v4680
  %v5145 = vmax.f32 %v3816, %v4685
  %v5146 = vmax.f32 %v3817, %v4688
  %v5147 = vmax.f32 %v3818, %v4693
  %v5148 = vmax.f32 %v3819, %v4696
  %v5149 = vmax.f32 %v3820, %v4701
  %v5150 = vmax.f32 %v3821, %v4704
  %v5151 = vmax.f32 %v3822, %v4709
  %v5152 = vmax.f32 %v3823, %v4712
  %v5153 = vmax.f32 %v3824, %v4717
  %v5154 = vmax.f32 %v3825, %v4720
  %v5155 = vmax.f32 %v3826, %v4725
  %v5156 = vmax.f32 %v3827, %v4728
  %v5157 = vmax.f32 %v3828, %v4733
  %v5158 = vmax.f32 %v3829, %v4736
  %v5159 = vmax.f32 %v3830, %v4741
  %v5160 = vmax.f32 %v3831, %v4744
  %v5161 = vmax.f32 %v3832, %v4749
  %v5162 = vmax.f32 %v3833, %v4752
  %v5163 = vmax.f32 %v3834, %v4757
  %v5164 = vmax.f32 %v3835, %v4760
  %v5165 = vmax.f32 %v3836, %v4765
  %v5166 = vmax.f32 %v3837, %v4768
  %v5167 = vmax.f32 %v3838, %v4773
  %v5168 = vmax.f32 %v3839, %v4776
  %v5169 = vmax.f32 %v3840, %v4781
  %v5170 = vmax.f32 %v3841, %v4784
  %v5171 = vmax.f32 %v3842, %v4789
  %v5172 = vmax.f32 %v3843, %v4792
  %v5173 = vmax.f32 %v3844, %v4797
  %v5174 = vmax.f32 %v3845, %v4800
  %v5175 = vmax.f32 %v3846, %v4805
  %v5176 = vmax.f32 %v3847, %v4808
  %v5177 = vmax.f32 %v3848, %v4813
  %v5178 = vmax.f32 %v3849, %v4816
  %v5179 = vmax.f32 %v3850, %v4821
  %v5180 = vmax.f32 %v3851, %v4824
  %v5181 = vmax.f32 %v3852, %v4829
  %v5182 = vmax.f32 %v3853, %v4832
  %v5183 = vmax.f32 %v3854, %v4837
  %v5184 = vmax.f32 %v3855, %v4840
  %v5185 = vmax.f32 %v3856, %v4845
  %v5186 = vmax.f32 %v3857, %v4848
  %v5187 = vmax.f32 %v3858, %v4853
  %v5188 = vmax.f32 %v3859, %v4856
  %v5189 = vmax.f32 %v3860, %v4861
  %v5190 = vmax.f32 %v3861, %v4864
  %v5191 = vmax.f32 %v3862, %v4869
  %v5192 = vmax.f32 %v3863, %v4872
  %v5193 = vmax.f32 %v3864, %v4877
  %v5194 = vmax.f32 %v3865, %v4880
  %v5195 = vmax.f32 %v3866, %v4885
  %v5196 = vmax.f32 %v3867, %v4888
  %v5197 = vmax.f32 %v3868, %v4893
  %v5198 = vmax.f32 %v3869, %v4896
  %v5199 = vmax.f32 %v3870, %v4901
  %v5200 = vmax.f32 %v3871, %v4904
  %v5201 = vmax.f32 %v3872, %v4909
  %v5202 = vmax.f32 %v3873, %v4912
  %v5203 = vmax.f32 %v3874, %v4917
  %v5204 = vmax.f32 %v3875, %v4920
  %v5205 = vmax.f32 %v3876, %v4925
  %v5206 = vmax.f32 %v3877, %v4928
  %v5207 = vmax.f32 %v3878, %v4933
  %v5208 = vmax.f32 %v3879, %v4936
  %v5209 = vmax.f32 %v3880, %v4941
  %v5210 = vmax.f32 %v3881, %v4944
  %v5211 = vmax.f32 %v3882, %v4949
  %v5212 = vmax.f32 %v3883, %v4952
  %v5213 = vmax.f32 %v3884, %v4957
  %v5214 = vmax.f32 %v3885, %v4960
  %v5215 = vmax.f32 %v3886, %v4965
  %v5216 = vmax.f32 %v3887, %v4968
  %v5217 = vmax.f32 %v3888, %v4973
  %v5218 = vmax.f32 %v3889, %v4976
  %v5219 = vmax.f32 %v3890, %v4981
  %v5220 = vmax.f32 %v3891, %v4984
  %v5221 = vmax.f32 %v3892, %v4989
  %v5222 = vmax.f32 %v3893, %v4992
  %v5223 = vmax.f32 %v3894, %v4997
  %v5224 = vmax.f32 %v3895, %v5000
  %v5225 = vmax.f32 %v3896, %v5005
  %v5226 = vmax.f32 %v3897, %v5008
  %v5227 = vmax.f32 %v3898, %v5013
  %v5228 = vmax.f32 %v3899, %v5016
  %v5229 = vmax.f32 %v3900, %v5021
  %v5230 = vmax.f32 %v3901, %v5024
  %v5231 = vmax.f32 %v3902, %v5029
  %v5232 = vmax.f32 %v3903, %v5032
  %v5233 = vmax.f32 %v3904, %v5037
  %v5234 = vmax.f32 %v3905, %v5040
  %v5235 = vmax.f32 %v3906, %v5045
  %v5236 = vmax.f32 %v3907, %v5048
  %v5237 = vmax.f32 %v3908, %v5053
  %v5238 = vmax.f32 %v3909, %v5056
  %v5239 = vmax.f32 %v3910, %v5061
  %v5240 = vmax.f32 %v3911, %v5064
  %v5241 = vmax.f32 %v3912, %v5069
  %v5242 = vmax.f32 %v3913, %v5072
  %v5243 = vmax.f32 %v3914, %v5077
  %v5244 = vmax.f32 %v3915, %v5080
  %v5245 = vmax.f32 %v3916, %v5085
  %v5246 = vmax.f32 %v3917, %v5088
  %v5247 = vmax.f32 %v3918, %v5093
  %v5248 = vmax.f32 %v3919, %v5096
  %v5249 = vmax.f32 %v3920, %v5101
  %v5250 = vmax.f32 %v3921, %v5104
  %v5251 = vld [vmem:[%s2] sm:$0x1]
  %v5253 = vlaneseq
  %v5254 = vshrl.u32 %v5253, 7
  %v5255 = vsub.s32 0, %v5254
  %v5256 = vrot.slane %v5251, %v5255
  %v5258 = vadd.f32 %v5107, %v5256
  %v5259 = vadd.f32 %v5108, %v5256
  %v5260 = vadd.f32 %v5109, %v5256
  %v5261 = vadd.f32 %v5110, %v5256
  %v5262 = vadd.f32 %v5111, %v5256
  %v5263 = vadd.f32 %v5112, %v5256
  %v5264 = vadd.f32 %v5113, %v5256
  %v5265 = vadd.f32 %v5114, %v5256
  %v5266 = vadd.f32 %v5115, %v5256
  %v5267 = vadd.f32 %v5116, %v5256
  %v5268 = vadd.f32 %v5117, %v5256
  %v5269 = vadd.f32 %v5118, %v5256
  %v5270 = vadd.f32 %v5119, %v5256
  %v5271 = vadd.f32 %v5120, %v5256
  %v5272 = vadd.f32 %v5121, %v5256
  %v5273 = vadd.f32 %v5122, %v5256
  %v5274 = vadd.f32 %v5123, %v5256
  %v5275 = vadd.f32 %v5124, %v5256
  %v5276 = vadd.f32 %v5125, %v5256
  %v5277 = vadd.f32 %v5126, %v5256
  %v5278 = vadd.f32 %v5127, %v5256
  %v5279 = vadd.f32 %v5128, %v5256
  %v5280 = vadd.f32 %v5129, %v5256
  %v5281 = vadd.f32 %v5130, %v5256
  %v5282 = vadd.f32 %v5131, %v5256
  %v5283 = vadd.f32 %v5132, %v5256
  %v5284 = vadd.f32 %v5133, %v5256
  %v5285 = vadd.f32 %v5134, %v5256
  %v5286 = vadd.f32 %v5135, %v5256
  %v5287 = vadd.f32 %v5136, %v5256
  %v5288 = vadd.f32 %v5137, %v5256
  %v5289 = vadd.f32 %v5138, %v5256
  %v5290 = vadd.f32 %v5139, %v5256
  %v5291 = vadd.f32 %v5140, %v5256
  %v5292 = vadd.f32 %v5141, %v5256
  %v5293 = vadd.f32 %v5142, %v5256
  %v5294 = vadd.f32 %v5143, %v5256
  %v5295 = vadd.f32 %v5144, %v5256
  %v5296 = vadd.f32 %v5145, %v5256
  %v5297 = vadd.f32 %v5146, %v5256
  %v5298 = vadd.f32 %v5147, %v5256
  %v5299 = vadd.f32 %v5148, %v5256
  %v5300 = vadd.f32 %v5149, %v5256
  %v5301 = vadd.f32 %v5150, %v5256
  %v5302 = vadd.f32 %v5151, %v5256
  %v5303 = vadd.f32 %v5152, %v5256
  %v5304 = vadd.f32 %v5153, %v5256
  %v5305 = vadd.f32 %v5154, %v5256
  %v5306 = vadd.f32 %v5155, %v5256
  %v5307 = vadd.f32 %v5156, %v5256
  %v5308 = vadd.f32 %v5157, %v5256
  %v5309 = vadd.f32 %v5158, %v5256
  %v5310 = vadd.f32 %v5159, %v5256
  %v5311 = vadd.f32 %v5160, %v5256
  %v5312 = vadd.f32 %v5161, %v5256
  %v5313 = vadd.f32 %v5162, %v5256
  %v5314 = vadd.f32 %v5163, %v5256
  %v5315 = vadd.f32 %v5164, %v5256
  %v5316 = vadd.f32 %v5165, %v5256
  %v5317 = vadd.f32 %v5166, %v5256
  %v5318 = vadd.f32 %v5167, %v5256
  %v5319 = vadd.f32 %v5168, %v5256
  %v5320 = vadd.f32 %v5169, %v5256
  %v5321 = vadd.f32 %v5170, %v5256
  %v5322 = vadd.f32 %v5171, %v5256
  %v5323 = vadd.f32 %v5172, %v5256
  %v5324 = vadd.f32 %v5173, %v5256
  %v5325 = vadd.f32 %v5174, %v5256
  %v5326 = vadd.f32 %v5175, %v5256
  %v5327 = vadd.f32 %v5176, %v5256
  %v5328 = vadd.f32 %v5177, %v5256
  %v5329 = vadd.f32 %v5178, %v5256
  %v5330 = vadd.f32 %v5179, %v5256
  %v5331 = vadd.f32 %v5180, %v5256
  %v5332 = vadd.f32 %v5181, %v5256
  %v5333 = vadd.f32 %v5182, %v5256
  %v5334 = vadd.f32 %v5183, %v5256
  %v5335 = vadd.f32 %v5184, %v5256
  %v5336 = vadd.f32 %v5185, %v5256
  %v5337 = vadd.f32 %v5186, %v5256
  %v5338 = vadd.f32 %v5187, %v5256
  %v5339 = vadd.f32 %v5188, %v5256
  %v5340 = vadd.f32 %v5189, %v5256
  %v5341 = vadd.f32 %v5190, %v5256
  %v5342 = vadd.f32 %v5191, %v5256
  %v5343 = vadd.f32 %v5192, %v5256
  %v5344 = vadd.f32 %v5193, %v5256
  %v5345 = vadd.f32 %v5194, %v5256
  %v5346 = vadd.f32 %v5195, %v5256
  %v5347 = vadd.f32 %v5196, %v5256
  %v5348 = vadd.f32 %v5197, %v5256
  %v5349 = vadd.f32 %v5198, %v5256
  %v5350 = vadd.f32 %v5199, %v5256
  %v5351 = vadd.f32 %v5200, %v5256
  %v5352 = vadd.f32 %v5201, %v5256
  %v5353 = vadd.f32 %v5202, %v5256
  %v5354 = vadd.f32 %v5203, %v5256
  %v5355 = vadd.f32 %v5204, %v5256
  %v5356 = vadd.f32 %v5205, %v5256
  %v5357 = vadd.f32 %v5206, %v5256
  %v5358 = vadd.f32 %v5207, %v5256
  %v5359 = vadd.f32 %v5208, %v5256
  %v5360 = vadd.f32 %v5209, %v5256
  %v5361 = vadd.f32 %v5210, %v5256
  %v5362 = vadd.f32 %v5211, %v5256
  %v5363 = vadd.f32 %v5212, %v5256
  %v5364 = vadd.f32 %v5213, %v5256
  %v5365 = vadd.f32 %v5214, %v5256
  %v5366 = vadd.f32 %v5215, %v5256
  %v5367 = vadd.f32 %v5216, %v5256
  %v5368 = vadd.f32 %v5217, %v5256
  %v5369 = vadd.f32 %v5218, %v5256
  %v5370 = vadd.f32 %v5219, %v5256
  %v5371 = vadd.f32 %v5220, %v5256
  %v5372 = vadd.f32 %v5221, %v5256
  %v5373 = vadd.f32 %v5222, %v5256
  %v5374 = vadd.f32 %v5223, %v5256
  %v5375 = vadd.f32 %v5224, %v5256
  %v5376 = vadd.f32 %v5225, %v5256
  %v5377 = vadd.f32 %v5226, %v5256
  %v5378 = vadd.f32 %v5227, %v5256
  %v5379 = vadd.f32 %v5228, %v5256
  %v5380 = vadd.f32 %v5229, %v5256
  %v5381 = vadd.f32 %v5230, %v5256
  %v5382 = vadd.f32 %v5231, %v5256
  %v5383 = vadd.f32 %v5232, %v5256
  %v5384 = vadd.f32 %v5233, %v5256
  %v5385 = vadd.f32 %v5234, %v5256
  %v5386 = vadd.f32 %v5235, %v5256
  %v5387 = vadd.f32 %v5236, %v5256
  %v5388 = vadd.f32 %v5237, %v5256
  %v5389 = vadd.f32 %v5238, %v5256
  %v5390 = vadd.f32 %v5239, %v5256
  %v5391 = vadd.f32 %v5240, %v5256
  %v5392 = vadd.f32 %v5241, %v5256
  %v5393 = vadd.f32 %v5242, %v5256
  %v5394 = vadd.f32 %v5243, %v5256
  %v5395 = vadd.f32 %v5244, %v5256
  %v5396 = vadd.f32 %v5245, %v5256
  %v5397 = vadd.f32 %v5246, %v5256
  %v5398 = vadd.f32 %v5247, %v5256
  %v5399 = vadd.f32 %v5248, %v5256
  %v5400 = vadd.f32 %v5249, %v5256
  %v5401 = vadd.f32 %v5250, %v5256
  %v5402 = vmax.f32 %v5258, 0.0
  %v5403 = vmax.f32 %v5259, 0.0
  %v5404 = vmax.f32 %v5260, 0.0
  %v5405 = vmax.f32 %v5261, 0.0
  %v5406 = vmax.f32 %v5262, 0.0
  %v5407 = vmax.f32 %v5263, 0.0
  %v5408 = vmax.f32 %v5264, 0.0
  %v5409 = vmax.f32 %v5265, 0.0
  %v5410 = vmax.f32 %v5266, 0.0
  %v5411 = vmax.f32 %v5267, 0.0
  %v5412 = vmax.f32 %v5268, 0.0
  %v5413 = vmax.f32 %v5269, 0.0
  %v5414 = vmax.f32 %v5270, 0.0
  %v5415 = vmax.f32 %v5271, 0.0
  %v5416 = vmax.f32 %v5272, 0.0
  %v5417 = vmax.f32 %v5273, 0.0
  %v5418 = vmax.f32 %v5274, 0.0
  %v5419 = vmax.f32 %v5275, 0.0
  %v5420 = vmax.f32 %v5276, 0.0
  %v5421 = vmax.f32 %v5277, 0.0
  %v5422 = vmax.f32 %v5278, 0.0
  %v5423 = vmax.f32 %v5279, 0.0
  %v5424 = vmax.f32 %v5280, 0.0
  %v5425 = vmax.f32 %v5281, 0.0
  %v5426 = vmax.f32 %v5282, 0.0
  %v5427 = vmax.f32 %v5283, 0.0
  %v5428 = vmax.f32 %v5284, 0.0
  %v5429 = vmax.f32 %v5285, 0.0
  %v5430 = vmax.f32 %v5286, 0.0
  %v5431 = vmax.f32 %v5287, 0.0
  %v5432 = vmax.f32 %v5288, 0.0
  %v5433 = vmax.f32 %v5289, 0.0
  %v5434 = vmax.f32 %v5290, 0.0
  %v5435 = vmax.f32 %v5291, 0.0
  %v5436 = vmax.f32 %v5292, 0.0
  %v5437 = vmax.f32 %v5293, 0.0
  %v5438 = vmax.f32 %v5294, 0.0
  %v5439 = vmax.f32 %v5295, 0.0
  %v5440 = vmax.f32 %v5296, 0.0
  %v5441 = vmax.f32 %v5297, 0.0
  %v5442 = vmax.f32 %v5298, 0.0
  %v5443 = vmax.f32 %v5299, 0.0
  %v5444 = vmax.f32 %v5300, 0.0
  %v5445 = vmax.f32 %v5301, 0.0
  %v5446 = vmax.f32 %v5302, 0.0
  %v5447 = vmax.f32 %v5303, 0.0
  %v5448 = vmax.f32 %v5304, 0.0
  %v5449 = vmax.f32 %v5305, 0.0
  %v5450 = vmax.f32 %v5306, 0.0
  %v5451 = vmax.f32 %v5307, 0.0
  %v5452 = vmax.f32 %v5308, 0.0
  %v5453 = vmax.f32 %v5309, 0.0
  %v5454 = vmax.f32 %v5310, 0.0
  %v5455 = vmax.f32 %v5311, 0.0
  %v5456 = vmax.f32 %v5312, 0.0
  %v5457 = vmax.f32 %v5313, 0.0
  %v5458 = vmax.f32 %v5314, 0.0
  %v5459 = vmax.f32 %v5315, 0.0
  %v5460 = vmax.f32 %v5316, 0.0
  %v5461 = vmax.f32 %v5317, 0.0
  %v5462 = vmax.f32 %v5318, 0.0
  %v5463 = vmax.f32 %v5319, 0.0
  %v5464 = vmax.f32 %v5320, 0.0
  %v5465 = vmax.f32 %v5321, 0.0
  %v5466 = vmax.f32 %v5322, 0.0
  %v5467 = vmax.f32 %v5323, 0.0
  %v5468 = vmax.f32 %v5324, 0.0
  %v5469 = vmax.f32 %v5325, 0.0
  %v5470 = vmax.f32 %v5326, 0.0
  %v5471 = vmax.f32 %v5327, 0.0
  %v5472 = vmax.f32 %v5328, 0.0
  %v5473 = vmax.f32 %v5329, 0.0
  %v5474 = vmax.f32 %v5330, 0.0
  %v5475 = vmax.f32 %v5331, 0.0
  %v5476 = vmax.f32 %v5332, 0.0
  %v5477 = vmax.f32 %v5333, 0.0
  %v5478 = vmax.f32 %v5334, 0.0
  %v5479 = vmax.f32 %v5335, 0.0
  %v5480 = vmax.f32 %v5336, 0.0
  %v5481 = vmax.f32 %v5337, 0.0
  %v5482 = vmax.f32 %v5338, 0.0
  %v5483 = vmax.f32 %v5339, 0.0
  %v5484 = vmax.f32 %v5340, 0.0
  %v5485 = vmax.f32 %v5341, 0.0
  %v5486 = vmax.f32 %v5342, 0.0
  %v5487 = vmax.f32 %v5343, 0.0
  %v5488 = vmax.f32 %v5344, 0.0
  %v5489 = vmax.f32 %v5345, 0.0
  %v5490 = vmax.f32 %v5346, 0.0
  %v5491 = vmax.f32 %v5347, 0.0
  %v5492 = vmax.f32 %v5348, 0.0
  %v5493 = vmax.f32 %v5349, 0.0
  %v5494 = vmax.f32 %v5350, 0.0
  %v5495 = vmax.f32 %v5351, 0.0
  %v5496 = vmax.f32 %v5352, 0.0
  %v5497 = vmax.f32 %v5353, 0.0
  %v5498 = vmax.f32 %v5354, 0.0
  %v5499 = vmax.f32 %v5355, 0.0
  %v5500 = vmax.f32 %v5356, 0.0
  %v5501 = vmax.f32 %v5357, 0.0
  %v5502 = vmax.f32 %v5358, 0.0
  %v5503 = vmax.f32 %v5359, 0.0
  %v5504 = vmax.f32 %v5360, 0.0
  %v5505 = vmax.f32 %v5361, 0.0
  %v5506 = vmax.f32 %v5362, 0.0
  %v5507 = vmax.f32 %v5363, 0.0
  %v5508 = vmax.f32 %v5364, 0.0
  %v5509 = vmax.f32 %v5365, 0.0
  %v5510 = vmax.f32 %v5366, 0.0
  %v5511 = vmax.f32 %v5367, 0.0
  %v5512 = vmax.f32 %v5368, 0.0
  %v5513 = vmax.f32 %v5369, 0.0
  %v5514 = vmax.f32 %v5370, 0.0
  %v5515 = vmax.f32 %v5371, 0.0
  %v5516 = vmax.f32 %v5372, 0.0
  %v5517 = vmax.f32 %v5373, 0.0
  %v5518 = vmax.f32 %v5374, 0.0
  %v5519 = vmax.f32 %v5375, 0.0
  %v5520 = vmax.f32 %v5376, 0.0
  %v5521 = vmax.f32 %v5377, 0.0
  %v5522 = vmax.f32 %v5378, 0.0
  %v5523 = vmax.f32 %v5379, 0.0
  %v5524 = vmax.f32 %v5380, 0.0
  %v5525 = vmax.f32 %v5381, 0.0
  %v5526 = vmax.f32 %v5382, 0.0
  %v5527 = vmax.f32 %v5383, 0.0
  %v5528 = vmax.f32 %v5384, 0.0
  %v5529 = vmax.f32 %v5385, 0.0
  %v5530 = vmax.f32 %v5386, 0.0
  %v5531 = vmax.f32 %v5387, 0.0
  %v5532 = vmax.f32 %v5388, 0.0
  %v5533 = vmax.f32 %v5389, 0.0
  %v5534 = vmax.f32 %v5390, 0.0
  %v5535 = vmax.f32 %v5391, 0.0
  %v5536 = vmax.f32 %v5392, 0.0
  %v5537 = vmax.f32 %v5393, 0.0
  %v5538 = vmax.f32 %v5394, 0.0
  %v5539 = vmax.f32 %v5395, 0.0
  %v5540 = vmax.f32 %v5396, 0.0
  %v5541 = vmax.f32 %v5397, 0.0
  %v5542 = vmax.f32 %v5398, 0.0
  %v5543 = vmax.f32 %v5399, 0.0
  %v5544 = vmax.f32 %v5400, 0.0
  %v5545 = vmax.f32 %v5401, 0.0
  %v5546 = vpack.c.bf16 %v5403, %v5402
  %v5547 = vpack.c.bf16 %v5405, %v5404
  %v5548 = vpack.c.bf16 %v5407, %v5406
  %v5549 = vpack.c.bf16 %v5409, %v5408
  %v5550 = vpack.c.bf16 %v5411, %v5410
  %v5551 = vpack.c.bf16 %v5413, %v5412
  %v5552 = vpack.c.bf16 %v5415, %v5414
  %v5553 = vpack.c.bf16 %v5417, %v5416
  %v5554 = vpack.c.bf16 %v5419, %v5418
  %v5555 = vpack.c.bf16 %v5421, %v5420
  %v5556 = vpack.c.bf16 %v5423, %v5422
  %v5557 = vpack.c.bf16 %v5425, %v5424
  %v5558 = vpack.c.bf16 %v5427, %v5426
  %v5559 = vpack.c.bf16 %v5429, %v5428
  %v5560 = vpack.c.bf16 %v5431, %v5430
  %v5561 = vpack.c.bf16 %v5433, %v5432
  %v5562 = vpack.c.bf16 %v5435, %v5434
  %v5563 = vpack.c.bf16 %v5437, %v5436
  %v5564 = vpack.c.bf16 %v5439, %v5438
  %v5565 = vpack.c.bf16 %v5441, %v5440
  %v5566 = vpack.c.bf16 %v5443, %v5442
  %v5567 = vpack.c.bf16 %v5445, %v5444
  %v5568 = vpack.c.bf16 %v5447, %v5446
  %v5569 = vpack.c.bf16 %v5449, %v5448
  %v5570 = vpack.c.bf16 %v5451, %v5450
  %v5571 = vpack.c.bf16 %v5453, %v5452
  %v5572 = vpack.c.bf16 %v5455, %v5454
  %v5573 = vpack.c.bf16 %v5457, %v5456
  %v5574 = vpack.c.bf16 %v5459, %v5458
  %v5575 = vpack.c.bf16 %v5461, %v5460
  %v5576 = vpack.c.bf16 %v5463, %v5462
  %v5577 = vpack.c.bf16 %v5465, %v5464
  %v5578 = vpack.c.bf16 %v5467, %v5466
  %v5579 = vpack.c.bf16 %v5469, %v5468
  %v5580 = vpack.c.bf16 %v5471, %v5470
  %v5581 = vpack.c.bf16 %v5473, %v5472
  %v5582 = vpack.c.bf16 %v5475, %v5474
  %v5583 = vpack.c.bf16 %v5477, %v5476
  %v5584 = vpack.c.bf16 %v5479, %v5478
  %v5585 = vpack.c.bf16 %v5481, %v5480
  %v5586 = vpack.c.bf16 %v5483, %v5482
  %v5587 = vpack.c.bf16 %v5485, %v5484
  %v5588 = vpack.c.bf16 %v5487, %v5486
  %v5589 = vpack.c.bf16 %v5489, %v5488
  %v5590 = vpack.c.bf16 %v5491, %v5490
  %v5591 = vpack.c.bf16 %v5493, %v5492
  %v5592 = vpack.c.bf16 %v5495, %v5494
  %v5593 = vpack.c.bf16 %v5497, %v5496
  %v5594 = vpack.c.bf16 %v5499, %v5498
  %v5595 = vpack.c.bf16 %v5501, %v5500
  %v5596 = vpack.c.bf16 %v5503, %v5502
  %v5597 = vpack.c.bf16 %v5505, %v5504
  %v5598 = vpack.c.bf16 %v5507, %v5506
  %v5599 = vpack.c.bf16 %v5509, %v5508
  %v5600 = vpack.c.bf16 %v5511, %v5510
  %v5601 = vpack.c.bf16 %v5513, %v5512
  %v5602 = vpack.c.bf16 %v5515, %v5514
  %v5603 = vpack.c.bf16 %v5517, %v5516
  %v5604 = vpack.c.bf16 %v5519, %v5518
  %v5605 = vpack.c.bf16 %v5521, %v5520
  %v5606 = vpack.c.bf16 %v5523, %v5522
  %v5607 = vpack.c.bf16 %v5525, %v5524
  %v5608 = vpack.c.bf16 %v5527, %v5526
  %v5609 = vpack.c.bf16 %v5529, %v5528
  %v5610 = vpack.c.bf16 %v5531, %v5530
  %v5611 = vpack.c.bf16 %v5533, %v5532
  %v5612 = vpack.c.bf16 %v5535, %v5534
  %v5613 = vpack.c.bf16 %v5537, %v5536
  %v5614 = vpack.c.bf16 %v5539, %v5538
  %v5615 = vpack.c.bf16 %v5541, %v5540
  %v5616 = vpack.c.bf16 %v5543, %v5542
  %v5617 = vpack.c.bf16 %v5545, %v5544
  %v5690 = vunpack.c.l.b16 %v5546
  %v5691 = vunpack.c.h.b16 %v5546
  %v5692 = vunpack.c.l.b16 %v5547
  %v5693 = vunpack.c.h.b16 %v5547
  %v5694 = vunpack.c.l.b16 %v5548
  %v5695 = vunpack.c.h.b16 %v5548
  %v5696 = vunpack.c.l.b16 %v5549
  %v5697 = vunpack.c.h.b16 %v5549
  %v5698 = vunpack.c.l.b16 %v5550
  %v5699 = vunpack.c.h.b16 %v5550
  %v5700 = vunpack.c.l.b16 %v5551
  %v5701 = vunpack.c.h.b16 %v5551
  %v5702 = vunpack.c.l.b16 %v5552
  %v5703 = vunpack.c.h.b16 %v5552
  %v5704 = vunpack.c.l.b16 %v5553
  %v5705 = vunpack.c.h.b16 %v5553
  %v5706 = vunpack.c.l.b16 %v5554
  %v5707 = vunpack.c.h.b16 %v5554
  %v5708 = vunpack.c.l.b16 %v5555
  %v5709 = vunpack.c.h.b16 %v5555
  %v5710 = vunpack.c.l.b16 %v5556
  %v5711 = vunpack.c.h.b16 %v5556
  %v5712 = vunpack.c.l.b16 %v5557
  %v5713 = vunpack.c.h.b16 %v5557
  %v5714 = vunpack.c.l.b16 %v5558
  %v5715 = vunpack.c.h.b16 %v5558
  %v5716 = vunpack.c.l.b16 %v5559
  %v5717 = vunpack.c.h.b16 %v5559
  %v5718 = vunpack.c.l.b16 %v5560
  %v5719 = vunpack.c.h.b16 %v5560
  %v5720 = vunpack.c.l.b16 %v5561
  %v5721 = vunpack.c.h.b16 %v5561
  %v5722 = vunpack.c.l.b16 %v5562
  %v5723 = vunpack.c.h.b16 %v5562
  %v5724 = vunpack.c.l.b16 %v5563
  %v5725 = vunpack.c.h.b16 %v5563
  %v5726 = vunpack.c.l.b16 %v5564
  %v5727 = vunpack.c.h.b16 %v5564
  %v5728 = vunpack.c.l.b16 %v5565
  %v5729 = vunpack.c.h.b16 %v5565
  %v5730 = vunpack.c.l.b16 %v5566
  %v5731 = vunpack.c.h.b16 %v5566
  %v5732 = vunpack.c.l.b16 %v5567
  %v5733 = vunpack.c.h.b16 %v5567
  %v5734 = vunpack.c.l.b16 %v5568
  %v5735 = vunpack.c.h.b16 %v5568
  %v5736 = vunpack.c.l.b16 %v5569
  %v5737 = vunpack.c.h.b16 %v5569
  %v5738 = vunpack.c.l.b16 %v5570
  %v5739 = vunpack.c.h.b16 %v5570
  %v5740 = vunpack.c.l.b16 %v5571
  %v5741 = vunpack.c.h.b16 %v5571
  %v5742 = vunpack.c.l.b16 %v5572
  %v5743 = vunpack.c.h.b16 %v5572
  %v5744 = vunpack.c.l.b16 %v5573
  %v5745 = vunpack.c.h.b16 %v5573
  %v5746 = vunpack.c.l.b16 %v5574
  %v5747 = vunpack.c.h.b16 %v5574
  %v5748 = vunpack.c.l.b16 %v5575
  %v5749 = vunpack.c.h.b16 %v5575
  %v5750 = vunpack.c.l.b16 %v5576
  %v5751 = vunpack.c.h.b16 %v5576
  %v5752 = vunpack.c.l.b16 %v5577
  %v5753 = vunpack.c.h.b16 %v5577
  %v5754 = vunpack.c.l.b16 %v5578
  %v5755 = vunpack.c.h.b16 %v5578
  %v5756 = vunpack.c.l.b16 %v5579
  %v5757 = vunpack.c.h.b16 %v5579
  %v5758 = vunpack.c.l.b16 %v5580
  %v5759 = vunpack.c.h.b16 %v5580
  %v5760 = vunpack.c.l.b16 %v5581
  %v5761 = vunpack.c.h.b16 %v5581
  %v5762 = vunpack.c.l.b16 %v5582
  %v5763 = vunpack.c.h.b16 %v5582
  %v5764 = vunpack.c.l.b16 %v5583
  %v5765 = vunpack.c.h.b16 %v5583
  %v5766 = vunpack.c.l.b16 %v5584
  %v5767 = vunpack.c.h.b16 %v5584
  %v5768 = vunpack.c.l.b16 %v5585
  %v5769 = vunpack.c.h.b16 %v5585
  %v5770 = vunpack.c.l.b16 %v5586
  %v5771 = vunpack.c.h.b16 %v5586
  %v5772 = vunpack.c.l.b16 %v5587
  %v5773 = vunpack.c.h.b16 %v5587
  %v5774 = vunpack.c.l.b16 %v5588
  %v5775 = vunpack.c.h.b16 %v5588
  %v5776 = vunpack.c.l.b16 %v5589
  %v5777 = vunpack.c.h.b16 %v5589
  %v5778 = vunpack.c.l.b16 %v5590
  %v5779 = vunpack.c.h.b16 %v5590
  %v5780 = vunpack.c.l.b16 %v5591
  %v5781 = vunpack.c.h.b16 %v5591
  %v5782 = vunpack.c.l.b16 %v5592
  %v5783 = vunpack.c.h.b16 %v5592
  %v5784 = vunpack.c.l.b16 %v5593
  %v5785 = vunpack.c.h.b16 %v5593
  %v5786 = vunpack.c.l.b16 %v5594
  %v5787 = vunpack.c.h.b16 %v5594
  %v5788 = vunpack.c.l.b16 %v5595
  %v5789 = vunpack.c.h.b16 %v5595
  %v5790 = vunpack.c.l.b16 %v5596
  %v5791 = vunpack.c.h.b16 %v5596
  %v5792 = vunpack.c.l.b16 %v5597
  %v5793 = vunpack.c.h.b16 %v5597
  %v5794 = vunpack.c.l.b16 %v5598
  %v5795 = vunpack.c.h.b16 %v5598
  %v5796 = vunpack.c.l.b16 %v5599
  %v5797 = vunpack.c.h.b16 %v5599
  %v5798 = vunpack.c.l.b16 %v5600
  %v5799 = vunpack.c.h.b16 %v5600
  %v5800 = vunpack.c.l.b16 %v5601
  %v5801 = vunpack.c.h.b16 %v5601
  %v5802 = vunpack.c.l.b16 %v5602
  %v5803 = vunpack.c.h.b16 %v5602
  %v5804 = vunpack.c.l.b16 %v5603
  %v5805 = vunpack.c.h.b16 %v5603
  %v5806 = vunpack.c.l.b16 %v5604
  %v5807 = vunpack.c.h.b16 %v5604
  %v5808 = vunpack.c.l.b16 %v5605
  %v5809 = vunpack.c.h.b16 %v5605
  %v5810 = vunpack.c.l.b16 %v5606
  %v5811 = vunpack.c.h.b16 %v5606
  %v5812 = vunpack.c.l.b16 %v5607
  %v5813 = vunpack.c.h.b16 %v5607
  %v5814 = vunpack.c.l.b16 %v5608
  %v5815 = vunpack.c.h.b16 %v5608
  %v5816 = vunpack.c.l.b16 %v5609
  %v5817 = vunpack.c.h.b16 %v5609
  %v5818 = vunpack.c.l.b16 %v5610
  %v5819 = vunpack.c.h.b16 %v5610
  %v5820 = vunpack.c.l.b16 %v5611
  %v5821 = vunpack.c.h.b16 %v5611
  %v5822 = vunpack.c.l.b16 %v5612
  %v5823 = vunpack.c.h.b16 %v5612
  %v5824 = vunpack.c.l.b16 %v5613
  %v5825 = vunpack.c.h.b16 %v5613
  %v5826 = vunpack.c.l.b16 %v5614
  %v5827 = vunpack.c.h.b16 %v5614
  %v5828 = vunpack.c.l.b16 %v5615
  %v5829 = vunpack.c.h.b16 %v5615
  %v5830 = vunpack.c.l.b16 %v5616
  %v5831 = vunpack.c.h.b16 %v5616
  %v5832 = vunpack.c.l.b16 %v5617
  %v5833 = vunpack.c.h.b16 %v5617
  %v5834 = vpack.c.b16 %v5690, %v5690
  %v5835 = vpack.c.b16 %v5691, %v5691
  %v5836 = vpack.c.b16 %v5692, %v5692
  %v5837 = vpack.c.b16 %v5693, %v5693
  %v5838 = vpack.c.b16 %v5694, %v5694
  %v5839 = vpack.c.b16 %v5695, %v5695
  %v5840 = vpack.c.b16 %v5696, %v5696
  %v5841 = vpack.c.b16 %v5697, %v5697
  %v5842 = vpack.c.b16 %v5698, %v5698
  %v5843 = vpack.c.b16 %v5699, %v5699
  %v5844 = vpack.c.b16 %v5700, %v5700
  %v5845 = vpack.c.b16 %v5701, %v5701
  %v5846 = vpack.c.b16 %v5702, %v5702
  %v5847 = vpack.c.b16 %v5703, %v5703
  %v5848 = vpack.c.b16 %v5704, %v5704
  %v5849 = vpack.c.b16 %v5705, %v5705
  %v5850 = vpack.c.b16 %v5706, %v5706
  %v5851 = vpack.c.b16 %v5707, %v5707
  %v5852 = vpack.c.b16 %v5708, %v5708
  %v5853 = vpack.c.b16 %v5709, %v5709
  %v5854 = vpack.c.b16 %v5710, %v5710
  %v5855 = vpack.c.b16 %v5711, %v5711
  %v5856 = vpack.c.b16 %v5712, %v5712
  %v5857 = vpack.c.b16 %v5713, %v5713
  %v5858 = vpack.c.b16 %v5714, %v5714
  %v5859 = vpack.c.b16 %v5715, %v5715
  %v5860 = vpack.c.b16 %v5716, %v5716
  %v5861 = vpack.c.b16 %v5717, %v5717
  %v5862 = vpack.c.b16 %v5718, %v5718
  %v5863 = vpack.c.b16 %v5719, %v5719
  %v5864 = vpack.c.b16 %v5720, %v5720
  %v5865 = vpack.c.b16 %v5721, %v5721
  %v5866 = vpack.c.b16 %v5722, %v5722
  %v5867 = vpack.c.b16 %v5723, %v5723
  %v5868 = vpack.c.b16 %v5724, %v5724
  %v5869 = vpack.c.b16 %v5725, %v5725
  %v5870 = vpack.c.b16 %v5726, %v5726
  %v5871 = vpack.c.b16 %v5727, %v5727
  %v5872 = vpack.c.b16 %v5728, %v5728
  %v5873 = vpack.c.b16 %v5729, %v5729
  %v5874 = vpack.c.b16 %v5730, %v5730
  %v5875 = vpack.c.b16 %v5731, %v5731
  %v5876 = vpack.c.b16 %v5732, %v5732
  %v5877 = vpack.c.b16 %v5733, %v5733
  %v5878 = vpack.c.b16 %v5734, %v5734
  %v5879 = vpack.c.b16 %v5735, %v5735
  %v5880 = vpack.c.b16 %v5736, %v5736
  %v5881 = vpack.c.b16 %v5737, %v5737
  %v5882 = vpack.c.b16 %v5738, %v5738
  %v5883 = vpack.c.b16 %v5739, %v5739
  %v5884 = vpack.c.b16 %v5740, %v5740
  %v5885 = vpack.c.b16 %v5741, %v5741
  %v5886 = vpack.c.b16 %v5742, %v5742
  %v5887 = vpack.c.b16 %v5743, %v5743
  %v5888 = vpack.c.b16 %v5744, %v5744
  %v5889 = vpack.c.b16 %v5745, %v5745
  %v5890 = vpack.c.b16 %v5746, %v5746
  %v5891 = vpack.c.b16 %v5747, %v5747
  %v5892 = vpack.c.b16 %v5748, %v5748
  %v5893 = vpack.c.b16 %v5749, %v5749
  %v5894 = vpack.c.b16 %v5750, %v5750
  %v5895 = vpack.c.b16 %v5751, %v5751
  %v5896 = vpack.c.b16 %v5752, %v5752
  %v5897 = vpack.c.b16 %v5753, %v5753
  %v5898 = vpack.c.b16 %v5754, %v5754
  %v5899 = vpack.c.b16 %v5755, %v5755
  %v5900 = vpack.c.b16 %v5756, %v5756
  %v5901 = vpack.c.b16 %v5757, %v5757
  %v5902 = vpack.c.b16 %v5758, %v5758
  %v5903 = vpack.c.b16 %v5759, %v5759
  %v5904 = vpack.c.b16 %v5760, %v5760
  %v5905 = vpack.c.b16 %v5761, %v5761
  %v5906 = vpack.c.b16 %v5762, %v5762
  %v5907 = vpack.c.b16 %v5763, %v5763
  %v5908 = vpack.c.b16 %v5764, %v5764
  %v5909 = vpack.c.b16 %v5765, %v5765
  %v5910 = vpack.c.b16 %v5766, %v5766
  %v5911 = vpack.c.b16 %v5767, %v5767
  %v5912 = vpack.c.b16 %v5768, %v5768
  %v5913 = vpack.c.b16 %v5769, %v5769
  %v5914 = vpack.c.b16 %v5770, %v5770
  %v5915 = vpack.c.b16 %v5771, %v5771
  %v5916 = vpack.c.b16 %v5772, %v5772
  %v5917 = vpack.c.b16 %v5773, %v5773
  %v5918 = vpack.c.b16 %v5774, %v5774
  %v5919 = vpack.c.b16 %v5775, %v5775
  %v5920 = vpack.c.b16 %v5776, %v5776
  %v5921 = vpack.c.b16 %v5777, %v5777
  %v5922 = vpack.c.b16 %v5778, %v5778
  %v5923 = vpack.c.b16 %v5779, %v5779
  %v5924 = vpack.c.b16 %v5780, %v5780
  %v5925 = vpack.c.b16 %v5781, %v5781
  %v5926 = vpack.c.b16 %v5782, %v5782
  %v5927 = vpack.c.b16 %v5783, %v5783
  %v5928 = vpack.c.b16 %v5784, %v5784
  %v5929 = vpack.c.b16 %v5785, %v5785
  %v5930 = vpack.c.b16 %v5786, %v5786
  %v5931 = vpack.c.b16 %v5787, %v5787
  %v5932 = vpack.c.b16 %v5788, %v5788
  %v5933 = vpack.c.b16 %v5789, %v5789
  %v5934 = vpack.c.b16 %v5790, %v5790
  %v5935 = vpack.c.b16 %v5791, %v5791
  %v5936 = vpack.c.b16 %v5792, %v5792
  %v5937 = vpack.c.b16 %v5793, %v5793
  %v5938 = vpack.c.b16 %v5794, %v5794
  %v5939 = vpack.c.b16 %v5795, %v5795
  %v5940 = vpack.c.b16 %v5796, %v5796
  %v5941 = vpack.c.b16 %v5797, %v5797
  %v5942 = vpack.c.b16 %v5798, %v5798
  %v5943 = vpack.c.b16 %v5799, %v5799
  %v5944 = vpack.c.b16 %v5800, %v5800
  %v5945 = vpack.c.b16 %v5801, %v5801
  %v5946 = vpack.c.b16 %v5802, %v5802
  %v5947 = vpack.c.b16 %v5803, %v5803
  %v5948 = vpack.c.b16 %v5804, %v5804
  %v5949 = vpack.c.b16 %v5805, %v5805
  %v5950 = vpack.c.b16 %v5806, %v5806
  %v5951 = vpack.c.b16 %v5807, %v5807
  %v5952 = vpack.c.b16 %v5808, %v5808
  %v5953 = vpack.c.b16 %v5809, %v5809
  %v5954 = vpack.c.b16 %v5810, %v5810
  %v5955 = vpack.c.b16 %v5811, %v5811
  %v5956 = vpack.c.b16 %v5812, %v5812
  %v5957 = vpack.c.b16 %v5813, %v5813
  %v5958 = vpack.c.b16 %v5814, %v5814
  %v5959 = vpack.c.b16 %v5815, %v5815
  %v5960 = vpack.c.b16 %v5816, %v5816
  %v5961 = vpack.c.b16 %v5817, %v5817
  %v5962 = vpack.c.b16 %v5818, %v5818
  %v5963 = vpack.c.b16 %v5819, %v5819
  %v5964 = vpack.c.b16 %v5820, %v5820
  %v5965 = vpack.c.b16 %v5821, %v5821
  %v5966 = vpack.c.b16 %v5822, %v5822
  %v5967 = vpack.c.b16 %v5823, %v5823
  %v5968 = vpack.c.b16 %v5824, %v5824
  %v5969 = vpack.c.b16 %v5825, %v5825
  %v5970 = vpack.c.b16 %v5826, %v5826
  %v5971 = vpack.c.b16 %v5827, %v5827
  %v5972 = vpack.c.b16 %v5828, %v5828
  %v5973 = vpack.c.b16 %v5829, %v5829
  %v5974 = vpack.c.b16 %v5830, %v5830
  %v5975 = vpack.c.b16 %v5831, %v5831
  %v5976 = vpack.c.b16 %v5832, %v5832
  %v5977 = vpack.c.b16 %v5833, %v5833
  %6122 = vst [vmem:[%s3] sm:$0xf] %v5834
  %6123 = vst [vmem:[%s3 + $0x4] sm:$0xf] %v5835
  %6124 = vst [vmem:[%s3 + $0x8] sm:$0xf] %v5836
  %6125 = vst [vmem:[%s3 + $0xc] sm:$0xf] %v5837
  %6126 = vst [vmem:[%s3 + $0x10] sm:$0xf] %v5838
  %6127 = vst [vmem:[%s3 + $0x14] sm:$0xf] %v5839
  %6128 = vst [vmem:[%s3 + $0x18] sm:$0xf] %v5840
  %6129 = vst [vmem:[%s3 + $0x1c] sm:$0xf] %v5841
  %6130 = vst [vmem:[%s3 + $0x20] sm:$0xf] %v5842
  %6131 = vst [vmem:[%s3 + $0x24] sm:$0xf] %v5843
  %6132 = vst [vmem:[%s3 + $0x28] sm:$0xf] %v5844
  %6133 = vst [vmem:[%s3 + $0x2c] sm:$0xf] %v5845
  %6134 = vst [vmem:[%s3 + $0x30] sm:$0xf] %v5846
  %6135 = vst [vmem:[%s3 + $0x34] sm:$0xf] %v5847
  %6136 = vst [vmem:[%s3 + $0x38] sm:$0xf] %v5848
  %6137 = vst [vmem:[%s3 + $0x3c] sm:$0xf] %v5849
  %6138 = vst [vmem:[%s3 + $0x40] sm:$0xf] %v5850
  %6139 = vst [vmem:[%s3 + $0x44] sm:$0xf] %v5851
  %6140 = vst [vmem:[%s3 + $0x48] sm:$0xf] %v5852
  %6141 = vst [vmem:[%s3 + $0x4c] sm:$0xf] %v5853
  %6142 = vst [vmem:[%s3 + $0x50] sm:$0xf] %v5854
  %6143 = vst [vmem:[%s3 + $0x54] sm:$0xf] %v5855
  %6144 = vst [vmem:[%s3 + $0x58] sm:$0xf] %v5856
  %6145 = vst [vmem:[%s3 + $0x5c] sm:$0xf] %v5857
  %6146 = vst [vmem:[%s3 + $0x60] sm:$0xf] %v5858
  %6147 = vst [vmem:[%s3 + $0x64] sm:$0xf] %v5859
  %6148 = vst [vmem:[%s3 + $0x68] sm:$0xf] %v5860
  %6149 = vst [vmem:[%s3 + $0x6c] sm:$0xf] %v5861
  %6150 = vst [vmem:[%s3 + $0x70] sm:$0xf] %v5862
  %6151 = vst [vmem:[%s3 + $0x74] sm:$0xf] %v5863
  %6152 = vst [vmem:[%s3 + $0x78] sm:$0xf] %v5864
  %6153 = vst [vmem:[%s3 + $0x7c] sm:$0xf] %v5865
  %6154 = vst [vmem:[%s3 + $0x80] sm:$0xf] %v5866
  %6155 = vst [vmem:[%s3 + $0x84] sm:$0xf] %v5867
  %6156 = vst [vmem:[%s3 + $0x88] sm:$0xf] %v5868
  %6157 = vst [vmem:[%s3 + $0x8c] sm:$0xf] %v5869
  %6158 = vst [vmem:[%s3 + $0x90] sm:$0xf] %v5870
  %6159 = vst [vmem:[%s3 + $0x94] sm:$0xf] %v5871
  %6160 = vst [vmem:[%s3 + $0x98] sm:$0xf] %v5872
  %6161 = vst [vmem:[%s3 + $0x9c] sm:$0xf] %v5873
  %6162 = vst [vmem:[%s3 + $0xa0] sm:$0xf] %v5874
  %6163 = vst [vmem:[%s3 + $0xa4] sm:$0xf] %v5875
  %6164 = vst [vmem:[%s3 + $0xa8] sm:$0xf] %v5876
  %6165 = vst [vmem:[%s3 + $0xac] sm:$0xf] %v5877
  %6166 = vst [vmem:[%s3 + $0xb0] sm:$0xf] %v5878
  %6167 = vst [vmem:[%s3 + $0xb4] sm:$0xf] %v5879
  %6168 = vst [vmem:[%s3 + $0xb8] sm:$0xf] %v5880
  %6169 = vst [vmem:[%s3 + $0xbc] sm:$0xf] %v5881
  %6170 = vst [vmem:[%s3 + $0xc0] sm:$0xf] %v5882
  %6171 = vst [vmem:[%s3 + $0xc4] sm:$0xf] %v5883
  %6172 = vst [vmem:[%s3 + $0xc8] sm:$0xf] %v5884
  %6173 = vst [vmem:[%s3 + $0xcc] sm:$0xf] %v5885
  %6174 = vst [vmem:[%s3 + $0xd0] sm:$0xf] %v5886
  %6175 = vst [vmem:[%s3 + $0xd4] sm:$0xf] %v5887
  %6176 = vst [vmem:[%s3 + $0xd8] sm:$0xf] %v5888
  %6177 = vst [vmem:[%s3 + $0xdc] sm:$0xf] %v5889
  %6178 = vst [vmem:[%s3 + $0xe0] sm:$0xf] %v5890
  %6179 = vst [vmem:[%s3 + $0xe4] sm:$0xf] %v5891
  %6180 = vst [vmem:[%s3 + $0xe8] sm:$0xf] %v5892
  %6181 = vst [vmem:[%s3 + $0xec] sm:$0xf] %v5893
  %6182 = vst [vmem:[%s3 + $0xf0] sm:$0xf] %v5894
  %6183 = vst [vmem:[%s3 + $0xf4] sm:$0xf] %v5895
  %6184 = vst [vmem:[%s3 + $0xf8] sm:$0xf] %v5896
  %6185 = vst [vmem:[%s3 + $0xfc] sm:$0xf] %v5897
  %6186 = vst [vmem:[%s3 + $0x100] sm:$0xf] %v5898
  %6187 = vst [vmem:[%s3 + $0x104] sm:$0xf] %v5899
  %6188 = vst [vmem:[%s3 + $0x108] sm:$0xf] %v5900
  %6189 = vst [vmem:[%s3 + $0x10c] sm:$0xf] %v5901
  %6190 = vst [vmem:[%s3 + $0x110] sm:$0xf] %v5902
  %6191 = vst [vmem:[%s3 + $0x114] sm:$0xf] %v5903
  %6192 = vst [vmem:[%s3 + $0x118] sm:$0xf] %v5904
  %6193 = vst [vmem:[%s3 + $0x11c] sm:$0xf] %v5905
  %6194 = vst [vmem:[%s3 + $0x120] sm:$0xf] %v5906
  %6195 = vst [vmem:[%s3 + $0x124] sm:$0xf] %v5907
  %6196 = vst [vmem:[%s3 + $0x128] sm:$0xf] %v5908
  %6197 = vst [vmem:[%s3 + $0x12c] sm:$0xf] %v5909
  %6198 = vst [vmem:[%s3 + $0x130] sm:$0xf] %v5910
  %6199 = vst [vmem:[%s3 + $0x134] sm:$0xf] %v5911
  %6200 = vst [vmem:[%s3 + $0x138] sm:$0xf] %v5912
  %6201 = vst [vmem:[%s3 + $0x13c] sm:$0xf] %v5913
  %6202 = vst [vmem:[%s3 + $0x140] sm:$0xf] %v5914
  %6203 = vst [vmem:[%s3 + $0x144] sm:$0xf] %v5915
  %6204 = vst [vmem:[%s3 + $0x148] sm:$0xf] %v5916
  %6205 = vst [vmem:[%s3 + $0x14c] sm:$0xf] %v5917
  %6206 = vst [vmem:[%s3 + $0x150] sm:$0xf] %v5918
  %6207 = vst [vmem:[%s3 + $0x154] sm:$0xf] %v5919
  %6208 = vst [vmem:[%s3 + $0x158] sm:$0xf] %v5920
  %6209 = vst [vmem:[%s3 + $0x15c] sm:$0xf] %v5921
  %6210 = vst [vmem:[%s3 + $0x160] sm:$0xf] %v5922
  %6211 = vst [vmem:[%s3 + $0x164] sm:$0xf] %v5923
  %6212 = vst [vmem:[%s3 + $0x168] sm:$0xf] %v5924
  %6213 = vst [vmem:[%s3 + $0x16c] sm:$0xf] %v5925
  %6214 = vst [vmem:[%s3 + $0x170] sm:$0xf] %v5926
  %6215 = vst [vmem:[%s3 + $0x174] sm:$0xf] %v5927
  %6216 = vst [vmem:[%s3 + $0x178] sm:$0xf] %v5928
  %6217 = vst [vmem:[%s3 + $0x17c] sm:$0xf] %v5929
  %6218 = vst [vmem:[%s3 + $0x180] sm:$0xf] %v5930
  %6219 = vst [vmem:[%s3 + $0x184] sm:$0xf] %v5931
  %6220 = vst [vmem:[%s3 + $0x188] sm:$0xf] %v5932
  %6221 = vst [vmem:[%s3 + $0x18c] sm:$0xf] %v5933
  %6222 = vst [vmem:[%s3 + $0x190] sm:$0xf] %v5934
  %6223 = vst [vmem:[%s3 + $0x194] sm:$0xf] %v5935
  %6224 = vst [vmem:[%s3 + $0x198] sm:$0xf] %v5936
  %6225 = vst [vmem:[%s3 + $0x19c] sm:$0xf] %v5937
  %6226 = vst [vmem:[%s3 + $0x1a0] sm:$0xf] %v5938
  %6227 = vst [vmem:[%s3 + $0x1a4] sm:$0xf] %v5939
  %6228 = vst [vmem:[%s3 + $0x1a8] sm:$0xf] %v5940
  %6229 = vst [vmem:[%s3 + $0x1ac] sm:$0xf] %v5941
  %6230 = vst [vmem:[%s3 + $0x1b0] sm:$0xf] %v5942
  %6231 = vst [vmem:[%s3 + $0x1b4] sm:$0xf] %v5943
  %6232 = vst [vmem:[%s3 + $0x1b8] sm:$0xf] %v5944
  %6233 = vst [vmem:[%s3 + $0x1bc] sm:$0xf] %v5945
  %6234 = vst [vmem:[%s3 + $0x1c0] sm:$0xf] %v5946
  %6235 = vst [vmem:[%s3 + $0x1c4] sm:$0xf] %v5947
  %6236 = vst [vmem:[%s3 + $0x1c8] sm:$0xf] %v5948
  %6237 = vst [vmem:[%s3 + $0x1cc] sm:$0xf] %v5949
  %6238 = vst [vmem:[%s3 + $0x1d0] sm:$0xf] %v5950
  %6239 = vst [vmem:[%s3 + $0x1d4] sm:$0xf] %v5951
  %6240 = vst [vmem:[%s3 + $0x1d8] sm:$0xf] %v5952
  %6241 = vst [vmem:[%s3 + $0x1dc] sm:$0xf] %v5953
  %6242 = vst [vmem:[%s3 + $0x1e0] sm:$0xf] %v5954
  %6243 = vst [vmem:[%s3 + $0x1e4] sm:$0xf] %v5955
  %6244 = vst [vmem:[%s3 + $0x1e8] sm:$0xf] %v5956
  %6245 = vst [vmem:[%s3 + $0x1ec] sm:$0xf] %v5957
  %6246 = vst [vmem:[%s3 + $0x1f0] sm:$0xf] %v5958
  %6247 = vst [vmem:[%s3 + $0x1f4] sm:$0xf] %v5959
  %6248 = vst [vmem:[%s3 + $0x1f8] sm:$0xf] %v5960
  %6249 = vst [vmem:[%s3 + $0x1fc] sm:$0xf] %v5961
  %6250 = vst [vmem:[%s3 + $0x200] sm:$0xf] %v5962
  %6251 = vst [vmem:[%s3 + $0x204] sm:$0xf] %v5963
  %6252 = vst [vmem:[%s3 + $0x208] sm:$0xf] %v5964
  %6253 = vst [vmem:[%s3 + $0x20c] sm:$0xf] %v5965
  %6254 = vst [vmem:[%s3 + $0x210] sm:$0xf] %v5966
  %6255 = vst [vmem:[%s3 + $0x214] sm:$0xf] %v5967
  %6256 = vst [vmem:[%s3 + $0x218] sm:$0xf] %v5968
  %6257 = vst [vmem:[%s3 + $0x21c] sm:$0xf] %v5969
  %6258 = vst [vmem:[%s3 + $0x220] sm:$0xf] %v5970
  %6259 = vst [vmem:[%s3 + $0x224] sm:$0xf] %v5971
  %6260 = vst [vmem:[%s3 + $0x228] sm:$0xf] %v5972
  %6261 = vst [vmem:[%s3 + $0x22c] sm:$0xf] %v5973
  %6262 = vst [vmem:[%s3 + $0x230] sm:$0xf] %v5974
  %6263 = vst [vmem:[%s3 + $0x234] sm:$0xf] %v5975
  %6264 = vst [vmem:[%s3 + $0x238] sm:$0xf] %v5976
  %6265 = vst [vmem:[%s3 + $0x23c] sm:$0xf] %v5977
  // Predicated region
  $region14: #{cnn_forward.3} parent=0 // pred_check
    _
  $region15: #{cnn_forward.3} parent=0 // pred_check_branch
    %6267 = sbr.rel (0) target = $region17
  $region16: #{cnn_forward.3} parent=0 // pred_region
    _
  $region17: #{cnn_forward.3} parent=0 // pred_fallthru
    _
  // Predicated region
  $region18: #{cnn_forward.3} parent=0 // pred_check
    _
  $region19: #{cnn_forward.3} parent=0 // pred_check_branch
    %6269 = sbr.rel (0) target = $region21
  $region20: #{cnn_forward.3} parent=0 // pred_region
    _
  $region21: #{cnn_forward.3} parent=0 // pred_fallthru
    _

// kernel: cnn_forward.4
$region0: #{cnn_forward.4}
  #allocation0 [shape = 'u32[]', space=smem, size = 0x4, offset = 0x4, fixed_abs, tag = 'smem constant byte address 0x4 - core index']
  #allocation1 [shape = 'u32[144,128]{1,0:T(1,128)}', space=vmem, size = 0x12000, scoped, tag = 'internal scratch']
  %s0 = inlined_call_operand.vmem [shape: bf16[1152,256], index: 0, kind: input, shape index: {}]
  %s1 = inlined_call_operand.vmem [shape: bf16[256,128], index: 1, kind: input, shape index: {}]
  %s2 = inlined_call_operand.vmem [shape: f32[1,128], index: 2, kind: input, shape index: {}]
  %s3 = inlined_call_operand.vmem [shape: bf16[288,128], index: 3, kind: output, shape index: {}]
  %s4 = sld [smem:[#allocation0]]
  $region22: #{cnn_forward.4} parent=0
    _
  %s6 = ssub.s32 1, %s4
  %s7 = scalar_select 0, %s6, %s4
  // Predicated region
  $region2: #{cnn_forward.4} parent=0 // pred_check
    _
  $region3: #{cnn_forward.4} parent=0 // pred_check_branch
    %9 = sbr.rel (0) target = $region5
  $region4: #{cnn_forward.4} parent=0 // pred_region
    _
  $region5: #{cnn_forward.4} parent=0 // pred_fallthru
    _
  // Predicated region
  $region6: #{cnn_forward.4} parent=0 // pred_check
    _
  $region7: #{cnn_forward.4} parent=0 // pred_check_branch
    %11 = sbr.rel (0) target = $region9
  $region8: #{cnn_forward.4} parent=0 // pred_region
    _
  $region9: #{cnn_forward.4} parent=0 // pred_fallthru
    _
  // Predicated region
  $region10: #{cnn_forward.4} parent=0 // pred_check
    _
  $region11: #{cnn_forward.4} parent=0 // pred_check_branch
    %13 = sbr.rel (0) target = $region13
  $region12: #{cnn_forward.4} parent=0 // pred_region
    _
  $region13: #{cnn_forward.4} parent=0 // pred_fallthru
    _
  %v15 = vld [vmem:[%s1] sm:$0xf]
  %v16 = vld [vmem:[%s1 + $0x4] sm:$0xf]
  %v17 = vld [vmem:[%s1 + $0x8] sm:$0xf]
  %v18 = vld [vmem:[%s1 + $0xc] sm:$0xf]
  %v19 = vld [vmem:[%s1 + $0x10] sm:$0xf]
  %v20 = vld [vmem:[%s1 + $0x14] sm:$0xf]
  %v21 = vld [vmem:[%s1 + $0x18] sm:$0xf]
  %v22 = vld [vmem:[%s1 + $0x1c] sm:$0xf]
  %v23 = vld [vmem:[%s1 + $0x20] sm:$0xf]
  %v24 = vld [vmem:[%s1 + $0x24] sm:$0xf]
  %v25 = vld [vmem:[%s1 + $0x28] sm:$0xf]
  %v26 = vld [vmem:[%s1 + $0x2c] sm:$0xf]
  %v27 = vld [vmem:[%s1 + $0x30] sm:$0xf]
  %v28 = vld [vmem:[%s1 + $0x34] sm:$0xf]
  %v29 = vld [vmem:[%s1 + $0x38] sm:$0xf]
  %v30 = vld [vmem:[%s1 + $0x3c] sm:$0xf]
  %v31 = vld [vmem:[%s1 + $0x40] sm:$0xf]
  %v32 = vld [vmem:[%s1 + $0x44] sm:$0xf]
  %v33 = vld [vmem:[%s1 + $0x48] sm:$0xf]
  %v34 = vld [vmem:[%s1 + $0x4c] sm:$0xf]
  %v35 = vld [vmem:[%s1 + $0x50] sm:$0xf]
  %v36 = vld [vmem:[%s1 + $0x54] sm:$0xf]
  %v37 = vld [vmem:[%s1 + $0x58] sm:$0xf]
  %v38 = vld [vmem:[%s1 + $0x5c] sm:$0xf]
  %v39 = vld [vmem:[%s1 + $0x60] sm:$0xf]
  %v40 = vld [vmem:[%s1 + $0x64] sm:$0xf]
  %v41 = vld [vmem:[%s1 + $0x68] sm:$0xf]
  %v42 = vld [vmem:[%s1 + $0x6c] sm:$0xf]
  %v43 = vld [vmem:[%s1 + $0x70] sm:$0xf]
  %v44 = vld [vmem:[%s1 + $0x74] sm:$0xf]
  %v45 = vld [vmem:[%s1 + $0x78] sm:$0xf]
  %v46 = vld [vmem:[%s1 + $0x7c] sm:$0xf]
  %v47 = vld [vmem:[%s0] sm:$0xff]
  %v48 = vld [vmem:[%s0 + $0x8] sm:$0xff]
  %v49 = vld [vmem:[%s0 + $0x10] sm:$0xff]
  %v50 = vld [vmem:[%s0 + $0x18] sm:$0xff]
  %v51 = vld [vmem:[%s0 + $0x20] sm:$0xff]
  %v52 = vld [vmem:[%s0 + $0x28] sm:$0xff]
  %v53 = vld [vmem:[%s0 + $0x30] sm:$0xff]
  %v54 = vld [vmem:[%s0 + $0x38] sm:$0xff]
  %v55 = vld [vmem:[%s0 + $0x40] sm:$0xff]
  %v56 = vld [vmem:[%s0 + $0x48] sm:$0xff]
  %v57 = vld [vmem:[%s0 + $0x50] sm:$0xff]
  %v58 = vld [vmem:[%s0 + $0x58] sm:$0xff]
  %v59 = vld [vmem:[%s0 + $0x60] sm:$0xff]
  %v60 = vld [vmem:[%s0 + $0x68] sm:$0xff]
  %v61 = vld [vmem:[%s0 + $0x70] sm:$0xff]
  %v62 = vld [vmem:[%s0 + $0x78] sm:$0xff]
  %v63 = vld [vmem:[%s0 + $0x80] sm:$0xff]
  %v64 = vld [vmem:[%s0 + $0x88] sm:$0xff]
  %v65 = vld [vmem:[%s0 + $0x90] sm:$0xff]
  %v66 = vld [vmem:[%s0 + $0x98] sm:$0xff]
  %v67 = vld [vmem:[%s0 + $0xa0] sm:$0xff]
  %v68 = vld [vmem:[%s0 + $0xa8] sm:$0xff]
  %v69 = vld [vmem:[%s0 + $0xb0] sm:$0xff]
  %v70 = vld [vmem:[%s0 + $0xb8] sm:$0xff]
  %v71 = vld [vmem:[%s0 + $0xc0] sm:$0xff]
  %v72 = vld [vmem:[%s0 + $0xc8] sm:$0xff]
  %v73 = vld [vmem:[%s0 + $0xd0] sm:$0xff]
  %v74 = vld [vmem:[%s0 + $0xd8] sm:$0xff]
  %v75 = vld [vmem:[%s0 + $0xe0] sm:$0xff]
  %v76 = vld [vmem:[%s0 + $0xe8] sm:$0xff]
  %v77 = vld [vmem:[%s0 + $0xf0] sm:$0xff]
  %v78 = vld [vmem:[%s0 + $0xf8] sm:$0xff]
  %v79 = vld [vmem:[%s0 + $0x100] sm:$0xff]
  %v80 = vld [vmem:[%s0 + $0x108] sm:$0xff]
  %v81 = vld [vmem:[%s0 + $0x110] sm:$0xff]
  %v82 = vld [vmem:[%s0 + $0x118] sm:$0xff]
  %v119 = vunpack.c.l.b16 %v47
  %v120 = vunpack.c.h.b16 %v47
  %v121 = vunpack.c.l.b16 %v48
  %v122 = vunpack.c.h.b16 %v48
  %v123 = vunpack.c.l.b16 %v49
  %v124 = vunpack.c.h.b16 %v49
  %v125 = vunpack.c.l.b16 %v50
  %v126 = vunpack.c.h.b16 %v50
  %v127 = vunpack.c.l.b16 %v51
  %v128 = vunpack.c.h.b16 %v51
  %v129 = vunpack.c.l.b16 %v52
  %v130 = vunpack.c.h.b16 %v52
  %v131 = vunpack.c.l.b16 %v53
  %v132 = vunpack.c.h.b16 %v53
  %v133 = vunpack.c.l.b16 %v54
  %v134 = vunpack.c.h.b16 %v54
  %v135 = vunpack.c.l.b16 %v55
  %v136 = vunpack.c.h.b16 %v55
  %v137 = vunpack.c.l.b16 %v56
  %v138 = vunpack.c.h.b16 %v56
  %v139 = vunpack.c.l.b16 %v57
  %v140 = vunpack.c.h.b16 %v57
  %v141 = vunpack.c.l.b16 %v58
  %v142 = vunpack.c.h.b16 %v58
  %v143 = vunpack.c.l.b16 %v59
  %v144 = vunpack.c.h.b16 %v59
  %v145 = vunpack.c.l.b16 %v60
  %v146 = vunpack.c.h.b16 %v60
  %v147 = vunpack.c.l.b16 %v61
  %v148 = vunpack.c.h.b16 %v61
  %v149 = vunpack.c.l.b16 %v62
  %v150 = vunpack.c.h.b16 %v62
  %v151 = vunpack.c.l.b16 %v63
  %v152 = vunpack.c.h.b16 %v63
  %v153 = vunpack.c.l.b16 %v64
  %v154 = vunpack.c.h.b16 %v64
  %v155 = vunpack.c.l.b16 %v65
  %v156 = vunpack.c.h.b16 %v65
  %v157 = vunpack.c.l.b16 %v66
  %v158 = vunpack.c.h.b16 %v66
  %v159 = vunpack.c.l.b16 %v67
  %v160 = vunpack.c.h.b16 %v67
  %v161 = vunpack.c.l.b16 %v68
  %v162 = vunpack.c.h.b16 %v68
  %v163 = vunpack.c.l.b16 %v69
  %v164 = vunpack.c.h.b16 %v69
  %v165 = vunpack.c.l.b16 %v70
  %v166 = vunpack.c.h.b16 %v70
  %v167 = vunpack.c.l.b16 %v71
  %v168 = vunpack.c.h.b16 %v71
  %v169 = vunpack.c.l.b16 %v72
  %v170 = vunpack.c.h.b16 %v72
  %v171 = vunpack.c.l.b16 %v73
  %v172 = vunpack.c.h.b16 %v73
  %v173 = vunpack.c.l.b16 %v74
  %v174 = vunpack.c.h.b16 %v74
  %v175 = vunpack.c.l.b16 %v75
  %v176 = vunpack.c.h.b16 %v75
  %v177 = vunpack.c.l.b16 %v76
  %v178 = vunpack.c.h.b16 %v76
  %v179 = vunpack.c.l.b16 %v77
  %v180 = vunpack.c.h.b16 %v77
  %v181 = vunpack.c.l.b16 %v78
  %v182 = vunpack.c.h.b16 %v78
  %v183 = vunpack.c.l.b16 %v79
  %v184 = vunpack.c.h.b16 %v79
  %v185 = vunpack.c.l.b16 %v80
  %v186 = vunpack.c.h.b16 %v80
  %v187 = vunpack.c.l.b16 %v81
  %v188 = vunpack.c.h.b16 %v81
  %v189 = vunpack.c.l.b16 %v82
  %v190 = vunpack.c.h.b16 %v82
  %v191 = vpack.c.b16 %v121, %v119
  %v192 = vpack.c.b16 %v122, %v120
  %v193 = vpack.c.b16 %v125, %v123
  %v194 = vpack.c.b16 %v126, %v124
  %v195 = vpack.c.b16 %v129, %v127
  %v196 = vpack.c.b16 %v130, %v128
  %v197 = vpack.c.b16 %v133, %v131
  %v198 = vpack.c.b16 %v134, %v132
  %v199 = vpack.c.b16 %v137, %v135
  %v200 = vpack.c.b16 %v138, %v136
  %v201 = vpack.c.b16 %v141, %v139
  %v202 = vpack.c.b16 %v142, %v140
  %v203 = vpack.c.b16 %v145, %v143
  %v204 = vpack.c.b16 %v146, %v144
  %v205 = vpack.c.b16 %v149, %v147
  %v206 = vpack.c.b16 %v150, %v148
  %v207 = vpack.c.b16 %v153, %v151
  %v208 = vpack.c.b16 %v154, %v152
  %v209 = vpack.c.b16 %v157, %v155
  %v210 = vpack.c.b16 %v158, %v156
  %v211 = vpack.c.b16 %v161, %v159
  %v212 = vpack.c.b16 %v162, %v160
  %v213 = vpack.c.b16 %v165, %v163
  %v214 = vpack.c.b16 %v166, %v164
  %v215 = vpack.c.b16 %v169, %v167
  %v216 = vpack.c.b16 %v170, %v168
  %v217 = vpack.c.b16 %v173, %v171
  %v218 = vpack.c.b16 %v174, %v172
  %v219 = vpack.c.b16 %v177, %v175
  %v220 = vpack.c.b16 %v178, %v176
  %v221 = vpack.c.b16 %v181, %v179
  %v222 = vpack.c.b16 %v182, %v180
  %v223 = vpack.c.b16 %v185, %v183
  %v224 = vpack.c.b16 %v186, %v184
  %v225 = vpack.c.b16 %v189, %v187
  %v226 = vpack.c.b16 %v190, %v188
  %v295 = vunpack.c.l.b16 %v15
  %v296 = vunpack.c.l.b16 %v16
  %v297 = vunpack.c.l.b16 %v17
  %v298 = vunpack.c.l.b16 %v18
  %v299 = vunpack.c.l.b16 %v19
  %v300 = vunpack.c.l.b16 %v20
  %v301 = vunpack.c.l.b16 %v21
  %v302 = vunpack.c.l.b16 %v22
  %v303 = vunpack.c.l.b16 %v23
  %v304 = vunpack.c.l.b16 %v24
  %v305 = vunpack.c.l.b16 %v25
  %v306 = vunpack.c.l.b16 %v26
  %v307 = vunpack.c.l.b16 %v27
  %v308 = vunpack.c.l.b16 %v28
  %v309 = vunpack.c.l.b16 %v29
  %v310 = vunpack.c.l.b16 %v30
  %v311 = vunpack.c.l.b16 %v31
  %v312 = vunpack.c.l.b16 %v32
  %v313 = vunpack.c.l.b16 %v33
  %v314 = vunpack.c.l.b16 %v34
  %v315 = vunpack.c.l.b16 %v35
  %v316 = vunpack.c.l.b16 %v36
  %v317 = vunpack.c.l.b16 %v37
  %v318 = vunpack.c.l.b16 %v38
  %v319 = vunpack.c.l.b16 %v39
  %v320 = vunpack.c.l.b16 %v40
  %v321 = vunpack.c.l.b16 %v41
  %v322 = vunpack.c.l.b16 %v42
  %v323 = vunpack.c.l.b16 %v43
  %v324 = vunpack.c.l.b16 %v44
  %v325 = vunpack.c.l.b16 %v45
  %v326 = vunpack.c.l.b16 %v46
  %v327 = vpack.c.b16 %v296, %v295
  %v328 = vpack.c.b16 %v298, %v297
  %v329 = vpack.c.b16 %v300, %v299
  %v330 = vpack.c.b16 %v302, %v301
  %v331 = vpack.c.b16 %v304, %v303
  %v332 = vpack.c.b16 %v306, %v305
  %v333 = vpack.c.b16 %v308, %v307
  %v334 = vpack.c.b16 %v310, %v309
  %v335 = vpack.c.b16 %v312, %v311
  %v336 = vpack.c.b16 %v314, %v313
  %v337 = vpack.c.b16 %v316, %v315
  %v338 = vpack.c.b16 %v318, %v317
  %v339 = vpack.c.b16 %v320, %v319
  %v340 = vpack.c.b16 %v322, %v321
  %v341 = vpack.c.b16 %v324, %v323
  %v342 = vpack.c.b16 %v326, %v325
  %359 = vmatprep.subr.bf16.mxu0 0
  %360 = vmatpush1.bf16.msra.mxu0 %v327
  %361 = vmatprep.subr.bf16.mxu0 0
  %362 = vmatpush1.bf16.msra.mxu0 %v328
  %363 = vmatprep.subr.bf16.mxu0 0
  %364 = vmatpush1.bf16.msra.mxu0 %v329
  %365 = vmatprep.subr.bf16.mxu0 0
  %366 = vmatpush1.bf16.msra.mxu0 %v330
  %367 = vmatprep.subr.bf16.mxu0 0
  %368 = vmatpush1.bf16.msra.mxu0 %v331
  %369 = vmatprep.subr.bf16.mxu0 0
  %370 = vmatpush1.bf16.msra.mxu0 %v332
  %371 = vmatprep.subr.bf16.mxu0 0
  %372 = vmatpush1.bf16.msra.mxu0 %v333
  %373 = vmatprep.subr.bf16.mxu0 0
  %374 = vmatpush1.bf16.msra.mxu0 %v334
  %375 = vmatprep.subr.bf16.mxu0 0
  %376 = vmatpush1.bf16.msra.mxu0 %v335
  %377 = vmatprep.subr.bf16.mxu0 0
  %378 = vmatpush1.bf16.msra.mxu0 %v336
  %379 = vmatprep.subr.bf16.mxu0 0
  %380 = vmatpush1.bf16.msra.mxu0 %v337
  %381 = vmatprep.subr.bf16.mxu0 0
  %382 = vmatpush1.bf16.msra.mxu0 %v338
  %383 = vmatprep.subr.bf16.mxu0 0
  %384 = vmatpush1.bf16.msra.mxu0 %v339
  %385 = vmatprep.subr.bf16.mxu0 0
  %386 = vmatpush1.bf16.msra.mxu0 %v340
  %387 = vmatprep.subr.bf16.mxu0 0
  %388 = vmatpush1.bf16.msra.mxu0 %v341
  %389 = vmatprep.subr.bf16.mxu0 0
  %390 = vmatpush1.bf16.msra.mxu0 %v342
  %391 = vmatprep.mubr.bf16.mxu0 %v192
  %392 = vmatmul.mubr.bf16.gmra.mrb[0].mxu0 %v191
  %v393 = vpop.f32.mrb[0].mxu0
  %v394 = vadd.f32 0.0, %v393
  %v395 = vpop.f32.mrb[0].mxu0
  %v396 = vpop.f32.mrb[0].mxu0
  %v397 = vadd.f32 0.0, %v396
  %v398 = vpop.f32.mrb[0].mxu0
  %399 = vmatprep.mubr.bf16.mxu0 %v194
  %400 = vmatmul.mubr.bf16.gmra.mrb[0].mxu0 %v193
  %v401 = vpop.f32.mrb[0].mxu0
  %v402 = vadd.f32 0.0, %v401
  %v403 = vpop.f32.mrb[0].mxu0
  %v404 = vpop.f32.mrb[0].mxu0
  %v405 = vadd.f32 0.0, %v404
  %v406 = vpop.f32.mrb[0].mxu0
  %407 = vmatprep.mubr.bf16.mxu0 %v196
  %408 = vmatmul.mubr.bf16.gmra.mrb[0].mxu0 %v195
  %v409 = vpop.f32.mrb[0].mxu0
  %v410 = vadd.f32 0.0, %v409
  %v411 = vpop.f32.mrb[0].mxu0
  %v412 = vpop.f32.mrb[0].mxu0
  %v413 = vadd.f32 0.0, %v412
  %v414 = vpop.f32.mrb[0].mxu0
  %415 = vmatprep.mubr.bf16.mxu0 %v198
  %416 = vmatmul.mubr.bf16.gmra.mrb[0].mxu0 %v197
  %v417 = vpop.f32.mrb[0].mxu0
  %v418 = vadd.f32 0.0, %v417
  %v419 = vpop.f32.mrb[0].mxu0
  %v420 = vpop.f32.mrb[0].mxu0
  %v421 = vadd.f32 0.0, %v420
  %v422 = vpop.f32.mrb[0].mxu0
  %423 = vmatprep.mubr.bf16.mxu0 %v200
  %424 = vmatmul.mubr.bf16.gmra.mrb[0].mxu0 %v199
  %v425 = vpop.f32.mrb[0].mxu0
  %v426 = vadd.f32 0.0, %v425
  %v427 = vpop.f32.mrb[0].mxu0
  %v428 = vpop.f32.mrb[0].mxu0
  %v429 = vadd.f32 0.0, %v428
  %v430 = vpop.f32.mrb[0].mxu0
  %431 = vmatprep.mubr.bf16.mxu0 %v202
  %432 = vmatmul.mubr.bf16.gmra.mrb[0].mxu0 %v201
  %v433 = vpop.f32.mrb[0].mxu0
  %v434 = vadd.f32 0.0, %v433
  %v435 = vpop.f32.mrb[0].mxu0
  %v436 = vpop.f32.mrb[0].mxu0
  %v437 = vadd.f32 0.0, %v436
  %v438 = vpop.f32.mrb[0].mxu0
  %439 = vmatprep.mubr.bf16.mxu0 %v204
  %440 = vmatmul.mubr.bf16.gmra.mrb[0].mxu0 %v203
  %v441 = vpop.f32.mrb[0].mxu0
  %v442 = vadd.f32 0.0, %v441
  %v443 = vpop.f32.mrb[0].mxu0
  %v444 = vpop.f32.mrb[0].mxu0
  %v445 = vadd.f32 0.0, %v444
  %v446 = vpop.f32.mrb[0].mxu0
  %447 = vmatprep.mubr.bf16.mxu0 %v206
  %448 = vmatmul.mubr.bf16.gmra.mrb[0].mxu0 %v205
  %v449 = vpop.f32.mrb[0].mxu0
  %v450 = vadd.f32 0.0, %v449
  %v451 = vpop.f32.mrb[0].mxu0
  %v452 = vpop.f32.mrb[0].mxu0
  %v453 = vadd.f32 0.0, %v452
  %v454 = vpop.f32.mrb[0].mxu0
  %455 = vmatprep.mubr.bf16.mxu0 %v208
  %456 = vmatmul.mubr.bf16.gmra.mrb[0].mxu0 %v207
  %v457 = vpop.f32.mrb[0].mxu0
  %v458 = vadd.f32 0.0, %v457
  %v459 = vpop.f32.mrb[0].mxu0
  %v460 = vpop.f32.mrb[0].mxu0
  %v461 = vadd.f32 0.0, %v460
  %v462 = vpop.f32.mrb[0].mxu0
  %463 = vmatprep.mubr.bf16.mxu0 %v210
  %464 = vmatmul.mubr.bf16.gmra.mrb[0].mxu0 %v209
  %v465 = vpop.f32.mrb[0].mxu0
  %v466 = vadd.f32 0.0, %v465
  %v467 = vpop.f32.mrb[0].mxu0
  %v468 = vpop.f32.mrb[0].mxu0
  %v469 = vadd.f32 0.0, %v468
  %v470 = vpop.f32.mrb[0].mxu0
  %471 = vmatprep.mubr.bf16.mxu0 %v212
  %472 = vmatmul.mubr.bf16.gmra.mrb[0].mxu0 %v211
  %v473 = vpop.f32.mrb[0].mxu0
  %v474 = vadd.f32 0.0, %v473
  %v475 = vpop.f32.mrb[0].mxu0
  %v476 = vpop.f32.mrb[0].mxu0
  %v477 = vadd.f32 0.0, %v476
  %v478 = vpop.f32.mrb[0].mxu0
  %479 = vmatprep.mubr.bf16.mxu0 %v214
  %480 = vmatmul.mubr.bf16.gmra.mrb[0].mxu0 %v213
  %v481 = vpop.f32.mrb[0].mxu0
  %v482 = vadd.f32 0.0, %v481
  %v483 = vpop.f32.mrb[0].mxu0
  %v484 = vpop.f32.mrb[0].mxu0
  %v485 = vadd.f32 0.0, %v484
  %v486 = vpop.f32.mrb[0].mxu0
  %487 = vmatprep.mubr.bf16.mxu0 %v216
  %488 = vmatmul.mubr.bf16.gmra.mrb[0].mxu0 %v215
  %v489 = vpop.f32.mrb[0].mxu0
  %v490 = vadd.f32 0.0, %v489
  %v491 = vpop.f32.mrb[0].mxu0
  %v492 = vpop.f32.mrb[0].mxu0
  %v493 = vadd.f32 0.0, %v492
  %v494 = vpop.f32.mrb[0].mxu0
  %495 = vmatprep.mubr.bf16.mxu0 %v218
  %496 = vmatmul.mubr.bf16.gmra.mrb[0].mxu0 %v217
  %v497 = vpop.f32.mrb[0].mxu0
  %v498 = vadd.f32 0.0, %v497
  %v499 = vpop.f32.mrb[0].mxu0
  %v500 = vpop.f32.mrb[0].mxu0
  %v501 = vadd.f32 0.0, %v500
  %v502 = vpop.f32.mrb[0].mxu0
  %503 = vmatprep.mubr.bf16.mxu0 %v220
  %504 = vmatmul.mubr.bf16.gmra.mrb[0].mxu0 %v219
  %v505 = vpop.f32.mrb[0].mxu0
  %v506 = vadd.f32 0.0, %v505
  %v507 = vpop.f32.mrb[0].mxu0
  %v508 = vpop.f32.mrb[0].mxu0
  %v509 = vadd.f32 0.0, %v508
  %v510 = vpop.f32.mrb[0].mxu0
  %511 = vmatprep.mubr.bf16.mxu0 %v222
  %512 = vmatmul.mubr.bf16.gmra.mrb[0].mxu0 %v221
  %v513 = vpop.f32.mrb[0].mxu0
  %v514 = vadd.f32 0.0, %v513
  %v515 = vpop.f32.mrb[0].mxu0
  %v516 = vpop.f32.mrb[0].mxu0
  %v517 = vadd.f32 0.0, %v516
  %v518 = vpop.f32.mrb[0].mxu0
  %519 = vmatprep.mubr.bf16.mxu0 %v224
  %520 = vmatmul.mubr.bf16.gmra.mrb[0].mxu0 %v223
  %v521 = vpop.f32.mrb[0].mxu0
  %v522 = vadd.f32 0.0, %v521
  %v523 = vpop.f32.mrb[0].mxu0
  %v524 = vpop.f32.mrb[0].mxu0
  %v525 = vadd.f32 0.0, %v524
  %v526 = vpop.f32.mrb[0].mxu0
  %527 = vmatprep.mubr.bf16.mxu0 %v226
  %528 = vmatmul.mubr.bf16.gmra.mrb[0].mxu0 %v225
  %v529 = vpop.f32.mrb[0].mxu0
  %v530 = vadd.f32 0.0, %v529
  %v531 = vpop.f32.mrb[0].mxu0
  %v532 = vpop.f32.mrb[0].mxu0
  %v533 = vadd.f32 0.0, %v532
  %v534 = vpop.f32.mrb[0].mxu0
  %535 = vdwg.mxu0
  %v536 = vld [vmem:[%s0 + $0x120] sm:$0xff]
  %v537 = vld [vmem:[%s0 + $0x128] sm:$0xff]
  %v538 = vld [vmem:[%s0 + $0x130] sm:$0xff]
  %v539 = vld [vmem:[%s0 + $0x138] sm:$0xff]
  %v540 = vld [vmem:[%s0 + $0x140] sm:$0xff]
  %v541 = vld [vmem:[%s0 + $0x148] sm:$0xff]
  %v542 = vld [vmem:[%s0 + $0x150] sm:$0xff]
  %v543 = vld [vmem:[%s0 + $0x158] sm:$0xff]
  %v544 = vld [vmem:[%s0 + $0x160] sm:$0xff]
  %v545 = vld [vmem:[%s0 + $0x168] sm:$0xff]
  %v546 = vld [vmem:[%s0 + $0x170] sm:$0xff]
  %v547 = vld [vmem:[%s0 + $0x178] sm:$0xff]
  %v548 = vld [vmem:[%s0 + $0x180] sm:$0xff]
  %v549 = vld [vmem:[%s0 + $0x188] sm:$0xff]
  %v550 = vld [vmem:[%s0 + $0x190] sm:$0xff]
  %v551 = vld [vmem:[%s0 + $0x198] sm:$0xff]
  %v552 = vld [vmem:[%s0 + $0x1a0] sm:$0xff]
  %v553 = vld [vmem:[%s0 + $0x1a8] sm:$0xff]
  %v554 = vld [vmem:[%s0 + $0x1b0] sm:$0xff]
  %v555 = vld [vmem:[%s0 + $0x1b8] sm:$0xff]
  %v556 = vld [vmem:[%s0 + $0x1c0] sm:$0xff]
  %v557 = vld [vmem:[%s0 + $0x1c8] sm:$0xff]
  %v558 = vld [vmem:[%s0 + $0x1d0] sm:$0xff]
  %v559 = vld [vmem:[%s0 + $0x1d8] sm:$0xff]
  %v560 = vld [vmem:[%s0 + $0x1e0] sm:$0xff]
  %v561 = vld [vmem:[%s0 + $0x1e8] sm:$0xff]
  %v562 = vld [vmem:[%s0 + $0x1f0] sm:$0xff]
  %v563 = vld [vmem:[%s0 + $0x1f8] sm:$0xff]
  %v564 = vld [vmem:[%s0 + $0x200] sm:$0xff]
  %v565 = vld [vmem:[%s0 + $0x208] sm:$0xff]
  %v566 = vld [vmem:[%s0 + $0x210] sm:$0xff]
  %v567 = vld [vmem:[%s0 + $0x218] sm:$0xff]
  %v568 = vld [vmem:[%s0 + $0x220] sm:$0xff]
  %v569 = vld [vmem:[%s0 + $0x228] sm:$0xff]
  %v570 = vld [vmem:[%s0 + $0x230] sm:$0xff]
  %v571 = vld [vmem:[%s0 + $0x238] sm:$0xff]
  %v608 = vunpack.c.l.b16 %v536
  %v609 = vunpack.c.h.b16 %v536
  %v610 = vunpack.c.l.b16 %v537
  %v611 = vunpack.c.h.b16 %v537
  %v612 = vunpack.c.l.b16 %v538
  %v613 = vunpack.c.h.b16 %v538
  %v614 = vunpack.c.l.b16 %v539
  %v615 = vunpack.c.h.b16 %v539
  %v616 = vunpack.c.l.b16 %v540
  %v617 = vunpack.c.h.b16 %v540
  %v618 = vunpack.c.l.b16 %v541
  %v619 = vunpack.c.h.b16 %v541
  %v620 = vunpack.c.l.b16 %v542
  %v621 = vunpack.c.h.b16 %v542
  %v622 = vunpack.c.l.b16 %v543
  %v623 = vunpack.c.h.b16 %v543
  %v624 = vunpack.c.l.b16 %v544
  %v625 = vunpack.c.h.b16 %v544
  %v626 = vunpack.c.l.b16 %v545
  %v627 = vunpack.c.h.b16 %v545
  %v628 = vunpack.c.l.b16 %v546
  %v629 = vunpack.c.h.b16 %v546
  %v630 = vunpack.c.l.b16 %v547
  %v631 = vunpack.c.h.b16 %v547
  %v632 = vunpack.c.l.b16 %v548
  %v633 = vunpack.c.h.b16 %v548
  %v634 = vunpack.c.l.b16 %v549
  %v635 = vunpack.c.h.b16 %v549
  %v636 = vunpack.c.l.b16 %v550
  %v637 = vunpack.c.h.b16 %v550
  %v638 = vunpack.c.l.b16 %v551
  %v639 = vunpack.c.h.b16 %v551
  %v640 = vunpack.c.l.b16 %v552
  %v641 = vunpack.c.h.b16 %v552
  %v642 = vunpack.c.l.b16 %v553
  %v643 = vunpack.c.h.b16 %v553
  %v644 = vunpack.c.l.b16 %v554
  %v645 = vunpack.c.h.b16 %v554
  %v646 = vunpack.c.l.b16 %v555
  %v647 = vunpack.c.h.b16 %v555
  %v648 = vunpack.c.l.b16 %v556
  %v649 = vunpack.c.h.b16 %v556
  %v650 = vunpack.c.l.b16 %v557
  %v651 = vunpack.c.h.b16 %v557
  %v652 = vunpack.c.l.b16 %v558
  %v653 = vunpack.c.h.b16 %v558
  %v654 = vunpack.c.l.b16 %v559
  %v655 = vunpack.c.h.b16 %v559
  %v656 = vunpack.c.l.b16 %v560
  %v657 = vunpack.c.h.b16 %v560
  %v658 = vunpack.c.l.b16 %v561
  %v659 = vunpack.c.h.b16 %v561
  %v660 = vunpack.c.l.b16 %v562
  %v661 = vunpack.c.h.b16 %v562
  %v662 = vunpack.c.l.b16 %v563
  %v663 = vunpack.c.h.b16 %v563
  %v664 = vunpack.c.l.b16 %v564
  %v665 = vunpack.c.h.b16 %v564
  %v666 = vunpack.c.l.b16 %v565
  %v667 = vunpack.c.h.b16 %v565
  %v668 = vunpack.c.l.b16 %v566
  %v669 = vunpack.c.h.b16 %v566
  %v670 = vunpack.c.l.b16 %v567
  %v671 = vunpack.c.h.b16 %v567
  %v672 = vunpack.c.l.b16 %v568
  %v673 = vunpack.c.h.b16 %v568
  %v674 = vunpack.c.l.b16 %v569
  %v675 = vunpack.c.h.b16 %v569
  %v676 = vunpack.c.l.b16 %v570
  %v677 = vunpack.c.h.b16 %v570
  %v678 = vunpack.c.l.b16 %v571
  %v679 = vunpack.c.h.b16 %v571
  %v680 = vpack.c.b16 %v610, %v608
  %v681 = vpack.c.b16 %v611, %v609
  %v682 = vpack.c.b16 %v614, %v612
  %v683 = vpack.c.b16 %v615, %v613
  %v684 = vpack.c.b16 %v618, %v616
  %v685 = vpack.c.b16 %v619, %v617
  %v686 = vpack.c.b16 %v622, %v620
  %v687 = vpack.c.b16 %v623, %v621
  %v688 = vpack.c.b16 %v626, %v624
  %v689 = vpack.c.b16 %v627, %v625
  %v690 = vpack.c.b16 %v630, %v628
  %v691 = vpack.c.b16 %v631, %v629
  %v692 = vpack.c.b16 %v634, %v632
  %v693 = vpack.c.b16 %v635, %v633
  %v694 = vpack.c.b16 %v638, %v636
  %v695 = vpack.c.b16 %v639, %v637
  %v696 = vpack.c.b16 %v642, %v640
  %v697 = vpack.c.b16 %v643, %v641
  %v698 = vpack.c.b16 %v646, %v644
  %v699 = vpack.c.b16 %v647, %v645
  %v700 = vpack.c.b16 %v650, %v648
  %v701 = vpack.c.b16 %v651, %v649
  %v702 = vpack.c.b16 %v654, %v652
  %v703 = vpack.c.b16 %v655, %v653
  %v704 = vpack.c.b16 %v658, %v656
  %v705 = vpack.c.b16 %v659, %v657
  %v706 = vpack.c.b16 %v662, %v660
  %v707 = vpack.c.b16 %v663, %v661
  %v708 = vpack.c.b16 %v666, %v664
  %v709 = vpack.c.b16 %v667, %v665
  %v710 = vpack.c.b16 %v670, %v668
  %v711 = vpack.c.b16 %v671, %v669
  %v712 = vpack.c.b16 %v674, %v672
  %v713 = vpack.c.b16 %v675, %v673
  %v714 = vpack.c.b16 %v678, %v676
  %v715 = vpack.c.b16 %v679, %v677
  %752 = vmatprep.subr.bf16.mxu0 0
  %753 = vmatpush1.bf16.msra.mxu0 %v327
  %754 = vmatprep.subr.bf16.mxu0 0
  %755 = vmatpush1.bf16.msra.mxu0 %v328
  %756 = vmatprep.subr.bf16.mxu0 0
  %757 = vmatpush1.bf16.msra.mxu0 %v329
  %758 = vmatprep.subr.bf16.mxu0 0
  %759 = vmatpush1.bf16.msra.mxu0 %v330
  %760 = vmatprep.subr.bf16.mxu0 0
  %761 = vmatpush1.bf16.msra.mxu0 %v331
  %762 = vmatprep.subr.bf16.mxu0 0
  %763 = vmatpush1.bf16.msra.mxu0 %v332
  %764 = vmatprep.subr.bf16.mxu0 0
  %765 = vmatpush1.bf16.msra.mxu0 %v333
  %766 = vmatprep.subr.bf16.mxu0 0
  %767 = vmatpush1.bf16.msra.mxu0 %v334
  %768 = vmatprep.subr.bf16.mxu0 0
  %769 = vmatpush1.bf16.msra.mxu0 %v335
  %770 = vmatprep.subr.bf16.mxu0 0
  %771 = vmatpush1.bf16.msra.mxu0 %v336
  %772 = vmatprep.subr.bf16.mxu0 0
  %773 = vmatpush1.bf16.msra.mxu0 %v337
  %774 = vmatprep.subr.bf16.mxu0 0
  %775 = vmatpush1.bf16.msra.mxu0 %v338
  %776 = vmatprep.subr.bf16.mxu0 0
  %777 = vmatpush1.bf16.msra.mxu0 %v339
  %778 = vmatprep.subr.bf16.mxu0 0
  %779 = vmatpush1.bf16.msra.mxu0 %v340
  %780 = vmatprep.subr.bf16.mxu0 0
  %781 = vmatpush1.bf16.msra.mxu0 %v341
  %782 = vmatprep.subr.bf16.mxu0 0
  %783 = vmatpush1.bf16.msra.mxu0 %v342
  %784 = vmatprep.mubr.bf16.mxu0 %v681
  %785 = vmatmul.mubr.bf16.gmra.mrb[0].mxu0 %v680
  %v786 = vpop.f32.mrb[0].mxu0
  %v787 = vadd.f32 0.0, %v786
  %v788 = vpop.f32.mrb[0].mxu0
  %v789 = vpop.f32.mrb[0].mxu0
  %v790 = vadd.f32 0.0, %v789
  %v791 = vpop.f32.mrb[0].mxu0
  %792 = vmatprep.mubr.bf16.mxu0 %v683
  %793 = vmatmul.mubr.bf16.gmra.mrb[0].mxu0 %v682
  %v794 = vpop.f32.mrb[0].mxu0
  %v795 = vadd.f32 0.0, %v794
  %v796 = vpop.f32.mrb[0].mxu0
  %v797 = vpop.f32.mrb[0].mxu0
  %v798 = vadd.f32 0.0, %v797
  %v799 = vpop.f32.mrb[0].mxu0
  %800 = vmatprep.mubr.bf16.mxu0 %v685
  %801 = vmatmul.mubr.bf16.gmra.mrb[0].mxu0 %v684
  %v802 = vpop.f32.mrb[0].mxu0
  %v803 = vadd.f32 0.0, %v802
  %v804 = vpop.f32.mrb[0].mxu0
  %v805 = vpop.f32.mrb[0].mxu0
  %v806 = vadd.f32 0.0, %v805
  %v807 = vpop.f32.mrb[0].mxu0
  %808 = vmatprep.mubr.bf16.mxu0 %v687
  %809 = vmatmul.mubr.bf16.gmra.mrb[0].mxu0 %v686
  %v810 = vpop.f32.mrb[0].mxu0
  %v811 = vadd.f32 0.0, %v810
  %v812 = vpop.f32.mrb[0].mxu0
  %v813 = vpop.f32.mrb[0].mxu0
  %v814 = vadd.f32 0.0, %v813
  %v815 = vpop.f32.mrb[0].mxu0
  %816 = vmatprep.mubr.bf16.mxu0 %v689
  %817 = vmatmul.mubr.bf16.gmra.mrb[0].mxu0 %v688
  %v818 = vpop.f32.mrb[0].mxu0
  %v819 = vadd.f32 0.0, %v818
  %v820 = vpop.f32.mrb[0].mxu0
  %v821 = vpop.f32.mrb[0].mxu0
  %v822 = vadd.f32 0.0, %v821
  %v823 = vpop.f32.mrb[0].mxu0
  %824 = vmatprep.mubr.bf16.mxu0 %v691
  %825 = vmatmul.mubr.bf16.gmra.mrb[0].mxu0 %v690
  %v826 = vpop.f32.mrb[0].mxu0
  %v827 = vadd.f32 0.0, %v826
  %v828 = vpop.f32.mrb[0].mxu0
  %v829 = vpop.f32.mrb[0].mxu0
  %v830 = vadd.f32 0.0, %v829
  %v831 = vpop.f32.mrb[0].mxu0
  %832 = vmatprep.mubr.bf16.mxu0 %v693
  %833 = vmatmul.mubr.bf16.gmra.mrb[0].mxu0 %v692
  %v834 = vpop.f32.mrb[0].mxu0
  %v835 = vadd.f32 0.0, %v834
  %v836 = vpop.f32.mrb[0].mxu0
  %v837 = vpop.f32.mrb[0].mxu0
  %v838 = vadd.f32 0.0, %v837
  %v839 = vpop.f32.mrb[0].mxu0
  %840 = vmatprep.mubr.bf16.mxu0 %v695
  %841 = vmatmul.mubr.bf16.gmra.mrb[0].mxu0 %v694
  %v842 = vpop.f32.mrb[0].mxu0
  %v843 = vadd.f32 0.0, %v842
  %v844 = vpop.f32.mrb[0].mxu0
  %v845 = vpop.f32.mrb[0].mxu0
  %v846 = vadd.f32 0.0, %v845
  %v847 = vpop.f32.mrb[0].mxu0
  %848 = vmatprep.mubr.bf16.mxu0 %v697
  %849 = vmatmul.mubr.bf16.gmra.mrb[0].mxu0 %v696
  %v850 = vpop.f32.mrb[0].mxu0
  %v851 = vadd.f32 0.0, %v850
  %v852 = vpop.f32.mrb[0].mxu0
  %v853 = vpop.f32.mrb[0].mxu0
  %v854 = vadd.f32 0.0, %v853
  %v855 = vpop.f32.mrb[0].mxu0
  %856 = vmatprep.mubr.bf16.mxu0 %v699
  %857 = vmatmul.mubr.bf16.gmra.mrb[0].mxu0 %v698
  %v858 = vpop.f32.mrb[0].mxu0
  %v859 = vadd.f32 0.0, %v858
  %v860 = vpop.f32.mrb[0].mxu0
  %v861 = vpop.f32.mrb[0].mxu0
  %v862 = vadd.f32 0.0, %v861
  %v863 = vpop.f32.mrb[0].mxu0
  %864 = vmatprep.mubr.bf16.mxu0 %v701
  %865 = vmatmul.mubr.bf16.gmra.mrb[0].mxu0 %v700
  %v866 = vpop.f32.mrb[0].mxu0
  %v867 = vadd.f32 0.0, %v866
  %v868 = vpop.f32.mrb[0].mxu0
  %v869 = vpop.f32.mrb[0].mxu0
  %v870 = vadd.f32 0.0, %v869
  %v871 = vpop.f32.mrb[0].mxu0
  %872 = vmatprep.mubr.bf16.mxu0 %v703
  %873 = vmatmul.mubr.bf16.gmra.mrb[0].mxu0 %v702
  %v874 = vpop.f32.mrb[0].mxu0
  %v875 = vadd.f32 0.0, %v874
  %v876 = vpop.f32.mrb[0].mxu0
  %v877 = vpop.f32.mrb[0].mxu0
  %v878 = vadd.f32 0.0, %v877
  %v879 = vpop.f32.mrb[0].mxu0
  %880 = vmatprep.mubr.bf16.mxu0 %v705
  %881 = vmatmul.mubr.bf16.gmra.mrb[0].mxu0 %v704
  %v882 = vpop.f32.mrb[0].mxu0
  %v883 = vadd.f32 0.0, %v882
  %v884 = vpop.f32.mrb[0].mxu0
  %v885 = vpop.f32.mrb[0].mxu0
  %v886 = vadd.f32 0.0, %v885
  %v887 = vpop.f32.mrb[0].mxu0
  %888 = vmatprep.mubr.bf16.mxu0 %v707
  %889 = vmatmul.mubr.bf16.gmra.mrb[0].mxu0 %v706
  %v890 = vpop.f32.mrb[0].mxu0
  %v891 = vadd.f32 0.0, %v890
  %v892 = vpop.f32.mrb[0].mxu0
  %v893 = vpop.f32.mrb[0].mxu0
  %v894 = vadd.f32 0.0, %v893
  %v895 = vpop.f32.mrb[0].mxu0
  %896 = vmatprep.mubr.bf16.mxu0 %v709
  %897 = vmatmul.mubr.bf16.gmra.mrb[0].mxu0 %v708
  %v898 = vpop.f32.mrb[0].mxu0
  %v899 = vadd.f32 0.0, %v898
  %v900 = vpop.f32.mrb[0].mxu0
  %v901 = vpop.f32.mrb[0].mxu0
  %v902 = vadd.f32 0.0, %v901
  %v903 = vpop.f32.mrb[0].mxu0
  %904 = vmatprep.mubr.bf16.mxu0 %v711
  %905 = vmatmul.mubr.bf16.gmra.mrb[0].mxu0 %v710
  %v906 = vpop.f32.mrb[0].mxu0
  %v907 = vadd.f32 0.0, %v906
  %v908 = vpop.f32.mrb[0].mxu0
  %v909 = vpop.f32.mrb[0].mxu0
  %v910 = vadd.f32 0.0, %v909
  %v911 = vpop.f32.mrb[0].mxu0
  %912 = vmatprep.mubr.bf16.mxu0 %v713
  %913 = vmatmul.mubr.bf16.gmra.mrb[0].mxu0 %v712
  %v914 = vpop.f32.mrb[0].mxu0
  %v915 = vadd.f32 0.0, %v914
  %v916 = vpop.f32.mrb[0].mxu0
  %v917 = vpop.f32.mrb[0].mxu0
  %v918 = vadd.f32 0.0, %v917
  %v919 = vpop.f32.mrb[0].mxu0
  %920 = vmatprep.mubr.bf16.mxu0 %v715
  %921 = vmatmul.mubr.bf16.gmra.mrb[0].mxu0 %v714
  %v922 = vpop.f32.mrb[0].mxu0
  %v923 = vadd.f32 0.0, %v922
  %v924 = vpop.f32.mrb[0].mxu0
  %v925 = vpop.f32.mrb[0].mxu0
  %v926 = vadd.f32 0.0, %v925
  %v927 = vpop.f32.mrb[0].mxu0
  %928 = vdwg.mxu0
  %v929 = vmax.f32 %v394, %v787
  %v930 = vmax.f32 %v397, %v790
  %v931 = vmax.f32 %v402, %v795
  %v932 = vmax.f32 %v405, %v798
  %v933 = vmax.f32 %v410, %v803
  %v934 = vmax.f32 %v413, %v806
  %v935 = vmax.f32 %v418, %v811
  %v936 = vmax.f32 %v421, %v814
  %v937 = vmax.f32 %v426, %v819
  %v938 = vmax.f32 %v429, %v822
  %v939 = vmax.f32 %v434, %v827
  %v940 = vmax.f32 %v437, %v830
  %v941 = vmax.f32 %v442, %v835
  %v942 = vmax.f32 %v445, %v838
  %v943 = vmax.f32 %v450, %v843
  %v944 = vmax.f32 %v453, %v846
  %v945 = vmax.f32 %v458, %v851
  %v946 = vmax.f32 %v461, %v854
  %v947 = vmax.f32 %v466, %v859
  %v948 = vmax.f32 %v469, %v862
  %v949 = vmax.f32 %v474, %v867
  %v950 = vmax.f32 %v477, %v870
  %v951 = vmax.f32 %v482, %v875
  %v952 = vmax.f32 %v485, %v878
  %v953 = vmax.f32 %v490, %v883
  %v954 = vmax.f32 %v493, %v886
  %v955 = vmax.f32 %v498, %v891
  %v956 = vmax.f32 %v501, %v894
  %v957 = vmax.f32 %v506, %v899
  %v958 = vmax.f32 %v509, %v902
  %v959 = vmax.f32 %v514, %v907
  %v960 = vmax.f32 %v517, %v910
  %v961 = vmax.f32 %v522, %v915
  %v962 = vmax.f32 %v525, %v918
  %v963 = vmax.f32 %v530, %v923
  %v964 = vmax.f32 %v533, %v926
  %v965 = vld [vmem:[%s0 + $0x240] sm:$0xff]
  %v966 = vld [vmem:[%s0 + $0x248] sm:$0xff]
  %v967 = vld [vmem:[%s0 + $0x250] sm:$0xff]
  %v968 = vld [vmem:[%s0 + $0x258] sm:$0xff]
  %v969 = vld [vmem:[%s0 + $0x260] sm:$0xff]
  %v970 = vld [vmem:[%s0 + $0x268] sm:$0xff]
  %v971 = vld [vmem:[%s0 + $0x270] sm:$0xff]
  %v972 = vld [vmem:[%s0 + $0x278] sm:$0xff]
  %v973 = vld [vmem:[%s0 + $0x280] sm:$0xff]
  %v974 = vld [vmem:[%s0 + $0x288] sm:$0xff]
  %v975 = vld [vmem:[%s0 + $0x290] sm:$0xff]
  %v976 = vld [vmem:[%s0 + $0x298] sm:$0xff]
  %v977 = vld [vmem:[%s0 + $0x2a0] sm:$0xff]
  %v978 = vld [vmem:[%s0 + $0x2a8] sm:$0xff]
  %v979 = vld [vmem:[%s0 + $0x2b0] sm:$0xff]
  %v980 = vld [vmem:[%s0 + $0x2b8] sm:$0xff]
  %v981 = vld [vmem:[%s0 + $0x2c0] sm:$0xff]
  %v982 = vld [vmem:[%s0 + $0x2c8] sm:$0xff]
  %v983 = vld [vmem:[%s0 + $0x2d0] sm:$0xff]
  %v984 = vld [vmem:[%s0 + $0x2d8] sm:$0xff]
  %v985 = vld [vmem:[%s0 + $0x2e0] sm:$0xff]
  %v986 = vld [vmem:[%s0 + $0x2e8] sm:$0xff]
  %v987 = vld [vmem:[%s0 + $0x2f0] sm:$0xff]
  %v988 = vld [vmem:[%s0 + $0x2f8] sm:$0xff]
  %v989 = vld [vmem:[%s0 + $0x300] sm:$0xff]
  %v990 = vld [vmem:[%s0 + $0x308] sm:$0xff]
  %v991 = vld [vmem:[%s0 + $0x310] sm:$0xff]
  %v992 = vld [vmem:[%s0 + $0x318] sm:$0xff]
  %v993 = vld [vmem:[%s0 + $0x320] sm:$0xff]
  %v994 = vld [vmem:[%s0 + $0x328] sm:$0xff]
  %v995 = vld [vmem:[%s0 + $0x330] sm:$0xff]
  %v996 = vld [vmem:[%s0 + $0x338] sm:$0xff]
  %v997 = vld [vmem:[%s0 + $0x340] sm:$0xff]
  %v998 = vld [vmem:[%s0 + $0x348] sm:$0xff]
  %v999 = vld [vmem:[%s0 + $0x350] sm:$0xff]
  %v1000 = vld [vmem:[%s0 + $0x358] sm:$0xff]
  %v1037 = vunpack.c.l.b16 %v965
  %v1038 = vunpack.c.h.b16 %v965
  %v1039 = vunpack.c.l.b16 %v966
  %v1040 = vunpack.c.h.b16 %v966
  %v1041 = vunpack.c.l.b16 %v967
  %v1042 = vunpack.c.h.b16 %v967
  %v1043 = vunpack.c.l.b16 %v968
  %v1044 = vunpack.c.h.b16 %v968
  %v1045 = vunpack.c.l.b16 %v969
  %v1046 = vunpack.c.h.b16 %v969
  %v1047 = vunpack.c.l.b16 %v970
  %v1048 = vunpack.c.h.b16 %v970
  %v1049 = vunpack.c.l.b16 %v971
  %v1050 = vunpack.c.h.b16 %v971
  %v1051 = vunpack.c.l.b16 %v972
  %v1052 = vunpack.c.h.b16 %v972
  %v1053 = vunpack.c.l.b16 %v973
  %v1054 = vunpack.c.h.b16 %v973
  %v1055 = vunpack.c.l.b16 %v974
  %v1056 = vunpack.c.h.b16 %v974
  %v1057 = vunpack.c.l.b16 %v975
  %v1058 = vunpack.c.h.b16 %v975
  %v1059 = vunpack.c.l.b16 %v976
  %v1060 = vunpack.c.h.b16 %v976
  %v1061 = vunpack.c.l.b16 %v977
  %v1062 = vunpack.c.h.b16 %v977
  %v1063 = vunpack.c.l.b16 %v978
  %v1064 = vunpack.c.h.b16 %v978
  %v1065 = vunpack.c.l.b16 %v979
  %v1066 = vunpack.c.h.b16 %v979
  %v1067 = vunpack.c.l.b16 %v980
  %v1068 = vunpack.c.h.b16 %v980
  %v1069 = vunpack.c.l.b16 %v981
  %v1070 = vunpack.c.h.b16 %v981
  %v1071 = vunpack.c.l.b16 %v982
  %v1072 = vunpack.c.h.b16 %v982
  %v1073 = vunpack.c.l.b16 %v983
  %v1074 = vunpack.c.h.b16 %v983
  %v1075 = vunpack.c.l.b16 %v984
  %v1076 = vunpack.c.h.b16 %v984
  %v1077 = vunpack.c.l.b16 %v985
  %v1078 = vunpack.c.h.b16 %v985
  %v1079 = vunpack.c.l.b16 %v986
  %v1080 = vunpack.c.h.b16 %v986
  %v1081 = vunpack.c.l.b16 %v987
  %v1082 = vunpack.c.h.b16 %v987
  %v1083 = vunpack.c.l.b16 %v988
  %v1084 = vunpack.c.h.b16 %v988
  %v1085 = vunpack.c.l.b16 %v989
  %v1086 = vunpack.c.h.b16 %v989
  %v1087 = vunpack.c.l.b16 %v990
  %v1088 = vunpack.c.h.b16 %v990
  %v1089 = vunpack.c.l.b16 %v991
  %v1090 = vunpack.c.h.b16 %v991
  %v1091 = vunpack.c.l.b16 %v992
  %v1092 = vunpack.c.h.b16 %v992
  %v1093 = vunpack.c.l.b16 %v993
  %v1094 = vunpack.c.h.b16 %v993
  %v1095 = vunpack.c.l.b16 %v994
  %v1096 = vunpack.c.h.b16 %v994
  %v1097 = vunpack.c.l.b16 %v995
  %v1098 = vunpack.c.h.b16 %v995
  %v1099 = vunpack.c.l.b16 %v996
  %v1100 = vunpack.c.h.b16 %v996
  %v1101 = vunpack.c.l.b16 %v997
  %v1102 = vunpack.c.h.b16 %v997
  %v1103 = vunpack.c.l.b16 %v998
  %v1104 = vunpack.c.h.b16 %v998
  %v1105 = vunpack.c.l.b16 %v999
  %v1106 = vunpack.c.h.b16 %v999
  %v1107 = vunpack.c.l.b16 %v1000
  %v1108 = vunpack.c.h.b16 %v1000
  %v1109 = vpack.c.b16 %v1039, %v1037
  %v1110 = vpack.c.b16 %v1040, %v1038
  %v1111 = vpack.c.b16 %v1043, %v1041
  %v1112 = vpack.c.b16 %v1044, %v1042
  %v1113 = vpack.c.b16 %v1047, %v1045
  %v1114 = vpack.c.b16 %v1048, %v1046
  %v1115 = vpack.c.b16 %v1051, %v1049
  %v1116 = vpack.c.b16 %v1052, %v1050
  %v1117 = vpack.c.b16 %v1055, %v1053
  %v1118 = vpack.c.b16 %v1056, %v1054
  %v1119 = vpack.c.b16 %v1059, %v1057
  %v1120 = vpack.c.b16 %v1060, %v1058
  %v1121 = vpack.c.b16 %v1063, %v1061
  %v1122 = vpack.c.b16 %v1064, %v1062
  %v1123 = vpack.c.b16 %v1067, %v1065
  %v1124 = vpack.c.b16 %v1068, %v1066
  %v1125 = vpack.c.b16 %v1071, %v1069
  %v1126 = vpack.c.b16 %v1072, %v1070
  %v1127 = vpack.c.b16 %v1075, %v1073
  %v1128 = vpack.c.b16 %v1076, %v1074
  %v1129 = vpack.c.b16 %v1079, %v1077
  %v1130 = vpack.c.b16 %v1080, %v1078
  %v1131 = vpack.c.b16 %v1083, %v1081
  %v1132 = vpack.c.b16 %v1084, %v1082
  %v1133 = vpack.c.b16 %v1087, %v1085
  %v1134 = vpack.c.b16 %v1088, %v1086
  %v1135 = vpack.c.b16 %v1091, %v1089
  %v1136 = vpack.c.b16 %v1092, %v1090
  %v1137 = vpack.c.b16 %v1095, %v1093
  %v1138 = vpack.c.b16 %v1096, %v1094
  %v1139 = vpack.c.b16 %v1099, %v1097
  %v1140 = vpack.c.b16 %v1100, %v1098
  %v1141 = vpack.c.b16 %v1103, %v1101
  %v1142 = vpack.c.b16 %v1104, %v1102
  %v1143 = vpack.c.b16 %v1107, %v1105
  %v1144 = vpack.c.b16 %v1108, %v1106
  %1181 = vmatprep.subr.bf16.mxu0 0
  %1182 = vmatpush1.bf16.msra.mxu0 %v327
  %1183 = vmatprep.subr.bf16.mxu0 0
  %1184 = vmatpush1.bf16.msra.mxu0 %v328
  %1185 = vmatprep.subr.bf16.mxu0 0
  %1186 = vmatpush1.bf16.msra.mxu0 %v329
  %1187 = vmatprep.subr.bf16.mxu0 0
  %1188 = vmatpush1.bf16.msra.mxu0 %v330
  %1189 = vmatprep.subr.bf16.mxu0 0
  %1190 = vmatpush1.bf16.msra.mxu0 %v331
  %1191 = vmatprep.subr.bf16.mxu0 0
  %1192 = vmatpush1.bf16.msra.mxu0 %v332
  %1193 = vmatprep.subr.bf16.mxu0 0
  %1194 = vmatpush1.bf16.msra.mxu0 %v333
  %1195 = vmatprep.subr.bf16.mxu0 0
  %1196 = vmatpush1.bf16.msra.mxu0 %v334
  %1197 = vmatprep.subr.bf16.mxu0 0
  %1198 = vmatpush1.bf16.msra.mxu0 %v335
  %1199 = vmatprep.subr.bf16.mxu0 0
  %1200 = vmatpush1.bf16.msra.mxu0 %v336
  %1201 = vmatprep.subr.bf16.mxu0 0
  %1202 = vmatpush1.bf16.msra.mxu0 %v337
  %1203 = vmatprep.subr.bf16.mxu0 0
  %1204 = vmatpush1.bf16.msra.mxu0 %v338
  %1205 = vmatprep.subr.bf16.mxu0 0
  %1206 = vmatpush1.bf16.msra.mxu0 %v339
  %1207 = vmatprep.subr.bf16.mxu0 0
  %1208 = vmatpush1.bf16.msra.mxu0 %v340
  %1209 = vmatprep.subr.bf16.mxu0 0
  %1210 = vmatpush1.bf16.msra.mxu0 %v341
  %1211 = vmatprep.subr.bf16.mxu0 0
  %1212 = vmatpush1.bf16.msra.mxu0 %v342
  %1213 = vmatprep.mubr.bf16.mxu0 %v1110
  %1214 = vmatmul.mubr.bf16.gmra.mrb[0].mxu0 %v1109
  %v1215 = vpop.f32.mrb[0].mxu0
  %v1216 = vadd.f32 0.0, %v1215
  %v1217 = vpop.f32.mrb[0].mxu0
  %v1218 = vpop.f32.mrb[0].mxu0
  %v1219 = vadd.f32 0.0, %v1218
  %v1220 = vpop.f32.mrb[0].mxu0
  %1221 = vmatprep.mubr.bf16.mxu0 %v1112
  %1222 = vmatmul.mubr.bf16.gmra.mrb[0].mxu0 %v1111
  %v1223 = vpop.f32.mrb[0].mxu0
  %v1224 = vadd.f32 0.0, %v1223
  %v1225 = vpop.f32.mrb[0].mxu0
  %v1226 = vpop.f32.mrb[0].mxu0
  %v1227 = vadd.f32 0.0, %v1226
  %v1228 = vpop.f32.mrb[0].mxu0
  %1229 = vmatprep.mubr.bf16.mxu0 %v1114
  %1230 = vmatmul.mubr.bf16.gmra.mrb[0].mxu0 %v1113
  %v1231 = vpop.f32.mrb[0].mxu0
  %v1232 = vadd.f32 0.0, %v1231
  %v1233 = vpop.f32.mrb[0].mxu0
  %v1234 = vpop.f32.mrb[0].mxu0
  %v1235 = vadd.f32 0.0, %v1234
  %v1236 = vpop.f32.mrb[0].mxu0
  %1237 = vmatprep.mubr.bf16.mxu0 %v1116
  %1238 = vmatmul.mubr.bf16.gmra.mrb[0].mxu0 %v1115
  %v1239 = vpop.f32.mrb[0].mxu0
  %v1240 = vadd.f32 0.0, %v1239
  %v1241 = vpop.f32.mrb[0].mxu0
  %v1242 = vpop.f32.mrb[0].mxu0
  %v1243 = vadd.f32 0.0, %v1242
  %v1244 = vpop.f32.mrb[0].mxu0
  %1245 = vmatprep.mubr.bf16.mxu0 %v1118
  %1246 = vmatmul.mubr.bf16.gmra.mrb[0].mxu0 %v1117
  %v1247 = vpop.f32.mrb[0].mxu0
  %v1248 = vadd.f32 0.0, %v1247
  %v1249 = vpop.f32.mrb[0].mxu0
  %v1250 = vpop.f32.mrb[0].mxu0
  %v1251 = vadd.f32 0.0, %v1250
  %v1252 = vpop.f32.mrb[0].mxu0
  %1253 = vmatprep.mubr.bf16.mxu0 %v1120
  %1254 = vmatmul.mubr.bf16.gmra.mrb[0].mxu0 %v1119
  %v1255 = vpop.f32.mrb[0].mxu0
  %v1256 = vadd.f32 0.0, %v1255
  %v1257 = vpop.f32.mrb[0].mxu0
  %v1258 = vpop.f32.mrb[0].mxu0
  %v1259 = vadd.f32 0.0, %v1258
  %v1260 = vpop.f32.mrb[0].mxu0
  %1261 = vmatprep.mubr.bf16.mxu0 %v1122
  %1262 = vmatmul.mubr.bf16.gmra.mrb[0].mxu0 %v1121
  %v1263 = vpop.f32.mrb[0].mxu0
  %v1264 = vadd.f32 0.0, %v1263
  %v1265 = vpop.f32.mrb[0].mxu0
  %v1266 = vpop.f32.mrb[0].mxu0
  %v1267 = vadd.f32 0.0, %v1266
  %v1268 = vpop.f32.mrb[0].mxu0
  %1269 = vmatprep.mubr.bf16.mxu0 %v1124
  %1270 = vmatmul.mubr.bf16.gmra.mrb[0].mxu0 %v1123
  %v1271 = vpop.f32.mrb[0].mxu0
  %v1272 = vadd.f32 0.0, %v1271
  %v1273 = vpop.f32.mrb[0].mxu0
  %v1274 = vpop.f32.mrb[0].mxu0
  %v1275 = vadd.f32 0.0, %v1274
  %v1276 = vpop.f32.mrb[0].mxu0
  %1277 = vmatprep.mubr.bf16.mxu0 %v1126
  %1278 = vmatmul.mubr.bf16.gmra.mrb[0].mxu0 %v1125
  %v1279 = vpop.f32.mrb[0].mxu0
  %v1280 = vadd.f32 0.0, %v1279
  %v1281 = vpop.f32.mrb[0].mxu0
  %v1282 = vpop.f32.mrb[0].mxu0
  %v1283 = vadd.f32 0.0, %v1282
  %v1284 = vpop.f32.mrb[0].mxu0
  %1285 = vmatprep.mubr.bf16.mxu0 %v1128
  %1286 = vmatmul.mubr.bf16.gmra.mrb[0].mxu0 %v1127
  %v1287 = vpop.f32.mrb[0].mxu0
  %v1288 = vadd.f32 0.0, %v1287
  %v1289 = vpop.f32.mrb[0].mxu0
  %v1290 = vpop.f32.mrb[0].mxu0
  %v1291 = vadd.f32 0.0, %v1290
  %v1292 = vpop.f32.mrb[0].mxu0
  %1293 = vmatprep.mubr.bf16.mxu0 %v1130
  %1294 = vmatmul.mubr.bf16.gmra.mrb[0].mxu0 %v1129
  %v1295 = vpop.f32.mrb[0].mxu0
  %v1296 = vadd.f32 0.0, %v1295
  %v1297 = vpop.f32.mrb[0].mxu0
  %v1298 = vpop.f32.mrb[0].mxu0
  %v1299 = vadd.f32 0.0, %v1298
  %v1300 = vpop.f32.mrb[0].mxu0
  %1301 = vmatprep.mubr.bf16.mxu0 %v1132
  %1302 = vmatmul.mubr.bf16.gmra.mrb[0].mxu0 %v1131
  %v1303 = vpop.f32.mrb[0].mxu0
  %v1304 = vadd.f32 0.0, %v1303
  %v1305 = vpop.f32.mrb[0].mxu0
  %v1306 = vpop.f32.mrb[0].mxu0
  %v1307 = vadd.f32 0.0, %v1306
  %v1308 = vpop.f32.mrb[0].mxu0
  %1309 = vmatprep.mubr.bf16.mxu0 %v1134
  %1310 = vmatmul.mubr.bf16.gmra.mrb[0].mxu0 %v1133
  %v1311 = vpop.f32.mrb[0].mxu0
  %v1312 = vadd.f32 0.0, %v1311
  %v1313 = vpop.f32.mrb[0].mxu0
  %v1314 = vpop.f32.mrb[0].mxu0
  %v1315 = vadd.f32 0.0, %v1314
  %v1316 = vpop.f32.mrb[0].mxu0
  %1317 = vmatprep.mubr.bf16.mxu0 %v1136
  %1318 = vmatmul.mubr.bf16.gmra.mrb[0].mxu0 %v1135
  %v1319 = vpop.f32.mrb[0].mxu0
  %v1320 = vadd.f32 0.0, %v1319
  %v1321 = vpop.f32.mrb[0].mxu0
  %v1322 = vpop.f32.mrb[0].mxu0
  %v1323 = vadd.f32 0.0, %v1322
  %v1324 = vpop.f32.mrb[0].mxu0
  %1325 = vmatprep.mubr.bf16.mxu0 %v1138
  %1326 = vmatmul.mubr.bf16.gmra.mrb[0].mxu0 %v1137
  %v1327 = vpop.f32.mrb[0].mxu0
  %v1328 = vadd.f32 0.0, %v1327
  %v1329 = vpop.f32.mrb[0].mxu0
  %v1330 = vpop.f32.mrb[0].mxu0
  %v1331 = vadd.f32 0.0, %v1330
  %v1332 = vpop.f32.mrb[0].mxu0
  %1333 = vmatprep.mubr.bf16.mxu0 %v1140
  %1334 = vmatmul.mubr.bf16.gmra.mrb[0].mxu0 %v1139
  %v1335 = vpop.f32.mrb[0].mxu0
  %v1336 = vadd.f32 0.0, %v1335
  %v1337 = vpop.f32.mrb[0].mxu0
  %v1338 = vpop.f32.mrb[0].mxu0
  %v1339 = vadd.f32 0.0, %v1338
  %v1340 = vpop.f32.mrb[0].mxu0
  %1341 = vmatprep.mubr.bf16.mxu0 %v1142
  %1342 = vmatmul.mubr.bf16.gmra.mrb[0].mxu0 %v1141
  %v1343 = vpop.f32.mrb[0].mxu0
  %v1344 = vadd.f32 0.0, %v1343
  %v1345 = vpop.f32.mrb[0].mxu0
  %v1346 = vpop.f32.mrb[0].mxu0
  %v1347 = vadd.f32 0.0, %v1346
  %v1348 = vpop.f32.mrb[0].mxu0
  %1349 = vmatprep.mubr.bf16.mxu0 %v1144
  %1350 = vmatmul.mubr.bf16.gmra.mrb[0].mxu0 %v1143
  %v1351 = vpop.f32.mrb[0].mxu0
  %v1352 = vadd.f32 0.0, %v1351
  %v1353 = vpop.f32.mrb[0].mxu0
  %v1354 = vpop.f32.mrb[0].mxu0
  %v1355 = vadd.f32 0.0, %v1354
  %v1356 = vpop.f32.mrb[0].mxu0
  %1357 = vdwg.mxu0
  %v1358 = vmax.f32 %v929, %v1216
  %v1359 = vmax.f32 %v930, %v1219
  %v1360 = vmax.f32 %v931, %v1224
  %v1361 = vmax.f32 %v932, %v1227
  %v1362 = vmax.f32 %v933, %v1232
  %v1363 = vmax.f32 %v934, %v1235
  %v1364 = vmax.f32 %v935, %v1240
  %v1365 = vmax.f32 %v936, %v1243
  %v1366 = vmax.f32 %v937, %v1248
  %v1367 = vmax.f32 %v938, %v1251
  %v1368 = vmax.f32 %v939, %v1256
  %v1369 = vmax.f32 %v940, %v1259
  %v1370 = vmax.f32 %v941, %v1264
  %v1371 = vmax.f32 %v942, %v1267
  %v1372 = vmax.f32 %v943, %v1272
  %v1373 = vmax.f32 %v944, %v1275
  %v1374 = vmax.f32 %v945, %v1280
  %v1375 = vmax.f32 %v946, %v1283
  %v1376 = vmax.f32 %v947, %v1288
  %v1377 = vmax.f32 %v948, %v1291
  %v1378 = vmax.f32 %v949, %v1296
  %v1379 = vmax.f32 %v950, %v1299
  %v1380 = vmax.f32 %v951, %v1304
  %v1381 = vmax.f32 %v952, %v1307
  %v1382 = vmax.f32 %v953, %v1312
  %v1383 = vmax.f32 %v954, %v1315
  %v1384 = vmax.f32 %v955, %v1320
  %v1385 = vmax.f32 %v956, %v1323
  %v1386 = vmax.f32 %v957, %v1328
  %v1387 = vmax.f32 %v958, %v1331
  %v1388 = vmax.f32 %v959, %v1336
  %v1389 = vmax.f32 %v960, %v1339
  %v1390 = vmax.f32 %v961, %v1344
  %v1391 = vmax.f32 %v962, %v1347
  %v1392 = vmax.f32 %v963, %v1352
  %v1393 = vmax.f32 %v964, %v1355
  %v1394 = vld [vmem:[%s0 + $0x360] sm:$0xff]
  %v1395 = vld [vmem:[%s0 + $0x368] sm:$0xff]
  %v1396 = vld [vmem:[%s0 + $0x370] sm:$0xff]
  %v1397 = vld [vmem:[%s0 + $0x378] sm:$0xff]
  %v1398 = vld [vmem:[%s0 + $0x380] sm:$0xff]
  %v1399 = vld [vmem:[%s0 + $0x388] sm:$0xff]
  %v1400 = vld [vmem:[%s0 + $0x390] sm:$0xff]
  %v1401 = vld [vmem:[%s0 + $0x398] sm:$0xff]
  %v1402 = vld [vmem:[%s0 + $0x3a0] sm:$0xff]
  %v1403 = vld [vmem:[%s0 + $0x3a8] sm:$0xff]
  %v1404 = vld [vmem:[%s0 + $0x3b0] sm:$0xff]
  %v1405 = vld [vmem:[%s0 + $0x3b8] sm:$0xff]
  %v1406 = vld [vmem:[%s0 + $0x3c0] sm:$0xff]
  %v1407 = vld [vmem:[%s0 + $0x3c8] sm:$0xff]
  %v1408 = vld [vmem:[%s0 + $0x3d0] sm:$0xff]
  %v1409 = vld [vmem:[%s0 + $0x3d8] sm:$0xff]
  %v1410 = vld [vmem:[%s0 + $0x3e0] sm:$0xff]
  %v1411 = vld [vmem:[%s0 + $0x3e8] sm:$0xff]
  %v1412 = vld [vmem:[%s0 + $0x3f0] sm:$0xff]
  %v1413 = vld [vmem:[%s0 + $0x3f8] sm:$0xff]
  %v1414 = vld [vmem:[%s0 + $0x400] sm:$0xff]
  %v1415 = vld [vmem:[%s0 + $0x408] sm:$0xff]
  %v1416 = vld [vmem:[%s0 + $0x410] sm:$0xff]
  %v1417 = vld [vmem:[%s0 + $0x418] sm:$0xff]
  %v1418 = vld [vmem:[%s0 + $0x420] sm:$0xff]
  %v1419 = vld [vmem:[%s0 + $0x428] sm:$0xff]
  %v1420 = vld [vmem:[%s0 + $0x430] sm:$0xff]
  %v1421 = vld [vmem:[%s0 + $0x438] sm:$0xff]
  %v1422 = vld [vmem:[%s0 + $0x440] sm:$0xff]
  %v1423 = vld [vmem:[%s0 + $0x448] sm:$0xff]
  %v1424 = vld [vmem:[%s0 + $0x450] sm:$0xff]
  %v1425 = vld [vmem:[%s0 + $0x458] sm:$0xff]
  %v1426 = vld [vmem:[%s0 + $0x460] sm:$0xff]
  %v1427 = vld [vmem:[%s0 + $0x468] sm:$0xff]
  %v1428 = vld [vmem:[%s0 + $0x470] sm:$0xff]
  %v1429 = vld [vmem:[%s0 + $0x478] sm:$0xff]
  %v1466 = vunpack.c.l.b16 %v1394
  %v1467 = vunpack.c.h.b16 %v1394
  %v1468 = vunpack.c.l.b16 %v1395
  %v1469 = vunpack.c.h.b16 %v1395
  %v1470 = vunpack.c.l.b16 %v1396
  %v1471 = vunpack.c.h.b16 %v1396
  %v1472 = vunpack.c.l.b16 %v1397
  %v1473 = vunpack.c.h.b16 %v1397
  %v1474 = vunpack.c.l.b16 %v1398
  %v1475 = vunpack.c.h.b16 %v1398
  %v1476 = vunpack.c.l.b16 %v1399
  %v1477 = vunpack.c.h.b16 %v1399
  %v1478 = vunpack.c.l.b16 %v1400
  %v1479 = vunpack.c.h.b16 %v1400
  %v1480 = vunpack.c.l.b16 %v1401
  %v1481 = vunpack.c.h.b16 %v1401
  %v1482 = vunpack.c.l.b16 %v1402
  %v1483 = vunpack.c.h.b16 %v1402
  %v1484 = vunpack.c.l.b16 %v1403
  %v1485 = vunpack.c.h.b16 %v1403
  %v1486 = vunpack.c.l.b16 %v1404
  %v1487 = vunpack.c.h.b16 %v1404
  %v1488 = vunpack.c.l.b16 %v1405
  %v1489 = vunpack.c.h.b16 %v1405
  %v1490 = vunpack.c.l.b16 %v1406
  %v1491 = vunpack.c.h.b16 %v1406
  %v1492 = vunpack.c.l.b16 %v1407
  %v1493 = vunpack.c.h.b16 %v1407
  %v1494 = vunpack.c.l.b16 %v1408
  %v1495 = vunpack.c.h.b16 %v1408
  %v1496 = vunpack.c.l.b16 %v1409
  %v1497 = vunpack.c.h.b16 %v1409
  %v1498 = vunpack.c.l.b16 %v1410
  %v1499 = vunpack.c.h.b16 %v1410
  %v1500 = vunpack.c.l.b16 %v1411
  %v1501 = vunpack.c.h.b16 %v1411
  %v1502 = vunpack.c.l.b16 %v1412
  %v1503 = vunpack.c.h.b16 %v1412
  %v1504 = vunpack.c.l.b16 %v1413
  %v1505 = vunpack.c.h.b16 %v1413
  %v1506 = vunpack.c.l.b16 %v1414
  %v1507 = vunpack.c.h.b16 %v1414
  %v1508 = vunpack.c.l.b16 %v1415
  %v1509 = vunpack.c.h.b16 %v1415
  %v1510 = vunpack.c.l.b16 %v1416
  %v1511 = vunpack.c.h.b16 %v1416
  %v1512 = vunpack.c.l.b16 %v1417
  %v1513 = vunpack.c.h.b16 %v1417
  %v1514 = vunpack.c.l.b16 %v1418
  %v1515 = vunpack.c.h.b16 %v1418
  %v1516 = vunpack.c.l.b16 %v1419
  %v1517 = vunpack.c.h.b16 %v1419
  %v1518 = vunpack.c.l.b16 %v1420
  %v1519 = vunpack.c.h.b16 %v1420
  %v1520 = vunpack.c.l.b16 %v1421
  %v1521 = vunpack.c.h.b16 %v1421
  %v1522 = vunpack.c.l.b16 %v1422
  %v1523 = vunpack.c.h.b16 %v1422
  %v1524 = vunpack.c.l.b16 %v1423
  %v1525 = vunpack.c.h.b16 %v1423
  %v1526 = vunpack.c.l.b16 %v1424
  %v1527 = vunpack.c.h.b16 %v1424
  %v1528 = vunpack.c.l.b16 %v1425
  %v1529 = vunpack.c.h.b16 %v1425
  %v1530 = vunpack.c.l.b16 %v1426
  %v1531 = vunpack.c.h.b16 %v1426
  %v1532 = vunpack.c.l.b16 %v1427
  %v1533 = vunpack.c.h.b16 %v1427
  %v1534 = vunpack.c.l.b16 %v1428
  %v1535 = vunpack.c.h.b16 %v1428
  %v1536 = vunpack.c.l.b16 %v1429
  %v1537 = vunpack.c.h.b16 %v1429
  %v1538 = vpack.c.b16 %v1468, %v1466
  %v1539 = vpack.c.b16 %v1469, %v1467
  %v1540 = vpack.c.b16 %v1472, %v1470
  %v1541 = vpack.c.b16 %v1473, %v1471
  %v1542 = vpack.c.b16 %v1476, %v1474
  %v1543 = vpack.c.b16 %v1477, %v1475
  %v1544 = vpack.c.b16 %v1480, %v1478
  %v1545 = vpack.c.b16 %v1481, %v1479
  %v1546 = vpack.c.b16 %v1484, %v1482
  %v1547 = vpack.c.b16 %v1485, %v1483
  %v1548 = vpack.c.b16 %v1488, %v1486
  %v1549 = vpack.c.b16 %v1489, %v1487
  %v1550 = vpack.c.b16 %v1492, %v1490
  %v1551 = vpack.c.b16 %v1493, %v1491
  %v1552 = vpack.c.b16 %v1496, %v1494
  %v1553 = vpack.c.b16 %v1497, %v1495
  %v1554 = vpack.c.b16 %v1500, %v1498
  %v1555 = vpack.c.b16 %v1501, %v1499
  %v1556 = vpack.c.b16 %v1504, %v1502
  %v1557 = vpack.c.b16 %v1505, %v1503
  %v1558 = vpack.c.b16 %v1508, %v1506
  %v1559 = vpack.c.b16 %v1509, %v1507
  %v1560 = vpack.c.b16 %v1512, %v1510
  %v1561 = vpack.c.b16 %v1513, %v1511
  %v1562 = vpack.c.b16 %v1516, %v1514
  %v1563 = vpack.c.b16 %v1517, %v1515
  %v1564 = vpack.c.b16 %v1520, %v1518
  %v1565 = vpack.c.b16 %v1521, %v1519
  %v1566 = vpack.c.b16 %v1524, %v1522
  %v1567 = vpack.c.b16 %v1525, %v1523
  %v1568 = vpack.c.b16 %v1528, %v1526
  %v1569 = vpack.c.b16 %v1529, %v1527
  %v1570 = vpack.c.b16 %v1532, %v1530
  %v1571 = vpack.c.b16 %v1533, %v1531
  %v1572 = vpack.c.b16 %v1536, %v1534
  %v1573 = vpack.c.b16 %v1537, %v1535
  %1610 = vmatprep.subr.bf16.mxu0 0
  %1611 = vmatpush1.bf16.msra.mxu0 %v327
  %1612 = vmatprep.subr.bf16.mxu0 0
  %1613 = vmatpush1.bf16.msra.mxu0 %v328
  %1614 = vmatprep.subr.bf16.mxu0 0
  %1615 = vmatpush1.bf16.msra.mxu0 %v329
  %1616 = vmatprep.subr.bf16.mxu0 0
  %1617 = vmatpush1.bf16.msra.mxu0 %v330
  %1618 = vmatprep.subr.bf16.mxu0 0
  %1619 = vmatpush1.bf16.msra.mxu0 %v331
  %1620 = vmatprep.subr.bf16.mxu0 0
  %1621 = vmatpush1.bf16.msra.mxu0 %v332
  %1622 = vmatprep.subr.bf16.mxu0 0
  %1623 = vmatpush1.bf16.msra.mxu0 %v333
  %1624 = vmatprep.subr.bf16.mxu0 0
  %1625 = vmatpush1.bf16.msra.mxu0 %v334
  %1626 = vmatprep.subr.bf16.mxu0 0
  %1627 = vmatpush1.bf16.msra.mxu0 %v335
  %1628 = vmatprep.subr.bf16.mxu0 0
  %1629 = vmatpush1.bf16.msra.mxu0 %v336
  %1630 = vmatprep.subr.bf16.mxu0 0
  %1631 = vmatpush1.bf16.msra.mxu0 %v337
  %1632 = vmatprep.subr.bf16.mxu0 0
  %1633 = vmatpush1.bf16.msra.mxu0 %v338
  %1634 = vmatprep.subr.bf16.mxu0 0
  %1635 = vmatpush1.bf16.msra.mxu0 %v339
  %1636 = vmatprep.subr.bf16.mxu0 0
  %1637 = vmatpush1.bf16.msra.mxu0 %v340
  %1638 = vmatprep.subr.bf16.mxu0 0
  %1639 = vmatpush1.bf16.msra.mxu0 %v341
  %1640 = vmatprep.subr.bf16.mxu0 0
  %1641 = vmatpush1.bf16.msra.mxu0 %v342
  %1642 = vmatprep.mubr.bf16.mxu0 %v1539
  %1643 = vmatmul.mubr.bf16.gmra.mrb[0].mxu0 %v1538
  %v1644 = vpop.f32.mrb[0].mxu0
  %v1645 = vadd.f32 0.0, %v1644
  %v1646 = vpop.f32.mrb[0].mxu0
  %v1647 = vpop.f32.mrb[0].mxu0
  %v1648 = vadd.f32 0.0, %v1647
  %v1649 = vpop.f32.mrb[0].mxu0
  %1650 = vmatprep.mubr.bf16.mxu0 %v1541
  %1651 = vmatmul.mubr.bf16.gmra.mrb[0].mxu0 %v1540
  %v1652 = vpop.f32.mrb[0].mxu0
  %v1653 = vadd.f32 0.0, %v1652
  %v1654 = vpop.f32.mrb[0].mxu0
  %v1655 = vpop.f32.mrb[0].mxu0
  %v1656 = vadd.f32 0.0, %v1655
  %v1657 = vpop.f32.mrb[0].mxu0
  %1658 = vmatprep.mubr.bf16.mxu0 %v1543
  %1659 = vmatmul.mubr.bf16.gmra.mrb[0].mxu0 %v1542
  %v1660 = vpop.f32.mrb[0].mxu0
  %v1661 = vadd.f32 0.0, %v1660
  %v1662 = vpop.f32.mrb[0].mxu0
  %v1663 = vpop.f32.mrb[0].mxu0
  %v1664 = vadd.f32 0.0, %v1663
  %v1665 = vpop.f32.mrb[0].mxu0
  %1666 = vmatprep.mubr.bf16.mxu0 %v1545
  %1667 = vmatmul.mubr.bf16.gmra.mrb[0].mxu0 %v1544
  %v1668 = vpop.f32.mrb[0].mxu0
  %v1669 = vadd.f32 0.0, %v1668
  %v1670 = vpop.f32.mrb[0].mxu0
  %v1671 = vpop.f32.mrb[0].mxu0
  %v1672 = vadd.f32 0.0, %v1671
  %v1673 = vpop.f32.mrb[0].mxu0
  %1674 = vmatprep.mubr.bf16.mxu0 %v1547
  %1675 = vmatmul.mubr.bf16.gmra.mrb[0].mxu0 %v1546
  %v1676 = vpop.f32.mrb[0].mxu0
  %v1677 = vadd.f32 0.0, %v1676
  %v1678 = vpop.f32.mrb[0].mxu0
  %v1679 = vpop.f32.mrb[0].mxu0
  %v1680 = vadd.f32 0.0, %v1679
  %v1681 = vpop.f32.mrb[0].mxu0
  %1682 = vmatprep.mubr.bf16.mxu0 %v1549
  %1683 = vmatmul.mubr.bf16.gmra.mrb[0].mxu0 %v1548
  %v1684 = vpop.f32.mrb[0].mxu0
  %v1685 = vadd.f32 0.0, %v1684
  %v1686 = vpop.f32.mrb[0].mxu0
  %v1687 = vpop.f32.mrb[0].mxu0
  %v1688 = vadd.f32 0.0, %v1687
  %v1689 = vpop.f32.mrb[0].mxu0
  %1690 = vmatprep.mubr.bf16.mxu0 %v1551
  %1691 = vmatmul.mubr.bf16.gmra.mrb[0].mxu0 %v1550
  %v1692 = vpop.f32.mrb[0].mxu0
  %v1693 = vadd.f32 0.0, %v1692
  %v1694 = vpop.f32.mrb[0].mxu0
  %v1695 = vpop.f32.mrb[0].mxu0
  %v1696 = vadd.f32 0.0, %v1695
  %v1697 = vpop.f32.mrb[0].mxu0
  %1698 = vmatprep.mubr.bf16.mxu0 %v1553
  %1699 = vmatmul.mubr.bf16.gmra.mrb[0].mxu0 %v1552
  %v1700 = vpop.f32.mrb[0].mxu0
  %v1701 = vadd.f32 0.0, %v1700
  %v1702 = vpop.f32.mrb[0].mxu0
  %v1703 = vpop.f32.mrb[0].mxu0
  %v1704 = vadd.f32 0.0, %v1703
  %v1705 = vpop.f32.mrb[0].mxu0
  %1706 = vmatprep.mubr.bf16.mxu0 %v1555
  %1707 = vmatmul.mubr.bf16.gmra.mrb[0].mxu0 %v1554
  %v1708 = vpop.f32.mrb[0].mxu0
  %v1709 = vadd.f32 0.0, %v1708
  %v1710 = vpop.f32.mrb[0].mxu0
  %v1711 = vpop.f32.mrb[0].mxu0
  %v1712 = vadd.f32 0.0, %v1711
  %v1713 = vpop.f32.mrb[0].mxu0
  %1714 = vmatprep.mubr.bf16.mxu0 %v1557
  %1715 = vmatmul.mubr.bf16.gmra.mrb[0].mxu0 %v1556
  %v1716 = vpop.f32.mrb[0].mxu0
  %v1717 = vadd.f32 0.0, %v1716
  %v1718 = vpop.f32.mrb[0].mxu0
  %v1719 = vpop.f32.mrb[0].mxu0
  %v1720 = vadd.f32 0.0, %v1719
  %v1721 = vpop.f32.mrb[0].mxu0
  %1722 = vmatprep.mubr.bf16.mxu0 %v1559
  %1723 = vmatmul.mubr.bf16.gmra.mrb[0].mxu0 %v1558
  %v1724 = vpop.f32.mrb[0].mxu0
  %v1725 = vadd.f32 0.0, %v1724
  %v1726 = vpop.f32.mrb[0].mxu0
  %v1727 = vpop.f32.mrb[0].mxu0
  %v1728 = vadd.f32 0.0, %v1727
  %v1729 = vpop.f32.mrb[0].mxu0
  %1730 = vmatprep.mubr.bf16.mxu0 %v1561
  %1731 = vmatmul.mubr.bf16.gmra.mrb[0].mxu0 %v1560
  %v1732 = vpop.f32.mrb[0].mxu0
  %v1733 = vadd.f32 0.0, %v1732
  %v1734 = vpop.f32.mrb[0].mxu0
  %v1735 = vpop.f32.mrb[0].mxu0
  %v1736 = vadd.f32 0.0, %v1735
  %v1737 = vpop.f32.mrb[0].mxu0
  %1738 = vmatprep.mubr.bf16.mxu0 %v1563
  %1739 = vmatmul.mubr.bf16.gmra.mrb[0].mxu0 %v1562
  %v1740 = vpop.f32.mrb[0].mxu0
  %v1741 = vadd.f32 0.0, %v1740
  %v1742 = vpop.f32.mrb[0].mxu0
  %v1743 = vpop.f32.mrb[0].mxu0
  %v1744 = vadd.f32 0.0, %v1743
  %v1745 = vpop.f32.mrb[0].mxu0
  %1746 = vmatprep.mubr.bf16.mxu0 %v1565
  %1747 = vmatmul.mubr.bf16.gmra.mrb[0].mxu0 %v1564
  %v1748 = vpop.f32.mrb[0].mxu0
  %v1749 = vadd.f32 0.0, %v1748
  %v1750 = vpop.f32.mrb[0].mxu0
  %v1751 = vpop.f32.mrb[0].mxu0
  %v1752 = vadd.f32 0.0, %v1751
  %v1753 = vpop.f32.mrb[0].mxu0
  %1754 = vmatprep.mubr.bf16.mxu0 %v1567
  %1755 = vmatmul.mubr.bf16.gmra.mrb[0].mxu0 %v1566
  %v1756 = vpop.f32.mrb[0].mxu0
  %v1757 = vadd.f32 0.0, %v1756
  %v1758 = vpop.f32.mrb[0].mxu0
  %v1759 = vpop.f32.mrb[0].mxu0
  %v1760 = vadd.f32 0.0, %v1759
  %v1761 = vpop.f32.mrb[0].mxu0
  %1762 = vmatprep.mubr.bf16.mxu0 %v1569
  %1763 = vmatmul.mubr.bf16.gmra.mrb[0].mxu0 %v1568
  %v1764 = vpop.f32.mrb[0].mxu0
  %v1765 = vadd.f32 0.0, %v1764
  %v1766 = vpop.f32.mrb[0].mxu0
  %v1767 = vpop.f32.mrb[0].mxu0
  %v1768 = vadd.f32 0.0, %v1767
  %v1769 = vpop.f32.mrb[0].mxu0
  %1770 = vmatprep.mubr.bf16.mxu0 %v1571
  %1771 = vmatmul.mubr.bf16.gmra.mrb[0].mxu0 %v1570
  %v1772 = vpop.f32.mrb[0].mxu0
  %v1773 = vadd.f32 0.0, %v1772
  %v1774 = vpop.f32.mrb[0].mxu0
  %v1775 = vpop.f32.mrb[0].mxu0
  %v1776 = vadd.f32 0.0, %v1775
  %v1777 = vpop.f32.mrb[0].mxu0
  %1778 = vmatprep.mubr.bf16.mxu0 %v1573
  %1779 = vmatmul.mubr.bf16.gmra.mrb[0].mxu0 %v1572
  %v1780 = vpop.f32.mrb[0].mxu0
  %v1781 = vadd.f32 0.0, %v1780
  %v1782 = vpop.f32.mrb[0].mxu0
  %v1783 = vpop.f32.mrb[0].mxu0
  %v1784 = vadd.f32 0.0, %v1783
  %v1785 = vpop.f32.mrb[0].mxu0
  %1786 = vdwg.mxu0
  %v1787 = vmax.f32 %v1358, %v1645
  %v1788 = vmax.f32 %v1359, %v1648
  %v1789 = vmax.f32 %v1360, %v1653
  %v1790 = vmax.f32 %v1361, %v1656
  %v1791 = vmax.f32 %v1362, %v1661
  %v1792 = vmax.f32 %v1363, %v1664
  %v1793 = vmax.f32 %v1364, %v1669
  %v1794 = vmax.f32 %v1365, %v1672
  %v1795 = vmax.f32 %v1366, %v1677
  %v1796 = vmax.f32 %v1367, %v1680
  %v1797 = vmax.f32 %v1368, %v1685
  %v1798 = vmax.f32 %v1369, %v1688
  %v1799 = vmax.f32 %v1370, %v1693
  %v1800 = vmax.f32 %v1371, %v1696
  %v1801 = vmax.f32 %v1372, %v1701
  %v1802 = vmax.f32 %v1373, %v1704
  %v1803 = vmax.f32 %v1374, %v1709
  %v1804 = vmax.f32 %v1375, %v1712
  %v1805 = vmax.f32 %v1376, %v1717
  %v1806 = vmax.f32 %v1377, %v1720
  %v1807 = vmax.f32 %v1378, %v1725
  %v1808 = vmax.f32 %v1379, %v1728
  %v1809 = vmax.f32 %v1380, %v1733
  %v1810 = vmax.f32 %v1381, %v1736
  %v1811 = vmax.f32 %v1382, %v1741
  %v1812 = vmax.f32 %v1383, %v1744
  %v1813 = vmax.f32 %v1384, %v1749
  %v1814 = vmax.f32 %v1385, %v1752
  %v1815 = vmax.f32 %v1386, %v1757
  %v1816 = vmax.f32 %v1387, %v1760
  %v1817 = vmax.f32 %v1388, %v1765
  %v1818 = vmax.f32 %v1389, %v1768
  %v1819 = vmax.f32 %v1390, %v1773
  %v1820 = vmax.f32 %v1391, %v1776
  %v1821 = vmax.f32 %v1392, %v1781
  %v1822 = vmax.f32 %v1393, %v1784
  %v1823 = vld [vmem:[%s2] sm:$0x1]
  %v1825 = vlaneseq
  %v1826 = vshrl.u32 %v1825, 7
  %v1827 = vsub.s32 0, %v1826
  %v1828 = vrot.slane %v1823, %v1827
  %v1830 = vadd.f32 %v1787, %v1828
  %v1831 = vadd.f32 %v1788, %v1828
  %v1832 = vadd.f32 %v1789, %v1828
  %v1833 = vadd.f32 %v1790, %v1828
  %v1834 = vadd.f32 %v1791, %v1828
  %v1835 = vadd.f32 %v1792, %v1828
  %v1836 = vadd.f32 %v1793, %v1828
  %v1837 = vadd.f32 %v1794, %v1828
  %v1838 = vadd.f32 %v1795, %v1828
  %v1839 = vadd.f32 %v1796, %v1828
  %v1840 = vadd.f32 %v1797, %v1828
  %v1841 = vadd.f32 %v1798, %v1828
  %v1842 = vadd.f32 %v1799, %v1828
  %v1843 = vadd.f32 %v1800, %v1828
  %v1844 = vadd.f32 %v1801, %v1828
  %v1845 = vadd.f32 %v1802, %v1828
  %v1846 = vadd.f32 %v1803, %v1828
  %v1847 = vadd.f32 %v1804, %v1828
  %v1848 = vadd.f32 %v1805, %v1828
  %v1849 = vadd.f32 %v1806, %v1828
  %v1850 = vadd.f32 %v1807, %v1828
  %v1851 = vadd.f32 %v1808, %v1828
  %v1852 = vadd.f32 %v1809, %v1828
  %v1853 = vadd.f32 %v1810, %v1828
  %v1854 = vadd.f32 %v1811, %v1828
  %v1855 = vadd.f32 %v1812, %v1828
  %v1856 = vadd.f32 %v1813, %v1828
  %v1857 = vadd.f32 %v1814, %v1828
  %v1858 = vadd.f32 %v1815, %v1828
  %v1859 = vadd.f32 %v1816, %v1828
  %v1860 = vadd.f32 %v1817, %v1828
  %v1861 = vadd.f32 %v1818, %v1828
  %v1862 = vadd.f32 %v1819, %v1828
  %v1863 = vadd.f32 %v1820, %v1828
  %v1864 = vadd.f32 %v1821, %v1828
  %v1865 = vadd.f32 %v1822, %v1828
  %v1866 = vmax.f32 %v1830, 0.0
  %v1867 = vmax.f32 %v1831, 0.0
  %v1868 = vmax.f32 %v1832, 0.0
  %v1869 = vmax.f32 %v1833, 0.0
  %v1870 = vmax.f32 %v1834, 0.0
  %v1871 = vmax.f32 %v1835, 0.0
  %v1872 = vmax.f32 %v1836, 0.0
  %v1873 = vmax.f32 %v1837, 0.0
  %v1874 = vmax.f32 %v1838, 0.0
  %v1875 = vmax.f32 %v1839, 0.0
  %v1876 = vmax.f32 %v1840, 0.0
  %v1877 = vmax.f32 %v1841, 0.0
  %v1878 = vmax.f32 %v1842, 0.0
  %v1879 = vmax.f32 %v1843, 0.0
  %v1880 = vmax.f32 %v1844, 0.0
  %v1881 = vmax.f32 %v1845, 0.0
  %v1882 = vmax.f32 %v1846, 0.0
  %v1883 = vmax.f32 %v1847, 0.0
  %v1884 = vmax.f32 %v1848, 0.0
  %v1885 = vmax.f32 %v1849, 0.0
  %v1886 = vmax.f32 %v1850, 0.0
  %v1887 = vmax.f32 %v1851, 0.0
  %v1888 = vmax.f32 %v1852, 0.0
  %v1889 = vmax.f32 %v1853, 0.0
  %v1890 = vmax.f32 %v1854, 0.0
  %v1891 = vmax.f32 %v1855, 0.0
  %v1892 = vmax.f32 %v1856, 0.0
  %v1893 = vmax.f32 %v1857, 0.0
  %v1894 = vmax.f32 %v1858, 0.0
  %v1895 = vmax.f32 %v1859, 0.0
  %v1896 = vmax.f32 %v1860, 0.0
  %v1897 = vmax.f32 %v1861, 0.0
  %v1898 = vmax.f32 %v1862, 0.0
  %v1899 = vmax.f32 %v1863, 0.0
  %v1900 = vmax.f32 %v1864, 0.0
  %v1901 = vmax.f32 %v1865, 0.0
  %v1902 = vpack.c.bf16 %v1867, %v1866
  %v1903 = vpack.c.bf16 %v1869, %v1868
  %v1904 = vpack.c.bf16 %v1871, %v1870
  %v1905 = vpack.c.bf16 %v1873, %v1872
  %v1906 = vpack.c.bf16 %v1875, %v1874
  %v1907 = vpack.c.bf16 %v1877, %v1876
  %v1908 = vpack.c.bf16 %v1879, %v1878
  %v1909 = vpack.c.bf16 %v1881, %v1880
  %v1910 = vpack.c.bf16 %v1883, %v1882
  %v1911 = vpack.c.bf16 %v1885, %v1884
  %v1912 = vpack.c.bf16 %v1887, %v1886
  %v1913 = vpack.c.bf16 %v1889, %v1888
  %v1914 = vpack.c.bf16 %v1891, %v1890
  %v1915 = vpack.c.bf16 %v1893, %v1892
  %v1916 = vpack.c.bf16 %v1895, %v1894
  %v1917 = vpack.c.bf16 %v1897, %v1896
  %v1918 = vpack.c.bf16 %v1899, %v1898
  %v1919 = vpack.c.bf16 %v1901, %v1900
  %v1938 = vunpack.c.l.b16 %v1902
  %v1939 = vunpack.c.h.b16 %v1902
  %v1940 = vunpack.c.l.b16 %v1903
  %v1941 = vunpack.c.h.b16 %v1903
  %v1942 = vunpack.c.l.b16 %v1904
  %v1943 = vunpack.c.h.b16 %v1904
  %v1944 = vunpack.c.l.b16 %v1905
  %v1945 = vunpack.c.h.b16 %v1905
  %v1946 = vunpack.c.l.b16 %v1906
  %v1947 = vunpack.c.h.b16 %v1906
  %v1948 = vunpack.c.l.b16 %v1907
  %v1949 = vunpack.c.h.b16 %v1907
  %v1950 = vunpack.c.l.b16 %v1908
  %v1951 = vunpack.c.h.b16 %v1908
  %v1952 = vunpack.c.l.b16 %v1909
  %v1953 = vunpack.c.h.b16 %v1909
  %v1954 = vunpack.c.l.b16 %v1910
  %v1955 = vunpack.c.h.b16 %v1910
  %v1956 = vunpack.c.l.b16 %v1911
  %v1957 = vunpack.c.h.b16 %v1911
  %v1958 = vunpack.c.l.b16 %v1912
  %v1959 = vunpack.c.h.b16 %v1912
  %v1960 = vunpack.c.l.b16 %v1913
  %v1961 = vunpack.c.h.b16 %v1913
  %v1962 = vunpack.c.l.b16 %v1914
  %v1963 = vunpack.c.h.b16 %v1914
  %v1964 = vunpack.c.l.b16 %v1915
  %v1965 = vunpack.c.h.b16 %v1915
  %v1966 = vunpack.c.l.b16 %v1916
  %v1967 = vunpack.c.h.b16 %v1916
  %v1968 = vunpack.c.l.b16 %v1917
  %v1969 = vunpack.c.h.b16 %v1917
  %v1970 = vunpack.c.l.b16 %v1918
  %v1971 = vunpack.c.h.b16 %v1918
  %v1972 = vunpack.c.l.b16 %v1919
  %v1973 = vunpack.c.h.b16 %v1919
  %v1974 = vpack.c.b16 %v1938, %v1938
  %v1975 = vpack.c.b16 %v1939, %v1939
  %v1976 = vpack.c.b16 %v1940, %v1940
  %v1977 = vpack.c.b16 %v1941, %v1941
  %v1978 = vpack.c.b16 %v1942, %v1942
  %v1979 = vpack.c.b16 %v1943, %v1943
  %v1980 = vpack.c.b16 %v1944, %v1944
  %v1981 = vpack.c.b16 %v1945, %v1945
  %v1982 = vpack.c.b16 %v1946, %v1946
  %v1983 = vpack.c.b16 %v1947, %v1947
  %v1984 = vpack.c.b16 %v1948, %v1948
  %v1985 = vpack.c.b16 %v1949, %v1949
  %v1986 = vpack.c.b16 %v1950, %v1950
  %v1987 = vpack.c.b16 %v1951, %v1951
  %v1988 = vpack.c.b16 %v1952, %v1952
  %v1989 = vpack.c.b16 %v1953, %v1953
  %v1990 = vpack.c.b16 %v1954, %v1954
  %v1991 = vpack.c.b16 %v1955, %v1955
  %v1992 = vpack.c.b16 %v1956, %v1956
  %v1993 = vpack.c.b16 %v1957, %v1957
  %v1994 = vpack.c.b16 %v1958, %v1958
  %v1995 = vpack.c.b16 %v1959, %v1959
  %v1996 = vpack.c.b16 %v1960, %v1960
  %v1997 = vpack.c.b16 %v1961, %v1961
  %v1998 = vpack.c.b16 %v1962, %v1962
  %v1999 = vpack.c.b16 %v1963, %v1963
  %v2000 = vpack.c.b16 %v1964, %v1964
  %v2001 = vpack.c.b16 %v1965, %v1965
  %v2002 = vpack.c.b16 %v1966, %v1966
  %v2003 = vpack.c.b16 %v1967, %v1967
  %v2004 = vpack.c.b16 %v1968, %v1968
  %v2005 = vpack.c.b16 %v1969, %v1969
  %v2006 = vpack.c.b16 %v1970, %v1970
  %v2007 = vpack.c.b16 %v1971, %v1971
  %v2008 = vpack.c.b16 %v1972, %v1972
  %v2009 = vpack.c.b16 %v1973, %v1973
  %2046 = vst [vmem:[%s3] sm:$0xf] %v1974
  %2047 = vst [vmem:[%s3 + $0x4] sm:$0xf] %v1975
  %2048 = vst [vmem:[%s3 + $0x8] sm:$0xf] %v1976
  %2049 = vst [vmem:[%s3 + $0xc] sm:$0xf] %v1977
  %2050 = vst [vmem:[%s3 + $0x10] sm:$0xf] %v1978
  %2051 = vst [vmem:[%s3 + $0x14] sm:$0xf] %v1979
  %2052 = vst [vmem:[%s3 + $0x18] sm:$0xf] %v1980
  %2053 = vst [vmem:[%s3 + $0x1c] sm:$0xf] %v1981
  %2054 = vst [vmem:[%s3 + $0x20] sm:$0xf] %v1982
  %2055 = vst [vmem:[%s3 + $0x24] sm:$0xf] %v1983
  %2056 = vst [vmem:[%s3 + $0x28] sm:$0xf] %v1984
  %2057 = vst [vmem:[%s3 + $0x2c] sm:$0xf] %v1985
  %2058 = vst [vmem:[%s3 + $0x30] sm:$0xf] %v1986
  %2059 = vst [vmem:[%s3 + $0x34] sm:$0xf] %v1987
  %2060 = vst [vmem:[%s3 + $0x38] sm:$0xf] %v1988
  %2061 = vst [vmem:[%s3 + $0x3c] sm:$0xf] %v1989
  %2062 = vst [vmem:[%s3 + $0x40] sm:$0xf] %v1990
  %2063 = vst [vmem:[%s3 + $0x44] sm:$0xf] %v1991
  %2064 = vst [vmem:[%s3 + $0x48] sm:$0xf] %v1992
  %2065 = vst [vmem:[%s3 + $0x4c] sm:$0xf] %v1993
  %2066 = vst [vmem:[%s3 + $0x50] sm:$0xf] %v1994
  %2067 = vst [vmem:[%s3 + $0x54] sm:$0xf] %v1995
  %2068 = vst [vmem:[%s3 + $0x58] sm:$0xf] %v1996
  %2069 = vst [vmem:[%s3 + $0x5c] sm:$0xf] %v1997
  %2070 = vst [vmem:[%s3 + $0x60] sm:$0xf] %v1998
  %2071 = vst [vmem:[%s3 + $0x64] sm:$0xf] %v1999
  %2072 = vst [vmem:[%s3 + $0x68] sm:$0xf] %v2000
  %2073 = vst [vmem:[%s3 + $0x6c] sm:$0xf] %v2001
  %2074 = vst [vmem:[%s3 + $0x70] sm:$0xf] %v2002
  %2075 = vst [vmem:[%s3 + $0x74] sm:$0xf] %v2003
  %2076 = vst [vmem:[%s3 + $0x78] sm:$0xf] %v2004
  %2077 = vst [vmem:[%s3 + $0x7c] sm:$0xf] %v2005
  %2078 = vst [vmem:[%s3 + $0x80] sm:$0xf] %v2006
  %2079 = vst [vmem:[%s3 + $0x84] sm:$0xf] %v2007
  %2080 = vst [vmem:[%s3 + $0x88] sm:$0xf] %v2008
  %2081 = vst [vmem:[%s3 + $0x8c] sm:$0xf] %v2009
  // Predicated region
  $region14: #{cnn_forward.4} parent=0 // pred_check
    _
  $region15: #{cnn_forward.4} parent=0 // pred_check_branch
    %2083 = sbr.rel (0) target = $region17
  $region16: #{cnn_forward.4} parent=0 // pred_region
    _
  $region17: #{cnn_forward.4} parent=0 // pred_fallthru
    _
  // Predicated region
  $region18: #{cnn_forward.4} parent=0 // pred_check
    _
  $region19: #{cnn_forward.4} parent=0 // pred_check_branch
    %2085 = sbr.rel (0) target = $region21
  $region20: #{cnn_forward.4} parent=0 // pred_region
    _
  $region21: #{cnn_forward.4} parent=0 // pred_fallthru
    _

// kernel: cnn_forward.5
$region0: #{cnn_forward.5}
  #allocation0 [shape = 'u32[]', space=smem, size = 0x4, offset = 0x4, fixed_abs, tag = 'smem constant byte address 0x4 - core index']
  #allocation1 [shape = 'u32[144,128]{1,0:T(1,128)}', space=vmem, size = 0x12000, scoped, tag = 'internal scratch']
  %s0 = inlined_call_operand.vmem [shape: bf16[288,256], index: 0, kind: input, shape index: {}]
  %s1 = inlined_call_operand.vmem [shape: bf16[256,128], index: 1, kind: input, shape index: {}]
  %s2 = inlined_call_operand.vmem [shape: f32[1,128], index: 2, kind: input, shape index: {}]
  %s3 = inlined_call_operand.vmem [shape: f32[8,128], index: 3, kind: input, shape index: {}]
  %s4 = inlined_call_operand.vmem [shape: bf16[1152,128], index: 4, kind: input, shape index: {}]
  %s5 = inlined_call_operand.vmem [shape: f32[1,128], index: 5, kind: input, shape index: {}]
  %s6 = inlined_call_operand.vmem [shape: f32[8,128], index: 6, kind: output, shape index: {}]
  %s7 = sld [smem:[#allocation0]]
  $region34: #{cnn_forward.5} parent=0
    _
  %s9 = ssub.s32 1, %s7
  %s10 = scalar_select 0, %s9, %s7
  // Predicated region
  $region2: #{cnn_forward.5} parent=0 // pred_check
    _
  $region3: #{cnn_forward.5} parent=0 // pred_check_branch
    %12 = sbr.rel (0) target = $region5
  $region4: #{cnn_forward.5} parent=0 // pred_region
    _
  $region5: #{cnn_forward.5} parent=0 // pred_fallthru
    _
  // Predicated region
  $region6: #{cnn_forward.5} parent=0 // pred_check
    _
  $region7: #{cnn_forward.5} parent=0 // pred_check_branch
    %14 = sbr.rel (0) target = $region9
  $region8: #{cnn_forward.5} parent=0 // pred_region
    _
  $region9: #{cnn_forward.5} parent=0 // pred_fallthru
    _
  // Predicated region
  $region10: #{cnn_forward.5} parent=0 // pred_check
    _
  $region11: #{cnn_forward.5} parent=0 // pred_check_branch
    %16 = sbr.rel (0) target = $region13
  $region12: #{cnn_forward.5} parent=0 // pred_region
    _
  $region13: #{cnn_forward.5} parent=0 // pred_fallthru
    _
  // Predicated region
  $region14: #{cnn_forward.5} parent=0 // pred_check
    _
  $region15: #{cnn_forward.5} parent=0 // pred_check_branch
    %18 = sbr.rel (0) target = $region17
  $region16: #{cnn_forward.5} parent=0 // pred_region
    _
  $region17: #{cnn_forward.5} parent=0 // pred_fallthru
    _
  // Predicated region
  $region18: #{cnn_forward.5} parent=0 // pred_check
    _
  $region19: #{cnn_forward.5} parent=0 // pred_check_branch
    %20 = sbr.rel (0) target = $region21
  $region20: #{cnn_forward.5} parent=0 // pred_region
    _
  $region21: #{cnn_forward.5} parent=0 // pred_fallthru
    _
  // Predicated region
  $region22: #{cnn_forward.5} parent=0 // pred_check
    _
  $region23: #{cnn_forward.5} parent=0 // pred_check_branch
    %22 = sbr.rel (0) target = $region25
  $region24: #{cnn_forward.5} parent=0 // pred_region
    _
  $region25: #{cnn_forward.5} parent=0 // pred_fallthru
    _
  %v24 = vld [vmem:[%s1] sm:$0xf]
  %v25 = vld [vmem:[%s1 + $0x4] sm:$0xf]
  %v26 = vld [vmem:[%s1 + $0x8] sm:$0xf]
  %v27 = vld [vmem:[%s1 + $0xc] sm:$0xf]
  %v28 = vld [vmem:[%s1 + $0x10] sm:$0xf]
  %v29 = vld [vmem:[%s1 + $0x14] sm:$0xf]
  %v30 = vld [vmem:[%s1 + $0x18] sm:$0xf]
  %v31 = vld [vmem:[%s1 + $0x1c] sm:$0xf]
  %v32 = vld [vmem:[%s1 + $0x20] sm:$0xf]
  %v33 = vld [vmem:[%s1 + $0x24] sm:$0xf]
  %v34 = vld [vmem:[%s1 + $0x28] sm:$0xf]
  %v35 = vld [vmem:[%s1 + $0x2c] sm:$0xf]
  %v36 = vld [vmem:[%s1 + $0x30] sm:$0xf]
  %v37 = vld [vmem:[%s1 + $0x34] sm:$0xf]
  %v38 = vld [vmem:[%s1 + $0x38] sm:$0xf]
  %v39 = vld [vmem:[%s1 + $0x3c] sm:$0xf]
  %v40 = vld [vmem:[%s1 + $0x40] sm:$0xf]
  %v41 = vld [vmem:[%s1 + $0x44] sm:$0xf]
  %v42 = vld [vmem:[%s1 + $0x48] sm:$0xf]
  %v43 = vld [vmem:[%s1 + $0x4c] sm:$0xf]
  %v44 = vld [vmem:[%s1 + $0x50] sm:$0xf]
  %v45 = vld [vmem:[%s1 + $0x54] sm:$0xf]
  %v46 = vld [vmem:[%s1 + $0x58] sm:$0xf]
  %v47 = vld [vmem:[%s1 + $0x5c] sm:$0xf]
  %v48 = vld [vmem:[%s1 + $0x60] sm:$0xf]
  %v49 = vld [vmem:[%s1 + $0x64] sm:$0xf]
  %v50 = vld [vmem:[%s1 + $0x68] sm:$0xf]
  %v51 = vld [vmem:[%s1 + $0x6c] sm:$0xf]
  %v52 = vld [vmem:[%s1 + $0x70] sm:$0xf]
  %v53 = vld [vmem:[%s1 + $0x74] sm:$0xf]
  %v54 = vld [vmem:[%s1 + $0x78] sm:$0xf]
  %v55 = vld [vmem:[%s1 + $0x7c] sm:$0xf]
  %v56 = vld [vmem:[%s0] sm:$0xff]
  %v57 = vld [vmem:[%s0 + $0x8] sm:$0xff]
  %v58 = vld [vmem:[%s0 + $0x10] sm:$0xff]
  %v59 = vld [vmem:[%s0 + $0x18] sm:$0xff]
  %v60 = vld [vmem:[%s0 + $0x20] sm:$0xff]
  %v61 = vld [vmem:[%s0 + $0x28] sm:$0xff]
  %v62 = vld [vmem:[%s0 + $0x30] sm:$0xff]
  %v63 = vld [vmem:[%s0 + $0x38] sm:$0xff]
  %v64 = vld [vmem:[%s0 + $0x40] sm:$0xff]
  %v74 = vunpack.c.l.b16 %v56
  %v75 = vunpack.c.h.b16 %v56
  %v76 = vunpack.c.l.b16 %v57
  %v77 = vunpack.c.h.b16 %v57
  %v78 = vunpack.c.l.b16 %v58
  %v79 = vunpack.c.h.b16 %v58
  %v80 = vunpack.c.l.b16 %v59
  %v81 = vunpack.c.h.b16 %v59
  %v82 = vunpack.c.l.b16 %v60
  %v83 = vunpack.c.h.b16 %v60
  %v84 = vunpack.c.l.b16 %v61
  %v85 = vunpack.c.h.b16 %v61
  %v86 = vunpack.c.l.b16 %v62
  %v87 = vunpack.c.h.b16 %v62
  %v88 = vunpack.c.l.b16 %v63
  %v89 = vunpack.c.h.b16 %v63
  %v90 = vunpack.c.l.b16 %v64
  %v91 = vunpack.c.h.b16 %v64
  %v92 = vpack.c.b16 %v76, %v74
  %v93 = vpack.c.b16 %v77, %v75
  %v94 = vpack.c.b16 %v80, %v78
  %v95 = vpack.c.b16 %v81, %v79
  %v96 = vpack.c.b16 %v84, %v82
  %v97 = vpack.c.b16 %v85, %v83
  %v98 = vpack.c.b16 %v88, %v86
  %v99 = vpack.c.b16 %v89, %v87
  %v100 = vpack.c.b16 %v90, %v90
  %v101 = vpack.c.b16 %v91, %v91
  %v144 = vunpack.c.l.b16 %v24
  %v145 = vunpack.c.l.b16 %v25
  %v146 = vunpack.c.l.b16 %v26
  %v147 = vunpack.c.l.b16 %v27
  %v148 = vunpack.c.l.b16 %v28
  %v149 = vunpack.c.l.b16 %v29
  %v150 = vunpack.c.l.b16 %v30
  %v151 = vunpack.c.l.b16 %v31
  %v152 = vunpack.c.l.b16 %v32
  %v153 = vunpack.c.l.b16 %v33
  %v154 = vunpack.c.l.b16 %v34
  %v155 = vunpack.c.l.b16 %v35
  %v156 = vunpack.c.l.b16 %v36
  %v157 = vunpack.c.l.b16 %v37
  %v158 = vunpack.c.l.b16 %v38
  %v159 = vunpack.c.l.b16 %v39
  %v160 = vunpack.c.l.b16 %v40
  %v161 = vunpack.c.l.b16 %v41
  %v162 = vunpack.c.l.b16 %v42
  %v163 = vunpack.c.l.b16 %v43
  %v164 = vunpack.c.l.b16 %v44
  %v165 = vunpack.c.l.b16 %v45
  %v166 = vunpack.c.l.b16 %v46
  %v167 = vunpack.c.l.b16 %v47
  %v168 = vunpack.c.l.b16 %v48
  %v169 = vunpack.c.l.b16 %v49
  %v170 = vunpack.c.l.b16 %v50
  %v171 = vunpack.c.l.b16 %v51
  %v172 = vunpack.c.l.b16 %v52
  %v173 = vunpack.c.l.b16 %v53
  %v174 = vunpack.c.l.b16 %v54
  %v175 = vunpack.c.l.b16 %v55
  %v176 = vpack.c.b16 %v145, %v144
  %v177 = vpack.c.b16 %v147, %v146
  %v178 = vpack.c.b16 %v149, %v148
  %v179 = vpack.c.b16 %v151, %v150
  %v180 = vpack.c.b16 %v153, %v152
  %v181 = vpack.c.b16 %v155, %v154
  %v182 = vpack.c.b16 %v157, %v156
  %v183 = vpack.c.b16 %v159, %v158
  %v184 = vpack.c.b16 %v161, %v160
  %v185 = vpack.c.b16 %v163, %v162
  %v186 = vpack.c.b16 %v165, %v164
  %v187 = vpack.c.b16 %v167, %v166
  %v188 = vpack.c.b16 %v169, %v168
  %v189 = vpack.c.b16 %v171, %v170
  %v190 = vpack.c.b16 %v173, %v172
  %v191 = vpack.c.b16 %v175, %v174
  %208 = vmatprep.subr.bf16.mxu0 0
  %209 = vmatpush1.bf16.msra.mxu0 %v176
  %210 = vmatprep.subr.bf16.mxu0 0
  %211 = vmatpush1.bf16.msra.mxu0 %v177
  %212 = vmatprep.subr.bf16.mxu0 0
  %213 = vmatpush1.bf16.msra.mxu0 %v178
  %214 = vmatprep.subr.bf16.mxu0 0
  %215 = vmatpush1.bf16.msra.mxu0 %v179
  %216 = vmatprep.subr.bf16.mxu0 0
  %217 = vmatpush1.bf16.msra.mxu0 %v180
  %218 = vmatprep.subr.bf16.mxu0 0
  %219 = vmatpush1.bf16.msra.mxu0 %v181
  %220 = vmatprep.subr.bf16.mxu0 0
  %221 = vmatpush1.bf16.msra.mxu0 %v182
  %222 = vmatprep.subr.bf16.mxu0 0
  %223 = vmatpush1.bf16.msra.mxu0 %v183
  %224 = vmatprep.subr.bf16.mxu0 0
  %225 = vmatpush1.bf16.msra.mxu0 %v184
  %226 = vmatprep.subr.bf16.mxu0 0
  %227 = vmatpush1.bf16.msra.mxu0 %v185
  %228 = vmatprep.subr.bf16.mxu0 0
  %229 = vmatpush1.bf16.msra.mxu0 %v186
  %230 = vmatprep.subr.bf16.mxu0 0
  %231 = vmatpush1.bf16.msra.mxu0 %v187
  %232 = vmatprep.subr.bf16.mxu0 0
  %233 = vmatpush1.bf16.msra.mxu0 %v188
  %234 = vmatprep.subr.bf16.mxu0 0
  %235 = vmatpush1.bf16.msra.mxu0 %v189
  %236 = vmatprep.subr.bf16.mxu0 0
  %237 = vmatpush1.bf16.msra.mxu0 %v190
  %238 = vmatprep.subr.bf16.mxu0 0
  %239 = vmatpush1.bf16.msra.mxu0 %v191
  %240 = vmatprep.mubr.bf16.mxu0 %v93
  %241 = vmatmul.mubr.bf16.gmra.mrb[0].mxu0 %v92
  %v242 = vpop.f32.mrb[0].mxu0
  %v243 = vadd.f32 0.0, %v242
  %v244 = vpop.f32.mrb[0].mxu0
  %v245 = vpop.f32.mrb[0].mxu0
  %v246 = vadd.f32 0.0, %v245
  %v247 = vpop.f32.mrb[0].mxu0
  %248 = vmatprep.mubr.bf16.mxu0 %v95
  %249 = vmatmul.mubr.bf16.gmra.mrb[0].mxu0 %v94
  %v250 = vpop.f32.mrb[0].mxu0
  %v251 = vadd.f32 0.0, %v250
  %v252 = vpop.f32.mrb[0].mxu0
  %v253 = vpop.f32.mrb[0].mxu0
  %v254 = vadd.f32 0.0, %v253
  %v255 = vpop.f32.mrb[0].mxu0
  %256 = vmatprep.mubr.bf16.mxu0 %v97
  %257 = vmatmul.mubr.bf16.gmra.mrb[0].mxu0 %v96
  %v258 = vpop.f32.mrb[0].mxu0
  %v259 = vadd.f32 0.0, %v258
  %v260 = vpop.f32.mrb[0].mxu0
  %v261 = vpop.f32.mrb[0].mxu0
  %v262 = vadd.f32 0.0, %v261
  %v263 = vpop.f32.mrb[0].mxu0
  %264 = vmatprep.mubr.bf16.mxu0 %v99
  %265 = vmatmul.mubr.bf16.gmra.mrb[0].mxu0 %v98
  %v266 = vpop.f32.mrb[0].mxu0
  %v267 = vadd.f32 0.0, %v266
  %v268 = vpop.f32.mrb[0].mxu0
  %v269 = vpop.f32.mrb[0].mxu0
  %v270 = vadd.f32 0.0, %v269
  %v271 = vpop.f32.mrb[0].mxu0
  %272 = vmatprep.mubr.bf16.mxu0 %v101
  %273 = vmatmul.mubr.bf16.gmra.mrb[0].mxu0 %v100
  %v274 = vpop.f32.mrb[0].mxu0
  %v275 = vadd.f32 0.0, %v274
  %v276 = vpop.f32.mrb[0].mxu0
  %v277 = vpop.f32.mrb[0].mxu0
  %v278 = vpop.f32.mrb[0].mxu0
  %279 = vdwg.mxu0
  %v280 = vld [vmem:[%s0 + $0x48] sm:$0xff]
  %v281 = vld [vmem:[%s0 + $0x50] sm:$0xff]
  %v282 = vld [vmem:[%s0 + $0x58] sm:$0xff]
  %v283 = vld [vmem:[%s0 + $0x60] sm:$0xff]
  %v284 = vld [vmem:[%s0 + $0x68] sm:$0xff]
  %v285 = vld [vmem:[%s0 + $0x70] sm:$0xff]
  %v286 = vld [vmem:[%s0 + $0x78] sm:$0xff]
  %v287 = vld [vmem:[%s0 + $0x80] sm:$0xff]
  %v288 = vld [vmem:[%s0 + $0x88] sm:$0xff]
  %v298 = vunpack.c.l.b16 %v280
  %v299 = vunpack.c.h.b16 %v280
  %v300 = vunpack.c.l.b16 %v281
  %v301 = vunpack.c.h.b16 %v281
  %v302 = vunpack.c.l.b16 %v282
  %v303 = vunpack.c.h.b16 %v282
  %v304 = vunpack.c.l.b16 %v283
  %v305 = vunpack.c.h.b16 %v283
  %v306 = vunpack.c.l.b16 %v284
  %v307 = vunpack.c.h.b16 %v284
  %v308 = vunpack.c.l.b16 %v285
  %v309 = vunpack.c.h.b16 %v285
  %v310 = vunpack.c.l.b16 %v286
  %v311 = vunpack.c.h.b16 %v286
  %v312 = vunpack.c.l.b16 %v287
  %v313 = vunpack.c.h.b16 %v287
  %v314 = vunpack.c.l.b16 %v288
  %v315 = vunpack.c.h.b16 %v288
  %v316 = vpack.c.b16 %v300, %v298
  %v317 = vpack.c.b16 %v301, %v299
  %v318 = vpack.c.b16 %v304, %v302
  %v319 = vpack.c.b16 %v305, %v303
  %v320 = vpack.c.b16 %v308, %v306
  %v321 = vpack.c.b16 %v309, %v307
  %v322 = vpack.c.b16 %v312, %v310
  %v323 = vpack.c.b16 %v313, %v311
  %v324 = vpack.c.b16 %v314, %v314
  %v325 = vpack.c.b16 %v315, %v315
  %336 = vmatprep.subr.bf16.mxu0 0
  %337 = vmatpush1.bf16.msra.mxu0 %v176
  %338 = vmatprep.subr.bf16.mxu0 0
  %339 = vmatpush1.bf16.msra.mxu0 %v177
  %340 = vmatprep.subr.bf16.mxu0 0
  %341 = vmatpush1.bf16.msra.mxu0 %v178
  %342 = vmatprep.subr.bf16.mxu0 0
  %343 = vmatpush1.bf16.msra.mxu0 %v179
  %344 = vmatprep.subr.bf16.mxu0 0
  %345 = vmatpush1.bf16.msra.mxu0 %v180
  %346 = vmatprep.subr.bf16.mxu0 0
  %347 = vmatpush1.bf16.msra.mxu0 %v181
  %348 = vmatprep.subr.bf16.mxu0 0
  %349 = vmatpush1.bf16.msra.mxu0 %v182
  %350 = vmatprep.subr.bf16.mxu0 0
  %351 = vmatpush1.bf16.msra.mxu0 %v183
  %352 = vmatprep.subr.bf16.mxu0 0
  %353 = vmatpush1.bf16.msra.mxu0 %v184
  %354 = vmatprep.subr.bf16.mxu0 0
  %355 = vmatpush1.bf16.msra.mxu0 %v185
  %356 = vmatprep.subr.bf16.mxu0 0
  %357 = vmatpush1.bf16.msra.mxu0 %v186
  %358 = vmatprep.subr.bf16.mxu0 0
  %359 = vmatpush1.bf16.msra.mxu0 %v187
  %360 = vmatprep.subr.bf16.mxu0 0
  %361 = vmatpush1.bf16.msra.mxu0 %v188
  %362 = vmatprep.subr.bf16.mxu0 0
  %363 = vmatpush1.bf16.msra.mxu0 %v189
  %364 = vmatprep.subr.bf16.mxu0 0
  %365 = vmatpush1.bf16.msra.mxu0 %v190
  %366 = vmatprep.subr.bf16.mxu0 0
  %367 = vmatpush1.bf16.msra.mxu0 %v191
  %368 = vmatprep.mubr.bf16.mxu0 %v317
  %369 = vmatmul.mubr.bf16.gmra.mrb[0].mxu0 %v316
  %v370 = vpop.f32.mrb[0].mxu0
  %v371 = vadd.f32 0.0, %v370
  %v372 = vpop.f32.mrb[0].mxu0
  %v373 = vpop.f32.mrb[0].mxu0
  %v374 = vadd.f32 0.0, %v373
  %v375 = vpop.f32.mrb[0].mxu0
  %376 = vmatprep.mubr.bf16.mxu0 %v319
  %377 = vmatmul.mubr.bf16.gmra.mrb[0].mxu0 %v318
  %v378 = vpop.f32.mrb[0].mxu0
  %v379 = vadd.f32 0.0, %v378
  %v380 = vpop.f32.mrb[0].mxu0
  %v381 = vpop.f32.mrb[0].mxu0
  %v382 = vadd.f32 0.0, %v381
  %v383 = vpop.f32.mrb[0].mxu0
  %384 = vmatprep.mubr.bf16.mxu0 %v321
  %385 = vmatmul.mubr.bf16.gmra.mrb[0].mxu0 %v320
  %v386 = vpop.f32.mrb[0].mxu0
  %v387 = vadd.f32 0.0, %v386
  %v388 = vpop.f32.mrb[0].mxu0
  %v389 = vpop.f32.mrb[0].mxu0
  %v390 = vadd.f32 0.0, %v389
  %v391 = vpop.f32.mrb[0].mxu0
  %392 = vmatprep.mubr.bf16.mxu0 %v323
  %393 = vmatmul.mubr.bf16.gmra.mrb[0].mxu0 %v322
  %v394 = vpop.f32.mrb[0].mxu0
  %v395 = vadd.f32 0.0, %v394
  %v396 = vpop.f32.mrb[0].mxu0
  %v397 = vpop.f32.mrb[0].mxu0
  %v398 = vadd.f32 0.0, %v397
  %v399 = vpop.f32.mrb[0].mxu0
  %400 = vmatprep.mubr.bf16.mxu0 %v325
  %401 = vmatmul.mubr.bf16.gmra.mrb[0].mxu0 %v324
  %v402 = vpop.f32.mrb[0].mxu0
  %v403 = vadd.f32 0.0, %v402
  %v404 = vpop.f32.mrb[0].mxu0
  %v405 = vpop.f32.mrb[0].mxu0
  %v406 = vpop.f32.mrb[0].mxu0
  %407 = vdwg.mxu0
  %v408 = vmax.f32 %v243, %v371
  %v409 = vmax.f32 %v246, %v374
  %v410 = vmax.f32 %v251, %v379
  %v411 = vmax.f32 %v254, %v382
  %v412 = vmax.f32 %v259, %v387
  %v413 = vmax.f32 %v262, %v390
  %v414 = vmax.f32 %v267, %v395
  %v415 = vmax.f32 %v270, %v398
  %v416 = vmax.f32 %v275, %v403
  %v417 = vld [vmem:[%s0 + $0x90] sm:$0xff]
  %v418 = vld [vmem:[%s0 + $0x98] sm:$0xff]
  %v419 = vld [vmem:[%s0 + $0xa0] sm:$0xff]
  %v420 = vld [vmem:[%s0 + $0xa8] sm:$0xff]
  %v421 = vld [vmem:[%s0 + $0xb0] sm:$0xff]
  %v422 = vld [vmem:[%s0 + $0xb8] sm:$0xff]
  %v423 = vld [vmem:[%s0 + $0xc0] sm:$0xff]
  %v424 = vld [vmem:[%s0 + $0xc8] sm:$0xff]
  %v425 = vld [vmem:[%s0 + $0xd0] sm:$0xff]
  %v435 = vunpack.c.l.b16 %v417
  %v436 = vunpack.c.h.b16 %v417
  %v437 = vunpack.c.l.b16 %v418
  %v438 = vunpack.c.h.b16 %v418
  %v439 = vunpack.c.l.b16 %v419
  %v440 = vunpack.c.h.b16 %v419
  %v441 = vunpack.c.l.b16 %v420
  %v442 = vunpack.c.h.b16 %v420
  %v443 = vunpack.c.l.b16 %v421
  %v444 = vunpack.c.h.b16 %v421
  %v445 = vunpack.c.l.b16 %v422
  %v446 = vunpack.c.h.b16 %v422
  %v447 = vunpack.c.l.b16 %v423
  %v448 = vunpack.c.h.b16 %v423
  %v449 = vunpack.c.l.b16 %v424
  %v450 = vunpack.c.h.b16 %v424
  %v451 = vunpack.c.l.b16 %v425
  %v452 = vunpack.c.h.b16 %v425
  %v453 = vpack.c.b16 %v437, %v435
  %v454 = vpack.c.b16 %v438, %v436
  %v455 = vpack.c.b16 %v441, %v439
  %v456 = vpack.c.b16 %v442, %v440
  %v457 = vpack.c.b16 %v445, %v443
  %v458 = vpack.c.b16 %v446, %v444
  %v459 = vpack.c.b16 %v449, %v447
  %v460 = vpack.c.b16 %v450, %v448
  %v461 = vpack.c.b16 %v451, %v451
  %v462 = vpack.c.b16 %v452, %v452
  %473 = vmatprep.subr.bf16.mxu0 0
  %474 = vmatpush1.bf16.msra.mxu0 %v176
  %475 = vmatprep.subr.bf16.mxu0 0
  %476 = vmatpush1.bf16.msra.mxu0 %v177
  %477 = vmatprep.subr.bf16.mxu0 0
  %478 = vmatpush1.bf16.msra.mxu0 %v178
  %479 = vmatprep.subr.bf16.mxu0 0
  %480 = vmatpush1.bf16.msra.mxu0 %v179
  %481 = vmatprep.subr.bf16.mxu0 0
  %482 = vmatpush1.bf16.msra.mxu0 %v180
  %483 = vmatprep.subr.bf16.mxu0 0
  %484 = vmatpush1.bf16.msra.mxu0 %v181
  %485 = vmatprep.subr.bf16.mxu0 0
  %486 = vmatpush1.bf16.msra.mxu0 %v182
  %487 = vmatprep.subr.bf16.mxu0 0
  %488 = vmatpush1.bf16.msra.mxu0 %v183
  %489 = vmatprep.subr.bf16.mxu0 0
  %490 = vmatpush1.bf16.msra.mxu0 %v184
  %491 = vmatprep.subr.bf16.mxu0 0
  %492 = vmatpush1.bf16.msra.mxu0 %v185
  %493 = vmatprep.subr.bf16.mxu0 0
  %494 = vmatpush1.bf16.msra.mxu0 %v186
  %495 = vmatprep.subr.bf16.mxu0 0
  %496 = vmatpush1.bf16.msra.mxu0 %v187
  %497 = vmatprep.subr.bf16.mxu0 0
  %498 = vmatpush1.bf16.msra.mxu0 %v188
  %499 = vmatprep.subr.bf16.mxu0 0
  %500 = vmatpush1.bf16.msra.mxu0 %v189
  %501 = vmatprep.subr.bf16.mxu0 0
  %502 = vmatpush1.bf16.msra.mxu0 %v190
  %503 = vmatprep.subr.bf16.mxu0 0
  %504 = vmatpush1.bf16.msra.mxu0 %v191
  %505 = vmatprep.mubr.bf16.mxu0 %v454
  %506 = vmatmul.mubr.bf16.gmra.mrb[0].mxu0 %v453
  %v507 = vpop.f32.mrb[0].mxu0
  %v508 = vadd.f32 0.0, %v507
  %v509 = vpop.f32.mrb[0].mxu0
  %v510 = vpop.f32.mrb[0].mxu0
  %v511 = vadd.f32 0.0, %v510
  %v512 = vpop.f32.mrb[0].mxu0
  %513 = vmatprep.mubr.bf16.mxu0 %v456
  %514 = vmatmul.mubr.bf16.gmra.mrb[0].mxu0 %v455
  %v515 = vpop.f32.mrb[0].mxu0
  %v516 = vadd.f32 0.0, %v515
  %v517 = vpop.f32.mrb[0].mxu0
  %v518 = vpop.f32.mrb[0].mxu0
  %v519 = vadd.f32 0.0, %v518
  %v520 = vpop.f32.mrb[0].mxu0
  %521 = vmatprep.mubr.bf16.mxu0 %v458
  %522 = vmatmul.mubr.bf16.gmra.mrb[0].mxu0 %v457
  %v523 = vpop.f32.mrb[0].mxu0
  %v524 = vadd.f32 0.0, %v523
  %v525 = vpop.f32.mrb[0].mxu0
  %v526 = vpop.f32.mrb[0].mxu0
  %v527 = vadd.f32 0.0, %v526
  %v528 = vpop.f32.mrb[0].mxu0
  %529 = vmatprep.mubr.bf16.mxu0 %v460
  %530 = vmatmul.mubr.bf16.gmra.mrb[0].mxu0 %v459
  %v531 = vpop.f32.mrb[0].mxu0
  %v532 = vadd.f32 0.0, %v531
  %v533 = vpop.f32.mrb[0].mxu0
  %v534 = vpop.f32.mrb[0].mxu0
  %v535 = vadd.f32 0.0, %v534
  %v536 = vpop.f32.mrb[0].mxu0
  %537 = vmatprep.mubr.bf16.mxu0 %v462
  %538 = vmatmul.mubr.bf16.gmra.mrb[0].mxu0 %v461
  %v539 = vpop.f32.mrb[0].mxu0
  %v540 = vadd.f32 0.0, %v539
  %v541 = vpop.f32.mrb[0].mxu0
  %v542 = vpop.f32.mrb[0].mxu0
  %v543 = vpop.f32.mrb[0].mxu0
  %544 = vdwg.mxu0
  %v545 = vmax.f32 %v408, %v508
  %v546 = vmax.f32 %v409, %v511
  %v547 = vmax.f32 %v410, %v516
  %v548 = vmax.f32 %v411, %v519
  %v549 = vmax.f32 %v412, %v524
  %v550 = vmax.f32 %v413, %v527
  %v551 = vmax.f32 %v414, %v532
  %v552 = vmax.f32 %v415, %v535
  %v553 = vmax.f32 %v416, %v540
  %v554 = vld [vmem:[%s0 + $0xd8] sm:$0xff]
  %v555 = vld [vmem:[%s0 + $0xe0] sm:$0xff]
  %v556 = vld [vmem:[%s0 + $0xe8] sm:$0xff]
  %v557 = vld [vmem:[%s0 + $0xf0] sm:$0xff]
  %v558 = vld [vmem:[%s0 + $0xf8] sm:$0xff]
  %v559 = vld [vmem:[%s0 + $0x100] sm:$0xff]
  %v560 = vld [vmem:[%s0 + $0x108] sm:$0xff]
  %v561 = vld [vmem:[%s0 + $0x110] sm:$0xff]
  %v562 = vld [vmem:[%s0 + $0x118] sm:$0xff]
  %v572 = vunpack.c.l.b16 %v554
  %v573 = vunpack.c.h.b16 %v554
  %v574 = vunpack.c.l.b16 %v555
  %v575 = vunpack.c.h.b16 %v555
  %v576 = vunpack.c.l.b16 %v556
  %v577 = vunpack.c.h.b16 %v556
  %v578 = vunpack.c.l.b16 %v557
  %v579 = vunpack.c.h.b16 %v557
  %v580 = vunpack.c.l.b16 %v558
  %v581 = vunpack.c.h.b16 %v558
  %v582 = vunpack.c.l.b16 %v559
  %v583 = vunpack.c.h.b16 %v559
  %v584 = vunpack.c.l.b16 %v560
  %v585 = vunpack.c.h.b16 %v560
  %v586 = vunpack.c.l.b16 %v561
  %v587 = vunpack.c.h.b16 %v561
  %v588 = vunpack.c.l.b16 %v562
  %v589 = vunpack.c.h.b16 %v562
  %v590 = vpack.c.b16 %v574, %v572
  %v591 = vpack.c.b16 %v575, %v573
  %v592 = vpack.c.b16 %v578, %v576
  %v593 = vpack.c.b16 %v579, %v577
  %v594 = vpack.c.b16 %v582, %v580
  %v595 = vpack.c.b16 %v583, %v581
  %v596 = vpack.c.b16 %v586, %v584
  %v597 = vpack.c.b16 %v587, %v585
  %v598 = vpack.c.b16 %v588, %v588
  %v599 = vpack.c.b16 %v589, %v589
  %610 = vmatprep.subr.bf16.mxu0 0
  %611 = vmatpush1.bf16.msra.mxu0 %v176
  %612 = vmatprep.subr.bf16.mxu0 0
  %613 = vmatpush1.bf16.msra.mxu0 %v177
  %614 = vmatprep.subr.bf16.mxu0 0
  %615 = vmatpush1.bf16.msra.mxu0 %v178
  %616 = vmatprep.subr.bf16.mxu0 0
  %617 = vmatpush1.bf16.msra.mxu0 %v179
  %618 = vmatprep.subr.bf16.mxu0 0
  %619 = vmatpush1.bf16.msra.mxu0 %v180
  %620 = vmatprep.subr.bf16.mxu0 0
  %621 = vmatpush1.bf16.msra.mxu0 %v181
  %622 = vmatprep.subr.bf16.mxu0 0
  %623 = vmatpush1.bf16.msra.mxu0 %v182
  %624 = vmatprep.subr.bf16.mxu0 0
  %625 = vmatpush1.bf16.msra.mxu0 %v183
  %626 = vmatprep.subr.bf16.mxu0 0
  %627 = vmatpush1.bf16.msra.mxu0 %v184
  %628 = vmatprep.subr.bf16.mxu0 0
  %629 = vmatpush1.bf16.msra.mxu0 %v185
  %630 = vmatprep.subr.bf16.mxu0 0
  %631 = vmatpush1.bf16.msra.mxu0 %v186
  %632 = vmatprep.subr.bf16.mxu0 0
  %633 = vmatpush1.bf16.msra.mxu0 %v187
  %634 = vmatprep.subr.bf16.mxu0 0
  %635 = vmatpush1.bf16.msra.mxu0 %v188
  %636 = vmatprep.subr.bf16.mxu0 0
  %637 = vmatpush1.bf16.msra.mxu0 %v189
  %638 = vmatprep.subr.bf16.mxu0 0
  %639 = vmatpush1.bf16.msra.mxu0 %v190
  %640 = vmatprep.subr.bf16.mxu0 0
  %641 = vmatpush1.bf16.msra.mxu0 %v191
  %642 = vmatprep.mubr.bf16.mxu0 %v591
  %643 = vmatmul.mubr.bf16.gmra.mrb[0].mxu0 %v590
  %v644 = vpop.f32.mrb[0].mxu0
  %v645 = vadd.f32 0.0, %v644
  %v646 = vpop.f32.mrb[0].mxu0
  %v647 = vpop.f32.mrb[0].mxu0
  %v648 = vadd.f32 0.0, %v647
  %v649 = vpop.f32.mrb[0].mxu0
  %650 = vmatprep.mubr.bf16.mxu0 %v593
  %651 = vmatmul.mubr.bf16.gmra.mrb[0].mxu0 %v592
  %v652 = vpop.f32.mrb[0].mxu0
  %v653 = vadd.f32 0.0, %v652
  %v654 = vpop.f32.mrb[0].mxu0
  %v655 = vpop.f32.mrb[0].mxu0
  %v656 = vadd.f32 0.0, %v655
  %v657 = vpop.f32.mrb[0].mxu0
  %658 = vmatprep.mubr.bf16.mxu0 %v595
  %659 = vmatmul.mubr.bf16.gmra.mrb[0].mxu0 %v594
  %v660 = vpop.f32.mrb[0].mxu0
  %v661 = vadd.f32 0.0, %v660
  %v662 = vpop.f32.mrb[0].mxu0
  %v663 = vpop.f32.mrb[0].mxu0
  %v664 = vadd.f32 0.0, %v663
  %v665 = vpop.f32.mrb[0].mxu0
  %666 = vmatprep.mubr.bf16.mxu0 %v597
  %667 = vmatmul.mubr.bf16.gmra.mrb[0].mxu0 %v596
  %v668 = vpop.f32.mrb[0].mxu0
  %v669 = vadd.f32 0.0, %v668
  %v670 = vpop.f32.mrb[0].mxu0
  %v671 = vpop.f32.mrb[0].mxu0
  %v672 = vadd.f32 0.0, %v671
  %v673 = vpop.f32.mrb[0].mxu0
  %674 = vmatprep.mubr.bf16.mxu0 %v599
  %675 = vmatmul.mubr.bf16.gmra.mrb[0].mxu0 %v598
  %v676 = vpop.f32.mrb[0].mxu0
  %v677 = vadd.f32 0.0, %v676
  %v678 = vpop.f32.mrb[0].mxu0
  %v679 = vpop.f32.mrb[0].mxu0
  %v680 = vpop.f32.mrb[0].mxu0
  %681 = vdwg.mxu0
  %v682 = vmax.f32 %v545, %v645
  %v683 = vmax.f32 %v546, %v648
  %v684 = vmax.f32 %v547, %v653
  %v685 = vmax.f32 %v548, %v656
  %v686 = vmax.f32 %v549, %v661
  %v687 = vmax.f32 %v550, %v664
  %v688 = vmax.f32 %v551, %v669
  %v689 = vmax.f32 %v552, %v672
  %v690 = vmax.f32 %v553, %v677
  %v691 = vld [vmem:[%s2] sm:$0x1]
  %v693 = vlaneseq
  %v694 = vshrl.u32 %v693, 7
  %v695 = vsub.s32 0, %v694
  %v696 = vrot.slane %v691, %v695
  %v698 = vadd.f32 %v682, %v696
  %v699 = vadd.f32 %v683, %v696
  %v700 = vadd.f32 %v684, %v696
  %v701 = vadd.f32 %v685, %v696
  %v702 = vadd.f32 %v686, %v696
  %v703 = vadd.f32 %v687, %v696
  %v704 = vadd.f32 %v688, %v696
  %v705 = vadd.f32 %v689, %v696
  %v706 = vadd.f32 %v690, %v696
  %v707 = vmax.f32 %v698, 0.0
  %v708 = vmax.f32 %v699, 0.0
  %v709 = vmax.f32 %v700, 0.0
  %v710 = vmax.f32 %v701, 0.0
  %v711 = vmax.f32 %v702, 0.0
  %v712 = vmax.f32 %v703, 0.0
  %v713 = vmax.f32 %v704, 0.0
  %v714 = vmax.f32 %v705, 0.0
  %v715 = vmax.f32 %v706, 0.0
  %v716 = vld [vmem:[%s3] sm:$0xff]
  %v717 = vmul.f32 %v707, %v716
  %v718 = vpack.c.bf16 %v717, %v717
  %v719 = vld [vmem:[%s4] sm:$0xf]
  %v720 = vld [vmem:[%s4 + $0x4] sm:$0xf]
  %v721 = vld [vmem:[%s4 + $0x8] sm:$0xf]
  %v722 = vld [vmem:[%s4 + $0xc] sm:$0xf]
  %v723 = vld [vmem:[%s4 + $0x10] sm:$0xf]
  %v724 = vld [vmem:[%s4 + $0x14] sm:$0xf]
  %v725 = vld [vmem:[%s4 + $0x18] sm:$0xf]
  %v726 = vld [vmem:[%s4 + $0x1c] sm:$0xf]
  %v727 = vld [vmem:[%s4 + $0x20] sm:$0xf]
  %v728 = vld [vmem:[%s4 + $0x24] sm:$0xf]
  %v729 = vld [vmem:[%s4 + $0x28] sm:$0xf]
  %v730 = vld [vmem:[%s4 + $0x2c] sm:$0xf]
  %v731 = vld [vmem:[%s4 + $0x30] sm:$0xf]
  %v732 = vld [vmem:[%s4 + $0x34] sm:$0xf]
  %v733 = vld [vmem:[%s4 + $0x38] sm:$0xf]
  %v734 = vld [vmem:[%s4 + $0x3c] sm:$0xf]
  %v735 = vmul.f32 %v708, %v716
  %v736 = vpack.c.bf16 %v735, %v735
  %v737 = vld [vmem:[%s4 + $0x40] sm:$0xf]
  %v738 = vld [vmem:[%s4 + $0x44] sm:$0xf]
  %v739 = vld [vmem:[%s4 + $0x48] sm:$0xf]
  %v740 = vld [vmem:[%s4 + $0x4c] sm:$0xf]
  %v741 = vld [vmem:[%s4 + $0x50] sm:$0xf]
  %v742 = vld [vmem:[%s4 + $0x54] sm:$0xf]
  %v743 = vld [vmem:[%s4 + $0x58] sm:$0xf]
  %v744 = vld [vmem:[%s4 + $0x5c] sm:$0xf]
  %v745 = vld [vmem:[%s4 + $0x60] sm:$0xf]
  %v746 = vld [vmem:[%s4 + $0x64] sm:$0xf]
  %v747 = vld [vmem:[%s4 + $0x68] sm:$0xf]
  %v748 = vld [vmem:[%s4 + $0x6c] sm:$0xf]
  %v749 = vld [vmem:[%s4 + $0x70] sm:$0xf]
  %v750 = vld [vmem:[%s4 + $0x74] sm:$0xf]
  %v751 = vld [vmem:[%s4 + $0x78] sm:$0xf]
  %v752 = vld [vmem:[%s4 + $0x7c] sm:$0xf]
  %v769 = vunpack.c.l.b16 %v737
  %v770 = vunpack.c.l.b16 %v738
  %v771 = vunpack.c.l.b16 %v739
  %v772 = vunpack.c.l.b16 %v740
  %v773 = vunpack.c.l.b16 %v741
  %v774 = vunpack.c.l.b16 %v742
  %v775 = vunpack.c.l.b16 %v743
  %v776 = vunpack.c.l.b16 %v744
  %v777 = vunpack.c.l.b16 %v745
  %v778 = vunpack.c.l.b16 %v746
  %v779 = vunpack.c.l.b16 %v747
  %v780 = vunpack.c.l.b16 %v748
  %v781 = vunpack.c.l.b16 %v749
  %v782 = vunpack.c.l.b16 %v750
  %v783 = vunpack.c.l.b16 %v751
  %v784 = vunpack.c.l.b16 %v752
  %v785 = vpack.c.b16 %v770, %v769
  %v786 = vpack.c.b16 %v772, %v771
  %v787 = vpack.c.b16 %v774, %v773
  %v788 = vpack.c.b16 %v776, %v775
  %v789 = vpack.c.b16 %v778, %v777
  %v790 = vpack.c.b16 %v780, %v779
  %v791 = vpack.c.b16 %v782, %v781
  %v792 = vpack.c.b16 %v784, %v783
  %801 = vmatprep.subr.bf16.mxu0 0
  %802 = vmatpush1.bf16.msra.mxu0 %v785
  %803 = vmatprep.subr.bf16.mxu0 0
  %804 = vmatpush1.bf16.msra.mxu0 %v786
  %805 = vmatprep.subr.bf16.mxu0 0
  %806 = vmatpush1.bf16.msra.mxu0 %v787
  %807 = vmatprep.subr.bf16.mxu0 0
  %808 = vmatpush1.bf16.msra.mxu0 %v788
  %809 = vmatprep.subr.bf16.mxu0 0
  %810 = vmatpush1.bf16.msra.mxu0 %v789
  %811 = vmatprep.subr.bf16.mxu0 0
  %812 = vmatpush1.bf16.msra.mxu0 %v790
  %813 = vmatprep.subr.bf16.mxu0 0
  %814 = vmatpush1.bf16.msra.mxu0 %v791
  %815 = vmatprep.subr.bf16.mxu0 0
  %816 = vmatpush1.bf16.msra.mxu0 %v792
  %817 = vmatprep.subr.bf16.mxu0 0
  %818 = vmatpush1.bf16.msra.mxu0 0
  %819 = vmatprep.subr.bf16.mxu0 0
  %820 = vmatpush1.bf16.msra.mxu0 0
  %821 = vmatprep.subr.bf16.mxu0 0
  %822 = vmatpush1.bf16.msra.mxu0 0
  %823 = vmatprep.subr.bf16.mxu0 0
  %824 = vmatpush1.bf16.msra.mxu0 0
  %825 = vmatprep.subr.bf16.mxu0 0
  %826 = vmatpush1.bf16.msra.mxu0 0
  %827 = vmatprep.subr.bf16.mxu0 0
  %828 = vmatpush1.bf16.msra.mxu0 0
  %829 = vmatprep.subr.bf16.mxu0 0
  %830 = vmatpush1.bf16.msra.mxu0 0
  %831 = vmatprep.subr.bf16.mxu0 0
  %832 = vmatpush1.bf16.msra.mxu0 0
  %833 = vmatprep.mubr.bf16.mxu0 0
  %834 = vmatmul.mubr.bf16.gmra.mrb[0].mxu0 %v736
  %v835 = vpop.f32.mrb[0].mxu0
  %v836 = vadd.f32 0.0, %v835
  %v837 = vpop.f32.mrb[0].mxu0
  %v838 = vpop.f32.mrb[0].mxu0
  %v839 = vpop.f32.mrb[0].mxu0
  %840 = vdwg.mxu0
  %v857 = vunpack.c.l.b16 %v719
  %v858 = vunpack.c.l.b16 %v720
  %v859 = vunpack.c.l.b16 %v721
  %v860 = vunpack.c.l.b16 %v722
  %v861 = vunpack.c.l.b16 %v723
  %v862 = vunpack.c.l.b16 %v724
  %v863 = vunpack.c.l.b16 %v725
  %v864 = vunpack.c.l.b16 %v726
  %v865 = vunpack.c.l.b16 %v727
  %v866 = vunpack.c.l.b16 %v728
  %v867 = vunpack.c.l.b16 %v729
  %v868 = vunpack.c.l.b16 %v730
  %v869 = vunpack.c.l.b16 %v731
  %v870 = vunpack.c.l.b16 %v732
  %v871 = vunpack.c.l.b16 %v733
  %v872 = vunpack.c.l.b16 %v734
  %v873 = vpack.c.b16 %v858, %v857
  %v874 = vpack.c.b16 %v860, %v859
  %v875 = vpack.c.b16 %v862, %v861
  %v876 = vpack.c.b16 %v864, %v863
  %v877 = vpack.c.b16 %v866, %v865
  %v878 = vpack.c.b16 %v868, %v867
  %v879 = vpack.c.b16 %v870, %v869
  %v880 = vpack.c.b16 %v872, %v871
  %889 = vmatprep.subr.bf16.mxu0 0
  %890 = vmatpush1.bf16.msra.mxu0 %v873
  %891 = vmatprep.subr.bf16.mxu0 0
  %892 = vmatpush1.bf16.msra.mxu0 %v874
  %893 = vmatprep.subr.bf16.mxu0 0
  %894 = vmatpush1.bf16.msra.mxu0 %v875
  %895 = vmatprep.subr.bf16.mxu0 0
  %896 = vmatpush1.bf16.msra.mxu0 %v876
  %897 = vmatprep.subr.bf16.mxu0 0
  %898 = vmatpush1.bf16.msra.mxu0 %v877
  %899 = vmatprep.subr.bf16.mxu0 0
  %900 = vmatpush1.bf16.msra.mxu0 %v878
  %901 = vmatprep.subr.bf16.mxu0 0
  %902 = vmatpush1.bf16.msra.mxu0 %v879
  %903 = vmatprep.subr.bf16.mxu0 0
  %904 = vmatpush1.bf16.msra.mxu0 %v880
  %905 = vmatprep.subr.bf16.mxu0 0
  %906 = vmatpush1.bf16.msra.mxu0 0
  %907 = vmatprep.subr.bf16.mxu0 0
  %908 = vmatpush1.bf16.msra.mxu0 0
  %909 = vmatprep.subr.bf16.mxu0 0
  %910 = vmatpush1.bf16.msra.mxu0 0
  %911 = vmatprep.subr.bf16.mxu0 0
  %912 = vmatpush1.bf16.msra.mxu0 0
  %913 = vmatprep.subr.bf16.mxu0 0
  %914 = vmatpush1.bf16.msra.mxu0 0
  %915 = vmatprep.subr.bf16.mxu0 0
  %916 = vmatpush1.bf16.msra.mxu0 0
  %917 = vmatprep.subr.bf16.mxu0 0
  %918 = vmatpush1.bf16.msra.mxu0 0
  %919 = vmatprep.subr.bf16.mxu0 0
  %920 = vmatpush1.bf16.msra.mxu0 0
  %921 = vmatprep.mubr.bf16.mxu0 0
  %922 = vmatmul.mubr.bf16.gmra.mrb[0].mxu0 %v718
  %v923 = vpop.f32.mrb[0].mxu0
  %v924 = vadd.f32 %v836, %v923
  %v925 = vpop.f32.mrb[0].mxu0
  %v926 = vpop.f32.mrb[0].mxu0
  %v927 = vpop.f32.mrb[0].mxu0
  %928 = vdwg.mxu0
  %v929 = vmul.f32 %v709, %v716
  %v930 = vpack.c.bf16 %v929, %v929
  %v931 = vld [vmem:[%s4 + $0x80] sm:$0xf]
  %v932 = vld [vmem:[%s4 + $0x84] sm:$0xf]
  %v933 = vld [vmem:[%s4 + $0x88] sm:$0xf]
  %v934 = vld [vmem:[%s4 + $0x8c] sm:$0xf]
  %v935 = vld [vmem:[%s4 + $0x90] sm:$0xf]
  %v936 = vld [vmem:[%s4 + $0x94] sm:$0xf]
  %v937 = vld [vmem:[%s4 + $0x98] sm:$0xf]
  %v938 = vld [vmem:[%s4 + $0x9c] sm:$0xf]
  %v939 = vld [vmem:[%s4 + $0xa0] sm:$0xf]
  %v940 = vld [vmem:[%s4 + $0xa4] sm:$0xf]
  %v941 = vld [vmem:[%s4 + $0xa8] sm:$0xf]
  %v942 = vld [vmem:[%s4 + $0xac] sm:$0xf]
  %v943 = vld [vmem:[%s4 + $0xb0] sm:$0xf]
  %v944 = vld [vmem:[%s4 + $0xb4] sm:$0xf]
  %v945 = vld [vmem:[%s4 + $0xb8] sm:$0xf]
  %v946 = vld [vmem:[%s4 + $0xbc] sm:$0xf]
  %v963 = vunpack.c.l.b16 %v931
  %v964 = vunpack.c.l.b16 %v932
  %v965 = vunpack.c.l.b16 %v933
  %v966 = vunpack.c.l.b16 %v934
  %v967 = vunpack.c.l.b16 %v935
  %v968 = vunpack.c.l.b16 %v936
  %v969 = vunpack.c.l.b16 %v937
  %v970 = vunpack.c.l.b16 %v938
  %v971 = vunpack.c.l.b16 %v939
  %v972 = vunpack.c.l.b16 %v940
  %v973 = vunpack.c.l.b16 %v941
  %v974 = vunpack.c.l.b16 %v942
  %v975 = vunpack.c.l.b16 %v943
  %v976 = vunpack.c.l.b16 %v944
  %v977 = vunpack.c.l.b16 %v945
  %v978 = vunpack.c.l.b16 %v946
  %v979 = vpack.c.b16 %v964, %v963
  %v980 = vpack.c.b16 %v966, %v965
  %v981 = vpack.c.b16 %v968, %v967
  %v982 = vpack.c.b16 %v970, %v969
  %v983 = vpack.c.b16 %v972, %v971
  %v984 = vpack.c.b16 %v974, %v973
  %v985 = vpack.c.b16 %v976, %v975
  %v986 = vpack.c.b16 %v978, %v977
  %995 = vmatprep.subr.bf16.mxu0 0
  %996 = vmatpush1.bf16.msra.mxu0 %v979
  %997 = vmatprep.subr.bf16.mxu0 0
  %998 = vmatpush1.bf16.msra.mxu0 %v980
  %999 = vmatprep.subr.bf16.mxu0 0
  %1000 = vmatpush1.bf16.msra.mxu0 %v981
  %1001 = vmatprep.subr.bf16.mxu0 0
  %1002 = vmatpush1.bf16.msra.mxu0 %v982
  %1003 = vmatprep.subr.bf16.mxu0 0
  %1004 = vmatpush1.bf16.msra.mxu0 %v983
  %1005 = vmatprep.subr.bf16.mxu0 0
  %1006 = vmatpush1.bf16.msra.mxu0 %v984
  %1007 = vmatprep.subr.bf16.mxu0 0
  %1008 = vmatpush1.bf16.msra.mxu0 %v985
  %1009 = vmatprep.subr.bf16.mxu0 0
  %1010 = vmatpush1.bf16.msra.mxu0 %v986
  %1011 = vmatprep.subr.bf16.mxu0 0
  %1012 = vmatpush1.bf16.msra.mxu0 0
  %1013 = vmatprep.subr.bf16.mxu0 0
  %1014 = vmatpush1.bf16.msra.mxu0 0
  %1015 = vmatprep.subr.bf16.mxu0 0
  %1016 = vmatpush1.bf16.msra.mxu0 0
  %1017 = vmatprep.subr.bf16.mxu0 0
  %1018 = vmatpush1.bf16.msra.mxu0 0
  %1019 = vmatprep.subr.bf16.mxu0 0
  %1020 = vmatpush1.bf16.msra.mxu0 0
  %1021 = vmatprep.subr.bf16.mxu0 0
  %1022 = vmatpush1.bf16.msra.mxu0 0
  %1023 = vmatprep.subr.bf16.mxu0 0
  %1024 = vmatpush1.bf16.msra.mxu0 0
  %1025 = vmatprep.subr.bf16.mxu0 0
  %1026 = vmatpush1.bf16.msra.mxu0 0
  %1027 = vmatprep.mubr.bf16.mxu0 0
  %1028 = vmatmul.mubr.bf16.gmra.mrb[0].mxu0 %v930
  %v1029 = vpop.f32.mrb[0].mxu0
  %v1030 = vadd.f32 0.0, %v1029
  %v1031 = vpop.f32.mrb[0].mxu0
  %v1032 = vpop.f32.mrb[0].mxu0
  %v1033 = vpop.f32.mrb[0].mxu0
  %1034 = vdwg.mxu0
  %v1035 = vadd.f32 %v924, %v1030
  %v1036 = vmul.f32 %v710, %v716
  %v1037 = vpack.c.bf16 %v1036, %v1036
  %v1038 = vld [vmem:[%s4 + $0xc0] sm:$0xf]
  %v1039 = vld [vmem:[%s4 + $0xc4] sm:$0xf]
  %v1040 = vld [vmem:[%s4 + $0xc8] sm:$0xf]
  %v1041 = vld [vmem:[%s4 + $0xcc] sm:$0xf]
  %v1042 = vld [vmem:[%s4 + $0xd0] sm:$0xf]
  %v1043 = vld [vmem:[%s4 + $0xd4] sm:$0xf]
  %v1044 = vld [vmem:[%s4 + $0xd8] sm:$0xf]
  %v1045 = vld [vmem:[%s4 + $0xdc] sm:$0xf]
  %v1046 = vld [vmem:[%s4 + $0xe0] sm:$0xf]
  %v1047 = vld [vmem:[%s4 + $0xe4] sm:$0xf]
  %v1048 = vld [vmem:[%s4 + $0xe8] sm:$0xf]
  %v1049 = vld [vmem:[%s4 + $0xec] sm:$0xf]
  %v1050 = vld [vmem:[%s4 + $0xf0] sm:$0xf]
  %v1051 = vld [vmem:[%s4 + $0xf4] sm:$0xf]
  %v1052 = vld [vmem:[%s4 + $0xf8] sm:$0xf]
  %v1053 = vld [vmem:[%s4 + $0xfc] sm:$0xf]
  %v1070 = vunpack.c.l.b16 %v1038
  %v1071 = vunpack.c.l.b16 %v1039
  %v1072 = vunpack.c.l.b16 %v1040
  %v1073 = vunpack.c.l.b16 %v1041
  %v1074 = vunpack.c.l.b16 %v1042
  %v1075 = vunpack.c.l.b16 %v1043
  %v1076 = vunpack.c.l.b16 %v1044
  %v1077 = vunpack.c.l.b16 %v1045
  %v1078 = vunpack.c.l.b16 %v1046
  %v1079 = vunpack.c.l.b16 %v1047
  %v1080 = vunpack.c.l.b16 %v1048
  %v1081 = vunpack.c.l.b16 %v1049
  %v1082 = vunpack.c.l.b16 %v1050
  %v1083 = vunpack.c.l.b16 %v1051
  %v1084 = vunpack.c.l.b16 %v1052
  %v1085 = vunpack.c.l.b16 %v1053
  %v1086 = vpack.c.b16 %v1071, %v1070
  %v1087 = vpack.c.b16 %v1073, %v1072
  %v1088 = vpack.c.b16 %v1075, %v1074
  %v1089 = vpack.c.b16 %v1077, %v1076
  %v1090 = vpack.c.b16 %v1079, %v1078
  %v1091 = vpack.c.b16 %v1081, %v1080
  %v1092 = vpack.c.b16 %v1083, %v1082
  %v1093 = vpack.c.b16 %v1085, %v1084
  %1102 = vmatprep.subr.bf16.mxu0 0
  %1103 = vmatpush1.bf16.msra.mxu0 %v1086
  %1104 = vmatprep.subr.bf16.mxu0 0
  %1105 = vmatpush1.bf16.msra.mxu0 %v1087
  %1106 = vmatprep.subr.bf16.mxu0 0
  %1107 = vmatpush1.bf16.msra.mxu0 %v1088
  %1108 = vmatprep.subr.bf16.mxu0 0
  %1109 = vmatpush1.bf16.msra.mxu0 %v1089
  %1110 = vmatprep.subr.bf16.mxu0 0
  %1111 = vmatpush1.bf16.msra.mxu0 %v1090
  %1112 = vmatprep.subr.bf16.mxu0 0
  %1113 = vmatpush1.bf16.msra.mxu0 %v1091
  %1114 = vmatprep.subr.bf16.mxu0 0
  %1115 = vmatpush1.bf16.msra.mxu0 %v1092
  %1116 = vmatprep.subr.bf16.mxu0 0
  %1117 = vmatpush1.bf16.msra.mxu0 %v1093
  %1118 = vmatprep.subr.bf16.mxu0 0
  %1119 = vmatpush1.bf16.msra.mxu0 0
  %1120 = vmatprep.subr.bf16.mxu0 0
  %1121 = vmatpush1.bf16.msra.mxu0 0
  %1122 = vmatprep.subr.bf16.mxu0 0
  %1123 = vmatpush1.bf16.msra.mxu0 0
  %1124 = vmatprep.subr.bf16.mxu0 0
  %1125 = vmatpush1.bf16.msra.mxu0 0
  %1126 = vmatprep.subr.bf16.mxu0 0
  %1127 = vmatpush1.bf16.msra.mxu0 0
  %1128 = vmatprep.subr.bf16.mxu0 0
  %1129 = vmatpush1.bf16.msra.mxu0 0
  %1130 = vmatprep.subr.bf16.mxu0 0
  %1131 = vmatpush1.bf16.msra.mxu0 0
  %1132 = vmatprep.subr.bf16.mxu0 0
  %1133 = vmatpush1.bf16.msra.mxu0 0
  %1134 = vmatprep.mubr.bf16.mxu0 0
  %1135 = vmatmul.mubr.bf16.gmra.mrb[0].mxu0 %v1037
  %v1136 = vpop.f32.mrb[0].mxu0
  %v1137 = vadd.f32 0.0, %v1136
  %v1138 = vpop.f32.mrb[0].mxu0
  %v1139 = vpop.f32.mrb[0].mxu0
  %v1140 = vpop.f32.mrb[0].mxu0
  %1141 = vdwg.mxu0
  %v1142 = vadd.f32 %v1035, %v1137
  %v1143 = vmul.f32 %v711, %v716
  %v1144 = vpack.c.bf16 %v1143, %v1143
  %v1145 = vld [vmem:[%s4 + $0x100] sm:$0xf]
  %v1146 = vld [vmem:[%s4 + $0x104] sm:$0xf]
  %v1147 = vld [vmem:[%s4 + $0x108] sm:$0xf]
  %v1148 = vld [vmem:[%s4 + $0x10c] sm:$0xf]
  %v1149 = vld [vmem:[%s4 + $0x110] sm:$0xf]
  %v1150 = vld [vmem:[%s4 + $0x114] sm:$0xf]
  %v1151 = vld [vmem:[%s4 + $0x118] sm:$0xf]
  %v1152 = vld [vmem:[%s4 + $0x11c] sm:$0xf]
  %v1153 = vld [vmem:[%s4 + $0x120] sm:$0xf]
  %v1154 = vld [vmem:[%s4 + $0x124] sm:$0xf]
  %v1155 = vld [vmem:[%s4 + $0x128] sm:$0xf]
  %v1156 = vld [vmem:[%s4 + $0x12c] sm:$0xf]
  %v1157 = vld [vmem:[%s4 + $0x130] sm:$0xf]
  %v1158 = vld [vmem:[%s4 + $0x134] sm:$0xf]
  %v1159 = vld [vmem:[%s4 + $0x138] sm:$0xf]
  %v1160 = vld [vmem:[%s4 + $0x13c] sm:$0xf]
  %v1177 = vunpack.c.l.b16 %v1145
  %v1178 = vunpack.c.l.b16 %v1146
  %v1179 = vunpack.c.l.b16 %v1147
  %v1180 = vunpack.c.l.b16 %v1148
  %v1181 = vunpack.c.l.b16 %v1149
  %v1182 = vunpack.c.l.b16 %v1150
  %v1183 = vunpack.c.l.b16 %v1151
  %v1184 = vunpack.c.l.b16 %v1152
  %v1185 = vunpack.c.l.b16 %v1153
  %v1186 = vunpack.c.l.b16 %v1154
  %v1187 = vunpack.c.l.b16 %v1155
  %v1188 = vunpack.c.l.b16 %v1156
  %v1189 = vunpack.c.l.b16 %v1157
  %v1190 = vunpack.c.l.b16 %v1158
  %v1191 = vunpack.c.l.b16 %v1159
  %v1192 = vunpack.c.l.b16 %v1160
  %v1193 = vpack.c.b16 %v1178, %v1177
  %v1194 = vpack.c.b16 %v1180, %v1179
  %v1195 = vpack.c.b16 %v1182, %v1181
  %v1196 = vpack.c.b16 %v1184, %v1183
  %v1197 = vpack.c.b16 %v1186, %v1185
  %v1198 = vpack.c.b16 %v1188, %v1187
  %v1199 = vpack.c.b16 %v1190, %v1189
  %v1200 = vpack.c.b16 %v1192, %v1191
  %1209 = vmatprep.subr.bf16.mxu0 0
  %1210 = vmatpush1.bf16.msra.mxu0 %v1193
  %1211 = vmatprep.subr.bf16.mxu0 0
  %1212 = vmatpush1.bf16.msra.mxu0 %v1194
  %1213 = vmatprep.subr.bf16.mxu0 0
  %1214 = vmatpush1.bf16.msra.mxu0 %v1195
  %1215 = vmatprep.subr.bf16.mxu0 0
  %1216 = vmatpush1.bf16.msra.mxu0 %v1196
  %1217 = vmatprep.subr.bf16.mxu0 0
  %1218 = vmatpush1.bf16.msra.mxu0 %v1197
  %1219 = vmatprep.subr.bf16.mxu0 0
  %1220 = vmatpush1.bf16.msra.mxu0 %v1198
  %1221 = vmatprep.subr.bf16.mxu0 0
  %1222 = vmatpush1.bf16.msra.mxu0 %v1199
  %1223 = vmatprep.subr.bf16.mxu0 0
  %1224 = vmatpush1.bf16.msra.mxu0 %v1200
  %1225 = vmatprep.subr.bf16.mxu0 0
  %1226 = vmatpush1.bf16.msra.mxu0 0
  %1227 = vmatprep.subr.bf16.mxu0 0
  %1228 = vmatpush1.bf16.msra.mxu0 0
  %1229 = vmatprep.subr.bf16.mxu0 0
  %1230 = vmatpush1.bf16.msra.mxu0 0
  %1231 = vmatprep.subr.bf16.mxu0 0
  %1232 = vmatpush1.bf16.msra.mxu0 0
  %1233 = vmatprep.subr.bf16.mxu0 0
  %1234 = vmatpush1.bf16.msra.mxu0 0
  %1235 = vmatprep.subr.bf16.mxu0 0
  %1236 = vmatpush1.bf16.msra.mxu0 0
  %1237 = vmatprep.subr.bf16.mxu0 0
  %1238 = vmatpush1.bf16.msra.mxu0 0
  %1239 = vmatprep.subr.bf16.mxu0 0
  %1240 = vmatpush1.bf16.msra.mxu0 0
  %1241 = vmatprep.mubr.bf16.mxu0 0
  %1242 = vmatmul.mubr.bf16.gmra.mrb[0].mxu0 %v1144
  %v1243 = vpop.f32.mrb[0].mxu0
  %v1244 = vadd.f32 0.0, %v1243
  %v1245 = vpop.f32.mrb[0].mxu0
  %v1246 = vpop.f32.mrb[0].mxu0
  %v1247 = vpop.f32.mrb[0].mxu0
  %1248 = vdwg.mxu0
  %v1249 = vadd.f32 %v1142, %v1244
  %v1250 = vmul.f32 %v712, %v716
  %v1251 = vpack.c.bf16 %v1250, %v1250
  %v1252 = vld [vmem:[%s4 + $0x140] sm:$0xf]
  %v1253 = vld [vmem:[%s4 + $0x144] sm:$0xf]
  %v1254 = vld [vmem:[%s4 + $0x148] sm:$0xf]
  %v1255 = vld [vmem:[%s4 + $0x14c] sm:$0xf]
  %v1256 = vld [vmem:[%s4 + $0x150] sm:$0xf]
  %v1257 = vld [vmem:[%s4 + $0x154] sm:$0xf]
  %v1258 = vld [vmem:[%s4 + $0x158] sm:$0xf]
  %v1259 = vld [vmem:[%s4 + $0x15c] sm:$0xf]
  %v1260 = vld [vmem:[%s4 + $0x160] sm:$0xf]
  %v1261 = vld [vmem:[%s4 + $0x164] sm:$0xf]
  %v1262 = vld [vmem:[%s4 + $0x168] sm:$0xf]
  %v1263 = vld [vmem:[%s4 + $0x16c] sm:$0xf]
  %v1264 = vld [vmem:[%s4 + $0x170] sm:$0xf]
  %v1265 = vld [vmem:[%s4 + $0x174] sm:$0xf]
  %v1266 = vld [vmem:[%s4 + $0x178] sm:$0xf]
  %v1267 = vld [vmem:[%s4 + $0x17c] sm:$0xf]
  %v1284 = vunpack.c.l.b16 %v1252
  %v1285 = vunpack.c.l.b16 %v1253
  %v1286 = vunpack.c.l.b16 %v1254
  %v1287 = vunpack.c.l.b16 %v1255
  %v1288 = vunpack.c.l.b16 %v1256
  %v1289 = vunpack.c.l.b16 %v1257
  %v1290 = vunpack.c.l.b16 %v1258
  %v1291 = vunpack.c.l.b16 %v1259
  %v1292 = vunpack.c.l.b16 %v1260
  %v1293 = vunpack.c.l.b16 %v1261
  %v1294 = vunpack.c.l.b16 %v1262
  %v1295 = vunpack.c.l.b16 %v1263
  %v1296 = vunpack.c.l.b16 %v1264
  %v1297 = vunpack.c.l.b16 %v1265
  %v1298 = vunpack.c.l.b16 %v1266
  %v1299 = vunpack.c.l.b16 %v1267
  %v1300 = vpack.c.b16 %v1285, %v1284
  %v1301 = vpack.c.b16 %v1287, %v1286
  %v1302 = vpack.c.b16 %v1289, %v1288
  %v1303 = vpack.c.b16 %v1291, %v1290
  %v1304 = vpack.c.b16 %v1293, %v1292
  %v1305 = vpack.c.b16 %v1295, %v1294
  %v1306 = vpack.c.b16 %v1297, %v1296
  %v1307 = vpack.c.b16 %v1299, %v1298
  %1316 = vmatprep.subr.bf16.mxu0 0
  %1317 = vmatpush1.bf16.msra.mxu0 %v1300
  %1318 = vmatprep.subr.bf16.mxu0 0
  %1319 = vmatpush1.bf16.msra.mxu0 %v1301
  %1320 = vmatprep.subr.bf16.mxu0 0
  %1321 = vmatpush1.bf16.msra.mxu0 %v1302
  %1322 = vmatprep.subr.bf16.mxu0 0
  %1323 = vmatpush1.bf16.msra.mxu0 %v1303
  %1324 = vmatprep.subr.bf16.mxu0 0
  %1325 = vmatpush1.bf16.msra.mxu0 %v1304
  %1326 = vmatprep.subr.bf16.mxu0 0
  %1327 = vmatpush1.bf16.msra.mxu0 %v1305
  %1328 = vmatprep.subr.bf16.mxu0 0
  %1329 = vmatpush1.bf16.msra.mxu0 %v1306
  %1330 = vmatprep.subr.bf16.mxu0 0
  %1331 = vmatpush1.bf16.msra.mxu0 %v1307
  %1332 = vmatprep.subr.bf16.mxu0 0
  %1333 = vmatpush1.bf16.msra.mxu0 0
  %1334 = vmatprep.subr.bf16.mxu0 0
  %1335 = vmatpush1.bf16.msra.mxu0 0
  %1336 = vmatprep.subr.bf16.mxu0 0
  %1337 = vmatpush1.bf16.msra.mxu0 0
  %1338 = vmatprep.subr.bf16.mxu0 0
  %1339 = vmatpush1.bf16.msra.mxu0 0
  %1340 = vmatprep.subr.bf16.mxu0 0
  %1341 = vmatpush1.bf16.msra.mxu0 0
  %1342 = vmatprep.subr.bf16.mxu0 0
  %1343 = vmatpush1.bf16.msra.mxu0 0
  %1344 = vmatprep.subr.bf16.mxu0 0
  %1345 = vmatpush1.bf16.msra.mxu0 0
  %1346 = vmatprep.subr.bf16.mxu0 0
  %1347 = vmatpush1.bf16.msra.mxu0 0
  %1348 = vmatprep.mubr.bf16.mxu0 0
  %1349 = vmatmul.mubr.bf16.gmra.mrb[0].mxu0 %v1251
  %v1350 = vpop.f32.mrb[0].mxu0
  %v1351 = vadd.f32 0.0, %v1350
  %v1352 = vpop.f32.mrb[0].mxu0
  %v1353 = vpop.f32.mrb[0].mxu0
  %v1354 = vpop.f32.mrb[0].mxu0
  %1355 = vdwg.mxu0
  %v1356 = vadd.f32 %v1249, %v1351
  %v1357 = vmul.f32 %v713, %v716
  %v1358 = vpack.c.bf16 %v1357, %v1357
  %v1359 = vld [vmem:[%s4 + $0x180] sm:$0xf]
  %v1360 = vld [vmem:[%s4 + $0x184] sm:$0xf]
  %v1361 = vld [vmem:[%s4 + $0x188] sm:$0xf]
  %v1362 = vld [vmem:[%s4 + $0x18c] sm:$0xf]
  %v1363 = vld [vmem:[%s4 + $0x190] sm:$0xf]
  %v1364 = vld [vmem:[%s4 + $0x194] sm:$0xf]
  %v1365 = vld [vmem:[%s4 + $0x198] sm:$0xf]
  %v1366 = vld [vmem:[%s4 + $0x19c] sm:$0xf]
  %v1367 = vld [vmem:[%s4 + $0x1a0] sm:$0xf]
  %v1368 = vld [vmem:[%s4 + $0x1a4] sm:$0xf]
  %v1369 = vld [vmem:[%s4 + $0x1a8] sm:$0xf]
  %v1370 = vld [vmem:[%s4 + $0x1ac] sm:$0xf]
  %v1371 = vld [vmem:[%s4 + $0x1b0] sm:$0xf]
  %v1372 = vld [vmem:[%s4 + $0x1b4] sm:$0xf]
  %v1373 = vld [vmem:[%s4 + $0x1b8] sm:$0xf]
  %v1374 = vld [vmem:[%s4 + $0x1bc] sm:$0xf]
  %v1391 = vunpack.c.l.b16 %v1359
  %v1392 = vunpack.c.l.b16 %v1360
  %v1393 = vunpack.c.l.b16 %v1361
  %v1394 = vunpack.c.l.b16 %v1362
  %v1395 = vunpack.c.l.b16 %v1363
  %v1396 = vunpack.c.l.b16 %v1364
  %v1397 = vunpack.c.l.b16 %v1365
  %v1398 = vunpack.c.l.b16 %v1366
  %v1399 = vunpack.c.l.b16 %v1367
  %v1400 = vunpack.c.l.b16 %v1368
  %v1401 = vunpack.c.l.b16 %v1369
  %v1402 = vunpack.c.l.b16 %v1370
  %v1403 = vunpack.c.l.b16 %v1371
  %v1404 = vunpack.c.l.b16 %v1372
  %v1405 = vunpack.c.l.b16 %v1373
  %v1406 = vunpack.c.l.b16 %v1374
  %v1407 = vpack.c.b16 %v1392, %v1391
  %v1408 = vpack.c.b16 %v1394, %v1393
  %v1409 = vpack.c.b16 %v1396, %v1395
  %v1410 = vpack.c.b16 %v1398, %v1397
  %v1411 = vpack.c.b16 %v1400, %v1399
  %v1412 = vpack.c.b16 %v1402, %v1401
  %v1413 = vpack.c.b16 %v1404, %v1403
  %v1414 = vpack.c.b16 %v1406, %v1405
  %1423 = vmatprep.subr.bf16.mxu0 0
  %1424 = vmatpush1.bf16.msra.mxu0 %v1407
  %1425 = vmatprep.subr.bf16.mxu0 0
  %1426 = vmatpush1.bf16.msra.mxu0 %v1408
  %1427 = vmatprep.subr.bf16.mxu0 0
  %1428 = vmatpush1.bf16.msra.mxu0 %v1409
  %1429 = vmatprep.subr.bf16.mxu0 0
  %1430 = vmatpush1.bf16.msra.mxu0 %v1410
  %1431 = vmatprep.subr.bf16.mxu0 0
  %1432 = vmatpush1.bf16.msra.mxu0 %v1411
  %1433 = vmatprep.subr.bf16.mxu0 0
  %1434 = vmatpush1.bf16.msra.mxu0 %v1412
  %1435 = vmatprep.subr.bf16.mxu0 0
  %1436 = vmatpush1.bf16.msra.mxu0 %v1413
  %1437 = vmatprep.subr.bf16.mxu0 0
  %1438 = vmatpush1.bf16.msra.mxu0 %v1414
  %1439 = vmatprep.subr.bf16.mxu0 0
  %1440 = vmatpush1.bf16.msra.mxu0 0
  %1441 = vmatprep.subr.bf16.mxu0 0
  %1442 = vmatpush1.bf16.msra.mxu0 0
  %1443 = vmatprep.subr.bf16.mxu0 0
  %1444 = vmatpush1.bf16.msra.mxu0 0
  %1445 = vmatprep.subr.bf16.mxu0 0
  %1446 = vmatpush1.bf16.msra.mxu0 0
  %1447 = vmatprep.subr.bf16.mxu0 0
  %1448 = vmatpush1.bf16.msra.mxu0 0
  %1449 = vmatprep.subr.bf16.mxu0 0
  %1450 = vmatpush1.bf16.msra.mxu0 0
  %1451 = vmatprep.subr.bf16.mxu0 0
  %1452 = vmatpush1.bf16.msra.mxu0 0
  %1453 = vmatprep.subr.bf16.mxu0 0
  %1454 = vmatpush1.bf16.msra.mxu0 0
  %1455 = vmatprep.mubr.bf16.mxu0 0
  %1456 = vmatmul.mubr.bf16.gmra.mrb[0].mxu0 %v1358
  %v1457 = vpop.f32.mrb[0].mxu0
  %v1458 = vadd.f32 0.0, %v1457
  %v1459 = vpop.f32.mrb[0].mxu0
  %v1460 = vpop.f32.mrb[0].mxu0
  %v1461 = vpop.f32.mrb[0].mxu0
  %1462 = vdwg.mxu0
  %v1463 = vadd.f32 %v1356, %v1458
  %v1464 = vmul.f32 %v714, %v716
  %v1465 = vpack.c.bf16 %v1464, %v1464
  %v1466 = vld [vmem:[%s4 + $0x1c0] sm:$0xf]
  %v1467 = vld [vmem:[%s4 + $0x1c4] sm:$0xf]
  %v1468 = vld [vmem:[%s4 + $0x1c8] sm:$0xf]
  %v1469 = vld [vmem:[%s4 + $0x1cc] sm:$0xf]
  %v1470 = vld [vmem:[%s4 + $0x1d0] sm:$0xf]
  %v1471 = vld [vmem:[%s4 + $0x1d4] sm:$0xf]
  %v1472 = vld [vmem:[%s4 + $0x1d8] sm:$0xf]
  %v1473 = vld [vmem:[%s4 + $0x1dc] sm:$0xf]
  %v1474 = vld [vmem:[%s4 + $0x1e0] sm:$0xf]
  %v1475 = vld [vmem:[%s4 + $0x1e4] sm:$0xf]
  %v1476 = vld [vmem:[%s4 + $0x1e8] sm:$0xf]
  %v1477 = vld [vmem:[%s4 + $0x1ec] sm:$0xf]
  %v1478 = vld [vmem:[%s4 + $0x1f0] sm:$0xf]
  %v1479 = vld [vmem:[%s4 + $0x1f4] sm:$0xf]
  %v1480 = vld [vmem:[%s4 + $0x1f8] sm:$0xf]
  %v1481 = vld [vmem:[%s4 + $0x1fc] sm:$0xf]
  %v1498 = vunpack.c.l.b16 %v1466
  %v1499 = vunpack.c.l.b16 %v1467
  %v1500 = vunpack.c.l.b16 %v1468
  %v1501 = vunpack.c.l.b16 %v1469
  %v1502 = vunpack.c.l.b16 %v1470
  %v1503 = vunpack.c.l.b16 %v1471
  %v1504 = vunpack.c.l.b16 %v1472
  %v1505 = vunpack.c.l.b16 %v1473
  %v1506 = vunpack.c.l.b16 %v1474
  %v1507 = vunpack.c.l.b16 %v1475
  %v1508 = vunpack.c.l.b16 %v1476
  %v1509 = vunpack.c.l.b16 %v1477
  %v1510 = vunpack.c.l.b16 %v1478
  %v1511 = vunpack.c.l.b16 %v1479
  %v1512 = vunpack.c.l.b16 %v1480
  %v1513 = vunpack.c.l.b16 %v1481
  %v1514 = vpack.c.b16 %v1499, %v1498
  %v1515 = vpack.c.b16 %v1501, %v1500
  %v1516 = vpack.c.b16 %v1503, %v1502
  %v1517 = vpack.c.b16 %v1505, %v1504
  %v1518 = vpack.c.b16 %v1507, %v1506
  %v1519 = vpack.c.b16 %v1509, %v1508
  %v1520 = vpack.c.b16 %v1511, %v1510
  %v1521 = vpack.c.b16 %v1513, %v1512
  %1530 = vmatprep.subr.bf16.mxu0 0
  %1531 = vmatpush1.bf16.msra.mxu0 %v1514
  %1532 = vmatprep.subr.bf16.mxu0 0
  %1533 = vmatpush1.bf16.msra.mxu0 %v1515
  %1534 = vmatprep.subr.bf16.mxu0 0
  %1535 = vmatpush1.bf16.msra.mxu0 %v1516
  %1536 = vmatprep.subr.bf16.mxu0 0
  %1537 = vmatpush1.bf16.msra.mxu0 %v1517
  %1538 = vmatprep.subr.bf16.mxu0 0
  %1539 = vmatpush1.bf16.msra.mxu0 %v1518
  %1540 = vmatprep.subr.bf16.mxu0 0
  %1541 = vmatpush1.bf16.msra.mxu0 %v1519
  %1542 = vmatprep.subr.bf16.mxu0 0
  %1543 = vmatpush1.bf16.msra.mxu0 %v1520
  %1544 = vmatprep.subr.bf16.mxu0 0
  %1545 = vmatpush1.bf16.msra.mxu0 %v1521
  %1546 = vmatprep.subr.bf16.mxu0 0
  %1547 = vmatpush1.bf16.msra.mxu0 0
  %1548 = vmatprep.subr.bf16.mxu0 0
  %1549 = vmatpush1.bf16.msra.mxu0 0
  %1550 = vmatprep.subr.bf16.mxu0 0
  %1551 = vmatpush1.bf16.msra.mxu0 0
  %1552 = vmatprep.subr.bf16.mxu0 0
  %1553 = vmatpush1.bf16.msra.mxu0 0
  %1554 = vmatprep.subr.bf16.mxu0 0
  %1555 = vmatpush1.bf16.msra.mxu0 0
  %1556 = vmatprep.subr.bf16.mxu0 0
  %1557 = vmatpush1.bf16.msra.mxu0 0
  %1558 = vmatprep.subr.bf16.mxu0 0
  %1559 = vmatpush1.bf16.msra.mxu0 0
  %1560 = vmatprep.subr.bf16.mxu0 0
  %1561 = vmatpush1.bf16.msra.mxu0 0
  %1562 = vmatprep.mubr.bf16.mxu0 0
  %1563 = vmatmul.mubr.bf16.gmra.mrb[0].mxu0 %v1465
  %v1564 = vpop.f32.mrb[0].mxu0
  %v1565 = vadd.f32 0.0, %v1564
  %v1566 = vpop.f32.mrb[0].mxu0
  %v1567 = vpop.f32.mrb[0].mxu0
  %v1568 = vpop.f32.mrb[0].mxu0
  %1569 = vdwg.mxu0
  %v1570 = vadd.f32 %v1463, %v1565
  %v1571 = vmul.f32 %v715, %v716
  %v1572 = vpack.c.bf16 %v1571, %v1571
  %v1573 = vld [vmem:[%s4 + $0x200] sm:$0xf]
  %v1574 = vld [vmem:[%s4 + $0x204] sm:$0xf]
  %v1575 = vld [vmem:[%s4 + $0x208] sm:$0xf]
  %v1576 = vld [vmem:[%s4 + $0x20c] sm:$0xf]
  %v1577 = vld [vmem:[%s4 + $0x210] sm:$0xf]
  %v1578 = vld [vmem:[%s4 + $0x214] sm:$0xf]
  %v1579 = vld [vmem:[%s4 + $0x218] sm:$0xf]
  %v1580 = vld [vmem:[%s4 + $0x21c] sm:$0xf]
  %v1581 = vld [vmem:[%s4 + $0x220] sm:$0xf]
  %v1582 = vld [vmem:[%s4 + $0x224] sm:$0xf]
  %v1583 = vld [vmem:[%s4 + $0x228] sm:$0xf]
  %v1584 = vld [vmem:[%s4 + $0x22c] sm:$0xf]
  %v1585 = vld [vmem:[%s4 + $0x230] sm:$0xf]
  %v1586 = vld [vmem:[%s4 + $0x234] sm:$0xf]
  %v1587 = vld [vmem:[%s4 + $0x238] sm:$0xf]
  %v1588 = vld [vmem:[%s4 + $0x23c] sm:$0xf]
  %v1605 = vunpack.c.l.b16 %v1573
  %v1606 = vunpack.c.l.b16 %v1574
  %v1607 = vunpack.c.l.b16 %v1575
  %v1608 = vunpack.c.l.b16 %v1576
  %v1609 = vunpack.c.l.b16 %v1577
  %v1610 = vunpack.c.l.b16 %v1578
  %v1611 = vunpack.c.l.b16 %v1579
  %v1612 = vunpack.c.l.b16 %v1580
  %v1613 = vunpack.c.l.b16 %v1581
  %v1614 = vunpack.c.l.b16 %v1582
  %v1615 = vunpack.c.l.b16 %v1583
  %v1616 = vunpack.c.l.b16 %v1584
  %v1617 = vunpack.c.l.b16 %v1585
  %v1618 = vunpack.c.l.b16 %v1586
  %v1619 = vunpack.c.l.b16 %v1587
  %v1620 = vunpack.c.l.b16 %v1588
  %v1621 = vpack.c.b16 %v1606, %v1605
  %v1622 = vpack.c.b16 %v1608, %v1607
  %v1623 = vpack.c.b16 %v1610, %v1609
  %v1624 = vpack.c.b16 %v1612, %v1611
  %v1625 = vpack.c.b16 %v1614, %v1613
  %v1626 = vpack.c.b16 %v1616, %v1615
  %v1627 = vpack.c.b16 %v1618, %v1617
  %v1628 = vpack.c.b16 %v1620, %v1619
  %1637 = vmatprep.subr.bf16.mxu0 0
  %1638 = vmatpush1.bf16.msra.mxu0 %v1621
  %1639 = vmatprep.subr.bf16.mxu0 0
  %1640 = vmatpush1.bf16.msra.mxu0 %v1622
  %1641 = vmatprep.subr.bf16.mxu0 0
  %1642 = vmatpush1.bf16.msra.mxu0 %v1623
  %1643 = vmatprep.subr.bf16.mxu0 0
  %1644 = vmatpush1.bf16.msra.mxu0 %v1624
  %1645 = vmatprep.subr.bf16.mxu0 0
  %1646 = vmatpush1.bf16.msra.mxu0 %v1625
  %1647 = vmatprep.subr.bf16.mxu0 0
  %1648 = vmatpush1.bf16.msra.mxu0 %v1626
  %1649 = vmatprep.subr.bf16.mxu0 0
  %1650 = vmatpush1.bf16.msra.mxu0 %v1627
  %1651 = vmatprep.subr.bf16.mxu0 0
  %1652 = vmatpush1.bf16.msra.mxu0 %v1628
  %1653 = vmatprep.subr.bf16.mxu0 0
  %1654 = vmatpush1.bf16.msra.mxu0 0
  %1655 = vmatprep.subr.bf16.mxu0 0
  %1656 = vmatpush1.bf16.msra.mxu0 0
  %1657 = vmatprep.subr.bf16.mxu0 0
  %1658 = vmatpush1.bf16.msra.mxu0 0
  %1659 = vmatprep.subr.bf16.mxu0 0
  %1660 = vmatpush1.bf16.msra.mxu0 0
  %1661 = vmatprep.subr.bf16.mxu0 0
  %1662 = vmatpush1.bf16.msra.mxu0 0
  %1663 = vmatprep.subr.bf16.mxu0 0
  %1664 = vmatpush1.bf16.msra.mxu0 0
  %1665 = vmatprep.subr.bf16.mxu0 0
  %1666 = vmatpush1.bf16.msra.mxu0 0
  %1667 = vmatprep.subr.bf16.mxu0 0
  %1668 = vmatpush1.bf16.msra.mxu0 0
  %1669 = vmatprep.mubr.bf16.mxu0 0
  %1670 = vmatmul.mubr.bf16.gmra.mrb[0].mxu0 %v1572
  %v1671 = vpop.f32.mrb[0].mxu0
  %v1672 = vadd.f32 0.0, %v1671
  %v1673 = vpop.f32.mrb[0].mxu0
  %v1674 = vpop.f32.mrb[0].mxu0
  %v1675 = vpop.f32.mrb[0].mxu0
  %1676 = vdwg.mxu0
  %v1677 = vadd.f32 %v1570, %v1672
  %v1678 = vld [vmem:[%s5] sm:$0x1]
  %v1680 = vlaneseq
  %v1681 = vshrl.u32 %v1680, 7
  %v1682 = vsub.s32 0, %v1681
  %v1683 = vrot.slane %v1678, %v1682
  %v1685 = vadd.f32 %v1677, %v1683
  %1686 = vst [vmem:[%s6] sm:$0xff] %v1685
  // Predicated region
  $region26: #{cnn_forward.5} parent=0 // pred_check
    _
  $region27: #{cnn_forward.5} parent=0 // pred_check_branch
    %1688 = sbr.rel (0) target = $region29
  $region28: #{cnn_forward.5} parent=0 // pred_region
    _
  $region29: #{cnn_forward.5} parent=0 // pred_fallthru
    _
  // Predicated region
  $region30: #{cnn_forward.5} parent=0 // pred_check
    _
  $region31: #{cnn_forward.5} parent=0 // pred_check_branch
    %1690 = sbr.rel (0) target = $region33
  $region32: #{cnn_forward.5} parent=0 // pred_region
    _
  $region33: #{cnn_forward.5} parent=0 // pred_fallthru
    _

</llo_original>
